<compile_context>
chip_gen: v7x
topology: tpu7x:2x2x1
jax: 0.10.0
libtpu: 0.0.40
codegen_flags: <defaults>
</compile_context>

<pallas_src>
import jax
import jax.numpy as jnp
from jax.experimental import pallas as pl
from jax.experimental.pallas import tpu as pltpu

KERNEL_SIZES = (1, 2, 3, 5, 10)            # feature_kernel keys
N_FILTER = 64                              # feature_kernel values
NUM_EXPERT = 6
OUT_FEAT = len(KERNEL_SIZES) * N_FILTER    # 320
CONV_CH = NUM_EXPERT * N_FILTER            # 384 (experts stacked on output channels)
DOMAIN_NUM = 10
K_PAD = 16                                 # >= max(KERNEL_SIZES) - 1, sublane-friendly
VEC_W = CONV_CH                            # packed f32 vector width (384, lane-multiple)

# packed f32 vector rows
_R_ATTW, _R_GB1, _R_GB2, _R_CB1, _R_BNS, _R_BNH, _R_CW2, _R_SCAL, _R_CONVB = \
    0, 1, 2, 3, 4, 5, 6, 7, 8
VEC_ROWS = _R_CONVB + len(KERNEL_SIZES)    # 13


# ----------------------------------------------------------------------------
# Single fused kernel (one batch block per grid step):
# MaskAttention -> gate MLP + softmax -> 6-expert Conv1d banks (shared im2col
# slab) + max-pool + gated mix folded into classifier Linear-1 -> BN(eval) +
# ReLU + Linear(H->1) + sigmoid.
# ----------------------------------------------------------------------------
def _mdfend_fused_kernel(x_ref, m_ref, dom_ref, vec_ref,
                         gw1_ref, gw2_ref, convw_ref, esel_ref, w1x_ref,
                         out_ref):
    xb = x_ref[...]                          # (Bb, Sp, E) bf16 (seq pre-padded by K_PAD)
    mask = m_ref[...]                        # (Bb, Sp) f32 (padded region masked 0)
    Bb, Sp, E = xb.shape
    S = Sp - K_PAD                           # real sequence length
    H = gw1_ref.shape[1]
    neg = jnp.float32(-1e30)                 # finite "-inf": all-masked rows stay NaN-free

    xf = xb.astype(jnp.float32)              # f32 copy for the attention path only

    # ---- MaskAttention: Linear(E->1) as a VPU lane-reduce, masked softmax over Sp ----
    att_w = vec_ref[_R_ATTW:_R_ATTW + 1, 0:E].reshape(1, 1, E)
    att_b = vec_ref[_R_SCAL:_R_SCAL + 1, 0:1]                        # (1, 1)
    scores = jnp.sum(xf * att_w, axis=-1) + att_b                    # (Bb, Sp)
    scores = jnp.where(mask > 0.0, scores, neg)
    mx = jnp.max(scores, axis=-1, keepdims=True)
    ex = jnp.exp(scores - mx)
    alpha = ex * pl.reciprocal(jnp.sum(ex, axis=-1, keepdims=True), approx=True)
    feat = jnp.sum(alpha[:, :, None] * xf, axis=1)                   # (Bb, E) f32

    # ---- gate: Linear(2E->H) split into (domain, feature) halves, ReLU,
    #      Linear(H->num_expert), softmax.  bf16 matmuls, f32 accumulation. ----
    h = (jnp.dot(dom_ref[...], gw1_ref[0:E, :], preferred_element_type=jnp.float32)
         + jnp.dot(feat.astype(jnp.bfloat16), gw1_ref[E:2 * E, :],
                   preferred_element_type=jnp.float32)
         + vec_ref[_R_GB1:_R_GB1 + 1, 0:H])
    h = jnp.maximum(h, 0.0)
    logits = (jnp.dot(h.astype(jnp.bfloat16), gw2_ref[...],
                      preferred_element_type=jnp.float32)
              + vec_ref[_R_GB2:_R_GB2 + 1, 0:NUM_EXPERT])
    lm = jnp.max(logits, axis=-1, keepdims=True)
    le = jnp.exp(logits - lm)
    gate = le * pl.reciprocal(jnp.sum(le, axis=-1, keepdims=True), approx=True)   # (Bb, 6)
    # broadcast gate over the 6*64 stacked expert channels via a tiny bf16 matmul
    gate_bc = jnp.dot(gate.astype(jnp.bfloat16), esel_ref[...],
                      preferred_element_type=jnp.float32)            # (Bb, 384)

    # ---- shared im2col slab, built ONCE for k_max=10.  Taps are tau-major on the
    #      lane axis, so kernel size k uses the lane-prefix slab[:, :k*E].  Tap
    #      slices are in-bounds (sequence pre-padded by K_PAD >= k_max-1). ----
    k_max = KERNEL_SIZES[-1]
    slab = jnp.concatenate([xb[:, tau:tau + S, :] for tau in range(k_max)],
                           axis=-1)                                  # (Bb, S, 10*E) bf16
    slab = slab.reshape(Bb * S, k_max * E)                           # clean collapse (S % 16 == 0)
    t_idx = jax.lax.broadcasted_iota(jnp.int32, (Bb, S, 1), 1)

    # ---- per-k: conv matmul, masked max-pool over time, bias, gate, and the expert
    #      sum + classifier Linear-1 folded into one bf16 matmul with W1exp. ----
    h1 = jnp.zeros((Bb, H), jnp.float32)
    off = 0
    for j, k in enumerate(KERNEL_SIZES):
        L = S - k + 1
        z = jnp.dot(slab[:, :k * E], convw_ref[off:off + k * E, :],
                    preferred_element_type=jnp.float32)              # (Bb*S, 384)
        z = z.reshape(Bb, S, CONV_CH)
        z = jnp.where(t_idx < L, z, neg)                  # drop windows past the real sequence
        pooled = jnp.max(z, axis=1) + vec_ref[_R_CONVB + j:_R_CONVB + j + 1, :]   # (Bb, 384)
        weighted = (pooled * gate_bc).astype(jnp.bfloat16)           # gate each expert block
        h1 = h1 + jnp.dot(weighted, w1x_ref[j * CONV_CH:(j + 1) * CONV_CH, :],
                          preferred_element_type=jnp.float32)        # folded mix + Linear-1
        off += k * E

    # ---- classifier MLP(320 -> H -> 1): bias, BN(eval) scale/shift, ReLU
    #      (Dropout = identity), Linear(H->1) as a lane-reduce, sigmoid. ----
    h1 = h1 + vec_ref[_R_CB1:_R_CB1 + 1, 0:H]
    h1 = h1 * vec_ref[_R_BNS:_R_BNS + 1, 0:H] + vec_ref[_R_BNH:_R_BNH + 1, 0:H]
    h1 = jnp.maximum(h1, 0.0)
    logit = (jnp.sum(h1 * vec_ref[_R_CW2:_R_CW2 + 1, 0:H], axis=-1, keepdims=True)
             + vec_ref[_R_SCAL:_R_SCAL + 1, 1:2])                    # (Bb, 1)
    p = pl.reciprocal(1.0 + jnp.exp(-logit), approx=True)            # sigmoid via EUP recip
    # TODO(synk): for production batch sizes, emit a lane-dense output instead of (B,1).
    out_ref[...] = jnp.minimum(p, 1.0)


# ----------------------------------------------------------------------------
# Parameters (deterministic, synthetic).  Matmul weights pre-cast to bf16, the
# expert-sum fold and gate-broadcast selection baked in, small f32 vectors packed.
# ----------------------------------------------------------------------------
def init_params(key, emb_dim, hidden):
    E, H = emb_dim, hidden
    keys = iter(jax.random.split(key, 16))
    nrm = lambda k, shape, s=0.1: jax.random.normal(k, shape, jnp.float32) * s
    p = {}

    p["domain_table"] = nrm(next(keys), (DOMAIN_NUM, E), 1.0)

    # gate Linear(2E, H) (domain half first, matching torch.cat order), Linear(H, 6)
    p["gate_w1"] = nrm(next(keys), (2 * E, H)).astype(jnp.bfloat16)
    p["gate_w2"] = nrm(next(keys), (H, NUM_EXPERT)).astype(jnp.bfloat16)

    # Conv1d banks in im2col layout: for kernel size k, rows [off_k, off_k + k*E)
    # hold W_k with W_k[tau*E + e, n*64 + c] (experts n stacked on output channels,
    # taps tau-major so the shared slab's lane prefix matches).
    conv_blocks = [nrm(next(keys), (k * E, CONV_CH)) for k in KERNEL_SIZES]
    p["conv_w"] = jnp.concatenate(conv_blocks, axis=0).astype(jnp.bfloat16)   # (672, 384)
    conv_b = jnp.zeros((len(KERNEL_SIZES), CONV_CH), jnp.float32)

    # gate-broadcast 0/1 selection (6, 384), bf16 (review item 2)
    p["e_sel"] = jnp.repeat(jnp.eye(NUM_EXPERT, dtype=jnp.float32),
                            N_FILTER, axis=1).astype(jnp.bfloat16)

    # classifier MLP(320, [H], dropout): Linear, BN(eval), ReLU, Dropout, Linear(->1)
    cls_w1 = nrm(next(keys), (OUT_FEAT, H))
    cls_b1 = jnp.zeros((H,), jnp.float32)
    gamma = jnp.ones((H,), jnp.float32)        # torch BatchNorm1d defaults (eval)
    beta = jnp.zeros((H,), jnp.float32)
    run_mean = jnp.zeros((H,), jnp.float32)
    run_var = jnp.ones((H,), jnp.float32)
    scale = gamma / jnp.sqrt(run_var + 1e-5)
    shift = beta - run_mean * scale
    cls_w2 = nrm(next(keys), (H,))
    cls_b2 = jnp.zeros((), jnp.float32)
    att_w = nrm(next(keys), (E,))
    att_b = jnp.zeros((), jnp.float32)

    # Fold the expert-sum selection into the classifier Linear-1: block j of W1exp
    # replicates cls_w1 rows [j*64,(j+1)*64) across the 6 experts -> (5*384, H) bf16.
    p["w1exp"] = jnp.concatenate(
        [jnp.tile(cls_w1[j * N_FILTER:(j + 1) * N_FILTER, :], (NUM_EXPERT, 1))
         for j in range(len(KERNEL_SIZES))], axis=0).astype(jnp.bfloat16)     # (1920, H)

    # Pack every small f32 vector into one (13, 384) array -> one DMA instead of ~12.
    vec = jnp.zeros((VEC_ROWS, VEC_W), jnp.float32)
    vec = vec.at[_R_ATTW, :E].set(att_w)
    vec = vec.at[_R_GB1, :H].set(jnp.zeros((H,), jnp.float32))        # gate_b1
    vec = vec.at[_R_GB2, :NUM_EXPERT].set(jnp.zeros((NUM_EXPERT,), jnp.float32))
    vec = vec.at[_R_CB1, :H].set(cls_b1)
    vec = vec.at[_R_BNS, :H].set(scale)
    vec = vec.at[_R_BNH, :H].set(shift)
    vec = vec.at[_R_CW2, :H].set(cls_w2)
    vec = vec.at[_R_SCAL, 0].set(att_b)
    vec = vec.at[_R_SCAL, 1].set(cls_b2)
    vec = vec.at[_R_CONVB:_R_CONVB + len(KERNEL_SIZES), :CONV_CH].set(conv_b)
    p["vec"] = vec
    return p


# ----------------------------------------------------------------------------
# Forward (emb_type='w2v', type_fusion=0).  img / metadata accepted to mirror
# the torch signature but unused on this configuration.
# ----------------------------------------------------------------------------
def mdfend_forward(params, content, content_masks, category, img=None, metadata=None,
                   batch_block=8):
    B, S, E = content.shape
    assert S >= max(KERNEL_SIZES), "sequence must cover the largest conv kernel"
    assert S % 16 == 0, "S must be a multiple of 16 for the bf16 im2col collapse"
    Bb = min(batch_block, B)
    assert B % Bb == 0 and (Bb % 8 == 0 or Bb == B), "batch block must tile the batch"
    Sp = S + K_PAD

    # glue: bf16 cast, sequence pre-pad (no in-kernel zero concat), domain gather
    content_p = jnp.pad(content.astype(jnp.bfloat16),
                        ((0, 0), (0, K_PAD), (0, 0)))                 # (B, Sp, E) bf16
    masks_p = jnp.pad(content_masks.astype(jnp.float32),
                      ((0, 0), (0, K_PAD)))                           # (B, Sp) f32
    dom = jnp.take(params["domain_table"], category, axis=0).astype(jnp.bfloat16)  # (B, E)

    grid = (B // Bb,)
    pred = pl.pallas_call(
        _mdfend_fused_kernel,
        out_shape=jax.ShapeDtypeStruct((B, 1), jnp.float32),
        grid_spec=pltpu.PrefetchScalarGridSpec(
            num_scalar_prefetch=0,
            grid=grid,
            in_specs=[
                pl.BlockSpec((Bb, Sp, E), lambda i: (i, 0, 0)),        # content (batch-blocked)
                pl.BlockSpec((Bb, Sp), lambda i: (i, 0)),              # masks
                pl.BlockSpec((Bb, E), lambda i: (i, 0)),               # domain embedding
                pl.BlockSpec(params["vec"].shape, lambda i: (0, 0)),   # packed f32 vectors
                pl.BlockSpec(params["gate_w1"].shape, lambda i: (0, 0)),
                pl.BlockSpec(params["gate_w2"].shape, lambda i: (0, 0)),
                pl.BlockSpec(params["conv_w"].shape, lambda i: (0, 0)),
                pl.BlockSpec(params["e_sel"].shape, lambda i: (0, 0)),
                pl.BlockSpec(params["w1exp"].shape, lambda i: (0, 0)),
            ],
            out_specs=pl.BlockSpec((Bb, 1), lambda i: (i, 0)),
        ),
        compiler_params=pltpu.CompilerParams(
            dimension_semantics=("parallel",),        # both v7x TensorCores when grid > 1
            vmem_limit_bytes=32 * 1024 * 1024),
    )(content_p, masks_p, dom,
      params["vec"], params["gate_w1"], params["gate_w2"],
      params["conv_w"], params["e_sel"], params["w1exp"])

    # TODO(synk): type_fusion 1/2/3 image/metadata fusion branches (resize_img*,
    # resize_meta, norm_text) and the bert embedding path are not exercised here.
    return pred[:, 0]    # torch: sigmoid(label_pred.squeeze(1)) -> (B,)


if __name__ == "__main__":
    B, S, E, H = 16, 16, 32, 32          # batch, seq, emb_dim, mlp_dims[-1]
    root = jax.random.PRNGKey(0)
    k_par, k_x, k_cat = jax.random.split(root, 3)

    params = init_params(k_par, E, H)

    content = jax.random.normal(k_x, (B, S, E), jnp.float32)          # w2v embeddings
    content_masks = jnp.ones((B, S), jnp.float32)
    content_masks = content_masks.at[0, 12:].set(0.0)                 # some padding
    content_masks = content_masks.at[2, 14:].set(0.0)
    content_masks = content_masks.at[5, 11:].set(0.0)
    category = jax.random.randint(k_cat, (B,), 0, DOMAIN_NUM)
    img = jnp.zeros((B, 4096), jnp.float32)                           # unused (type_fusion=0)
    metadata = jnp.zeros((B, 17), jnp.float32)                        # unused (type_fusion=0)

    out = mdfend_forward(params, content, content_masks, category, img, metadata,
                         batch_block=8)                               # grid=(2,), parallel
    out = jax.block_until_ready(out)
    assert out.shape == (B,)
    assert bool(jnp.all(jnp.isfinite(out)))
    assert bool(jnp.all((out >= 0.0) & (out <= 1.0)))
    print("KERNEL_OK")
</pallas_src>

<mosaic_0001>
module attributes {stable_mosaic.version = 11 : i64} {
  func.func @_mdfend_fused_kernel(%arg0: i32, %arg1: memref<8x32x32xbf16, #tpu.memory_space<vmem>>, %arg2: memref<8x32xf32, #tpu.memory_space<vmem>>, %arg3: memref<8x32xbf16, #tpu.memory_space<vmem>>, %arg4: memref<13x384xf32, #tpu.memory_space<vmem>>, %arg5: memref<64x32xbf16, #tpu.memory_space<vmem>>, %arg6: memref<32x6xbf16, #tpu.memory_space<vmem>>, %arg7: memref<672x384xbf16, #tpu.memory_space<vmem>>, %arg8: memref<6x384xbf16, #tpu.memory_space<vmem>>, %arg9: memref<1920x32xbf16, #tpu.memory_space<vmem>>, %arg10: memref<8x1xf32, #tpu.memory_space<vmem>>) attributes {dimension_semantics = [#tpu.dimension_semantics<parallel>], iteration_bounds = array<i64: 2>, scalar_prefetch = 0 : i64, scratch_operands = 0 : i64, tpu.core_type = #tpu.core_type<tc>, window_params = [{transform_indices = @transform_0, window_bounds = array<i64: 8, 32, 32>}, {transform_indices = @transform_1, window_bounds = array<i64: 8, 32>}, {transform_indices = @transform_2, window_bounds = array<i64: 8, 32>}, {pipeline_mode = #tpu.pipeline_mode<synchronous>, transform_indices = @transform_3, window_bounds = array<i64: 13, 384>}, {pipeline_mode = #tpu.pipeline_mode<synchronous>, transform_indices = @transform_4, window_bounds = array<i64: 64, 32>}, {pipeline_mode = #tpu.pipeline_mode<synchronous>, transform_indices = @transform_5, window_bounds = array<i64: 32, 6>}, {pipeline_mode = #tpu.pipeline_mode<synchronous>, transform_indices = @transform_6, window_bounds = array<i64: 672, 384>}, {pipeline_mode = #tpu.pipeline_mode<synchronous>, transform_indices = @transform_7, window_bounds = array<i64: 6, 384>}, {pipeline_mode = #tpu.pipeline_mode<synchronous>, transform_indices = @transform_8, window_bounds = array<i64: 1920, 32>}, {transform_indices = @transform_9, window_bounds = array<i64: 8, 1>}]} {
    %c0 = arith.constant 0 : index
    %c0_0 = arith.constant 0 : index
    %c0_1 = arith.constant 0 : index
    %0 = vector.load %arg1[%c0, %c0_0, %c0_1] : memref<8x32x32xbf16, #tpu.memory_space<vmem>>, vector<8x32x32xbf16>
    %c0_2 = arith.constant 0 : index
    %c0_3 = arith.constant 0 : index
    %1 = vector.load %arg2[%c0_2, %c0_3] : memref<8x32xf32, #tpu.memory_space<vmem>>, vector<8x32xf32>
    %2 = arith.extf %0 : vector<8x32x32xbf16> to vector<8x32x32xf32>
    %c0_4 = arith.constant 0 : index
    %c0_5 = arith.constant 0 : index
    %3 = vector.load %arg4[%c0_4, %c0_5] : memref<13x384xf32, #tpu.memory_space<vmem>>, vector<1x32xf32>
    %4 = vector.shape_cast %3 : vector<1x32xf32> to vector<1x1x32xf32>
    %c7 = arith.constant 7 : index
    %c0_6 = arith.constant 0 : index
    %5 = vector.load %arg4[%c7, %c0_6] : memref<13x384xf32, #tpu.memory_space<vmem>>, vector<1x1xf32>
    %6 = vector.broadcast %4 : vector<1x1x32xf32> to vector<8x32x32xf32>
    %7 = arith.mulf %2, %6 : vector<8x32x32xf32>
    %cst = arith.constant dense<0.000000e+00> : vector<8x32xf32>
    %8 = vector.multi_reduction <add>, %7, %cst [2] : vector<8x32x32xf32> to vector<8x32xf32>
    %9 = vector.broadcast %5 : vector<1x1xf32> to vector<8x32xf32>
    %10 = arith.addf %8, %9 : vector<8x32xf32>
    %cst_7 = arith.constant 0.000000e+00 : f32
    %11 = vector.broadcast %cst_7 : f32 to vector<8x32xf32>
    %12 = arith.cmpf ogt, %1, %11 : vector<8x32xf32>
    %cst_8 = arith.constant -1.000000e+30 : f32
    %13 = vector.broadcast %cst_8 : f32 to vector<8x32xf32>
    %14 = arith.select %12, %10, %13 : vector<8x32xi1>, vector<8x32xf32>
    %cst_9 = arith.constant dense<0xFF800000> : vector<8xf32>
    %15 = vector.multi_reduction <maximumf>, %14, %cst_9 [1] : vector<8x32xf32> to vector<8xf32>
    %16 = vector.shape_cast %15 : vector<8xf32> to vector<8x1xf32>
    %17 = vector.broadcast %16 : vector<8x1xf32> to vector<8x32xf32>
    %18 = arith.subf %14, %17 : vector<8x32xf32>
    %19 = math.exp %18 : vector<8x32xf32>
    %cst_10 = arith.constant dense<0.000000e+00> : vector<8xf32>
    %20 = vector.multi_reduction <add>, %19, %cst_10 [1] : vector<8x32xf32> to vector<8xf32>
    %21 = vector.shape_cast %20 : vector<8xf32> to vector<8x1xf32>
    %22 = tpu.reciprocal %21 {approx = true} : vector<8x1xf32> -> vector<8x1xf32>
    %23 = vector.broadcast %22 : vector<8x1xf32> to vector<8x32xf32>
    %24 = arith.mulf %19, %23 : vector<8x32xf32>
    %25 = vector.shape_cast %24 : vector<8x32xf32> to vector<8x32x1xf32>
    %26 = vector.broadcast %25 : vector<8x32x1xf32> to vector<8x32x32xf32>
    %27 = arith.mulf %26, %2 : vector<8x32x32xf32>
    %cst_11 = arith.constant dense<0.000000e+00> : vector<8x32xf32>
    %28 = vector.multi_reduction <add>, %27, %cst_11 [1] : vector<8x32x32xf32> to vector<8x32xf32>
    %c0_12 = arith.constant 0 : index
    %c0_13 = arith.constant 0 : index
    %29 = vector.load %arg3[%c0_12, %c0_13] : memref<8x32xbf16, #tpu.memory_space<vmem>>, vector<8x32xbf16>
    %c0_14 = arith.constant 0 : index
    %c0_15 = arith.constant 0 : index
    %30 = vector.load %arg5[%c0_14, %c0_15] : memref<64x32xbf16, #tpu.memory_space<vmem>>, vector<32x32xbf16>
    %cst_16 = arith.constant dense<0.000000e+00> : vector<8x32xf32>
    %31 = tpu.matmul %29, %30, %cst_16 {dimension_numbers = #tpu.dot_dimension_numbers<[1], [0], [0], [1], [0, 0, 1, 1], [], []>} : vector<8x32xbf16>, vector<32x32xbf16>, vector<8x32xf32> -> vector<8x32xf32>
    %32 = arith.truncf %28 : vector<8x32xf32> to vector<8x32xbf16>
    %c32 = arith.constant 32 : index
    %c0_17 = arith.constant 0 : index
    %33 = vector.load %arg5[%c32, %c0_17] : memref<64x32xbf16, #tpu.memory_space<vmem>>, vector<32x32xbf16>
    %cst_18 = arith.constant dense<0.000000e+00> : vector<8x32xf32>
    %34 = tpu.matmul %32, %33, %cst_18 {dimension_numbers = #tpu.dot_dimension_numbers<[1], [0], [0], [1], [0, 0, 1, 1], [], []>} : vector<8x32xbf16>, vector<32x32xbf16>, vector<8x32xf32> -> vector<8x32xf32>
    %35 = arith.addf %31, %34 : vector<8x32xf32>
    %c1 = arith.constant 1 : index
    %c0_19 = arith.constant 0 : index
    %36 = vector.load %arg4[%c1, %c0_19] : memref<13x384xf32, #tpu.memory_space<vmem>>, vector<1x32xf32>
    %37 = vector.broadcast %36 : vector<1x32xf32> to vector<8x32xf32>
    %38 = arith.addf %35, %37 : vector<8x32xf32>
    %cst_20 = arith.constant 0.000000e+00 : f32
    %39 = vector.broadcast %cst_20 : f32 to vector<8x32xf32>
    %40 = arith.maximumf %38, %39 : vector<8x32xf32>
    %41 = arith.truncf %40 : vector<8x32xf32> to vector<8x32xbf16>
    %c0_21 = arith.constant 0 : index
    %c0_22 = arith.constant 0 : index
    %42 = vector.load %arg6[%c0_21, %c0_22] : memref<32x6xbf16, #tpu.memory_space<vmem>>, vector<32x6xbf16>
    %cst_23 = arith.constant dense<0.000000e+00> : vector<8x6xf32>
    %43 = tpu.matmul %41, %42, %cst_23 {dimension_numbers = #tpu.dot_dimension_numbers<[1], [0], [0], [1], [0, 0, 1, 1], [], []>} : vector<8x32xbf16>, vector<32x6xbf16>, vector<8x6xf32> -> vector<8x6xf32>
    %c2 = arith.constant 2 : index
    %c0_24 = arith.constant 0 : index
    %44 = vector.load %arg4[%c2, %c0_24] : memref<13x384xf32, #tpu.memory_space<vmem>>, vector<1x6xf32>
    %45 = vector.broadcast %44 : vector<1x6xf32> to vector<8x6xf32>
    %46 = arith.addf %43, %45 : vector<8x6xf32>
    %cst_25 = arith.constant dense<0xFF800000> : vector<8xf32>
    %47 = vector.multi_reduction <maximumf>, %46, %cst_25 [1] : vector<8x6xf32> to vector<8xf32>
    %48 = vector.shape_cast %47 : vector<8xf32> to vector<8x1xf32>
    %49 = vector.broadcast %48 : vector<8x1xf32> to vector<8x6xf32>
    %50 = arith.subf %46, %49 : vector<8x6xf32>
    %51 = math.exp %50 : vector<8x6xf32>
    %cst_26 = arith.constant dense<0.000000e+00> : vector<8xf32>
    %52 = vector.multi_reduction <add>, %51, %cst_26 [1] : vector<8x6xf32> to vector<8xf32>
    %53 = vector.shape_cast %52 : vector<8xf32> to vector<8x1xf32>
    %54 = tpu.reciprocal %53 {approx = true} : vector<8x1xf32> -> vector<8x1xf32>
    %55 = vector.broadcast %54 : vector<8x1xf32> to vector<8x6xf32>
    %56 = arith.mulf %51, %55 : vector<8x6xf32>
    %57 = arith.truncf %56 : vector<8x6xf32> to vector<8x6xbf16>
    %c0_27 = arith.constant 0 : index
    %c0_28 = arith.constant 0 : index
    %58 = vector.load %arg8[%c0_27, %c0_28] : memref<6x384xbf16, #tpu.memory_space<vmem>>, vector<6x384xbf16>
    %cst_29 = arith.constant dense<0.000000e+00> : vector<8x384xf32>
    %59 = tpu.matmul %57, %58, %cst_29 {dimension_numbers = #tpu.dot_dimension_numbers<[1], [0], [0], [1], [0, 0, 1, 1], [], []>} : vector<8x6xbf16>, vector<6x384xbf16>, vector<8x384xf32> -> vector<8x384xf32>
    %60 = vector.extract_strided_slice %0 {offsets = [0, 0, 0], sizes = [8, 16, 32], strides = [1, 1, 1]} : vector<8x32x32xbf16> to vector<8x16x32xbf16>
    %61 = vector.extract_strided_slice %0 {offsets = [0, 1, 0], sizes = [8, 16, 32], strides = [1, 1, 1]} : vector<8x32x32xbf16> to vector<8x16x32xbf16>
    %62 = vector.extract_strided_slice %0 {offsets = [0, 2, 0], sizes = [8, 16, 32], strides = [1, 1, 1]} : vector<8x32x32xbf16> to vector<8x16x32xbf16>
    %63 = vector.extract_strided_slice %0 {offsets = [0, 3, 0], sizes = [8, 16, 32], strides = [1, 1, 1]} : vector<8x32x32xbf16> to vector<8x16x32xbf16>
    %64 = vector.extract_strided_slice %0 {offsets = [0, 4, 0], sizes = [8, 16, 32], strides = [1, 1, 1]} : vector<8x32x32xbf16> to vector<8x16x32xbf16>
    %65 = vector.extract_strided_slice %0 {offsets = [0, 5, 0], sizes = [8, 16, 32], strides = [1, 1, 1]} : vector<8x32x32xbf16> to vector<8x16x32xbf16>
    %66 = vector.extract_strided_slice %0 {offsets = [0, 6, 0], sizes = [8, 16, 32], strides = [1, 1, 1]} : vector<8x32x32xbf16> to vector<8x16x32xbf16>
    %67 = vector.extract_strided_slice %0 {offsets = [0, 7, 0], sizes = [8, 16, 32], strides = [1, 1, 1]} : vector<8x32x32xbf16> to vector<8x16x32xbf16>
    %68 = vector.extract_strided_slice %0 {offsets = [0, 8, 0], sizes = [8, 16, 32], strides = [1, 1, 1]} : vector<8x32x32xbf16> to vector<8x16x32xbf16>
    %69 = vector.extract_strided_slice %0 {offsets = [0, 9, 0], sizes = [8, 16, 32], strides = [1, 1, 1]} : vector<8x32x32xbf16> to vector<8x16x32xbf16>
    %70 = tpu.concatenate %60, %61, %62, %63, %64, %65, %66, %67, %68, %69 in 2 : vector<8x16x32xbf16>, vector<8x16x32xbf16>, vector<8x16x32xbf16>, vector<8x16x32xbf16>, vector<8x16x32xbf16>, vector<8x16x32xbf16>, vector<8x16x32xbf16>, vector<8x16x32xbf16>, vector<8x16x32xbf16>, vector<8x16x32xbf16> -> vector<8x16x320xbf16>
    %71 = vector.shape_cast %70 : vector<8x16x320xbf16> to vector<128x320xbf16>
    %72 = tpu.iota {dimensions = array<i32: 1>} : vector<8x16x1xi32>
    %cst_30 = arith.constant 0.000000e+00 : f32
    %73 = vector.broadcast %cst_30 : f32 to vector<8x32xf32>
    %74 = vector.extract_strided_slice %71 {offsets = [0, 0], sizes = [128, 32], strides = [1, 1]} : vector<128x320xbf16> to vector<128x32xbf16>
    %c0_31 = arith.constant 0 : index
    %c0_32 = arith.constant 0 : index
    %75 = vector.load %arg7[%c0_31, %c0_32] : memref<672x384xbf16, #tpu.memory_space<vmem>>, vector<32x384xbf16>
    %cst_33 = arith.constant dense<0.000000e+00> : vector<128x384xf32>
    %76 = tpu.matmul %74, %75, %cst_33 {dimension_numbers = #tpu.dot_dimension_numbers<[1], [0], [0], [1], [0, 0, 1, 1], [], []>} : vector<128x32xbf16>, vector<32x384xbf16>, vector<128x384xf32> -> vector<128x384xf32>
    %77 = vector.shape_cast %76 : vector<128x384xf32> to vector<8x16x384xf32>
    %c16_i32 = arith.constant 16 : i32
    %78 = vector.broadcast %c16_i32 : i32 to vector<8x16x1xi32>
    %79 = arith.cmpi slt, %72, %78 : vector<8x16x1xi32>
    %cst_34 = arith.constant -1.000000e+30 : f32
    %80 = vector.shape_cast %79 : vector<8x16x1xi1> to vector<8x16x1xi1>
    %81 = vector.broadcast %80 : vector<8x16x1xi1> to vector<8x16x384xi1>
    %82 = vector.broadcast %cst_34 : f32 to vector<8x16x384xf32>
    %83 = arith.select %81, %77, %82 : vector<8x16x384xi1>, vector<8x16x384xf32>
    %cst_35 = arith.constant dense<0xFF800000> : vector<8x384xf32>
    %84 = vector.multi_reduction <maximumf>, %83, %cst_35 [1] : vector<8x16x384xf32> to vector<8x384xf32>
    %c8 = arith.constant 8 : index
    %c0_36 = arith.constant 0 : index
    %85 = vector.load %arg4[%c8, %c0_36] : memref<13x384xf32, #tpu.memory_space<vmem>>, vector<1x384xf32>
    %86 = vector.broadcast %85 : vector<1x384xf32> to vector<8x384xf32>
    %87 = arith.addf %84, %86 : vector<8x384xf32>
    %88 = arith.mulf %87, %59 : vector<8x384xf32>
    %89 = arith.truncf %88 : vector<8x384xf32> to vector<8x384xbf16>
    %c0_37 = arith.constant 0 : index
    %c0_38 = arith.constant 0 : index
    %90 = vector.load %arg9[%c0_37, %c0_38] : memref<1920x32xbf16, #tpu.memory_space<vmem>>, vector<384x32xbf16>
    %cst_39 = arith.constant dense<0.000000e+00> : vector<8x32xf32>
    %91 = tpu.matmul %89, %90, %cst_39 {dimension_numbers = #tpu.dot_dimension_numbers<[1], [0], [0], [1], [0, 0, 1, 1], [], []>} : vector<8x384xbf16>, vector<384x32xbf16>, vector<8x32xf32> -> vector<8x32xf32>
    %92 = arith.addf %73, %91 : vector<8x32xf32>
    %93 = vector.extract_strided_slice %71 {offsets = [0, 0], sizes = [128, 64], strides = [1, 1]} : vector<128x320xbf16> to vector<128x64xbf16>
    %c32_40 = arith.constant 32 : index
    %c0_41 = arith.constant 0 : index
    %94 = vector.load %arg7[%c32_40, %c0_41] : memref<672x384xbf16, #tpu.memory_space<vmem>>, vector<64x384xbf16>
    %cst_42 = arith.constant dense<0.000000e+00> : vector<128x384xf32>
    %95 = tpu.matmul %93, %94, %cst_42 {dimension_numbers = #tpu.dot_dimension_numbers<[1], [0], [0], [1], [0, 0, 1, 1], [], []>} : vector<128x64xbf16>, vector<64x384xbf16>, vector<128x384xf32> -> vector<128x384xf32>
    %96 = vector.shape_cast %95 : vector<128x384xf32> to vector<8x16x384xf32>
    %c15_i32 = arith.constant 15 : i32
    %97 = vector.broadcast %c15_i32 : i32 to vector<8x16x1xi32>
    %98 = arith.cmpi slt, %72, %97 : vector<8x16x1xi32>
    %cst_43 = arith.constant -1.000000e+30 : f32
    %99 = vector.shape_cast %98 : vector<8x16x1xi1> to vector<8x16x1xi1>
    %100 = vector.broadcast %99 : vector<8x16x1xi1> to vector<8x16x384xi1>
    %101 = vector.broadcast %cst_43 : f32 to vector<8x16x384xf32>
    %102 = arith.select %100, %96, %101 : vector<8x16x384xi1>, vector<8x16x384xf32>
    %cst_44 = arith.constant dense<0xFF800000> : vector<8x384xf32>
    %103 = vector.multi_reduction <maximumf>, %102, %cst_44 [1] : vector<8x16x384xf32> to vector<8x384xf32>
    %c9 = arith.constant 9 : index
    %c0_45 = arith.constant 0 : index
    %104 = vector.load %arg4[%c9, %c0_45] : memref<13x384xf32, #tpu.memory_space<vmem>>, vector<1x384xf32>
    %105 = vector.broadcast %104 : vector<1x384xf32> to vector<8x384xf32>
    %106 = arith.addf %103, %105 : vector<8x384xf32>
    %107 = arith.mulf %106, %59 : vector<8x384xf32>
    %108 = arith.truncf %107 : vector<8x384xf32> to vector<8x384xbf16>
    %c384 = arith.constant 384 : index
    %c0_46 = arith.constant 0 : index
    %109 = vector.load %arg9[%c384, %c0_46] : memref<1920x32xbf16, #tpu.memory_space<vmem>>, vector<384x32xbf16>
    %cst_47 = arith.constant dense<0.000000e+00> : vector<8x32xf32>
    %110 = tpu.matmul %108, %109, %cst_47 {dimension_numbers = #tpu.dot_dimension_numbers<[1], [0], [0], [1], [0, 0, 1, 1], [], []>} : vector<8x384xbf16>, vector<384x32xbf16>, vector<8x32xf32> -> vector<8x32xf32>
    %111 = arith.addf %92, %110 : vector<8x32xf32>
    %112 = vector.extract_strided_slice %71 {offsets = [0, 0], sizes = [128, 96], strides = [1, 1]} : vector<128x320xbf16> to vector<128x96xbf16>
    %c96 = arith.constant 96 : index
    %c0_48 = arith.constant 0 : index
    %113 = vector.load %arg7[%c96, %c0_48] : memref<672x384xbf16, #tpu.memory_space<vmem>>, vector<96x384xbf16>
    %cst_49 = arith.constant dense<0.000000e+00> : vector<128x384xf32>
    %114 = tpu.matmul %112, %113, %cst_49 {dimension_numbers = #tpu.dot_dimension_numbers<[1], [0], [0], [1], [0, 0, 1, 1], [], []>} : vector<128x96xbf16>, vector<96x384xbf16>, vector<128x384xf32> -> vector<128x384xf32>
    %115 = vector.shape_cast %114 : vector<128x384xf32> to vector<8x16x384xf32>
    %c14_i32 = arith.constant 14 : i32
    %116 = vector.broadcast %c14_i32 : i32 to vector<8x16x1xi32>
    %117 = arith.cmpi slt, %72, %116 : vector<8x16x1xi32>
    %cst_50 = arith.constant -1.000000e+30 : f32
    %118 = vector.shape_cast %117 : vector<8x16x1xi1> to vector<8x16x1xi1>
    %119 = vector.broadcast %118 : vector<8x16x1xi1> to vector<8x16x384xi1>
    %120 = vector.broadcast %cst_50 : f32 to vector<8x16x384xf32>
    %121 = arith.select %119, %115, %120 : vector<8x16x384xi1>, vector<8x16x384xf32>
    %cst_51 = arith.constant dense<0xFF800000> : vector<8x384xf32>
    %122 = vector.multi_reduction <maximumf>, %121, %cst_51 [1] : vector<8x16x384xf32> to vector<8x384xf32>
    %c10 = arith.constant 10 : index
    %c0_52 = arith.constant 0 : index
    %123 = vector.load %arg4[%c10, %c0_52] : memref<13x384xf32, #tpu.memory_space<vmem>>, vector<1x384xf32>
    %124 = vector.broadcast %123 : vector<1x384xf32> to vector<8x384xf32>
    %125 = arith.addf %122, %124 : vector<8x384xf32>
    %126 = arith.mulf %125, %59 : vector<8x384xf32>
    %127 = arith.truncf %126 : vector<8x384xf32> to vector<8x384xbf16>
    %c768 = arith.constant 768 : index
    %c0_53 = arith.constant 0 : index
    %128 = vector.load %arg9[%c768, %c0_53] : memref<1920x32xbf16, #tpu.memory_space<vmem>>, vector<384x32xbf16>
    %cst_54 = arith.constant dense<0.000000e+00> : vector<8x32xf32>
    %129 = tpu.matmul %127, %128, %cst_54 {dimension_numbers = #tpu.dot_dimension_numbers<[1], [0], [0], [1], [0, 0, 1, 1], [], []>} : vector<8x384xbf16>, vector<384x32xbf16>, vector<8x32xf32> -> vector<8x32xf32>
    %130 = arith.addf %111, %129 : vector<8x32xf32>
    %131 = vector.extract_strided_slice %71 {offsets = [0, 0], sizes = [128, 160], strides = [1, 1]} : vector<128x320xbf16> to vector<128x160xbf16>
    %c192 = arith.constant 192 : index
    %c0_55 = arith.constant 0 : index
    %132 = vector.load %arg7[%c192, %c0_55] : memref<672x384xbf16, #tpu.memory_space<vmem>>, vector<160x384xbf16>
    %cst_56 = arith.constant dense<0.000000e+00> : vector<128x384xf32>
    %133 = tpu.matmul %131, %132, %cst_56 {dimension_numbers = #tpu.dot_dimension_numbers<[1], [0], [0], [1], [0, 0, 1, 1], [], []>} : vector<128x160xbf16>, vector<160x384xbf16>, vector<128x384xf32> -> vector<128x384xf32>
    %134 = vector.shape_cast %133 : vector<128x384xf32> to vector<8x16x384xf32>
    %c12_i32 = arith.constant 12 : i32
    %135 = vector.broadcast %c12_i32 : i32 to vector<8x16x1xi32>
    %136 = arith.cmpi slt, %72, %135 : vector<8x16x1xi32>
    %cst_57 = arith.constant -1.000000e+30 : f32
    %137 = vector.shape_cast %136 : vector<8x16x1xi1> to vector<8x16x1xi1>
    %138 = vector.broadcast %137 : vector<8x16x1xi1> to vector<8x16x384xi1>
    %139 = vector.broadcast %cst_57 : f32 to vector<8x16x384xf32>
    %140 = arith.select %138, %134, %139 : vector<8x16x384xi1>, vector<8x16x384xf32>
    %cst_58 = arith.constant dense<0xFF800000> : vector<8x384xf32>
    %141 = vector.multi_reduction <maximumf>, %140, %cst_58 [1] : vector<8x16x384xf32> to vector<8x384xf32>
    %c11 = arith.constant 11 : index
    %c0_59 = arith.constant 0 : index
    %142 = vector.load %arg4[%c11, %c0_59] : memref<13x384xf32, #tpu.memory_space<vmem>>, vector<1x384xf32>
    %143 = vector.broadcast %142 : vector<1x384xf32> to vector<8x384xf32>
    %144 = arith.addf %141, %143 : vector<8x384xf32>
    %145 = arith.mulf %144, %59 : vector<8x384xf32>
    %146 = arith.truncf %145 : vector<8x384xf32> to vector<8x384xbf16>
    %c1152 = arith.constant 1152 : index
    %c0_60 = arith.constant 0 : index
    %147 = vector.load %arg9[%c1152, %c0_60] : memref<1920x32xbf16, #tpu.memory_space<vmem>>, vector<384x32xbf16>
    %cst_61 = arith.constant dense<0.000000e+00> : vector<8x32xf32>
    %148 = tpu.matmul %146, %147, %cst_61 {dimension_numbers = #tpu.dot_dimension_numbers<[1], [0], [0], [1], [0, 0, 1, 1], [], []>} : vector<8x384xbf16>, vector<384x32xbf16>, vector<8x32xf32> -> vector<8x32xf32>
    %149 = arith.addf %130, %148 : vector<8x32xf32>
    %c352 = arith.constant 352 : index
    %c0_62 = arith.constant 0 : index
    %150 = vector.load %arg7[%c352, %c0_62] : memref<672x384xbf16, #tpu.memory_space<vmem>>, vector<320x384xbf16>
    %cst_63 = arith.constant dense<0.000000e+00> : vector<128x384xf32>
    %151 = tpu.matmul %71, %150, %cst_63 {dimension_numbers = #tpu.dot_dimension_numbers<[1], [0], [0], [1], [0, 0, 1, 1], [], []>} : vector<128x320xbf16>, vector<320x384xbf16>, vector<128x384xf32> -> vector<128x384xf32>
    %152 = vector.shape_cast %151 : vector<128x384xf32> to vector<8x16x384xf32>
    %c7_i32 = arith.constant 7 : i32
    %153 = vector.broadcast %c7_i32 : i32 to vector<8x16x1xi32>
    %154 = arith.cmpi slt, %72, %153 : vector<8x16x1xi32>
    %cst_64 = arith.constant -1.000000e+30 : f32
    %155 = vector.shape_cast %154 : vector<8x16x1xi1> to vector<8x16x1xi1>
    %156 = vector.broadcast %155 : vector<8x16x1xi1> to vector<8x16x384xi1>
    %157 = vector.broadcast %cst_64 : f32 to vector<8x16x384xf32>
    %158 = arith.select %156, %152, %157 : vector<8x16x384xi1>, vector<8x16x384xf32>
    %cst_65 = arith.constant dense<0xFF800000> : vector<8x384xf32>
    %159 = vector.multi_reduction <maximumf>, %158, %cst_65 [1] : vector<8x16x384xf32> to vector<8x384xf32>
    %c12 = arith.constant 12 : index
    %c0_66 = arith.constant 0 : index
    %160 = vector.load %arg4[%c12, %c0_66] : memref<13x384xf32, #tpu.memory_space<vmem>>, vector<1x384xf32>
    %161 = vector.broadcast %160 : vector<1x384xf32> to vector<8x384xf32>
    %162 = arith.addf %159, %161 : vector<8x384xf32>
    %163 = arith.mulf %162, %59 : vector<8x384xf32>
    %164 = arith.truncf %163 : vector<8x384xf32> to vector<8x384xbf16>
    %c1536 = arith.constant 1536 : index
    %c0_67 = arith.constant 0 : index
    %165 = vector.load %arg9[%c1536, %c0_67] : memref<1920x32xbf16, #tpu.memory_space<vmem>>, vector<384x32xbf16>
    %cst_68 = arith.constant dense<0.000000e+00> : vector<8x32xf32>
    %166 = tpu.matmul %164, %165, %cst_68 {dimension_numbers = #tpu.dot_dimension_numbers<[1], [0], [0], [1], [0, 0, 1, 1], [], []>} : vector<8x384xbf16>, vector<384x32xbf16>, vector<8x32xf32> -> vector<8x32xf32>
    %167 = arith.addf %149, %166 : vector<8x32xf32>
    %c3 = arith.constant 3 : index
    %c0_69 = arith.constant 0 : index
    %168 = vector.load %arg4[%c3, %c0_69] : memref<13x384xf32, #tpu.memory_space<vmem>>, vector<1x32xf32>
    %169 = vector.broadcast %168 : vector<1x32xf32> to vector<8x32xf32>
    %170 = arith.addf %167, %169 : vector<8x32xf32>
    %c4 = arith.constant 4 : index
    %c0_70 = arith.constant 0 : index
    %171 = vector.load %arg4[%c4, %c0_70] : memref<13x384xf32, #tpu.memory_space<vmem>>, vector<1x32xf32>
    %172 = vector.broadcast %171 : vector<1x32xf32> to vector<8x32xf32>
    %173 = arith.mulf %170, %172 : vector<8x32xf32>
    %c5 = arith.constant 5 : index
    %c0_71 = arith.constant 0 : index
    %174 = vector.load %arg4[%c5, %c0_71] : memref<13x384xf32, #tpu.memory_space<vmem>>, vector<1x32xf32>
    %175 = vector.broadcast %174 : vector<1x32xf32> to vector<8x32xf32>
    %176 = arith.addf %173, %175 : vector<8x32xf32>
    %cst_72 = arith.constant 0.000000e+00 : f32
    %177 = vector.broadcast %cst_72 : f32 to vector<8x32xf32>
    %178 = arith.maximumf %176, %177 : vector<8x32xf32>
    %c6 = arith.constant 6 : index
    %c0_73 = arith.constant 0 : index
    %179 = vector.load %arg4[%c6, %c0_73] : memref<13x384xf32, #tpu.memory_space<vmem>>, vector<1x32xf32>
    %180 = vector.broadcast %179 : vector<1x32xf32> to vector<8x32xf32>
    %181 = arith.mulf %178, %180 : vector<8x32xf32>
    %cst_74 = arith.constant dense<0.000000e+00> : vector<8xf32>
    %182 = vector.multi_reduction <add>, %181, %cst_74 [1] : vector<8x32xf32> to vector<8xf32>
    %183 = vector.shape_cast %182 : vector<8xf32> to vector<8x1xf32>
    %c7_75 = arith.constant 7 : index
    %c1_76 = arith.constant 1 : index
    %184 = vector.load %arg4[%c7_75, %c1_76] : memref<13x384xf32, #tpu.memory_space<vmem>>, vector<1x1xf32>
    %185 = vector.broadcast %184 : vector<1x1xf32> to vector<8x1xf32>
    %186 = arith.addf %183, %185 : vector<8x1xf32>
    %cst_77 = arith.constant 0.000000e+00 : f32
    %187 = vector.broadcast %cst_77 : f32 to vector<8x1xf32>
    %188 = arith.subf %187, %186 : vector<8x1xf32>
    %189 = math.exp %188 : vector<8x1xf32>
    %cst_78 = arith.constant 1.000000e+00 : f32
    %190 = vector.broadcast %cst_78 : f32 to vector<8x1xf32>
    %191 = arith.addf %190, %189 : vector<8x1xf32>
    %192 = tpu.reciprocal %191 {approx = true} : vector<8x1xf32> -> vector<8x1xf32>
    %cst_79 = arith.constant 1.000000e+00 : f32
    %193 = vector.broadcast %cst_79 : f32 to vector<8x1xf32>
    %194 = arith.minimumf %192, %193 : vector<8x1xf32>
    %c0_80 = arith.constant 0 : index
    %c0_81 = arith.constant 0 : index
    %195 = vector.load %arg10[%c0_80, %c0_81] : memref<8x1xf32, #tpu.memory_space<vmem>>, vector<8x1xf32>
    tpu.vector_store %arg10[%c0_80, %c0_81], %194 {strides = array<i32>} : memref<8x1xf32, #tpu.memory_space<vmem>>, vector<8x1xf32>,
    return
  }
  func.func @transform_0(%arg0: i32) -> (i32, i32, i32) {
    %c0_i32 = arith.constant 0 : i32
    %c0_i32_0 = arith.constant 0 : i32
    %c0_i32_1 = arith.constant 0 : i32
    return %arg0, %c0_i32, %c0_i32_0 : i32, i32, i32
  }
  func.func @transform_1(%arg0: i32) -> (i32, i32) {
    %c0_i32 = arith.constant 0 : i32
    %c0_i32_0 = arith.constant 0 : i32
    return %arg0, %c0_i32 : i32, i32
  }
  func.func @transform_2(%arg0: i32) -> (i32, i32) {
    %c0_i32 = arith.constant 0 : i32
    %c0_i32_0 = arith.constant 0 : i32
    return %arg0, %c0_i32 : i32, i32
  }
  func.func @transform_3(%arg0: i32) -> (i32, i32) {
    %c0_i32 = arith.constant 0 : i32
    %c0_i32_0 = arith.constant 0 : i32
    %c0_i32_1 = arith.constant 0 : i32
    return %c0_i32, %c0_i32_0 : i32, i32
  }
  func.func @transform_4(%arg0: i32) -> (i32, i32) {
    %c0_i32 = arith.constant 0 : i32
    %c0_i32_0 = arith.constant 0 : i32
    %c0_i32_1 = arith.constant 0 : i32
    return %c0_i32, %c0_i32_0 : i32, i32
  }
  func.func @transform_5(%arg0: i32) -> (i32, i32) {
    %c0_i32 = arith.constant 0 : i32
    %c0_i32_0 = arith.constant 0 : i32
    %c0_i32_1 = arith.constant 0 : i32
    return %c0_i32, %c0_i32_0 : i32, i32
  }
  func.func @transform_6(%arg0: i32) -> (i32, i32) {
    %c0_i32 = arith.constant 0 : i32
    %c0_i32_0 = arith.constant 0 : i32
    %c0_i32_1 = arith.constant 0 : i32
    return %c0_i32, %c0_i32_0 : i32, i32
  }
  func.func @transform_7(%arg0: i32) -> (i32, i32) {
    %c0_i32 = arith.constant 0 : i32
    %c0_i32_0 = arith.constant 0 : i32
    %c0_i32_1 = arith.constant 0 : i32
    return %c0_i32, %c0_i32_0 : i32, i32
  }
  func.func @transform_8(%arg0: i32) -> (i32, i32) {
    %c0_i32 = arith.constant 0 : i32
    %c0_i32_0 = arith.constant 0 : i32
    %c0_i32_1 = arith.constant 0 : i32
    return %c0_i32, %c0_i32_0 : i32, i32
  }
  func.func @transform_9(%arg0: i32) -> (i32, i32) {
    %c0_i32 = arith.constant 0 : i32
    %c0_i32_0 = arith.constant 0 : i32
    return %arg0, %c0_i32 : i32, i32
  }
}

</mosaic_0001>

<llo_original>
// kernel: tpu_custom_call.1
$region0: #{tpu_custom_call.1}
  #allocation0 [shape = 'u32[]', space=smem, size = 0x4, offset = 0x4, fixed_abs, tag = 'smem constant byte address 0x4 - core index']
  #allocation1 [shape = 'u32[144,128]{1,0:T(1,128)}', space=vmem, size = 0x12000, scoped, tag = 'internal scratch']
  %s0 = inlined_call_operand.vmem [shape: bf16[16,32,32], index: 0, kind: input, shape index: {}]
  %s1 = inlined_call_operand.vmem [shape: f32[16,32], index: 1, kind: input, shape index: {}]
  %s2 = inlined_call_operand.vmem [shape: bf16[16,32], index: 2, kind: input, shape index: {}]
  %s3 = inlined_call_operand.hbm [shape: f32[13,384], index: 3, kind: input, shape index: {}]
  %s4 = inlined_call_operand.vmem [shape: bf16[64,32], index: 4, kind: input, shape index: {}]
  %s5 = inlined_call_operand.vmem [shape: bf16[32,6], index: 5, kind: input, shape index: {}]
  %s6 = inlined_call_operand.vmem [shape: bf16[672,384], index: 6, kind: input, shape index: {}]
  %s7 = inlined_call_operand.hbm [shape: bf16[6,384], index: 7, kind: input, shape index: {}]
  %s8 = inlined_call_operand.vmem [shape: bf16[1920,32], index: 8, kind: input, shape index: {}]
  %s9 = inlined_call_operand.vmem [shape: f32[16,1], index: 9, kind: output, shape index: {}]
  %s10 = sld [smem:[#allocation0]]
  $region77: #{tpu_custom_call.1} parent=0
    _
  %s12 = ssub.s32 1, %s10
  %s13 = scalar_select 0, %s12, %s10
  $region1: #{tpu_custom_call.1} parent=0
    #allocation2 [shape = 'u8[24576]{0}', space=vmem, size = 0x6000, scoped, tag = 'input window, operand 3, single buffered']
    #allocation3 [shape = 's32[2]{0}', space=sflag, size = 0x8, scoped, tag = 'scoped memory for tpu_custom_call.1']
    #allocation4 [shape = 'u8[6144]{0}', space=vmem, size = 0x1800, scoped, tag = 'input window, operand 7, single buffered']
    #allocation5 [shape = 's32[1]{0}', space=sflag, size = 0x4, scoped, tag = 'scoped memory for tpu_custom_call.1']
    %14 = vsyncpa [#allocation3], 0
    %15 = vsyncpa [#allocation5], 0
    loop: start=0, step=1, limit=4
    $region2: #{tpu_custom_call.1} parent=1 // loop_pre_header
      _
    $region3: #{tpu_custom_call.1} parent=1 // loop_header
      %s17 = sphi 0, %s21
      %p18 = scmp.ge.s32.totalorder %s17, 4
      %s27 = sphi 0, %s29
      %s30 = sphi 0, %s27
      %s31 = sphi 0, %s30
      %s47 = sphi 0, %s31
      %s53 = sphi 0, %s55
      %s56 = sphi 0, %s53
      %s57 = sphi 0, %s56
      %s73 = sphi 0, %s57
      %s79 = sphi 0, %s81
      %s82 = sphi 0, %s79
      %s83 = sphi 0, %s82
      %s99 = sphi 0, %s83
      %s103 = sphi 0, %s103
      %s105 = sphi 0, %s103
      %s106 = sphi 0, %s105
      %s120 = sphi 0, %s106
      %s124 = sphi 0, %s124
      %s126 = sphi 0, %s124
      %s127 = sphi 0, %s126
      %s141 = sphi 0, %s127
      %s145 = sphi 0, %s145
      %s147 = sphi 0, %s145
      %s148 = sphi 0, %s147
      %s162 = sphi 0, %s148
      %s166 = sphi 0, %s166
      %s168 = sphi 0, %s166
      %s169 = sphi 0, %s168
      %s183 = sphi 0, %s169
      %s187 = sphi 0, %s187
      %s189 = sphi 0, %s187
      %s190 = sphi 0, %s189
      %s204 = sphi 0, %s190
      %s208 = sphi 0, %s208
      %s210 = sphi 0, %s208
      %s211 = sphi 0, %s210
      %s225 = sphi 0, %s211
      %s231 = sphi 0, %s233
      %s234 = sphi 0, %s231
      %s235 = sphi 0, %s234
      %s251 = sphi 0, %s235
    $region4: #{tpu_custom_call.1} parent=1 // loop_header_branch
      %20 = sbr.rel (%p18) target = $region8
    $region5: #{tpu_custom_call.1} parent=1 // loop_body
      %s22 = ssub.s32 %s17, 1
      %s23 = ssub.s32 %s17, 2
      %s24 = sadd.s32 %s17, 1
      %s25 = ssub.s32 %s17, %s24
      %p26 = scmp.eq.s32.totalorder %s25, 0
      %s28 = sadd.s32 %s27, 1
      %s29 = scalar_select %p26, %s27, %s28
      %p32 = pneg %p26
      %p33 = scmp.eq.s32.totalorder %s17, 1
      %p34 = por %p32, %p33
      %p35 = scmp.ne.s32.totalorder %s27, %s30
      %p36 = scmp.eq.s32.totalorder %s17, 0
      %p37 = por %p35, %p36
      %p38 = scmp.ne.s32.totalorder %s27, %s30
      %p39 = scmp.eq.s32.totalorder %s22, 1
      %p40 = por %p38, %p39
      %p41 = scmp.ne.s32.totalorder %s30, %s31
      %p42 = scmp.eq.s32.totalorder %s22, 0
      %p43 = por %p41, %p42
      %p44 = scmp.ne.s32.totalorder %s30, %s31
      %p45 = scmp.eq.s32.totalorder %s23, 1
      %p46 = por %p44, %p45
      %p48 = scmp.ne.s32.totalorder %s31, %s47
      %p49 = scmp.eq.s32.totalorder %s23, 0
      %p50 = por %p48, %p49
      %s51 = ssub.s32 %s17, %s24
      %p52 = scmp.eq.s32.totalorder %s51, 0
      %s54 = sadd.s32 %s53, 1
      %s55 = scalar_select %p52, %s53, %s54
      %p58 = pneg %p52
      %p59 = scmp.eq.s32.totalorder %s17, 1
      %p60 = por %p58, %p59
      %p61 = scmp.ne.s32.totalorder %s53, %s56
      %p62 = scmp.eq.s32.totalorder %s17, 0
      %p63 = por %p61, %p62
      %p64 = scmp.ne.s32.totalorder %s53, %s56
      %p65 = scmp.eq.s32.totalorder %s22, 1
      %p66 = por %p64, %p65
      %p67 = scmp.ne.s32.totalorder %s56, %s57
      %p68 = scmp.eq.s32.totalorder %s22, 0
      %p69 = por %p67, %p68
      %p70 = scmp.ne.s32.totalorder %s56, %s57
      %p71 = scmp.eq.s32.totalorder %s23, 1
      %p72 = por %p70, %p71
      %p74 = scmp.ne.s32.totalorder %s57, %s73
      %p75 = scmp.eq.s32.totalorder %s23, 0
      %p76 = por %p74, %p75
      %s77 = ssub.s32 %s17, %s24
      %p78 = scmp.eq.s32.totalorder %s77, 0
      %s80 = sadd.s32 %s79, 1
      %s81 = scalar_select %p78, %s79, %s80
      %p84 = pneg %p78
      %p85 = scmp.eq.s32.totalorder %s17, 1
      %p86 = por %p84, %p85
      %p87 = scmp.ne.s32.totalorder %s79, %s82
      %p88 = scmp.eq.s32.totalorder %s17, 0
      %p89 = por %p87, %p88
      %p90 = scmp.ne.s32.totalorder %s79, %s82
      %p91 = scmp.eq.s32.totalorder %s22, 1
      %p92 = por %p90, %p91
      %p93 = scmp.ne.s32.totalorder %s82, %s83
      %p94 = scmp.eq.s32.totalorder %s22, 0
      %p95 = por %p93, %p94
      %p96 = scmp.ne.s32.totalorder %s82, %s83
      %p97 = scmp.eq.s32.totalorder %s23, 1
      %p98 = por %p96, %p97
      %p100 = scmp.ne.s32.totalorder %s83, %s99
      %p101 = scmp.eq.s32.totalorder %s23, 0
      %p102 = por %p100, %p101
      %s104 = sadd.s32 %s103, 1
      %p107 = scmp.eq.s32.totalorder %s17, 1
      %p108 = scmp.ne.s32.totalorder %s103, %s105
      %p109 = scmp.eq.s32.totalorder %s17, 0
      %p110 = por %p108, %p109
      %p111 = scmp.ne.s32.totalorder %s103, %s105
      %p112 = scmp.eq.s32.totalorder %s22, 1
      %p113 = por %p111, %p112
      %p114 = scmp.ne.s32.totalorder %s105, %s106
      %p115 = scmp.eq.s32.totalorder %s22, 0
      %p116 = por %p114, %p115
      %p117 = scmp.ne.s32.totalorder %s105, %s106
      %p118 = scmp.eq.s32.totalorder %s23, 1
      %p119 = por %p117, %p118
      %p121 = scmp.ne.s32.totalorder %s106, %s120
      %p122 = scmp.eq.s32.totalorder %s23, 0
      %p123 = por %p121, %p122
      %s125 = sadd.s32 %s124, 1
      %p128 = scmp.eq.s32.totalorder %s17, 1
      %p129 = scmp.ne.s32.totalorder %s124, %s126
      %p130 = scmp.eq.s32.totalorder %s17, 0
      %p131 = por %p129, %p130
      %p132 = scmp.ne.s32.totalorder %s124, %s126
      %p133 = scmp.eq.s32.totalorder %s22, 1
      %p134 = por %p132, %p133
      %p135 = scmp.ne.s32.totalorder %s126, %s127
      %p136 = scmp.eq.s32.totalorder %s22, 0
      %p137 = por %p135, %p136
      %p138 = scmp.ne.s32.totalorder %s126, %s127
      %p139 = scmp.eq.s32.totalorder %s23, 1
      %p140 = por %p138, %p139
      %p142 = scmp.ne.s32.totalorder %s127, %s141
      %p143 = scmp.eq.s32.totalorder %s23, 0
      %p144 = por %p142, %p143
      %s146 = sadd.s32 %s145, 1
      %p149 = scmp.eq.s32.totalorder %s17, 1
      %p150 = scmp.ne.s32.totalorder %s145, %s147
      %p151 = scmp.eq.s32.totalorder %s17, 0
      %p152 = por %p150, %p151
      %p153 = scmp.ne.s32.totalorder %s145, %s147
      %p154 = scmp.eq.s32.totalorder %s22, 1
      %p155 = por %p153, %p154
      %p156 = scmp.ne.s32.totalorder %s147, %s148
      %p157 = scmp.eq.s32.totalorder %s22, 0
      %p158 = por %p156, %p157
      %p159 = scmp.ne.s32.totalorder %s147, %s148
      %p160 = scmp.eq.s32.totalorder %s23, 1
      %p161 = por %p159, %p160
      %p163 = scmp.ne.s32.totalorder %s148, %s162
      %p164 = scmp.eq.s32.totalorder %s23, 0
      %p165 = por %p163, %p164
      %s167 = sadd.s32 %s166, 1
      %p170 = scmp.eq.s32.totalorder %s17, 1
      %p171 = scmp.ne.s32.totalorder %s166, %s168
      %p172 = scmp.eq.s32.totalorder %s17, 0
      %p173 = por %p171, %p172
      %p174 = scmp.ne.s32.totalorder %s166, %s168
      %p175 = scmp.eq.s32.totalorder %s22, 1
      %p176 = por %p174, %p175
      %p177 = scmp.ne.s32.totalorder %s168, %s169
      %p178 = scmp.eq.s32.totalorder %s22, 0
      %p179 = por %p177, %p178
      %p180 = scmp.ne.s32.totalorder %s168, %s169
      %p181 = scmp.eq.s32.totalorder %s23, 1
      %p182 = por %p180, %p181
      %p184 = scmp.ne.s32.totalorder %s169, %s183
      %p185 = scmp.eq.s32.totalorder %s23, 0
      %p186 = por %p184, %p185
      %s188 = sadd.s32 %s187, 1
      %p191 = scmp.eq.s32.totalorder %s17, 1
      %p192 = scmp.ne.s32.totalorder %s187, %s189
      %p193 = scmp.eq.s32.totalorder %s17, 0
      %p194 = por %p192, %p193
      %p195 = scmp.ne.s32.totalorder %s187, %s189
      %p196 = scmp.eq.s32.totalorder %s22, 1
      %p197 = por %p195, %p196
      %p198 = scmp.ne.s32.totalorder %s189, %s190
      %p199 = scmp.eq.s32.totalorder %s22, 0
      %p200 = por %p198, %p199
      %p201 = scmp.ne.s32.totalorder %s189, %s190
      %p202 = scmp.eq.s32.totalorder %s23, 1
      %p203 = por %p201, %p202
      %p205 = scmp.ne.s32.totalorder %s190, %s204
      %p206 = scmp.eq.s32.totalorder %s23, 0
      %p207 = por %p205, %p206
      %s209 = sadd.s32 %s208, 1
      %p212 = scmp.eq.s32.totalorder %s17, 1
      %p213 = scmp.ne.s32.totalorder %s208, %s210
      %p214 = scmp.eq.s32.totalorder %s17, 0
      %p215 = por %p213, %p214
      %p216 = scmp.ne.s32.totalorder %s208, %s210
      %p217 = scmp.eq.s32.totalorder %s22, 1
      %p218 = por %p216, %p217
      %p219 = scmp.ne.s32.totalorder %s210, %s211
      %p220 = scmp.eq.s32.totalorder %s22, 0
      %p221 = por %p219, %p220
      %p222 = scmp.ne.s32.totalorder %s210, %s211
      %p223 = scmp.eq.s32.totalorder %s23, 1
      %p224 = por %p222, %p223
      %p226 = scmp.ne.s32.totalorder %s211, %s225
      %p227 = scmp.eq.s32.totalorder %s23, 0
      %p228 = por %p226, %p227
      %s229 = ssub.s32 %s17, %s24
      %p230 = scmp.eq.s32.totalorder %s229, 0
      %s232 = sadd.s32 %s231, 1
      %s233 = scalar_select %p230, %s231, %s232
      %p236 = pneg %p230
      %p237 = scmp.eq.s32.totalorder %s17, 1
      %p238 = por %p236, %p237
      %p239 = scmp.ne.s32.totalorder %s231, %s234
      %p240 = scmp.eq.s32.totalorder %s17, 0
      %p241 = por %p239, %p240
      %p242 = scmp.ne.s32.totalorder %s231, %s234
      %p243 = scmp.eq.s32.totalorder %s22, 1
      %p244 = por %p242, %p243
      %p245 = scmp.ne.s32.totalorder %s234, %s235
      %p246 = scmp.eq.s32.totalorder %s22, 0
      %p247 = por %p245, %p246
      %p248 = scmp.ne.s32.totalorder %s234, %s235
      %p249 = scmp.eq.s32.totalorder %s23, 1
      %p250 = por %p248, %p249
      %p252 = scmp.ne.s32.totalorder %s235, %s251
      %p253 = scmp.eq.s32.totalorder %s23, 0
      %p254 = por %p252, %p253
      %p255 = scmp.le.s32.totalorder 1, %s17
      %p256 = scmp.lt.s32.totalorder %s17, 3
      %p257 = pnand %p255, %p256
      %p258 = pneg %p257
      // Predicated region
      $region9: #{tpu_custom_call.1} parent=5 // pred_check
        _
      $region10: #{tpu_custom_call.1} parent=5 // pred_check_branch
        %260 = sbr.rel (%p257) target = $region12
      $region11: #{tpu_custom_call.1} parent=5 // pred_region
        %s261 = ssub.s32 %s17, 1
        // Predicated region
        $region13: #{tpu_custom_call.1} parent=11 // pred_check
          %p262 = pneg %p116
        $region14: #{tpu_custom_call.1} parent=11 // pred_check_branch
          %264 = sbr.rel (%p262) target = $region16
        $region15: #{tpu_custom_call.1} parent=11 // pred_region
          %s266 = ssub.s32 768, 768
          %267 = vsyncadd [#allocation3], %s266
          %s268 = sshll.u32 [#allocation2], 4
          %s269 = int_to_ptr.vmem [resolvable:$true] %s268
          %274 = dma.hbm_to_vmem [thread:$0]  %s3, 768, %s269, [#allocation3], 384, 384, 24
        $region16: #{tpu_custom_call.1} parent=11 // pred_fallthru
          _
        // Predicated region
        $region17: #{tpu_custom_call.1} parent=11 // pred_check
          %p275 = pneg %p137
        $region18: #{tpu_custom_call.1} parent=11 // pred_check_branch
          %277 = sbr.rel (%p275) target = $region20
        $region19: #{tpu_custom_call.1} parent=11 // pred_region
          _
        $region20: #{tpu_custom_call.1} parent=11 // pred_fallthru
          _
        // Predicated region
        $region21: #{tpu_custom_call.1} parent=11 // pred_check
          %p278 = pneg %p158
        $region22: #{tpu_custom_call.1} parent=11 // pred_check_branch
          %280 = sbr.rel (%p278) target = $region24
        $region23: #{tpu_custom_call.1} parent=11 // pred_region
          _
        $region24: #{tpu_custom_call.1} parent=11 // pred_fallthru
          _
        // Predicated region
        $region25: #{tpu_custom_call.1} parent=11 // pred_check
          %p281 = pneg %p179
        $region26: #{tpu_custom_call.1} parent=11 // pred_check_branch
          %283 = sbr.rel (%p281) target = $region28
        $region27: #{tpu_custom_call.1} parent=11 // pred_region
          _
        $region28: #{tpu_custom_call.1} parent=11 // pred_fallthru
          _
        // Predicated region
        $region29: #{tpu_custom_call.1} parent=11 // pred_check
          %p284 = pneg %p200
        $region30: #{tpu_custom_call.1} parent=11 // pred_check_branch
          %286 = sbr.rel (%p284) target = $region32
        $region31: #{tpu_custom_call.1} parent=11 // pred_region
          %s288 = ssub.s32 192, 192
          %289 = vsyncadd [#allocation5], %s288
          %s291 = sshll.u32 [#allocation4], 4
          %s292 = int_to_ptr.vmem [resolvable:$true] %s291
          %294 = dma.hbm_to_vmem [thread:$0]  %s7, 192, %s292, [#allocation5]
        $region32: #{tpu_custom_call.1} parent=11 // pred_fallthru
          _
        // Predicated region
        $region33: #{tpu_custom_call.1} parent=11 // pred_check
          %p295 = pneg %p221
        $region34: #{tpu_custom_call.1} parent=11 // pred_check_branch
          %297 = sbr.rel (%p295) target = $region36
        $region35: #{tpu_custom_call.1} parent=11 // pred_region
          _
        $region36: #{tpu_custom_call.1} parent=11 // pred_fallthru
          _
      $region12: #{tpu_custom_call.1} parent=5 // pred_fallthru
        _
      %p298 = scmp.lt.s32.totalorder %s17, 2
      // Predicated region
      $region37: #{tpu_custom_call.1} parent=5 // pred_check
        %p299 = pneg %p298
      $region38: #{tpu_custom_call.1} parent=5 // pred_check_branch
        %301 = sbr.rel (%p299) target = $region40
      $region39: #{tpu_custom_call.1} parent=5 // pred_region
        // Predicated region
        $region41: #{tpu_custom_call.1} parent=39 // pred_check
          %p302 = pneg %p37
        $region42: #{tpu_custom_call.1} parent=39 // pred_check_branch
          %304 = sbr.rel (%p302) target = $region44
        $region43: #{tpu_custom_call.1} parent=39 // pred_region
          %s305 = smul.u32 8, %s17
          %p306 = scmp.lt.s32.totalorder %s305, 15
          %s307 = scalar_select %p306, %s305, 15
          %s308 = smul.addr %s307, 4
          %s309 = smul.addr %s308, 4
          %s310 = scalar_lea.vmem %s0, %s309
          %s311 = smul.u32 8, %s17
        $region44: #{tpu_custom_call.1} parent=39 // pred_fallthru
          _
        // Predicated region
        $region45: #{tpu_custom_call.1} parent=39 // pred_check
          %p312 = pneg %p63
        $region46: #{tpu_custom_call.1} parent=39 // pred_check_branch
          %314 = sbr.rel (%p312) target = $region48
        $region47: #{tpu_custom_call.1} parent=39 // pred_region
          %p315 = scmp.lt.s32.totalorder %s17, 1
          %s316 = scalar_select %p315, %s17, 1
          %s317 = smul.addr %s316, 8
          %s318 = scalar_lea.vmem %s1, %s317
        $region48: #{tpu_custom_call.1} parent=39 // pred_fallthru
          _
        // Predicated region
        $region49: #{tpu_custom_call.1} parent=39 // pred_check
          %p319 = pneg %p89
        $region50: #{tpu_custom_call.1} parent=39 // pred_check_branch
          %321 = sbr.rel (%p319) target = $region52
        $region51: #{tpu_custom_call.1} parent=39 // pred_region
          %p322 = scmp.lt.s32.totalorder %s17, 1
          %s323 = scalar_select %p322, %s17, 1
          %s324 = smul.addr %s323, 4
          %s325 = scalar_lea.vmem %s2, %s324
        $region52: #{tpu_custom_call.1} parent=39 // pred_fallthru
          _
      $region40: #{tpu_custom_call.1} parent=5 // pred_fallthru
        _
      %p326 = scmp.le.s32.totalorder 1, %s17
      %p327 = scmp.lt.s32.totalorder %s17, 3
      %p328 = pnand %p326, %p327
      %p329 = pneg %p328
      // Predicated region
      $region53: #{tpu_custom_call.1} parent=5 // pred_check
        _
      $region54: #{tpu_custom_call.1} parent=5 // pred_check_branch
        %331 = sbr.rel (%p328) target = $region56
      $region55: #{tpu_custom_call.1} parent=5 // pred_region
        %s332 = ssub.s32 %s17, 1
        // Predicated region
        $region57: #{tpu_custom_call.1} parent=55 // pred_check
          %p333 = pneg %p116
        $region58: #{tpu_custom_call.1} parent=55 // pred_check_branch
          %335 = sbr.rel (%p333) target = $region60
        $region59: #{tpu_custom_call.1} parent=55 // pred_region
          %336 = dma.done [#allocation3], 768
        $region60: #{tpu_custom_call.1} parent=55 // pred_fallthru
          _
        // Predicated region
        $region61: #{tpu_custom_call.1} parent=55 // pred_check
          %p337 = pneg %p200
        $region62: #{tpu_custom_call.1} parent=55 // pred_check_branch
          %339 = sbr.rel (%p337) target = $region64
        $region63: #{tpu_custom_call.1} parent=55 // pred_region
          %340 = dma.done [#allocation5], 192
        $region64: #{tpu_custom_call.1} parent=55 // pred_fallthru
          _
        %s341 = smul.u32 8, %s22
        %p342 = scmp.lt.s32.totalorder %s341, 15
        %s343 = scalar_select %p342, %s341, 15
        %s344 = smul.addr %s343, 4
        %s345 = smul.addr %s344, 4
        %s346 = scalar_lea.vmem %s0, %s345
        %p347 = pneg %p43
        %p348 = pneg %p40
        %p349 = scmp.lt.s32.totalorder %s22, 1
        %s350 = scalar_select %p349, %s22, 1
        %s351 = smul.addr %s350, 8
        %s352 = scalar_lea.vmem %s1, %s351
        %p353 = pneg %p69
        %p354 = pneg %p66
        %p355 = scmp.lt.s32.totalorder %s22, 1
        %s356 = scalar_select %p355, %s22, 1
        %s357 = smul.addr %s356, 4
        %s358 = scalar_lea.vmem %s2, %s357
        %p359 = pneg %p95
        %p360 = pneg %p92
        %p361 = pneg %p116
        %p362 = pneg %p113
        %p363 = pneg %p137
        %p364 = pneg %p134
        %p365 = pneg %p158
        %p366 = pneg %p155
        %p367 = pneg %p179
        %p368 = pneg %p176
        %p369 = pneg %p200
        %p370 = pneg %p197
        %p371 = pneg %p221
        %p372 = pneg %p218
        %p373 = pneg %p247
        %p374 = pneg %p244
        %p375 = scmp.lt.s32.totalorder %s22, 1
        %s376 = scalar_select %p375, %s22, 1
        %s377 = smul.addr %s376, 8
        %s378 = scalar_lea.vmem %s9, %s377
        %s379 = smul.u32 8, %s22
        %p380 = scmp.lt.s32.totalorder %s379, 15
        %s381 = scalar_select %p380, %s379, 15
        %s382 = smul.addr %s381, 4
        %s383 = smul.addr %s382, 4
        %s384 = scalar_lea.vmem %s0, %s383
        %s385 = smul.u32 8, %s22
        %p386 = scmp.lt.s32.totalorder %s22, 1
        %s387 = scalar_select %p386, %s22, 1
        %s388 = smul.addr %s387, 8
        %s389 = scalar_lea.vmem %s1, %s388
        %p390 = scmp.lt.s32.totalorder %s22, 1
        %s391 = scalar_select %p390, %s22, 1
        %s392 = smul.addr %s391, 4
        %s393 = scalar_lea.vmem %s2, %s392
        %p394 = scmp.lt.s32.totalorder %s22, 1
        %s395 = scalar_select %p394, %s22, 1
        %s396 = smul.addr %s395, 8
        %s397 = scalar_lea.vmem %s9, %s396
        %v399 = vld [vmem:[%s384] sm:$0xf]
        %v400 = vld [vmem:[%s384 + $0x4] sm:$0xf]
        %v401 = vld [vmem:[%s384 + $0x8] sm:$0xf]
        %v402 = vld [vmem:[%s384 + $0xc] sm:$0xf]
        %v403 = vld [vmem:[%s384 + $0x10] sm:$0xf]
        %v404 = vld [vmem:[%s384 + $0x14] sm:$0xf]
        %v405 = vld [vmem:[%s384 + $0x18] sm:$0xf]
        %v406 = vld [vmem:[%s384 + $0x1c] sm:$0xf]
        %v407 = vld [vmem:[%s384 + $0x20] sm:$0xf]
        %v408 = vld [vmem:[%s384 + $0x24] sm:$0xf]
        %v409 = vld [vmem:[%s384 + $0x28] sm:$0xf]
        %v410 = vld [vmem:[%s384 + $0x2c] sm:$0xf]
        %v411 = vld [vmem:[%s384 + $0x30] sm:$0xf]
        %v412 = vld [vmem:[%s384 + $0x34] sm:$0xf]
        %v413 = vld [vmem:[%s384 + $0x38] sm:$0xf]
        %v414 = vld [vmem:[%s384 + $0x3c] sm:$0xf]
        %v415 = vld [vmem:[%s384 + $0x40] sm:$0xf]
        %v416 = vld [vmem:[%s384 + $0x44] sm:$0xf]
        %v417 = vld [vmem:[%s384 + $0x48] sm:$0xf]
        %v418 = vld [vmem:[%s384 + $0x4c] sm:$0xf]
        %v419 = vld [vmem:[%s384 + $0x50] sm:$0xf]
        %v420 = vld [vmem:[%s384 + $0x54] sm:$0xf]
        %v421 = vld [vmem:[%s384 + $0x58] sm:$0xf]
        %v422 = vld [vmem:[%s384 + $0x5c] sm:$0xf]
        %v423 = vld [vmem:[%s384 + $0x60] sm:$0xf]
        %v424 = vld [vmem:[%s384 + $0x64] sm:$0xf]
        %v425 = vld [vmem:[%s384 + $0x68] sm:$0xf]
        %v426 = vld [vmem:[%s384 + $0x6c] sm:$0xf]
        %v427 = vld [vmem:[%s384 + $0x70] sm:$0xf]
        %v428 = vld [vmem:[%s384 + $0x74] sm:$0xf]
        %v429 = vld [vmem:[%s384 + $0x78] sm:$0xf]
        %v430 = vld [vmem:[%s384 + $0x7c] sm:$0xf]
        %v431 = vld [vmem:[%s389] sm:$0xff]
        %v432 = vunpack.c.l.bf16 %v399
        %v433 = vunpack.c.l.bf16 %v400
        %v434 = vunpack.c.l.bf16 %v401
        %v435 = vunpack.c.l.bf16 %v402
        %v436 = vunpack.c.l.bf16 %v403
        %v437 = vunpack.c.l.bf16 %v404
        %v438 = vunpack.c.l.bf16 %v405
        %v439 = vunpack.c.l.bf16 %v406
        %v440 = vunpack.c.l.bf16 %v407
        %v441 = vunpack.c.l.bf16 %v408
        %v442 = vunpack.c.l.bf16 %v409
        %v443 = vunpack.c.l.bf16 %v410
        %v444 = vunpack.c.l.bf16 %v411
        %v445 = vunpack.c.l.bf16 %v412
        %v446 = vunpack.c.l.bf16 %v413
        %v447 = vunpack.c.l.bf16 %v414
        %v448 = vunpack.c.l.bf16 %v415
        %v449 = vunpack.c.l.bf16 %v416
        %v450 = vunpack.c.l.bf16 %v417
        %v451 = vunpack.c.l.bf16 %v418
        %v452 = vunpack.c.l.bf16 %v419
        %v453 = vunpack.c.l.bf16 %v420
        %v454 = vunpack.c.l.bf16 %v421
        %v455 = vunpack.c.l.bf16 %v422
        %v456 = vunpack.c.l.bf16 %v423
        %v457 = vunpack.c.l.bf16 %v424
        %v458 = vunpack.c.l.bf16 %v425
        %v459 = vunpack.c.l.bf16 %v426
        %v460 = vunpack.c.l.bf16 %v427
        %v461 = vunpack.c.l.bf16 %v428
        %v462 = vunpack.c.l.bf16 %v429
        %v463 = vunpack.c.l.bf16 %v430
        %v464 = vld [vmem:[#allocation2] ss:$0 sm:$0xff]
        %v465 = vld [vmem:[#allocation2 + $0x7] ss:$0 sm:$0xff]
        %v466 = vmul.f32 %v432, %v464
        %v467 = vmul.f32 %v433, %v464
        %v468 = vmul.f32 %v434, %v464
        %v469 = vmul.f32 %v435, %v464
        %v470 = vmul.f32 %v436, %v464
        %v471 = vmul.f32 %v437, %v464
        %v472 = vmul.f32 %v438, %v464
        %v473 = vmul.f32 %v439, %v464
        %v474 = vmul.f32 %v440, %v464
        %v475 = vmul.f32 %v441, %v464
        %v476 = vmul.f32 %v442, %v464
        %v477 = vmul.f32 %v443, %v464
        %v478 = vmul.f32 %v444, %v464
        %v479 = vmul.f32 %v445, %v464
        %v480 = vmul.f32 %v446, %v464
        %v481 = vmul.f32 %v447, %v464
        %v482 = vmul.f32 %v448, %v464
        %v483 = vmul.f32 %v449, %v464
        %v484 = vmul.f32 %v450, %v464
        %v485 = vmul.f32 %v451, %v464
        %v486 = vmul.f32 %v452, %v464
        %v487 = vmul.f32 %v453, %v464
        %v488 = vmul.f32 %v454, %v464
        %v489 = vmul.f32 %v455, %v464
        %v490 = vmul.f32 %v456, %v464
        %v491 = vmul.f32 %v457, %v464
        %v492 = vmul.f32 %v458, %v464
        %v493 = vmul.f32 %v459, %v464
        %v494 = vmul.f32 %v460, %v464
        %v495 = vmul.f32 %v461, %v464
        %v496 = vmul.f32 %v462, %v464
        %v497 = vmul.f32 %v463, %v464
        %vm498 = vcmask 261120
        %v499 = vsel %vm498, %v466, 0.0
        %500 = vadd.xlane.f32.xlu0 %v499
        %v501 = vpop.xlane.xlu0 %500
        %v502 = vsel %vm498, %v467, 0.0
        %503 = vadd.xlane.f32.xlu0 %v502
        %v504 = vpop.xlane.xlu0 %503
        %v505 = vsel %vm498, %v468, 0.0
        %506 = vadd.xlane.f32.xlu0 %v505
        %v507 = vpop.xlane.xlu0 %506
        %v508 = vsel %vm498, %v469, 0.0
        %509 = vadd.xlane.f32.xlu0 %v508
        %v510 = vpop.xlane.xlu0 %509
        %v511 = vsel %vm498, %v470, 0.0
        %512 = vadd.xlane.f32.xlu0 %v511
        %v513 = vpop.xlane.xlu0 %512
        %v514 = vsel %vm498, %v471, 0.0
        %515 = vadd.xlane.f32.xlu0 %v514
        %v516 = vpop.xlane.xlu0 %515
        %v517 = vsel %vm498, %v472, 0.0
        %518 = vadd.xlane.f32.xlu0 %v517
        %v519 = vpop.xlane.xlu0 %518
        %v520 = vsel %vm498, %v473, 0.0
        %521 = vadd.xlane.f32.xlu0 %v520
        %v522 = vpop.xlane.xlu0 %521
        %v523 = vsel %vm498, %v474, 0.0
        %524 = vadd.xlane.f32.xlu0 %v523
        %v525 = vpop.xlane.xlu0 %524
        %v526 = vsel %vm498, %v475, 0.0
        %527 = vadd.xlane.f32.xlu0 %v526
        %v528 = vpop.xlane.xlu0 %527
        %v529 = vsel %vm498, %v476, 0.0
        %530 = vadd.xlane.f32.xlu0 %v529
        %v531 = vpop.xlane.xlu0 %530
        %v532 = vsel %vm498, %v477, 0.0
        %533 = vadd.xlane.f32.xlu0 %v532
        %v534 = vpop.xlane.xlu0 %533
        %v535 = vsel %vm498, %v478, 0.0
        %536 = vadd.xlane.f32.xlu0 %v535
        %v537 = vpop.xlane.xlu0 %536
        %v538 = vsel %vm498, %v479, 0.0
        %539 = vadd.xlane.f32.xlu0 %v538
        %v540 = vpop.xlane.xlu0 %539
        %v541 = vsel %vm498, %v480, 0.0
        %542 = vadd.xlane.f32.xlu0 %v541
        %v543 = vpop.xlane.xlu0 %542
        %v544 = vsel %vm498, %v481, 0.0
        %545 = vadd.xlane.f32.xlu0 %v544
        %v546 = vpop.xlane.xlu0 %545
        %v547 = vsel %vm498, %v482, 0.0
        %548 = vadd.xlane.f32.xlu0 %v547
        %v549 = vpop.xlane.xlu0 %548
        %v550 = vsel %vm498, %v483, 0.0
        %551 = vadd.xlane.f32.xlu0 %v550
        %v552 = vpop.xlane.xlu0 %551
        %v553 = vsel %vm498, %v484, 0.0
        %554 = vadd.xlane.f32.xlu0 %v553
        %v555 = vpop.xlane.xlu0 %554
        %v556 = vsel %vm498, %v485, 0.0
        %557 = vadd.xlane.f32.xlu0 %v556
        %v558 = vpop.xlane.xlu0 %557
        %v559 = vsel %vm498, %v486, 0.0
        %560 = vadd.xlane.f32.xlu0 %v559
        %v561 = vpop.xlane.xlu0 %560
        %v562 = vsel %vm498, %v487, 0.0
        %563 = vadd.xlane.f32.xlu0 %v562
        %v564 = vpop.xlane.xlu0 %563
        %v565 = vsel %vm498, %v488, 0.0
        %566 = vadd.xlane.f32.xlu0 %v565
        %v567 = vpop.xlane.xlu0 %566
        %v568 = vsel %vm498, %v489, 0.0
        %569 = vadd.xlane.f32.xlu0 %v568
        %v570 = vpop.xlane.xlu0 %569
        %v571 = vsel %vm498, %v490, 0.0
        %572 = vadd.xlane.f32.xlu0 %v571
        %v573 = vpop.xlane.xlu0 %572
        %v574 = vsel %vm498, %v491, 0.0
        %575 = vadd.xlane.f32.xlu0 %v574
        %v576 = vpop.xlane.xlu0 %575
        %v577 = vsel %vm498, %v492, 0.0
        %578 = vadd.xlane.f32.xlu0 %v577
        %v579 = vpop.xlane.xlu0 %578
        %v580 = vsel %vm498, %v493, 0.0
        %581 = vadd.xlane.f32.xlu0 %v580
        %v582 = vpop.xlane.xlu0 %581
        %v583 = vsel %vm498, %v494, 0.0
        %584 = vadd.xlane.f32.xlu0 %v583
        %v585 = vpop.xlane.xlu0 %584
        %v586 = vsel %vm498, %v495, 0.0
        %587 = vadd.xlane.f32.xlu0 %v586
        %v588 = vpop.xlane.xlu0 %587
        %v589 = vsel %vm498, %v496, 0.0
        %590 = vadd.xlane.f32.xlu0 %v589
        %v591 = vpop.xlane.xlu0 %590
        %v592 = vsel %vm498, %v497, 0.0
        %593 = vadd.xlane.f32.xlu0 %v592
        %v594 = vpop.xlane.xlu0 %593
        %596 = vset.pattern.permute.xlu0 0
        %597 = vperm.xlu0 %596, %v465
        %v598 = vpop.permute.xlu0 %597
        %v600 = vadd.f32 %v501, %v598
        %v601 = vadd.f32 %v504, %v598
        %v602 = vadd.f32 %v507, %v598
        %v603 = vadd.f32 %v510, %v598
        %v604 = vadd.f32 %v513, %v598
        %v605 = vadd.f32 %v516, %v598
        %v606 = vadd.f32 %v519, %v598
        %v607 = vadd.f32 %v522, %v598
        %v608 = vadd.f32 %v525, %v598
        %v609 = vadd.f32 %v528, %v598
        %v610 = vadd.f32 %v531, %v598
        %v611 = vadd.f32 %v534, %v598
        %v612 = vadd.f32 %v537, %v598
        %v613 = vadd.f32 %v540, %v598
        %v614 = vadd.f32 %v543, %v598
        %v615 = vadd.f32 %v546, %v598
        %v616 = vadd.f32 %v549, %v598
        %v617 = vadd.f32 %v552, %v598
        %v618 = vadd.f32 %v555, %v598
        %v619 = vadd.f32 %v558, %v598
        %v620 = vadd.f32 %v561, %v598
        %v621 = vadd.f32 %v564, %v598
        %v622 = vadd.f32 %v567, %v598
        %v623 = vadd.f32 %v570, %v598
        %v624 = vadd.f32 %v573, %v598
        %v625 = vadd.f32 %v576, %v598
        %v626 = vadd.f32 %v579, %v598
        %v627 = vadd.f32 %v582, %v598
        %v628 = vadd.f32 %v585, %v598
        %v629 = vadd.f32 %v588, %v598
        %v630 = vadd.f32 %v591, %v598
        %v631 = vadd.f32 %v594, %v598
        %vm632 = vcmp.gt.f32.partialorder %v431, 0.0
        %v665 = vlaneseq
        %v666 = vand.u32 %v665, 127
        %v667 = vlaneseq
        %v668 = vshrl.u32 %v667, 7
        %v669 = vsub.s32 %v666, %v668
        %v670 = vrot.slane %v600, %v669
        %v671 = vadd.s32 %v666, 4294967288
        %v672 = vlaneseq
        %v673 = vshrl.u32 %v672, 7
        %v674 = vsub.s32 %v671, %v673
        %v675 = vrot.slane %v601, %v674
        %vm676 = vcmask 130112
        %v677 = vsel %vm676, %v675, %v670
        %v678 = vadd.s32 %v666, 4294967280
        %v679 = vlaneseq
        %v680 = vshrl.u32 %v679, 7
        %v681 = vsub.s32 %v678, %v680
        %v682 = vrot.slane %v602, %v681
        %vm683 = vcmask 195712
        %v684 = vsel %vm683, %v682, %v677
        %v685 = vadd.s32 %v666, 4294967272
        %v686 = vlaneseq
        %v687 = vshrl.u32 %v686, 7
        %v688 = vsub.s32 %v685, %v687
        %v689 = vrot.slane %v603, %v688
        %vm690 = vcmask 261312
        %v691 = vsel %vm690, %v689, %v684
        %v692 = vlaneseq
        %v693 = vshrl.u32 %v692, 7
        %v694 = vsub.s32 %v666, %v693
        %v695 = vrot.slane %v604, %v694
        %v696 = vlaneseq
        %v697 = vshrl.u32 %v696, 7
        %v698 = vsub.s32 %v671, %v697
        %v699 = vrot.slane %v605, %v698
        %v700 = vsel %vm676, %v699, %v695
        %v701 = vlaneseq
        %v702 = vshrl.u32 %v701, 7
        %v703 = vsub.s32 %v678, %v702
        %v704 = vrot.slane %v606, %v703
        %v705 = vsel %vm683, %v704, %v700
        %v706 = vlaneseq
        %v707 = vshrl.u32 %v706, 7
        %v708 = vsub.s32 %v685, %v707
        %v709 = vrot.slane %v607, %v708
        %v710 = vsel %vm690, %v709, %v705
        %v711 = vlaneseq
        %v712 = vshrl.u32 %v711, 7
        %v713 = vsub.s32 %v666, %v712
        %v714 = vrot.slane %v608, %v713
        %v715 = vlaneseq
        %v716 = vshrl.u32 %v715, 7
        %v717 = vsub.s32 %v671, %v716
        %v718 = vrot.slane %v609, %v717
        %v719 = vsel %vm676, %v718, %v714
        %v720 = vlaneseq
        %v721 = vshrl.u32 %v720, 7
        %v722 = vsub.s32 %v678, %v721
        %v723 = vrot.slane %v610, %v722
        %v724 = vsel %vm683, %v723, %v719
        %v725 = vlaneseq
        %v726 = vshrl.u32 %v725, 7
        %v727 = vsub.s32 %v685, %v726
        %v728 = vrot.slane %v611, %v727
        %v729 = vsel %vm690, %v728, %v724
        %v730 = vlaneseq
        %v731 = vshrl.u32 %v730, 7
        %v732 = vsub.s32 %v666, %v731
        %v733 = vrot.slane %v612, %v732
        %v734 = vlaneseq
        %v735 = vshrl.u32 %v734, 7
        %v736 = vsub.s32 %v671, %v735
        %v737 = vrot.slane %v613, %v736
        %v738 = vsel %vm676, %v737, %v733
        %v739 = vlaneseq
        %v740 = vshrl.u32 %v739, 7
        %v741 = vsub.s32 %v678, %v740
        %v742 = vrot.slane %v614, %v741
        %v743 = vsel %vm683, %v742, %v738
        %v744 = vlaneseq
        %v745 = vshrl.u32 %v744, 7
        %v746 = vsub.s32 %v685, %v745
        %v747 = vrot.slane %v615, %v746
        %v748 = vsel %vm690, %v747, %v743
        %v749 = vlaneseq
        %v750 = vshrl.u32 %v749, 7
        %v751 = vsub.s32 %v666, %v750
        %v752 = vrot.slane %v616, %v751
        %v753 = vlaneseq
        %v754 = vshrl.u32 %v753, 7
        %v755 = vsub.s32 %v671, %v754
        %v756 = vrot.slane %v617, %v755
        %v757 = vsel %vm676, %v756, %v752
        %v758 = vlaneseq
        %v759 = vshrl.u32 %v758, 7
        %v760 = vsub.s32 %v678, %v759
        %v761 = vrot.slane %v618, %v760
        %v762 = vsel %vm683, %v761, %v757
        %v763 = vlaneseq
        %v764 = vshrl.u32 %v763, 7
        %v765 = vsub.s32 %v685, %v764
        %v766 = vrot.slane %v619, %v765
        %v767 = vsel %vm690, %v766, %v762
        %v768 = vlaneseq
        %v769 = vshrl.u32 %v768, 7
        %v770 = vsub.s32 %v666, %v769
        %v771 = vrot.slane %v620, %v770
        %v772 = vlaneseq
        %v773 = vshrl.u32 %v772, 7
        %v774 = vsub.s32 %v671, %v773
        %v775 = vrot.slane %v621, %v774
        %v776 = vsel %vm676, %v775, %v771
        %v777 = vlaneseq
        %v778 = vshrl.u32 %v777, 7
        %v779 = vsub.s32 %v678, %v778
        %v780 = vrot.slane %v622, %v779
        %v781 = vsel %vm683, %v780, %v776
        %v782 = vlaneseq
        %v783 = vshrl.u32 %v782, 7
        %v784 = vsub.s32 %v685, %v783
        %v785 = vrot.slane %v623, %v784
        %v786 = vsel %vm690, %v785, %v781
        %v787 = vlaneseq
        %v788 = vshrl.u32 %v787, 7
        %v789 = vsub.s32 %v666, %v788
        %v790 = vrot.slane %v624, %v789
        %v791 = vlaneseq
        %v792 = vshrl.u32 %v791, 7
        %v793 = vsub.s32 %v671, %v792
        %v794 = vrot.slane %v625, %v793
        %v795 = vsel %vm676, %v794, %v790
        %v796 = vlaneseq
        %v797 = vshrl.u32 %v796, 7
        %v798 = vsub.s32 %v678, %v797
        %v799 = vrot.slane %v626, %v798
        %v800 = vsel %vm683, %v799, %v795
        %v801 = vlaneseq
        %v802 = vshrl.u32 %v801, 7
        %v803 = vsub.s32 %v685, %v802
        %v804 = vrot.slane %v627, %v803
        %v805 = vsel %vm690, %v804, %v800
        %v806 = vlaneseq
        %v807 = vshrl.u32 %v806, 7
        %v808 = vsub.s32 %v666, %v807
        %v809 = vrot.slane %v628, %v808
        %v810 = vlaneseq
        %v811 = vshrl.u32 %v810, 7
        %v812 = vsub.s32 %v671, %v811
        %v813 = vrot.slane %v629, %v812
        %v814 = vsel %vm676, %v813, %v809
        %v815 = vlaneseq
        %v816 = vshrl.u32 %v815, 7
        %v817 = vsub.s32 %v678, %v816
        %v818 = vrot.slane %v630, %v817
        %v819 = vsel %vm683, %v818, %v814
        %v820 = vlaneseq
        %v821 = vshrl.u32 %v820, 7
        %v822 = vsub.s32 %v685, %v821
        %v823 = vrot.slane %v631, %v822
        %v824 = vsel %vm690, %v823, %v819
        %vm825 = vcmask 1041409
        %v826 = vsel %vm825, %v710, %v691
        %vm827 = vcmask 1042434
        %v828 = vsel %vm827, %v729, %v826
        %vm829 = vcmask 1043459
        %v830 = vsel %vm829, %v748, %v828
        %vm831 = vcmask 1044484
        %v832 = vsel %vm831, %v767, %v830
        %vm833 = vcmask 1045509
        %v834 = vsel %vm833, %v786, %v832
        %vm835 = vcmask 1046534
        %v836 = vsel %vm835, %v805, %v834
        %vm837 = vcmask 1047559
        %v838 = vsel %vm837, %v824, %v836
        %v840 = vsel %vm632, %v838, -1e+30
        %v841 = vsel %vm498, %v840, -inf
        %842 = vmax.xlane.f32.xlu0 %v841
        %v843 = vpop.xlane.xlu0 %842
        %v844 = vsub.f32 %v840, %v843
        %v845 = vmul.f32 %v844, 1.442695
        %v846 = vpow.pop %v845
        %v847 = vsel %vm498, %v846, 0.0
        %848 = vadd.xlane.f32.xlu0 %v847
        %v849 = vpop.xlane.xlu0 %848
        %v850 = vrcp.pop %v849
        %v851 = vmul.f32 %v846, %v850
        %v852 = vlaneseq
        %v853 = vshrl.u32 %v852, 7
        %v854 = vsub.s32 0, %v853
        %v855 = vrot.slane %v851, %v854
        %857 = vbcast.lane.b32.xlu0 %v855, 256
        %v858 = vpop.permute.xlu0 %857
        %s860 = sor.u32 256, 8
        %861 = vbcast.lane.b32.xlu0 %v855, %s860
        %v862 = vpop.permute.xlu0 %861
        %s864 = sor.u32 256, 16
        %865 = vbcast.lane.b32.xlu0 %v855, %s864
        %v866 = vpop.permute.xlu0 %865
        %s868 = sor.u32 256, 24
        %869 = vbcast.lane.b32.xlu0 %v855, %s868
        %v870 = vpop.permute.xlu0 %869
        %v871 = vlaneseq
        %v872 = vshrl.u32 %v871, 7
        %v873 = vsub.s32 1, %v872
        %v874 = vrot.slane %v851, %v873
        %876 = vbcast.lane.b32.xlu0 %v874, 256
        %v877 = vpop.permute.xlu0 %876
        %s879 = sor.u32 256, 8
        %880 = vbcast.lane.b32.xlu0 %v874, %s879
        %v881 = vpop.permute.xlu0 %880
        %s883 = sor.u32 256, 16
        %884 = vbcast.lane.b32.xlu0 %v874, %s883
        %v885 = vpop.permute.xlu0 %884
        %s887 = sor.u32 256, 24
        %888 = vbcast.lane.b32.xlu0 %v874, %s887
        %v889 = vpop.permute.xlu0 %888
        %v890 = vlaneseq
        %v891 = vshrl.u32 %v890, 7
        %v892 = vsub.s32 2, %v891
        %v893 = vrot.slane %v851, %v892
        %895 = vbcast.lane.b32.xlu0 %v893, 256
        %v896 = vpop.permute.xlu0 %895
        %s898 = sor.u32 256, 8
        %899 = vbcast.lane.b32.xlu0 %v893, %s898
        %v900 = vpop.permute.xlu0 %899
        %s902 = sor.u32 256, 16
        %903 = vbcast.lane.b32.xlu0 %v893, %s902
        %v904 = vpop.permute.xlu0 %903
        %s906 = sor.u32 256, 24
        %907 = vbcast.lane.b32.xlu0 %v893, %s906
        %v908 = vpop.permute.xlu0 %907
        %v909 = vlaneseq
        %v910 = vshrl.u32 %v909, 7
        %v911 = vsub.s32 3, %v910
        %v912 = vrot.slane %v851, %v911
        %914 = vbcast.lane.b32.xlu0 %v912, 256
        %v915 = vpop.permute.xlu0 %914
        %s917 = sor.u32 256, 8
        %918 = vbcast.lane.b32.xlu0 %v912, %s917
        %v919 = vpop.permute.xlu0 %918
        %s921 = sor.u32 256, 16
        %922 = vbcast.lane.b32.xlu0 %v912, %s921
        %v923 = vpop.permute.xlu0 %922
        %s925 = sor.u32 256, 24
        %926 = vbcast.lane.b32.xlu0 %v912, %s925
        %v927 = vpop.permute.xlu0 %926
        %v928 = vlaneseq
        %v929 = vshrl.u32 %v928, 7
        %v930 = vsub.s32 4, %v929
        %v931 = vrot.slane %v851, %v930
        %933 = vbcast.lane.b32.xlu0 %v931, 256
        %v934 = vpop.permute.xlu0 %933
        %s936 = sor.u32 256, 8
        %937 = vbcast.lane.b32.xlu0 %v931, %s936
        %v938 = vpop.permute.xlu0 %937
        %s940 = sor.u32 256, 16
        %941 = vbcast.lane.b32.xlu0 %v931, %s940
        %v942 = vpop.permute.xlu0 %941
        %s944 = sor.u32 256, 24
        %945 = vbcast.lane.b32.xlu0 %v931, %s944
        %v946 = vpop.permute.xlu0 %945
        %v947 = vlaneseq
        %v948 = vshrl.u32 %v947, 7
        %v949 = vsub.s32 5, %v948
        %v950 = vrot.slane %v851, %v949
        %952 = vbcast.lane.b32.xlu0 %v950, 256
        %v953 = vpop.permute.xlu0 %952
        %s955 = sor.u32 256, 8
        %956 = vbcast.lane.b32.xlu0 %v950, %s955
        %v957 = vpop.permute.xlu0 %956
        %s959 = sor.u32 256, 16
        %960 = vbcast.lane.b32.xlu0 %v950, %s959
        %v961 = vpop.permute.xlu0 %960
        %s963 = sor.u32 256, 24
        %964 = vbcast.lane.b32.xlu0 %v950, %s963
        %v965 = vpop.permute.xlu0 %964
        %v966 = vlaneseq
        %v967 = vshrl.u32 %v966, 7
        %v968 = vsub.s32 6, %v967
        %v969 = vrot.slane %v851, %v968
        %971 = vbcast.lane.b32.xlu0 %v969, 256
        %v972 = vpop.permute.xlu0 %971
        %s974 = sor.u32 256, 8
        %975 = vbcast.lane.b32.xlu0 %v969, %s974
        %v976 = vpop.permute.xlu0 %975
        %s978 = sor.u32 256, 16
        %979 = vbcast.lane.b32.xlu0 %v969, %s978
        %v980 = vpop.permute.xlu0 %979
        %s982 = sor.u32 256, 24
        %983 = vbcast.lane.b32.xlu0 %v969, %s982
        %v984 = vpop.permute.xlu0 %983
        %v985 = vlaneseq
        %v986 = vshrl.u32 %v985, 7
        %v987 = vsub.s32 7, %v986
        %v988 = vrot.slane %v851, %v987
        %990 = vbcast.lane.b32.xlu0 %v988, 256
        %v991 = vpop.permute.xlu0 %990
        %s993 = sor.u32 256, 8
        %994 = vbcast.lane.b32.xlu0 %v988, %s993
        %v995 = vpop.permute.xlu0 %994
        %s997 = sor.u32 256, 16
        %998 = vbcast.lane.b32.xlu0 %v988, %s997
        %v999 = vpop.permute.xlu0 %998
        %s1001 = sor.u32 256, 24
        %1002 = vbcast.lane.b32.xlu0 %v988, %s1001
        %v1003 = vpop.permute.xlu0 %1002
        %v1004 = vmul.f32 %v858, %v432
        %v1005 = vmul.f32 %v862, %v433
        %v1006 = vmul.f32 %v866, %v434
        %v1007 = vmul.f32 %v870, %v435
        %v1008 = vmul.f32 %v877, %v436
        %v1009 = vmul.f32 %v881, %v437
        %v1010 = vmul.f32 %v885, %v438
        %v1011 = vmul.f32 %v889, %v439
        %v1012 = vmul.f32 %v896, %v440
        %v1013 = vmul.f32 %v900, %v441
        %v1014 = vmul.f32 %v904, %v442
        %v1015 = vmul.f32 %v908, %v443
        %v1016 = vmul.f32 %v915, %v444
        %v1017 = vmul.f32 %v919, %v445
        %v1018 = vmul.f32 %v923, %v446
        %v1019 = vmul.f32 %v927, %v447
        %v1020 = vmul.f32 %v934, %v448
        %v1021 = vmul.f32 %v938, %v449
        %v1022 = vmul.f32 %v942, %v450
        %v1023 = vmul.f32 %v946, %v451
        %v1024 = vmul.f32 %v953, %v452
        %v1025 = vmul.f32 %v957, %v453
        %v1026 = vmul.f32 %v961, %v454
        %v1027 = vmul.f32 %v965, %v455
        %v1028 = vmul.f32 %v972, %v456
        %v1029 = vmul.f32 %v976, %v457
        %v1030 = vmul.f32 %v980, %v458
        %v1031 = vmul.f32 %v984, %v459
        %v1032 = vmul.f32 %v991, %v460
        %v1033 = vmul.f32 %v995, %v461
        %v1034 = vmul.f32 %v999, %v462
        %v1035 = vmul.f32 %v1003, %v463
        %v1036 = vsel %vm498, %v1004, 0.0
        %v1037 = vsel %vm498, %v1005, 0.0
        %v1038 = vadd.f32 %v1036, %v1037
        %v1039 = vsel %vm498, %v1006, 0.0
        %v1040 = vadd.f32 %v1038, %v1039
        %v1041 = vsel %vm498, %v1007, 0.0
        %v1042 = vadd.f32 %v1040, %v1041
        %v1043 = vrot.slane %v1042, 4
        %v1044 = vadd.f32 %v1042, %v1043
        %v1045 = vrot.slane %v1044, 2
        %v1046 = vadd.f32 %v1044, %v1045
        %v1047 = vrot.slane %v1046, 1
        %v1048 = vadd.f32 %v1046, %v1047
        %v1049 = vsel %vm498, %v1008, 0.0
        %v1050 = vsel %vm498, %v1009, 0.0
        %v1051 = vadd.f32 %v1049, %v1050
        %v1052 = vsel %vm498, %v1010, 0.0
        %v1053 = vadd.f32 %v1051, %v1052
        %v1054 = vsel %vm498, %v1011, 0.0
        %v1055 = vadd.f32 %v1053, %v1054
        %v1056 = vrot.slane %v1055, 4
        %v1057 = vadd.f32 %v1055, %v1056
        %v1058 = vrot.slane %v1057, 2
        %v1059 = vadd.f32 %v1057, %v1058
        %v1060 = vrot.slane %v1059, 1
        %v1061 = vadd.f32 %v1059, %v1060
        %v1062 = vsel %vm498, %v1012, 0.0
        %v1063 = vsel %vm498, %v1013, 0.0
        %v1064 = vadd.f32 %v1062, %v1063
        %v1065 = vsel %vm498, %v1014, 0.0
        %v1066 = vadd.f32 %v1064, %v1065
        %v1067 = vsel %vm498, %v1015, 0.0
        %v1068 = vadd.f32 %v1066, %v1067
        %v1069 = vrot.slane %v1068, 4
        %v1070 = vadd.f32 %v1068, %v1069
        %v1071 = vrot.slane %v1070, 2
        %v1072 = vadd.f32 %v1070, %v1071
        %v1073 = vrot.slane %v1072, 1
        %v1074 = vadd.f32 %v1072, %v1073
        %v1075 = vsel %vm498, %v1016, 0.0
        %v1076 = vsel %vm498, %v1017, 0.0
        %v1077 = vadd.f32 %v1075, %v1076
        %v1078 = vsel %vm498, %v1018, 0.0
        %v1079 = vadd.f32 %v1077, %v1078
        %v1080 = vsel %vm498, %v1019, 0.0
        %v1081 = vadd.f32 %v1079, %v1080
        %v1082 = vrot.slane %v1081, 4
        %v1083 = vadd.f32 %v1081, %v1082
        %v1084 = vrot.slane %v1083, 2
        %v1085 = vadd.f32 %v1083, %v1084
        %v1086 = vrot.slane %v1085, 1
        %v1087 = vadd.f32 %v1085, %v1086
        %v1088 = vsel %vm498, %v1020, 0.0
        %v1089 = vsel %vm498, %v1021, 0.0
        %v1090 = vadd.f32 %v1088, %v1089
        %v1091 = vsel %vm498, %v1022, 0.0
        %v1092 = vadd.f32 %v1090, %v1091
        %v1093 = vsel %vm498, %v1023, 0.0
        %v1094 = vadd.f32 %v1092, %v1093
        %v1095 = vrot.slane %v1094, 4
        %v1096 = vadd.f32 %v1094, %v1095
        %v1097 = vrot.slane %v1096, 2
        %v1098 = vadd.f32 %v1096, %v1097
        %v1099 = vrot.slane %v1098, 1
        %v1100 = vadd.f32 %v1098, %v1099
        %v1101 = vsel %vm498, %v1024, 0.0
        %v1102 = vsel %vm498, %v1025, 0.0
        %v1103 = vadd.f32 %v1101, %v1102
        %v1104 = vsel %vm498, %v1026, 0.0
        %v1105 = vadd.f32 %v1103, %v1104
        %v1106 = vsel %vm498, %v1027, 0.0
        %v1107 = vadd.f32 %v1105, %v1106
        %v1108 = vrot.slane %v1107, 4
        %v1109 = vadd.f32 %v1107, %v1108
        %v1110 = vrot.slane %v1109, 2
        %v1111 = vadd.f32 %v1109, %v1110
        %v1112 = vrot.slane %v1111, 1
        %v1113 = vadd.f32 %v1111, %v1112
        %v1114 = vsel %vm498, %v1028, 0.0
        %v1115 = vsel %vm498, %v1029, 0.0
        %v1116 = vadd.f32 %v1114, %v1115
        %v1117 = vsel %vm498, %v1030, 0.0
        %v1118 = vadd.f32 %v1116, %v1117
        %v1119 = vsel %vm498, %v1031, 0.0
        %v1120 = vadd.f32 %v1118, %v1119
        %v1121 = vrot.slane %v1120, 4
        %v1122 = vadd.f32 %v1120, %v1121
        %v1123 = vrot.slane %v1122, 2
        %v1124 = vadd.f32 %v1122, %v1123
        %v1125 = vrot.slane %v1124, 1
        %v1126 = vadd.f32 %v1124, %v1125
        %v1127 = vsel %vm498, %v1032, 0.0
        %v1128 = vsel %vm498, %v1033, 0.0
        %v1129 = vadd.f32 %v1127, %v1128
        %v1130 = vsel %vm498, %v1034, 0.0
        %v1131 = vadd.f32 %v1129, %v1130
        %v1132 = vsel %vm498, %v1035, 0.0
        %v1133 = vadd.f32 %v1131, %v1132
        %v1134 = vrot.slane %v1133, 4
        %v1135 = vadd.f32 %v1133, %v1134
        %v1136 = vrot.slane %v1135, 2
        %v1137 = vadd.f32 %v1135, %v1136
        %v1138 = vrot.slane %v1137, 1
        %v1139 = vadd.f32 %v1137, %v1138
        %v1140 = vld [vmem:[%s393] sm:$0xf]
        %v1141 = vld [vmem:[%s4] sm:$0xf]
        %v1142 = vld [vmem:[%s4 + $0x4] sm:$0xf]
        %v1143 = vld [vmem:[%s4 + $0x8] sm:$0xf]
        %v1144 = vld [vmem:[%s4 + $0xc] sm:$0xf]
        %v1145 = vpack.c.bf16 %v1048, %v1048
        %v1146 = vpack.c.bf16 %v1061, %v1061
        %v1147 = vpack.c.bf16 %v1074, %v1074
        %v1148 = vpack.c.bf16 %v1087, %v1087
        %v1149 = vpack.c.bf16 %v1100, %v1100
        %v1150 = vpack.c.bf16 %v1113, %v1113
        %v1151 = vpack.c.bf16 %v1126, %v1126
        %v1152 = vpack.c.bf16 %v1139, %v1139
        %v1153 = vld [vmem:[%s4 + $0x10] sm:$0xf]
        %v1154 = vld [vmem:[%s4 + $0x14] sm:$0xf]
        %v1155 = vld [vmem:[%s4 + $0x18] sm:$0xf]
        %v1156 = vld [vmem:[%s4 + $0x1c] sm:$0xf]
        %v1165 = vunpack.c.l.b16 %v1145
        %v1166 = vunpack.c.l.b16 %v1146
        %v1167 = vunpack.c.l.b16 %v1147
        %v1168 = vunpack.c.l.b16 %v1148
        %v1169 = vunpack.c.l.b16 %v1149
        %v1170 = vunpack.c.l.b16 %v1150
        %v1171 = vunpack.c.l.b16 %v1151
        %v1172 = vunpack.c.l.b16 %v1152
        %v1173 = vsel %vm825, %v1166, %v1165
        %v1174 = vsel %vm827, %v1167, %v1173
        %v1175 = vsel %vm829, %v1168, %v1174
        %v1176 = vsel %vm831, %v1169, %v1175
        %v1177 = vsel %vm833, %v1170, %v1176
        %v1178 = vsel %vm835, %v1171, %v1177
        %v1179 = vsel %vm837, %v1172, %v1178
        %v1180 = vpack.c.b16 %v1179, %v1179
        %v1185 = vunpack.c.l.b16 %v1153
        %v1186 = vunpack.c.l.b16 %v1154
        %v1187 = vunpack.c.l.b16 %v1155
        %v1188 = vunpack.c.l.b16 %v1156
        %v1189 = vpack.c.b16 %v1186, %v1185
        %v1190 = vpack.c.b16 %v1188, %v1187
        %v1194 = vsel %vm498, %v1180, 0
        %1196 = vmatprep.subr.bf16.mxu0 0
        %1197 = vmatpush1.bf16.msra.mxu0 %v1189
        %1198 = vmatprep.subr.bf16.mxu0 0
        %1199 = vmatpush1.bf16.msra.mxu0 %v1190
        %1200 = vmatprep.subr.bf16.mxu0 0
        %1201 = vmatpush1.bf16.msra.mxu0 0
        %1202 = vmatprep.subr.bf16.mxu0 0
        %1203 = vmatpush1.bf16.msra.mxu0 0
        %1204 = vmatprep.subr.bf16.mxu0 0
        %1205 = vmatpush1.bf16.msra.mxu0 0
        %1206 = vmatprep.subr.bf16.mxu0 0
        %1207 = vmatpush1.bf16.msra.mxu0 0
        %1208 = vmatprep.subr.bf16.mxu0 0
        %1209 = vmatpush1.bf16.msra.mxu0 0
        %1210 = vmatprep.subr.bf16.mxu0 0
        %1211 = vmatpush1.bf16.msra.mxu0 0
        %1212 = vmatprep.subr.bf16.mxu0 0
        %1213 = vmatpush1.bf16.msra.mxu0 0
        %1214 = vmatprep.subr.bf16.mxu0 0
        %1215 = vmatpush1.bf16.msra.mxu0 0
        %1216 = vmatprep.subr.bf16.mxu0 0
        %1217 = vmatpush1.bf16.msra.mxu0 0
        %1218 = vmatprep.subr.bf16.mxu0 0
        %1219 = vmatpush1.bf16.msra.mxu0 0
        %1220 = vmatprep.subr.bf16.mxu0 0
        %1221 = vmatpush1.bf16.msra.mxu0 0
        %1222 = vmatprep.subr.bf16.mxu0 0
        %1223 = vmatpush1.bf16.msra.mxu0 0
        %1224 = vmatprep.subr.bf16.mxu0 0
        %1225 = vmatpush1.bf16.msra.mxu0 0
        %1226 = vmatprep.subr.bf16.mxu0 0
        %1227 = vmatpush1.bf16.msra.mxu0 0
        %1228 = vmatprep.mubr.bf16.mxu0 0
        %1229 = vmatmul.mubr.bf16.gmra.mrb[0].mxu0 %v1194
        %v1230 = vpop.f32.mrb[0].mxu0
        %v1231 = vadd.f32 0.0, %v1230
        %v1232 = vpop.f32.mrb[0].mxu0
        %v1233 = vpop.f32.mrb[0].mxu0
        %v1234 = vpop.f32.mrb[0].mxu0
        %1235 = vdwg.mxu0
        %v1240 = vunpack.c.l.b16 %v1141
        %v1241 = vunpack.c.l.b16 %v1142
        %v1242 = vunpack.c.l.b16 %v1143
        %v1243 = vunpack.c.l.b16 %v1144
        %v1244 = vpack.c.b16 %v1241, %v1240
        %v1245 = vpack.c.b16 %v1243, %v1242
        %v1249 = vsel %vm498, %v1140, 0
        %1251 = vmatprep.subr.bf16.mxu0 0
        %1252 = vmatpush1.bf16.msra.mxu0 %v1244
        %1253 = vmatprep.subr.bf16.mxu0 0
        %1254 = vmatpush1.bf16.msra.mxu0 %v1245
        %1255 = vmatprep.subr.bf16.mxu0 0
        %1256 = vmatpush1.bf16.msra.mxu0 0
        %1257 = vmatprep.subr.bf16.mxu0 0
        %1258 = vmatpush1.bf16.msra.mxu0 0
        %1259 = vmatprep.subr.bf16.mxu0 0
        %1260 = vmatpush1.bf16.msra.mxu0 0
        %1261 = vmatprep.subr.bf16.mxu0 0
        %1262 = vmatpush1.bf16.msra.mxu0 0
        %1263 = vmatprep.subr.bf16.mxu0 0
        %1264 = vmatpush1.bf16.msra.mxu0 0
        %1265 = vmatprep.subr.bf16.mxu0 0
        %1266 = vmatpush1.bf16.msra.mxu0 0
        %1267 = vmatprep.subr.bf16.mxu0 0
        %1268 = vmatpush1.bf16.msra.mxu0 0
        %1269 = vmatprep.subr.bf16.mxu0 0
        %1270 = vmatpush1.bf16.msra.mxu0 0
        %1271 = vmatprep.subr.bf16.mxu0 0
        %1272 = vmatpush1.bf16.msra.mxu0 0
        %1273 = vmatprep.subr.bf16.mxu0 0
        %1274 = vmatpush1.bf16.msra.mxu0 0
        %1275 = vmatprep.subr.bf16.mxu0 0
        %1276 = vmatpush1.bf16.msra.mxu0 0
        %1277 = vmatprep.subr.bf16.mxu0 0
        %1278 = vmatpush1.bf16.msra.mxu0 0
        %1279 = vmatprep.subr.bf16.mxu0 0
        %1280 = vmatpush1.bf16.msra.mxu0 0
        %1281 = vmatprep.subr.bf16.mxu0 0
        %1282 = vmatpush1.bf16.msra.mxu0 0
        %1283 = vmatprep.mubr.bf16.mxu0 0
        %1284 = vmatmul.mubr.bf16.gmra.mrb[0].mxu0 %v1249
        %v1285 = vpop.f32.mrb[0].mxu0
        %v1286 = vadd.f32 %v1231, %v1285
        %v1287 = vpop.f32.mrb[0].mxu0
        %v1288 = vpop.f32.mrb[0].mxu0
        %v1289 = vpop.f32.mrb[0].mxu0
        %1290 = vdwg.mxu0
        %v1291 = vld [vmem:[#allocation2 + $0x1] ss:$0 sm:$0xff]
        %v1292 = vadd.f32 %v1286, %v1291
        %v1293 = vmax.f32 %v1292, 0.0
        %v1294 = vpack.c.bf16 %v1293, %v1293
        %v1295 = vld [vmem:[%s5] sm:$0xf]
        %v1296 = vld [vmem:[%s5 + $0x4] sm:$0xf]
        %v1297 = vld [vmem:[%s5 + $0x8] sm:$0xf]
        %v1298 = vld [vmem:[%s5 + $0xc] sm:$0xf]
        %v1299 = vld [vmem:[#allocation2 + $0x2] ss:$0 sm:$0xff]
        %v1304 = vunpack.c.l.b16 %v1295
        %v1305 = vunpack.c.l.b16 %v1296
        %v1306 = vunpack.c.l.b16 %v1297
        %v1307 = vunpack.c.l.b16 %v1298
        %v1308 = vpack.c.b16 %v1305, %v1304
        %v1309 = vpack.c.b16 %v1307, %v1306
        %v1313 = vsel %vm498, %v1294, 0
        %1315 = vmatprep.subr.bf16.mxu0 0
        %1316 = vmatpush1.bf16.msra.mxu0 %v1308
        %1317 = vmatprep.subr.bf16.mxu0 0
        %1318 = vmatpush1.bf16.msra.mxu0 %v1309
        %1319 = vmatprep.subr.bf16.mxu0 0
        %1320 = vmatpush1.bf16.msra.mxu0 0
        %1321 = vmatprep.subr.bf16.mxu0 0
        %1322 = vmatpush1.bf16.msra.mxu0 0
        %1323 = vmatprep.subr.bf16.mxu0 0
        %1324 = vmatpush1.bf16.msra.mxu0 0
        %1325 = vmatprep.subr.bf16.mxu0 0
        %1326 = vmatpush1.bf16.msra.mxu0 0
        %1327 = vmatprep.subr.bf16.mxu0 0
        %1328 = vmatpush1.bf16.msra.mxu0 0
        %1329 = vmatprep.subr.bf16.mxu0 0
        %1330 = vmatpush1.bf16.msra.mxu0 0
        %1331 = vmatprep.subr.bf16.mxu0 0
        %1332 = vmatpush1.bf16.msra.mxu0 0
        %1333 = vmatprep.subr.bf16.mxu0 0
        %1334 = vmatpush1.bf16.msra.mxu0 0
        %1335 = vmatprep.subr.bf16.mxu0 0
        %1336 = vmatpush1.bf16.msra.mxu0 0
        %1337 = vmatprep.subr.bf16.mxu0 0
        %1338 = vmatpush1.bf16.msra.mxu0 0
        %1339 = vmatprep.subr.bf16.mxu0 0
        %1340 = vmatpush1.bf16.msra.mxu0 0
        %1341 = vmatprep.subr.bf16.mxu0 0
        %1342 = vmatpush1.bf16.msra.mxu0 0
        %1343 = vmatprep.subr.bf16.mxu0 0
        %1344 = vmatpush1.bf16.msra.mxu0 0
        %1345 = vmatprep.subr.bf16.mxu0 0
        %1346 = vmatpush1.bf16.msra.mxu0 0
        %1347 = vmatprep.mubr.bf16.mxu0 0
        %1348 = vmatmul.mubr.bf16.gmra.mrb[0].mxu0 %v1313
        %v1349 = vpop.f32.mrb[0].mxu0
        %v1350 = vadd.f32 %v1299, %v1349
        %v1351 = vpop.f32.mrb[0].mxu0
        %v1352 = vpop.f32.mrb[0].mxu0
        %v1353 = vpop.f32.mrb[0].mxu0
        %1354 = vdwg.mxu0
        %vm1355 = vcmask 48128
        %v1356 = vsel %vm1355, %v1350, -inf
        %1357 = vmax.xlane.f32.xlu0 %v1356
        %v1358 = vpop.xlane.xlu0 %1357
        %v1359 = vsub.f32 %v1350, %v1358
        %v1360 = vmul.f32 %v1359, 1.442695
        %v1361 = vpow.pop %v1360
        %v1362 = vsel %vm1355, %v1361, 0.0
        %1363 = vadd.xlane.f32.xlu0 %v1362
        %v1364 = vpop.xlane.xlu0 %1363
        %v1365 = vrcp.pop %v1364
        %v1366 = vmul.f32 %v1361, %v1365
        %v1367 = vpack.c.bf16 %v1366, %v1366
        %v1368 = vld [vmem:[#allocation4] sm:$0x77]
        %v1369 = vld [vmem:[#allocation4 + $0x8] sm:$0x7]
        %v1372 = vunpack.c.l.b16 %v1368
        %v1373 = vunpack.c.h.b16 %v1368
        %v1374 = vunpack.c.l.b16 %v1369
        %v1375 = vpack.c.b16 %v1372, %v1372
        %v1376 = vpack.c.b16 %v1373, %v1373
        %v1377 = vpack.c.b16 %v1374, %v1374
        %v1379 = vsel %vm1355, %v1367, 0
        %vm1381 = vcmask 1042432
        %v1383 = vsel %vm1381, %v1375, 0
        %v1386 = vsel %vm1381, %v1376, 0
        %v1389 = vsel %vm1381, %v1377, 0
        %1391 = vmatprep.subr.bf16.mxu0 %v1386
        %1392 = vmatpush1.bf16.msra.mxu0 %v1383
        %1393 = vmatprep.subr.bf16.mxu0 0
        %1394 = vmatpush1.bf16.msra.mxu0 0
        %1395 = vmatprep.subr.bf16.mxu0 0
        %1396 = vmatpush1.bf16.msra.mxu0 0
        %1397 = vmatprep.subr.bf16.mxu0 0
        %1398 = vmatpush1.bf16.msra.mxu0 0
        %1399 = vmatprep.subr.bf16.mxu0 0
        %1400 = vmatpush1.bf16.msra.mxu0 0
        %1401 = vmatprep.subr.bf16.mxu0 0
        %1402 = vmatpush1.bf16.msra.mxu0 0
        %1403 = vmatprep.subr.bf16.mxu0 0
        %1404 = vmatpush1.bf16.msra.mxu0 0
        %1405 = vmatprep.subr.bf16.mxu0 0
        %1406 = vmatpush1.bf16.msra.mxu0 0
        %1407 = vmatprep.subr.bf16.mxu0 0
        %1408 = vmatpush1.bf16.msra.mxu0 0
        %1409 = vmatprep.subr.bf16.mxu0 0
        %1410 = vmatpush1.bf16.msra.mxu0 0
        %1411 = vmatprep.subr.bf16.mxu0 0
        %1412 = vmatpush1.bf16.msra.mxu0 0
        %1413 = vmatprep.subr.bf16.mxu0 0
        %1414 = vmatpush1.bf16.msra.mxu0 0
        %1415 = vmatprep.subr.bf16.mxu0 0
        %1416 = vmatpush1.bf16.msra.mxu0 0
        %1417 = vmatprep.subr.bf16.mxu0 0
        %1418 = vmatpush1.bf16.msra.mxu0 0
        %1419 = vmatprep.subr.bf16.mxu0 0
        %1420 = vmatpush1.bf16.msra.mxu0 0
        %1421 = vmatprep.subr.bf16.mxu0 0
        %1422 = vmatpush1.bf16.msra.mxu0 0
        %1423 = vmatprep.mubr.bf16.mxu0 0
        %1424 = vmatmul.mubr.bf16.gmra.mrb[0].mxu0 %v1379
        %v1425 = vpop.f32.mrb[0].mxu0
        %v1426 = vadd.f32 0.0, %v1425
        %v1427 = vpop.f32.mrb[0].mxu0
        %v1428 = vadd.f32 0.0, %v1427
        %v1429 = vpop.f32.mrb[0].mxu0
        %v1430 = vpop.f32.mrb[0].mxu0
        %1431 = vdwg.mxu0
        %1432 = vmatprep.subr.bf16.mxu0 0
        %1433 = vmatpush1.bf16.msra.mxu0 %v1389
        %1434 = vmatprep.subr.bf16.mxu0 0
        %1435 = vmatpush1.bf16.msra.mxu0 0
        %1436 = vmatprep.subr.bf16.mxu0 0
        %1437 = vmatpush1.bf16.msra.mxu0 0
        %1438 = vmatprep.subr.bf16.mxu0 0
        %1439 = vmatpush1.bf16.msra.mxu0 0
        %1440 = vmatprep.subr.bf16.mxu0 0
        %1441 = vmatpush1.bf16.msra.mxu0 0
        %1442 = vmatprep.subr.bf16.mxu0 0
        %1443 = vmatpush1.bf16.msra.mxu0 0
        %1444 = vmatprep.subr.bf16.mxu0 0
        %1445 = vmatpush1.bf16.msra.mxu0 0
        %1446 = vmatprep.subr.bf16.mxu0 0
        %1447 = vmatpush1.bf16.msra.mxu0 0
        %1448 = vmatprep.subr.bf16.mxu0 0
        %1449 = vmatpush1.bf16.msra.mxu0 0
        %1450 = vmatprep.subr.bf16.mxu0 0
        %1451 = vmatpush1.bf16.msra.mxu0 0
        %1452 = vmatprep.subr.bf16.mxu0 0
        %1453 = vmatpush1.bf16.msra.mxu0 0
        %1454 = vmatprep.subr.bf16.mxu0 0
        %1455 = vmatpush1.bf16.msra.mxu0 0
        %1456 = vmatprep.subr.bf16.mxu0 0
        %1457 = vmatpush1.bf16.msra.mxu0 0
        %1458 = vmatprep.subr.bf16.mxu0 0
        %1459 = vmatpush1.bf16.msra.mxu0 0
        %1460 = vmatprep.subr.bf16.mxu0 0
        %1461 = vmatpush1.bf16.msra.mxu0 0
        %1462 = vmatprep.subr.bf16.mxu0 0
        %1463 = vmatpush1.bf16.msra.mxu0 0
        %1464 = vmatprep.mubr.bf16.mxu0 0
        %1465 = vmatmul.mubr.bf16.gmra.mrb[0].mxu0 %v1379
        %v1466 = vpop.f32.mrb[0].mxu0
        %v1467 = vadd.f32 0.0, %v1466
        %v1468 = vpop.f32.mrb[0].mxu0
        %v1469 = vpop.f32.mrb[0].mxu0
        %v1470 = vpop.f32.mrb[0].mxu0
        %1471 = vdwg.mxu0
        %v1488 = vunpack.c.l.b16 %v399
        %v1489 = vunpack.c.l.b16 %v400
        %v1490 = vunpack.c.l.b16 %v403
        %v1491 = vunpack.c.l.b16 %v404
        %v1492 = vunpack.c.l.b16 %v407
        %v1493 = vunpack.c.l.b16 %v408
        %v1494 = vunpack.c.l.b16 %v411
        %v1495 = vunpack.c.l.b16 %v412
        %v1496 = vunpack.c.l.b16 %v415
        %v1497 = vunpack.c.l.b16 %v416
        %v1498 = vunpack.c.l.b16 %v419
        %v1499 = vunpack.c.l.b16 %v420
        %v1500 = vunpack.c.l.b16 %v423
        %v1501 = vunpack.c.l.b16 %v424
        %v1502 = vunpack.c.l.b16 %v427
        %v1503 = vunpack.c.l.b16 %v428
        %v1504 = vpack.c.b16 %v1489, %v1488
        %v1505 = vpack.c.b16 %v1491, %v1490
        %v1506 = vpack.c.b16 %v1493, %v1492
        %v1507 = vpack.c.b16 %v1495, %v1494
        %v1508 = vpack.c.b16 %v1497, %v1496
        %v1509 = vpack.c.b16 %v1499, %v1498
        %v1510 = vpack.c.b16 %v1501, %v1500
        %v1511 = vpack.c.b16 %v1503, %v1502
        %v1520 = vunpack.c.l.b16 %v401
        %v1521 = vunpack.c.l.b16 %v405
        %v1522 = vunpack.c.l.b16 %v409
        %v1523 = vunpack.c.l.b16 %v413
        %v1524 = vunpack.c.l.b16 %v417
        %v1525 = vunpack.c.l.b16 %v421
        %v1526 = vunpack.c.l.b16 %v425
        %v1527 = vunpack.c.l.b16 %v429
        %v1528 = vpack.c.b16 %v1520, %v1520
        %v1529 = vpack.c.b16 %v1521, %v1521
        %v1530 = vpack.c.b16 %v1522, %v1522
        %v1531 = vpack.c.b16 %v1523, %v1523
        %v1532 = vpack.c.b16 %v1524, %v1524
        %v1533 = vpack.c.b16 %v1525, %v1525
        %v1534 = vpack.c.b16 %v1526, %v1526
        %v1535 = vpack.c.b16 %v1527, %v1527
        %vm1536 = vsmask.f32 7424
        %v1538 = vshrl.u32 %v1504, 16
        %v1540 = vshll.u32 %v1504, 16
        %v1542 = vrot.slane %v1540, 1
        %v1543 = vor.u32 %v1538, %v1542
        %v1545 = vshll.u32 %v1528, 16
        %v1547 = vrot.slane %v1545, 1
        %v1548 = vsel %vm1536, %v1543, %v1547
        %v1550 = vshrl.u32 %v1505, 16
        %v1552 = vshll.u32 %v1505, 16
        %v1554 = vrot.slane %v1552, 1
        %v1555 = vor.u32 %v1550, %v1554
        %v1557 = vshll.u32 %v1529, 16
        %v1559 = vrot.slane %v1557, 1
        %v1560 = vsel %vm1536, %v1555, %v1559
        %v1562 = vshrl.u32 %v1506, 16
        %v1564 = vshll.u32 %v1506, 16
        %v1566 = vrot.slane %v1564, 1
        %v1567 = vor.u32 %v1562, %v1566
        %v1569 = vshll.u32 %v1530, 16
        %v1571 = vrot.slane %v1569, 1
        %v1572 = vsel %vm1536, %v1567, %v1571
        %v1574 = vshrl.u32 %v1507, 16
        %v1576 = vshll.u32 %v1507, 16
        %v1578 = vrot.slane %v1576, 1
        %v1579 = vor.u32 %v1574, %v1578
        %v1581 = vshll.u32 %v1531, 16
        %v1583 = vrot.slane %v1581, 1
        %v1584 = vsel %vm1536, %v1579, %v1583
        %v1586 = vshrl.u32 %v1508, 16
        %v1588 = vshll.u32 %v1508, 16
        %v1590 = vrot.slane %v1588, 1
        %v1591 = vor.u32 %v1586, %v1590
        %v1593 = vshll.u32 %v1532, 16
        %v1595 = vrot.slane %v1593, 1
        %v1596 = vsel %vm1536, %v1591, %v1595
        %v1598 = vshrl.u32 %v1509, 16
        %v1600 = vshll.u32 %v1509, 16
        %v1602 = vrot.slane %v1600, 1
        %v1603 = vor.u32 %v1598, %v1602
        %v1605 = vshll.u32 %v1533, 16
        %v1607 = vrot.slane %v1605, 1
        %v1608 = vsel %vm1536, %v1603, %v1607
        %v1610 = vshrl.u32 %v1510, 16
        %v1612 = vshll.u32 %v1510, 16
        %v1614 = vrot.slane %v1612, 1
        %v1615 = vor.u32 %v1610, %v1614
        %v1617 = vshll.u32 %v1534, 16
        %v1619 = vrot.slane %v1617, 1
        %v1620 = vsel %vm1536, %v1615, %v1619
        %v1622 = vshrl.u32 %v1511, 16
        %v1624 = vshll.u32 %v1511, 16
        %v1626 = vrot.slane %v1624, 1
        %v1627 = vor.u32 %v1622, %v1626
        %v1629 = vshll.u32 %v1535, 16
        %v1631 = vrot.slane %v1629, 1
        %v1632 = vsel %vm1536, %v1627, %v1631
        %1633 = vrot.lane.b32.xlu0 %v1548, 32
        %v1634 = vpop.permute.xlu0 %1633
        %1635 = vrot.lane.b32.xlu0 %v1560, 32
        %v1636 = vpop.permute.xlu0 %1635
        %1637 = vrot.lane.b32.xlu0 %v1572, 32
        %v1638 = vpop.permute.xlu0 %1637
        %1639 = vrot.lane.b32.xlu0 %v1584, 32
        %v1640 = vpop.permute.xlu0 %1639
        %1641 = vrot.lane.b32.xlu0 %v1596, 32
        %v1642 = vpop.permute.xlu0 %1641
        %1643 = vrot.lane.b32.xlu0 %v1608, 32
        %v1644 = vpop.permute.xlu0 %1643
        %1645 = vrot.lane.b32.xlu0 %v1620, 32
        %v1646 = vpop.permute.xlu0 %1645
        %1647 = vrot.lane.b32.xlu0 %v1632, 32
        %v1648 = vpop.permute.xlu0 %1647
        %vm1649 = vcmask 1046528
        %v1650 = vrot.slane %v1504, 1
        %v1651 = vrot.slane %v1528, 1
        %v1652 = vsel %vm1649, %v1650, %v1651
        %v1653 = vrot.slane %v1505, 1
        %v1654 = vrot.slane %v1529, 1
        %v1655 = vsel %vm1649, %v1653, %v1654
        %v1656 = vrot.slane %v1506, 1
        %v1657 = vrot.slane %v1530, 1
        %v1658 = vsel %vm1649, %v1656, %v1657
        %v1659 = vrot.slane %v1507, 1
        %v1660 = vrot.slane %v1531, 1
        %v1661 = vsel %vm1649, %v1659, %v1660
        %v1662 = vrot.slane %v1508, 1
        %v1663 = vrot.slane %v1532, 1
        %v1664 = vsel %vm1649, %v1662, %v1663
        %v1665 = vrot.slane %v1509, 1
        %v1666 = vrot.slane %v1533, 1
        %v1667 = vsel %vm1649, %v1665, %v1666
        %v1668 = vrot.slane %v1510, 1
        %v1669 = vrot.slane %v1534, 1
        %v1670 = vsel %vm1649, %v1668, %v1669
        %v1671 = vrot.slane %v1511, 1
        %v1672 = vrot.slane %v1535, 1
        %v1673 = vsel %vm1649, %v1671, %v1672
        %1674 = vrot.lane.b32.xlu0 %v1652, 64
        %v1675 = vpop.permute.xlu0 %1674
        %1676 = vrot.lane.b32.xlu0 %v1655, 64
        %v1677 = vpop.permute.xlu0 %1676
        %1678 = vrot.lane.b32.xlu0 %v1658, 64
        %v1679 = vpop.permute.xlu0 %1678
        %1680 = vrot.lane.b32.xlu0 %v1661, 64
        %v1681 = vpop.permute.xlu0 %1680
        %1682 = vrot.lane.b32.xlu0 %v1664, 64
        %v1683 = vpop.permute.xlu0 %1682
        %1684 = vrot.lane.b32.xlu0 %v1667, 64
        %v1685 = vpop.permute.xlu0 %1684
        %1686 = vrot.lane.b32.xlu0 %v1670, 64
        %v1687 = vpop.permute.xlu0 %1686
        %1688 = vrot.lane.b32.xlu0 %v1673, 64
        %v1689 = vpop.permute.xlu0 %1688
        %vm1690 = vsmask.f32 6400
        %v1691 = vrot.slane %v1538, 1
        %v1692 = vrot.slane %v1540, 2
        %v1693 = vor.u32 %v1691, %v1692
        %v1694 = vshrl.u32 %v1528, 16
        %v1696 = vrot.slane %v1694, 1
        %v1697 = vrot.slane %v1545, 2
        %v1698 = vor.u32 %v1696, %v1697
        %v1699 = vsel %vm1690, %v1693, %v1698
        %v1700 = vrot.slane %v1550, 1
        %v1701 = vrot.slane %v1552, 2
        %v1702 = vor.u32 %v1700, %v1701
        %v1703 = vshrl.u32 %v1529, 16
        %v1705 = vrot.slane %v1703, 1
        %v1706 = vrot.slane %v1557, 2
        %v1707 = vor.u32 %v1705, %v1706
        %v1708 = vsel %vm1690, %v1702, %v1707
        %v1709 = vrot.slane %v1562, 1
        %v1710 = vrot.slane %v1564, 2
        %v1711 = vor.u32 %v1709, %v1710
        %v1712 = vshrl.u32 %v1530, 16
        %v1714 = vrot.slane %v1712, 1
        %v1715 = vrot.slane %v1569, 2
        %v1716 = vor.u32 %v1714, %v1715
        %v1717 = vsel %vm1690, %v1711, %v1716
        %v1718 = vrot.slane %v1574, 1
        %v1719 = vrot.slane %v1576, 2
        %v1720 = vor.u32 %v1718, %v1719
        %v1721 = vshrl.u32 %v1531, 16
        %v1723 = vrot.slane %v1721, 1
        %v1724 = vrot.slane %v1581, 2
        %v1725 = vor.u32 %v1723, %v1724
        %v1726 = vsel %vm1690, %v1720, %v1725
        %v1727 = vrot.slane %v1586, 1
        %v1728 = vrot.slane %v1588, 2
        %v1729 = vor.u32 %v1727, %v1728
        %v1730 = vshrl.u32 %v1532, 16
        %v1732 = vrot.slane %v1730, 1
        %v1733 = vrot.slane %v1593, 2
        %v1734 = vor.u32 %v1732, %v1733
        %v1735 = vsel %vm1690, %v1729, %v1734
        %v1736 = vrot.slane %v1598, 1
        %v1737 = vrot.slane %v1600, 2
        %v1738 = vor.u32 %v1736, %v1737
        %v1739 = vshrl.u32 %v1533, 16
        %v1741 = vrot.slane %v1739, 1
        %v1742 = vrot.slane %v1605, 2
        %v1743 = vor.u32 %v1741, %v1742
        %v1744 = vsel %vm1690, %v1738, %v1743
        %v1745 = vrot.slane %v1610, 1
        %v1746 = vrot.slane %v1612, 2
        %v1747 = vor.u32 %v1745, %v1746
        %v1748 = vshrl.u32 %v1534, 16
        %v1750 = vrot.slane %v1748, 1
        %v1751 = vrot.slane %v1617, 2
        %v1752 = vor.u32 %v1750, %v1751
        %v1753 = vsel %vm1690, %v1747, %v1752
        %v1754 = vrot.slane %v1622, 1
        %v1755 = vrot.slane %v1624, 2
        %v1756 = vor.u32 %v1754, %v1755
        %v1757 = vshrl.u32 %v1535, 16
        %v1759 = vrot.slane %v1757, 1
        %v1760 = vrot.slane %v1629, 2
        %v1761 = vor.u32 %v1759, %v1760
        %v1762 = vsel %vm1690, %v1756, %v1761
        %1763 = vrot.lane.b32.xlu0 %v1699, 96
        %v1764 = vpop.permute.xlu0 %1763
        %1765 = vrot.lane.b32.xlu0 %v1708, 96
        %v1766 = vpop.permute.xlu0 %1765
        %1767 = vrot.lane.b32.xlu0 %v1717, 96
        %v1768 = vpop.permute.xlu0 %1767
        %1769 = vrot.lane.b32.xlu0 %v1726, 96
        %v1770 = vpop.permute.xlu0 %1769
        %1771 = vrot.lane.b32.xlu0 %v1735, 96
        %v1772 = vpop.permute.xlu0 %1771
        %1773 = vrot.lane.b32.xlu0 %v1744, 96
        %v1774 = vpop.permute.xlu0 %1773
        %1775 = vrot.lane.b32.xlu0 %v1753, 96
        %v1776 = vpop.permute.xlu0 %1775
        %1777 = vrot.lane.b32.xlu0 %v1762, 96
        %v1778 = vpop.permute.xlu0 %1777
        %vm1779 = vcmask 1045504
        %v1780 = vrot.slane %v1504, 2
        %v1781 = vrot.slane %v1528, 2
        %v1782 = vsel %vm1779, %v1780, %v1781
        %v1783 = vrot.slane %v1505, 2
        %v1784 = vrot.slane %v1529, 2
        %v1785 = vsel %vm1779, %v1783, %v1784
        %v1786 = vrot.slane %v1506, 2
        %v1787 = vrot.slane %v1530, 2
        %v1788 = vsel %vm1779, %v1786, %v1787
        %v1789 = vrot.slane %v1507, 2
        %v1790 = vrot.slane %v1531, 2
        %v1791 = vsel %vm1779, %v1789, %v1790
        %v1792 = vrot.slane %v1508, 2
        %v1793 = vrot.slane %v1532, 2
        %v1794 = vsel %vm1779, %v1792, %v1793
        %v1795 = vrot.slane %v1509, 2
        %v1796 = vrot.slane %v1533, 2
        %v1797 = vsel %vm1779, %v1795, %v1796
        %v1798 = vrot.slane %v1510, 2
        %v1799 = vrot.slane %v1534, 2
        %v1800 = vsel %vm1779, %v1798, %v1799
        %v1801 = vrot.slane %v1511, 2
        %v1802 = vrot.slane %v1535, 2
        %v1803 = vsel %vm1779, %v1801, %v1802
        %vm1804 = vsmask.f32 5376
        %v1805 = vrot.slane %v1538, 2
        %v1806 = vrot.slane %v1540, 3
        %v1807 = vor.u32 %v1805, %v1806
        %v1808 = vrot.slane %v1694, 2
        %v1809 = vrot.slane %v1545, 3
        %v1810 = vor.u32 %v1808, %v1809
        %v1811 = vsel %vm1804, %v1807, %v1810
        %v1812 = vrot.slane %v1550, 2
        %v1813 = vrot.slane %v1552, 3
        %v1814 = vor.u32 %v1812, %v1813
        %v1815 = vrot.slane %v1703, 2
        %v1816 = vrot.slane %v1557, 3
        %v1817 = vor.u32 %v1815, %v1816
        %v1818 = vsel %vm1804, %v1814, %v1817
        %v1819 = vrot.slane %v1562, 2
        %v1820 = vrot.slane %v1564, 3
        %v1821 = vor.u32 %v1819, %v1820
        %v1822 = vrot.slane %v1712, 2
        %v1823 = vrot.slane %v1569, 3
        %v1824 = vor.u32 %v1822, %v1823
        %v1825 = vsel %vm1804, %v1821, %v1824
        %v1826 = vrot.slane %v1574, 2
        %v1827 = vrot.slane %v1576, 3
        %v1828 = vor.u32 %v1826, %v1827
        %v1829 = vrot.slane %v1721, 2
        %v1830 = vrot.slane %v1581, 3
        %v1831 = vor.u32 %v1829, %v1830
        %v1832 = vsel %vm1804, %v1828, %v1831
        %v1833 = vrot.slane %v1586, 2
        %v1834 = vrot.slane %v1588, 3
        %v1835 = vor.u32 %v1833, %v1834
        %v1836 = vrot.slane %v1730, 2
        %v1837 = vrot.slane %v1593, 3
        %v1838 = vor.u32 %v1836, %v1837
        %v1839 = vsel %vm1804, %v1835, %v1838
        %v1840 = vrot.slane %v1598, 2
        %v1841 = vrot.slane %v1600, 3
        %v1842 = vor.u32 %v1840, %v1841
        %v1843 = vrot.slane %v1739, 2
        %v1844 = vrot.slane %v1605, 3
        %v1845 = vor.u32 %v1843, %v1844
        %v1846 = vsel %vm1804, %v1842, %v1845
        %v1847 = vrot.slane %v1610, 2
        %v1848 = vrot.slane %v1612, 3
        %v1849 = vor.u32 %v1847, %v1848
        %v1850 = vrot.slane %v1748, 2
        %v1851 = vrot.slane %v1617, 3
        %v1852 = vor.u32 %v1850, %v1851
        %v1853 = vsel %vm1804, %v1849, %v1852
        %v1854 = vrot.slane %v1622, 2
        %v1855 = vrot.slane %v1624, 3
        %v1856 = vor.u32 %v1854, %v1855
        %v1857 = vrot.slane %v1757, 2
        %v1858 = vrot.slane %v1629, 3
        %v1859 = vor.u32 %v1857, %v1858
        %v1860 = vsel %vm1804, %v1856, %v1859
        %1861 = vrot.lane.b32.xlu0 %v1811, 32
        %v1862 = vpop.permute.xlu0 %1861
        %1863 = vrot.lane.b32.xlu0 %v1818, 32
        %v1864 = vpop.permute.xlu0 %1863
        %1865 = vrot.lane.b32.xlu0 %v1825, 32
        %v1866 = vpop.permute.xlu0 %1865
        %1867 = vrot.lane.b32.xlu0 %v1832, 32
        %v1868 = vpop.permute.xlu0 %1867
        %1869 = vrot.lane.b32.xlu0 %v1839, 32
        %v1870 = vpop.permute.xlu0 %1869
        %1871 = vrot.lane.b32.xlu0 %v1846, 32
        %v1872 = vpop.permute.xlu0 %1871
        %1873 = vrot.lane.b32.xlu0 %v1853, 32
        %v1874 = vpop.permute.xlu0 %1873
        %1875 = vrot.lane.b32.xlu0 %v1860, 32
        %v1876 = vpop.permute.xlu0 %1875
        %vm1877 = vcmask 1044480
        %v1878 = vrot.slane %v1504, 3
        %v1879 = vrot.slane %v1528, 3
        %v1880 = vsel %vm1877, %v1878, %v1879
        %v1881 = vrot.slane %v1505, 3
        %v1882 = vrot.slane %v1529, 3
        %v1883 = vsel %vm1877, %v1881, %v1882
        %v1884 = vrot.slane %v1506, 3
        %v1885 = vrot.slane %v1530, 3
        %v1886 = vsel %vm1877, %v1884, %v1885
        %v1887 = vrot.slane %v1507, 3
        %v1888 = vrot.slane %v1531, 3
        %v1889 = vsel %vm1877, %v1887, %v1888
        %v1890 = vrot.slane %v1508, 3
        %v1891 = vrot.slane %v1532, 3
        %v1892 = vsel %vm1877, %v1890, %v1891
        %v1893 = vrot.slane %v1509, 3
        %v1894 = vrot.slane %v1533, 3
        %v1895 = vsel %vm1877, %v1893, %v1894
        %v1896 = vrot.slane %v1510, 3
        %v1897 = vrot.slane %v1534, 3
        %v1898 = vsel %vm1877, %v1896, %v1897
        %v1899 = vrot.slane %v1511, 3
        %v1900 = vrot.slane %v1535, 3
        %v1901 = vsel %vm1877, %v1899, %v1900
        %1902 = vrot.lane.b32.xlu0 %v1880, 64
        %v1903 = vpop.permute.xlu0 %1902
        %1904 = vrot.lane.b32.xlu0 %v1883, 64
        %v1905 = vpop.permute.xlu0 %1904
        %1906 = vrot.lane.b32.xlu0 %v1886, 64
        %v1907 = vpop.permute.xlu0 %1906
        %1908 = vrot.lane.b32.xlu0 %v1889, 64
        %v1909 = vpop.permute.xlu0 %1908
        %1910 = vrot.lane.b32.xlu0 %v1892, 64
        %v1911 = vpop.permute.xlu0 %1910
        %1912 = vrot.lane.b32.xlu0 %v1895, 64
        %v1913 = vpop.permute.xlu0 %1912
        %1914 = vrot.lane.b32.xlu0 %v1898, 64
        %v1915 = vpop.permute.xlu0 %1914
        %1916 = vrot.lane.b32.xlu0 %v1901, 64
        %v1917 = vpop.permute.xlu0 %1916
        %vm1918 = vsmask.f32 4352
        %v1919 = vrot.slane %v1538, 3
        %v1920 = vrot.slane %v1540, 4
        %v1921 = vor.u32 %v1919, %v1920
        %v1922 = vrot.slane %v1694, 3
        %v1923 = vrot.slane %v1545, 4
        %v1924 = vor.u32 %v1922, %v1923
        %v1925 = vsel %vm1918, %v1921, %v1924
        %v1926 = vrot.slane %v1550, 3
        %v1927 = vrot.slane %v1552, 4
        %v1928 = vor.u32 %v1926, %v1927
        %v1929 = vrot.slane %v1703, 3
        %v1930 = vrot.slane %v1557, 4
        %v1931 = vor.u32 %v1929, %v1930
        %v1932 = vsel %vm1918, %v1928, %v1931
        %v1933 = vrot.slane %v1562, 3
        %v1934 = vrot.slane %v1564, 4
        %v1935 = vor.u32 %v1933, %v1934
        %v1936 = vrot.slane %v1712, 3
        %v1937 = vrot.slane %v1569, 4
        %v1938 = vor.u32 %v1936, %v1937
        %v1939 = vsel %vm1918, %v1935, %v1938
        %v1940 = vrot.slane %v1574, 3
        %v1941 = vrot.slane %v1576, 4
        %v1942 = vor.u32 %v1940, %v1941
        %v1943 = vrot.slane %v1721, 3
        %v1944 = vrot.slane %v1581, 4
        %v1945 = vor.u32 %v1943, %v1944
        %v1946 = vsel %vm1918, %v1942, %v1945
        %v1947 = vrot.slane %v1586, 3
        %v1948 = vrot.slane %v1588, 4
        %v1949 = vor.u32 %v1947, %v1948
        %v1950 = vrot.slane %v1730, 3
        %v1951 = vrot.slane %v1593, 4
        %v1952 = vor.u32 %v1950, %v1951
        %v1953 = vsel %vm1918, %v1949, %v1952
        %v1954 = vrot.slane %v1598, 3
        %v1955 = vrot.slane %v1600, 4
        %v1956 = vor.u32 %v1954, %v1955
        %v1957 = vrot.slane %v1739, 3
        %v1958 = vrot.slane %v1605, 4
        %v1959 = vor.u32 %v1957, %v1958
        %v1960 = vsel %vm1918, %v1956, %v1959
        %v1961 = vrot.slane %v1610, 3
        %v1962 = vrot.slane %v1612, 4
        %v1963 = vor.u32 %v1961, %v1962
        %v1964 = vrot.slane %v1748, 3
        %v1965 = vrot.slane %v1617, 4
        %v1966 = vor.u32 %v1964, %v1965
        %v1967 = vsel %vm1918, %v1963, %v1966
        %v1968 = vrot.slane %v1622, 3
        %v1969 = vrot.slane %v1624, 4
        %v1970 = vor.u32 %v1968, %v1969
        %v1971 = vrot.slane %v1757, 3
        %v1972 = vrot.slane %v1629, 4
        %v1973 = vor.u32 %v1971, %v1972
        %v1974 = vsel %vm1918, %v1970, %v1973
        %1975 = vrot.lane.b32.xlu0 %v1925, 96
        %v1976 = vpop.permute.xlu0 %1975
        %1977 = vrot.lane.b32.xlu0 %v1932, 96
        %v1978 = vpop.permute.xlu0 %1977
        %1979 = vrot.lane.b32.xlu0 %v1939, 96
        %v1980 = vpop.permute.xlu0 %1979
        %1981 = vrot.lane.b32.xlu0 %v1946, 96
        %v1982 = vpop.permute.xlu0 %1981
        %1983 = vrot.lane.b32.xlu0 %v1953, 96
        %v1984 = vpop.permute.xlu0 %1983
        %1985 = vrot.lane.b32.xlu0 %v1960, 96
        %v1986 = vpop.permute.xlu0 %1985
        %1987 = vrot.lane.b32.xlu0 %v1967, 96
        %v1988 = vpop.permute.xlu0 %1987
        %1989 = vrot.lane.b32.xlu0 %v1974, 96
        %v1990 = vpop.permute.xlu0 %1989
        %v1991 = vpack.c.b16 %v1520, %v1489
        %v1992 = vpack.c.b16 %v1521, %v1491
        %v1993 = vpack.c.b16 %v1522, %v1493
        %v1994 = vpack.c.b16 %v1523, %v1495
        %v1995 = vpack.c.b16 %v1524, %v1497
        %v1996 = vpack.c.b16 %v1525, %v1499
        %v1997 = vpack.c.b16 %v1526, %v1501
        %v1998 = vpack.c.b16 %v1527, %v1503
        %v2007 = vunpack.c.l.b16 %v402
        %v2008 = vunpack.c.l.b16 %v406
        %v2009 = vunpack.c.l.b16 %v410
        %v2010 = vunpack.c.l.b16 %v414
        %v2011 = vunpack.c.l.b16 %v418
        %v2012 = vunpack.c.l.b16 %v422
        %v2013 = vunpack.c.l.b16 %v426
        %v2014 = vunpack.c.l.b16 %v430
        %v2015 = vpack.c.b16 %v2007, %v2007
        %v2016 = vpack.c.b16 %v2008, %v2008
        %v2017 = vpack.c.b16 %v2009, %v2009
        %v2018 = vpack.c.b16 %v2010, %v2010
        %v2019 = vpack.c.b16 %v2011, %v2011
        %v2020 = vpack.c.b16 %v2012, %v2012
        %v2021 = vpack.c.b16 %v2013, %v2013
        %v2022 = vpack.c.b16 %v2014, %v2014
        %v2024 = vshrl.u32 %v1991, 16
        %v2026 = vshll.u32 %v1991, 16
        %v2028 = vrot.slane %v2026, 1
        %v2029 = vor.u32 %v2024, %v2028
        %v2031 = vshll.u32 %v2015, 16
        %v2033 = vrot.slane %v2031, 1
        %v2034 = vsel %vm1536, %v2029, %v2033
        %v2036 = vshrl.u32 %v1992, 16
        %v2038 = vshll.u32 %v1992, 16
        %v2040 = vrot.slane %v2038, 1
        %v2041 = vor.u32 %v2036, %v2040
        %v2043 = vshll.u32 %v2016, 16
        %v2045 = vrot.slane %v2043, 1
        %v2046 = vsel %vm1536, %v2041, %v2045
        %v2048 = vshrl.u32 %v1993, 16
        %v2050 = vshll.u32 %v1993, 16
        %v2052 = vrot.slane %v2050, 1
        %v2053 = vor.u32 %v2048, %v2052
        %v2055 = vshll.u32 %v2017, 16
        %v2057 = vrot.slane %v2055, 1
        %v2058 = vsel %vm1536, %v2053, %v2057
        %v2060 = vshrl.u32 %v1994, 16
        %v2062 = vshll.u32 %v1994, 16
        %v2064 = vrot.slane %v2062, 1
        %v2065 = vor.u32 %v2060, %v2064
        %v2067 = vshll.u32 %v2018, 16
        %v2069 = vrot.slane %v2067, 1
        %v2070 = vsel %vm1536, %v2065, %v2069
        %v2072 = vshrl.u32 %v1995, 16
        %v2074 = vshll.u32 %v1995, 16
        %v2076 = vrot.slane %v2074, 1
        %v2077 = vor.u32 %v2072, %v2076
        %v2079 = vshll.u32 %v2019, 16
        %v2081 = vrot.slane %v2079, 1
        %v2082 = vsel %vm1536, %v2077, %v2081
        %v2084 = vshrl.u32 %v1996, 16
        %v2086 = vshll.u32 %v1996, 16
        %v2088 = vrot.slane %v2086, 1
        %v2089 = vor.u32 %v2084, %v2088
        %v2091 = vshll.u32 %v2020, 16
        %v2093 = vrot.slane %v2091, 1
        %v2094 = vsel %vm1536, %v2089, %v2093
        %v2096 = vshrl.u32 %v1997, 16
        %v2098 = vshll.u32 %v1997, 16
        %v2100 = vrot.slane %v2098, 1
        %v2101 = vor.u32 %v2096, %v2100
        %v2103 = vshll.u32 %v2021, 16
        %v2105 = vrot.slane %v2103, 1
        %v2106 = vsel %vm1536, %v2101, %v2105
        %v2108 = vshrl.u32 %v1998, 16
        %v2110 = vshll.u32 %v1998, 16
        %v2112 = vrot.slane %v2110, 1
        %v2113 = vor.u32 %v2108, %v2112
        %v2115 = vshll.u32 %v2022, 16
        %v2117 = vrot.slane %v2115, 1
        %v2118 = vsel %vm1536, %v2113, %v2117
        %2119 = vrot.lane.b32.xlu0 %v2034, 32
        %v2120 = vpop.permute.xlu0 %2119
        %2121 = vrot.lane.b32.xlu0 %v2046, 32
        %v2122 = vpop.permute.xlu0 %2121
        %2123 = vrot.lane.b32.xlu0 %v2058, 32
        %v2124 = vpop.permute.xlu0 %2123
        %2125 = vrot.lane.b32.xlu0 %v2070, 32
        %v2126 = vpop.permute.xlu0 %2125
        %2127 = vrot.lane.b32.xlu0 %v2082, 32
        %v2128 = vpop.permute.xlu0 %2127
        %2129 = vrot.lane.b32.xlu0 %v2094, 32
        %v2130 = vpop.permute.xlu0 %2129
        %2131 = vrot.lane.b32.xlu0 %v2106, 32
        %v2132 = vpop.permute.xlu0 %2131
        %2133 = vrot.lane.b32.xlu0 %v2118, 32
        %v2134 = vpop.permute.xlu0 %2133
        %v2136 = vsel %vm498, %v1504, %v1634
        %v2138 = vsel %vm498, %v1505, %v1636
        %v2140 = vsel %vm498, %v1506, %v1638
        %v2142 = vsel %vm498, %v1507, %v1640
        %v2144 = vsel %vm498, %v1508, %v1642
        %v2146 = vsel %vm498, %v1509, %v1644
        %v2148 = vsel %vm498, %v1510, %v1646
        %v2150 = vsel %vm498, %v1511, %v1648
        %vm2151 = vcmask 523264
        %v2153 = vsel %vm2151, %v2136, %v1675
        %v2155 = vsel %vm2151, %v2138, %v1677
        %v2157 = vsel %vm2151, %v2140, %v1679
        %v2159 = vsel %vm2151, %v2142, %v1681
        %v2161 = vsel %vm2151, %v2144, %v1683
        %v2163 = vsel %vm2151, %v2146, %v1685
        %v2165 = vsel %vm2151, %v2148, %v1687
        %v2167 = vsel %vm2151, %v2150, %v1689
        %vm2168 = vcmask 785408
        %v2170 = vsel %vm2168, %v2153, %v1764
        %v2173 = vsel %vm2168, %v2155, %v1766
        %v2176 = vsel %vm2168, %v2157, %v1768
        %v2179 = vsel %vm2168, %v2159, %v1770
        %v2182 = vsel %vm2168, %v2161, %v1772
        %v2185 = vsel %vm2168, %v2163, %v1774
        %v2188 = vsel %vm2168, %v2165, %v1776
        %v2191 = vsel %vm2168, %v2167, %v1778
        %v2195 = vsel %vm498, %v1782, %v1862
        %v2198 = vsel %vm498, %v1785, %v1864
        %v2201 = vsel %vm498, %v1788, %v1866
        %v2204 = vsel %vm498, %v1791, %v1868
        %v2207 = vsel %vm498, %v1794, %v1870
        %v2210 = vsel %vm498, %v1797, %v1872
        %v2213 = vsel %vm498, %v1800, %v1874
        %v2216 = vsel %vm498, %v1803, %v1876
        %v2218 = vsel %vm2151, %v2195, %v1903
        %v2220 = vsel %vm2151, %v2198, %v1905
        %v2222 = vsel %vm2151, %v2201, %v1907
        %v2224 = vsel %vm2151, %v2204, %v1909
        %v2226 = vsel %vm2151, %v2207, %v1911
        %v2228 = vsel %vm2151, %v2210, %v1913
        %v2230 = vsel %vm2151, %v2213, %v1915
        %v2232 = vsel %vm2151, %v2216, %v1917
        %v2234 = vsel %vm2168, %v2218, %v1976
        %v2237 = vsel %vm2168, %v2220, %v1978
        %v2240 = vsel %vm2168, %v2222, %v1980
        %v2243 = vsel %vm2168, %v2224, %v1982
        %v2246 = vsel %vm2168, %v2226, %v1984
        %v2249 = vsel %vm2168, %v2228, %v1986
        %v2252 = vsel %vm2168, %v2230, %v1988
        %v2255 = vsel %vm2168, %v2232, %v1990
        %v2258 = vsel %vm498, %v1991, %v2120
        %v2260 = vsel %vm498, %v1992, %v2122
        %v2262 = vsel %vm498, %v1993, %v2124
        %v2264 = vsel %vm498, %v1994, %v2126
        %v2266 = vsel %vm498, %v1995, %v2128
        %v2268 = vsel %vm498, %v1996, %v2130
        %v2270 = vsel %vm498, %v1997, %v2132
        %v2272 = vsel %vm498, %v1998, %v2134
        %v2273 = vlaneseq
        %v2274 = vshrl.u32 %v2273, 7
        %v2275 = vadd.s32 %v2274, 8
        %v2276 = vld [vmem:[%s6] sm:$0xff]
        %v2277 = vld [vmem:[%s6 + $0x8] sm:$0xf]
        %v2278 = vld [vmem:[%s6 + $0xc] sm:$0xff]
        %v2279 = vld [vmem:[%s6 + $0x14] sm:$0xf]
        %v2280 = vld [vmem:[%s6 + $0x18] sm:$0xff]
        %v2281 = vld [vmem:[%s6 + $0x20] sm:$0xf]
        %v2282 = vld [vmem:[%s6 + $0x24] sm:$0xff]
        %v2283 = vld [vmem:[%s6 + $0x2c] sm:$0xf]
        %v2292 = vunpack.c.l.b16 %v2276
        %v2293 = vunpack.c.h.b16 %v2276
        %v2294 = vunpack.c.l.b16 %v2277
        %v2295 = vunpack.c.l.b16 %v2278
        %v2296 = vunpack.c.h.b16 %v2278
        %v2297 = vunpack.c.l.b16 %v2279
        %v2298 = vunpack.c.l.b16 %v2280
        %v2299 = vunpack.c.h.b16 %v2280
        %v2300 = vunpack.c.l.b16 %v2281
        %v2301 = vunpack.c.l.b16 %v2282
        %v2302 = vunpack.c.h.b16 %v2282
        %v2303 = vunpack.c.l.b16 %v2283
        %v2304 = vpack.c.b16 %v2295, %v2292
        %v2305 = vpack.c.b16 %v2296, %v2293
        %v2306 = vpack.c.b16 %v2297, %v2294
        %v2307 = vpack.c.b16 %v2301, %v2298
        %v2308 = vpack.c.b16 %v2302, %v2299
        %v2309 = vpack.c.b16 %v2303, %v2300
        %v2316 = vsel %vm498, %v2170, 0
        %v2318 = vsel %vm498, %v2173, 0
        %v2320 = vsel %vm498, %v2176, 0
        %v2322 = vsel %vm498, %v2179, 0
        %v2324 = vsel %vm498, %v2182, 0
        %v2326 = vsel %vm498, %v2185, 0
        %v2328 = vsel %vm498, %v2188, 0
        %v2330 = vsel %vm498, %v2191, 0
        %2332 = vmatprep.subr.bf16.mxu0 %v2305
        %2333 = vmatpush1.bf16.msra.mxu0 %v2304
        %2334 = vmatprep.subr.bf16.mxu0 %v2308
        %2335 = vmatpush1.bf16.msra.mxu0 %v2307
        %2336 = vmatprep.subr.bf16.mxu0 0
        %2337 = vmatpush1.bf16.msra.mxu0 0
        %2338 = vmatprep.subr.bf16.mxu0 0
        %2339 = vmatpush1.bf16.msra.mxu0 0
        %2340 = vmatprep.subr.bf16.mxu0 0
        %2341 = vmatpush1.bf16.msra.mxu0 0
        %2342 = vmatprep.subr.bf16.mxu0 0
        %2343 = vmatpush1.bf16.msra.mxu0 0
        %2344 = vmatprep.subr.bf16.mxu0 0
        %2345 = vmatpush1.bf16.msra.mxu0 0
        %2346 = vmatprep.subr.bf16.mxu0 0
        %2347 = vmatpush1.bf16.msra.mxu0 0
        %2348 = vmatprep.subr.bf16.mxu0 0
        %2349 = vmatpush1.bf16.msra.mxu0 0
        %2350 = vmatprep.subr.bf16.mxu0 0
        %2351 = vmatpush1.bf16.msra.mxu0 0
        %2352 = vmatprep.subr.bf16.mxu0 0
        %2353 = vmatpush1.bf16.msra.mxu0 0
        %2354 = vmatprep.subr.bf16.mxu0 0
        %2355 = vmatpush1.bf16.msra.mxu0 0
        %2356 = vmatprep.subr.bf16.mxu0 0
        %2357 = vmatpush1.bf16.msra.mxu0 0
        %2358 = vmatprep.subr.bf16.mxu0 0
        %2359 = vmatpush1.bf16.msra.mxu0 0
        %2360 = vmatprep.subr.bf16.mxu0 0
        %2361 = vmatpush1.bf16.msra.mxu0 0
        %2362 = vmatprep.subr.bf16.mxu0 0
        %2363 = vmatpush1.bf16.msra.mxu0 0
        %2364 = vmatprep.mubr.bf16.mxu0 0
        %2365 = vmatmul.mubr.bf16.gmra.mrb[0].mxu0 %v2316
        %v2366 = vpop.f32.mrb[0].mxu0
        %v2367 = vadd.f32 0.0, %v2366
        %v2368 = vpop.f32.mrb[0].mxu0
        %v2369 = vadd.f32 0.0, %v2368
        %v2370 = vpop.f32.mrb[0].mxu0
        %v2371 = vadd.f32 0.0, %v2370
        %v2372 = vpop.f32.mrb[0].mxu0
        %v2373 = vadd.f32 0.0, %v2372
        %2374 = vmatprep.mubr.bf16.mxu0 0
        %2375 = vmatmul.mubr.bf16.gmra.mrb[0].mxu0 %v2318
        %v2376 = vpop.f32.mrb[0].mxu0
        %v2377 = vadd.f32 0.0, %v2376
        %v2378 = vpop.f32.mrb[0].mxu0
        %v2379 = vadd.f32 0.0, %v2378
        %v2380 = vpop.f32.mrb[0].mxu0
        %v2381 = vadd.f32 0.0, %v2380
        %v2382 = vpop.f32.mrb[0].mxu0
        %v2383 = vadd.f32 0.0, %v2382
        %2384 = vmatprep.mubr.bf16.mxu0 0
        %2385 = vmatmul.mubr.bf16.gmra.mrb[0].mxu0 %v2320
        %v2386 = vpop.f32.mrb[0].mxu0
        %v2387 = vadd.f32 0.0, %v2386
        %v2388 = vpop.f32.mrb[0].mxu0
        %v2389 = vadd.f32 0.0, %v2388
        %v2390 = vpop.f32.mrb[0].mxu0
        %v2391 = vadd.f32 0.0, %v2390
        %v2392 = vpop.f32.mrb[0].mxu0
        %v2393 = vadd.f32 0.0, %v2392
        %2394 = vmatprep.mubr.bf16.mxu0 0
        %2395 = vmatmul.mubr.bf16.gmra.mrb[0].mxu0 %v2322
        %v2396 = vpop.f32.mrb[0].mxu0
        %v2397 = vadd.f32 0.0, %v2396
        %v2398 = vpop.f32.mrb[0].mxu0
        %v2399 = vadd.f32 0.0, %v2398
        %v2400 = vpop.f32.mrb[0].mxu0
        %v2401 = vadd.f32 0.0, %v2400
        %v2402 = vpop.f32.mrb[0].mxu0
        %v2403 = vadd.f32 0.0, %v2402
        %2404 = vmatprep.mubr.bf16.mxu0 0
        %2405 = vmatmul.mubr.bf16.gmra.mrb[0].mxu0 %v2324
        %v2406 = vpop.f32.mrb[0].mxu0
        %v2407 = vadd.f32 0.0, %v2406
        %v2408 = vpop.f32.mrb[0].mxu0
        %v2409 = vadd.f32 0.0, %v2408
        %v2410 = vpop.f32.mrb[0].mxu0
        %v2411 = vadd.f32 0.0, %v2410
        %v2412 = vpop.f32.mrb[0].mxu0
        %v2413 = vadd.f32 0.0, %v2412
        %2414 = vmatprep.mubr.bf16.mxu0 0
        %2415 = vmatmul.mubr.bf16.gmra.mrb[0].mxu0 %v2326
        %v2416 = vpop.f32.mrb[0].mxu0
        %v2417 = vadd.f32 0.0, %v2416
        %v2418 = vpop.f32.mrb[0].mxu0
        %v2419 = vadd.f32 0.0, %v2418
        %v2420 = vpop.f32.mrb[0].mxu0
        %v2421 = vadd.f32 0.0, %v2420
        %v2422 = vpop.f32.mrb[0].mxu0
        %v2423 = vadd.f32 0.0, %v2422
        %2424 = vmatprep.mubr.bf16.mxu0 0
        %2425 = vmatmul.mubr.bf16.gmra.mrb[0].mxu0 %v2328
        %v2426 = vpop.f32.mrb[0].mxu0
        %v2427 = vadd.f32 0.0, %v2426
        %v2428 = vpop.f32.mrb[0].mxu0
        %v2429 = vadd.f32 0.0, %v2428
        %v2430 = vpop.f32.mrb[0].mxu0
        %v2431 = vadd.f32 0.0, %v2430
        %v2432 = vpop.f32.mrb[0].mxu0
        %v2433 = vadd.f32 0.0, %v2432
        %2434 = vmatprep.mubr.bf16.mxu0 0
        %2435 = vmatmul.mubr.bf16.gmra.mrb[0].mxu0 %v2330
        %v2436 = vpop.f32.mrb[0].mxu0
        %v2437 = vadd.f32 0.0, %v2436
        %v2438 = vpop.f32.mrb[0].mxu0
        %v2439 = vadd.f32 0.0, %v2438
        %v2440 = vpop.f32.mrb[0].mxu0
        %v2441 = vadd.f32 0.0, %v2440
        %v2442 = vpop.f32.mrb[0].mxu0
        %v2443 = vadd.f32 0.0, %v2442
        %2444 = vdwg.mxu0
        %2445 = vmatprep.subr.bf16.mxu0 0
        %2446 = vmatpush1.bf16.msra.mxu0 %v2306
        %2447 = vmatprep.subr.bf16.mxu0 0
        %2448 = vmatpush1.bf16.msra.mxu0 %v2309
        %2449 = vmatprep.subr.bf16.mxu0 0
        %2450 = vmatpush1.bf16.msra.mxu0 0
        %2451 = vmatprep.subr.bf16.mxu0 0
        %2452 = vmatpush1.bf16.msra.mxu0 0
        %2453 = vmatprep.subr.bf16.mxu0 0
        %2454 = vmatpush1.bf16.msra.mxu0 0
        %2455 = vmatprep.subr.bf16.mxu0 0
        %2456 = vmatpush1.bf16.msra.mxu0 0
        %2457 = vmatprep.subr.bf16.mxu0 0
        %2458 = vmatpush1.bf16.msra.mxu0 0
        %2459 = vmatprep.subr.bf16.mxu0 0
        %2460 = vmatpush1.bf16.msra.mxu0 0
        %2461 = vmatprep.subr.bf16.mxu0 0
        %2462 = vmatpush1.bf16.msra.mxu0 0
        %2463 = vmatprep.subr.bf16.mxu0 0
        %2464 = vmatpush1.bf16.msra.mxu0 0
        %2465 = vmatprep.subr.bf16.mxu0 0
        %2466 = vmatpush1.bf16.msra.mxu0 0
        %2467 = vmatprep.subr.bf16.mxu0 0
        %2468 = vmatpush1.bf16.msra.mxu0 0
        %2469 = vmatprep.subr.bf16.mxu0 0
        %2470 = vmatpush1.bf16.msra.mxu0 0
        %2471 = vmatprep.subr.bf16.mxu0 0
        %2472 = vmatpush1.bf16.msra.mxu0 0
        %2473 = vmatprep.subr.bf16.mxu0 0
        %2474 = vmatpush1.bf16.msra.mxu0 0
        %2475 = vmatprep.subr.bf16.mxu0 0
        %2476 = vmatpush1.bf16.msra.mxu0 0
        %2477 = vmatprep.mubr.bf16.mxu0 0
        %2478 = vmatmul.mubr.bf16.gmra.mrb[0].mxu0 %v2316
        %v2479 = vpop.f32.mrb[0].mxu0
        %v2480 = vadd.f32 0.0, %v2479
        %v2481 = vpop.f32.mrb[0].mxu0
        %v2482 = vpop.f32.mrb[0].mxu0
        %v2483 = vadd.f32 0.0, %v2482
        %v2484 = vpop.f32.mrb[0].mxu0
        %2485 = vmatprep.mubr.bf16.mxu0 0
        %2486 = vmatmul.mubr.bf16.gmra.mrb[0].mxu0 %v2318
        %v2487 = vpop.f32.mrb[0].mxu0
        %v2488 = vadd.f32 0.0, %v2487
        %v2489 = vpop.f32.mrb[0].mxu0
        %v2490 = vpop.f32.mrb[0].mxu0
        %v2491 = vadd.f32 0.0, %v2490
        %v2492 = vpop.f32.mrb[0].mxu0
        %2493 = vmatprep.mubr.bf16.mxu0 0
        %2494 = vmatmul.mubr.bf16.gmra.mrb[0].mxu0 %v2320
        %v2495 = vpop.f32.mrb[0].mxu0
        %v2496 = vadd.f32 0.0, %v2495
        %v2497 = vpop.f32.mrb[0].mxu0
        %v2498 = vpop.f32.mrb[0].mxu0
        %v2499 = vadd.f32 0.0, %v2498
        %v2500 = vpop.f32.mrb[0].mxu0
        %2501 = vmatprep.mubr.bf16.mxu0 0
        %2502 = vmatmul.mubr.bf16.gmra.mrb[0].mxu0 %v2322
        %v2503 = vpop.f32.mrb[0].mxu0
        %v2504 = vadd.f32 0.0, %v2503
        %v2505 = vpop.f32.mrb[0].mxu0
        %v2506 = vpop.f32.mrb[0].mxu0
        %v2507 = vadd.f32 0.0, %v2506
        %v2508 = vpop.f32.mrb[0].mxu0
        %2509 = vmatprep.mubr.bf16.mxu0 0
        %2510 = vmatmul.mubr.bf16.gmra.mrb[0].mxu0 %v2324
        %v2511 = vpop.f32.mrb[0].mxu0
        %v2512 = vadd.f32 0.0, %v2511
        %v2513 = vpop.f32.mrb[0].mxu0
        %v2514 = vpop.f32.mrb[0].mxu0
        %v2515 = vadd.f32 0.0, %v2514
        %v2516 = vpop.f32.mrb[0].mxu0
        %2517 = vmatprep.mubr.bf16.mxu0 0
        %2518 = vmatmul.mubr.bf16.gmra.mrb[0].mxu0 %v2326
        %v2519 = vpop.f32.mrb[0].mxu0
        %v2520 = vadd.f32 0.0, %v2519
        %v2521 = vpop.f32.mrb[0].mxu0
        %v2522 = vpop.f32.mrb[0].mxu0
        %v2523 = vadd.f32 0.0, %v2522
        %v2524 = vpop.f32.mrb[0].mxu0
        %2525 = vmatprep.mubr.bf16.mxu0 0
        %2526 = vmatmul.mubr.bf16.gmra.mrb[0].mxu0 %v2328
        %v2527 = vpop.f32.mrb[0].mxu0
        %v2528 = vadd.f32 0.0, %v2527
        %v2529 = vpop.f32.mrb[0].mxu0
        %v2530 = vpop.f32.mrb[0].mxu0
        %v2531 = vadd.f32 0.0, %v2530
        %v2532 = vpop.f32.mrb[0].mxu0
        %2533 = vmatprep.mubr.bf16.mxu0 0
        %2534 = vmatmul.mubr.bf16.gmra.mrb[0].mxu0 %v2330
        %v2535 = vpop.f32.mrb[0].mxu0
        %v2536 = vadd.f32 0.0, %v2535
        %v2537 = vpop.f32.mrb[0].mxu0
        %v2538 = vpop.f32.mrb[0].mxu0
        %v2539 = vadd.f32 0.0, %v2538
        %v2540 = vpop.f32.mrb[0].mxu0
        %2541 = vdwg.mxu0
        %vm2542 = vcmp.lt.s32.totalorder %v2274, 16
        %vm2543 = vcmp.lt.s32.totalorder %v2275, 16
        %v2544 = vsel %vm2542, 1, 0
        %v2545 = vsel %vm2543, 1, 0
        %vm2546 = vcmp.eq.s32.totalorder %v2544, 1
        %vm2547 = vcmp.eq.s32.totalorder %v2545, 1
        %v2548 = vsel %vm2546, %v2367, -1e+30
        %v2549 = vsel %vm2546, %v2369, -1e+30
        %v2550 = vsel %vm2546, %v2480, -1e+30
        %v2551 = vsel %vm2547, %v2371, -1e+30
        %v2552 = vsel %vm2547, %v2373, -1e+30
        %v2553 = vsel %vm2547, %v2483, -1e+30
        %v2554 = vsel %vm2546, %v2377, -1e+30
        %v2555 = vsel %vm2546, %v2379, -1e+30
        %v2556 = vsel %vm2546, %v2488, -1e+30
        %v2557 = vsel %vm2547, %v2381, -1e+30
        %v2558 = vsel %vm2547, %v2383, -1e+30
        %v2559 = vsel %vm2547, %v2491, -1e+30
        %v2560 = vsel %vm2546, %v2387, -1e+30
        %v2561 = vsel %vm2546, %v2389, -1e+30
        %v2562 = vsel %vm2546, %v2496, -1e+30
        %v2563 = vsel %vm2547, %v2391, -1e+30
        %v2564 = vsel %vm2547, %v2393, -1e+30
        %v2565 = vsel %vm2547, %v2499, -1e+30
        %v2566 = vsel %vm2546, %v2397, -1e+30
        %v2567 = vsel %vm2546, %v2399, -1e+30
        %v2568 = vsel %vm2546, %v2504, -1e+30
        %v2569 = vsel %vm2547, %v2401, -1e+30
        %v2570 = vsel %vm2547, %v2403, -1e+30
        %v2571 = vsel %vm2547, %v2507, -1e+30
        %v2572 = vsel %vm2546, %v2407, -1e+30
        %v2573 = vsel %vm2546, %v2409, -1e+30
        %v2574 = vsel %vm2546, %v2512, -1e+30
        %v2575 = vsel %vm2547, %v2411, -1e+30
        %v2576 = vsel %vm2547, %v2413, -1e+30
        %v2577 = vsel %vm2547, %v2515, -1e+30
        %v2578 = vsel %vm2546, %v2417, -1e+30
        %v2579 = vsel %vm2546, %v2419, -1e+30
        %v2580 = vsel %vm2546, %v2520, -1e+30
        %v2581 = vsel %vm2547, %v2421, -1e+30
        %v2582 = vsel %vm2547, %v2423, -1e+30
        %v2583 = vsel %vm2547, %v2523, -1e+30
        %v2584 = vsel %vm2546, %v2427, -1e+30
        %v2585 = vsel %vm2546, %v2429, -1e+30
        %v2586 = vsel %vm2546, %v2528, -1e+30
        %v2587 = vsel %vm2547, %v2431, -1e+30
        %v2588 = vsel %vm2547, %v2433, -1e+30
        %v2589 = vsel %vm2547, %v2531, -1e+30
        %v2590 = vsel %vm2546, %v2437, -1e+30
        %v2591 = vsel %vm2546, %v2439, -1e+30
        %v2592 = vsel %vm2546, %v2536, -1e+30
        %v2593 = vsel %vm2547, %v2441, -1e+30
        %v2594 = vsel %vm2547, %v2443, -1e+30
        %v2595 = vsel %vm2547, %v2539, -1e+30
        %v2596 = vmax.f32 %v2548, %v2551
        %v2597 = vrot.slane %v2596, 4
        %v2598 = vmax.f32 %v2596, %v2597
        %v2599 = vrot.slane %v2598, 2
        %v2600 = vmax.f32 %v2598, %v2599
        %v2601 = vrot.slane %v2600, 1
        %v2602 = vmax.f32 %v2600, %v2601
        %v2603 = vmax.f32 %v2549, %v2552
        %v2604 = vrot.slane %v2603, 4
        %v2605 = vmax.f32 %v2603, %v2604
        %v2606 = vrot.slane %v2605, 2
        %v2607 = vmax.f32 %v2605, %v2606
        %v2608 = vrot.slane %v2607, 1
        %v2609 = vmax.f32 %v2607, %v2608
        %v2610 = vmax.f32 %v2550, %v2553
        %v2611 = vrot.slane %v2610, 4
        %v2612 = vmax.f32 %v2610, %v2611
        %v2613 = vrot.slane %v2612, 2
        %v2614 = vmax.f32 %v2612, %v2613
        %v2615 = vrot.slane %v2614, 1
        %v2616 = vmax.f32 %v2614, %v2615
        %v2617 = vmax.f32 %v2554, %v2557
        %v2618 = vrot.slane %v2617, 4
        %v2619 = vmax.f32 %v2617, %v2618
        %v2620 = vrot.slane %v2619, 2
        %v2621 = vmax.f32 %v2619, %v2620
        %v2622 = vrot.slane %v2621, 1
        %v2623 = vmax.f32 %v2621, %v2622
        %v2624 = vmax.f32 %v2555, %v2558
        %v2625 = vrot.slane %v2624, 4
        %v2626 = vmax.f32 %v2624, %v2625
        %v2627 = vrot.slane %v2626, 2
        %v2628 = vmax.f32 %v2626, %v2627
        %v2629 = vrot.slane %v2628, 1
        %v2630 = vmax.f32 %v2628, %v2629
        %v2631 = vmax.f32 %v2556, %v2559
        %v2632 = vrot.slane %v2631, 4
        %v2633 = vmax.f32 %v2631, %v2632
        %v2634 = vrot.slane %v2633, 2
        %v2635 = vmax.f32 %v2633, %v2634
        %v2636 = vrot.slane %v2635, 1
        %v2637 = vmax.f32 %v2635, %v2636
        %v2638 = vmax.f32 %v2560, %v2563
        %v2639 = vrot.slane %v2638, 4
        %v2640 = vmax.f32 %v2638, %v2639
        %v2641 = vrot.slane %v2640, 2
        %v2642 = vmax.f32 %v2640, %v2641
        %v2643 = vrot.slane %v2642, 1
        %v2644 = vmax.f32 %v2642, %v2643
        %v2645 = vmax.f32 %v2561, %v2564
        %v2646 = vrot.slane %v2645, 4
        %v2647 = vmax.f32 %v2645, %v2646
        %v2648 = vrot.slane %v2647, 2
        %v2649 = vmax.f32 %v2647, %v2648
        %v2650 = vrot.slane %v2649, 1
        %v2651 = vmax.f32 %v2649, %v2650
        %v2652 = vmax.f32 %v2562, %v2565
        %v2653 = vrot.slane %v2652, 4
        %v2654 = vmax.f32 %v2652, %v2653
        %v2655 = vrot.slane %v2654, 2
        %v2656 = vmax.f32 %v2654, %v2655
        %v2657 = vrot.slane %v2656, 1
        %v2658 = vmax.f32 %v2656, %v2657
        %v2659 = vmax.f32 %v2566, %v2569
        %v2660 = vrot.slane %v2659, 4
        %v2661 = vmax.f32 %v2659, %v2660
        %v2662 = vrot.slane %v2661, 2
        %v2663 = vmax.f32 %v2661, %v2662
        %v2664 = vrot.slane %v2663, 1
        %v2665 = vmax.f32 %v2663, %v2664
        %v2666 = vmax.f32 %v2567, %v2570
        %v2667 = vrot.slane %v2666, 4
        %v2668 = vmax.f32 %v2666, %v2667
        %v2669 = vrot.slane %v2668, 2
        %v2670 = vmax.f32 %v2668, %v2669
        %v2671 = vrot.slane %v2670, 1
        %v2672 = vmax.f32 %v2670, %v2671
        %v2673 = vmax.f32 %v2568, %v2571
        %v2674 = vrot.slane %v2673, 4
        %v2675 = vmax.f32 %v2673, %v2674
        %v2676 = vrot.slane %v2675, 2
        %v2677 = vmax.f32 %v2675, %v2676
        %v2678 = vrot.slane %v2677, 1
        %v2679 = vmax.f32 %v2677, %v2678
        %v2680 = vmax.f32 %v2572, %v2575
        %v2681 = vrot.slane %v2680, 4
        %v2682 = vmax.f32 %v2680, %v2681
        %v2683 = vrot.slane %v2682, 2
        %v2684 = vmax.f32 %v2682, %v2683
        %v2685 = vrot.slane %v2684, 1
        %v2686 = vmax.f32 %v2684, %v2685
        %v2687 = vmax.f32 %v2573, %v2576
        %v2688 = vrot.slane %v2687, 4
        %v2689 = vmax.f32 %v2687, %v2688
        %v2690 = vrot.slane %v2689, 2
        %v2691 = vmax.f32 %v2689, %v2690
        %v2692 = vrot.slane %v2691, 1
        %v2693 = vmax.f32 %v2691, %v2692
        %v2694 = vmax.f32 %v2574, %v2577
        %v2695 = vrot.slane %v2694, 4
        %v2696 = vmax.f32 %v2694, %v2695
        %v2697 = vrot.slane %v2696, 2
        %v2698 = vmax.f32 %v2696, %v2697
        %v2699 = vrot.slane %v2698, 1
        %v2700 = vmax.f32 %v2698, %v2699
        %v2701 = vmax.f32 %v2578, %v2581
        %v2702 = vrot.slane %v2701, 4
        %v2703 = vmax.f32 %v2701, %v2702
        %v2704 = vrot.slane %v2703, 2
        %v2705 = vmax.f32 %v2703, %v2704
        %v2706 = vrot.slane %v2705, 1
        %v2707 = vmax.f32 %v2705, %v2706
        %v2708 = vmax.f32 %v2579, %v2582
        %v2709 = vrot.slane %v2708, 4
        %v2710 = vmax.f32 %v2708, %v2709
        %v2711 = vrot.slane %v2710, 2
        %v2712 = vmax.f32 %v2710, %v2711
        %v2713 = vrot.slane %v2712, 1
        %v2714 = vmax.f32 %v2712, %v2713
        %v2715 = vmax.f32 %v2580, %v2583
        %v2716 = vrot.slane %v2715, 4
        %v2717 = vmax.f32 %v2715, %v2716
        %v2718 = vrot.slane %v2717, 2
        %v2719 = vmax.f32 %v2717, %v2718
        %v2720 = vrot.slane %v2719, 1
        %v2721 = vmax.f32 %v2719, %v2720
        %v2722 = vmax.f32 %v2584, %v2587
        %v2723 = vrot.slane %v2722, 4
        %v2724 = vmax.f32 %v2722, %v2723
        %v2725 = vrot.slane %v2724, 2
        %v2726 = vmax.f32 %v2724, %v2725
        %v2727 = vrot.slane %v2726, 1
        %v2728 = vmax.f32 %v2726, %v2727
        %v2729 = vmax.f32 %v2585, %v2588
        %v2730 = vrot.slane %v2729, 4
        %v2731 = vmax.f32 %v2729, %v2730
        %v2732 = vrot.slane %v2731, 2
        %v2733 = vmax.f32 %v2731, %v2732
        %v2734 = vrot.slane %v2733, 1
        %v2735 = vmax.f32 %v2733, %v2734
        %v2736 = vmax.f32 %v2586, %v2589
        %v2737 = vrot.slane %v2736, 4
        %v2738 = vmax.f32 %v2736, %v2737
        %v2739 = vrot.slane %v2738, 2
        %v2740 = vmax.f32 %v2738, %v2739
        %v2741 = vrot.slane %v2740, 1
        %v2742 = vmax.f32 %v2740, %v2741
        %v2743 = vmax.f32 %v2590, %v2593
        %v2744 = vrot.slane %v2743, 4
        %v2745 = vmax.f32 %v2743, %v2744
        %v2746 = vrot.slane %v2745, 2
        %v2747 = vmax.f32 %v2745, %v2746
        %v2748 = vrot.slane %v2747, 1
        %v2749 = vmax.f32 %v2747, %v2748
        %v2750 = vmax.f32 %v2591, %v2594
        %v2751 = vrot.slane %v2750, 4
        %v2752 = vmax.f32 %v2750, %v2751
        %v2753 = vrot.slane %v2752, 2
        %v2754 = vmax.f32 %v2752, %v2753
        %v2755 = vrot.slane %v2754, 1
        %v2756 = vmax.f32 %v2754, %v2755
        %v2757 = vmax.f32 %v2592, %v2595
        %v2758 = vrot.slane %v2757, 4
        %v2759 = vmax.f32 %v2757, %v2758
        %v2760 = vrot.slane %v2759, 2
        %v2761 = vmax.f32 %v2759, %v2760
        %v2762 = vrot.slane %v2761, 1
        %v2763 = vmax.f32 %v2761, %v2762
        %s2764 = scalar_lea.vmem [#allocation2], 24
        %v2765 = vld [vmem:[%s2764] ss:$8 sm:$0x7]
        %v2767 = vlaneseq
        %v2768 = vshrl.u32 %v2767, 7
        %v2769 = vsub.s32 0, %v2768
        %v2770 = vrot.slane %v2765, %v2769
        %v2771 = vlaneseq
        %v2772 = vshrl.u32 %v2771, 7
        %v2773 = vsub.s32 1, %v2772
        %v2774 = vrot.slane %v2765, %v2773
        %v2775 = vlaneseq
        %v2776 = vshrl.u32 %v2775, 7
        %v2777 = vsub.s32 2, %v2776
        %v2778 = vrot.slane %v2765, %v2777
        %v2782 = vadd.f32 %v2602, %v2770
        %v2783 = vadd.f32 %v2609, %v2774
        %v2784 = vadd.f32 %v2616, %v2778
        %v2785 = vadd.f32 %v2623, %v2770
        %v2786 = vadd.f32 %v2630, %v2774
        %v2787 = vadd.f32 %v2637, %v2778
        %v2788 = vadd.f32 %v2644, %v2770
        %v2789 = vadd.f32 %v2651, %v2774
        %v2790 = vadd.f32 %v2658, %v2778
        %v2791 = vadd.f32 %v2665, %v2770
        %v2792 = vadd.f32 %v2672, %v2774
        %v2793 = vadd.f32 %v2679, %v2778
        %v2794 = vadd.f32 %v2686, %v2770
        %v2795 = vadd.f32 %v2693, %v2774
        %v2796 = vadd.f32 %v2700, %v2778
        %v2797 = vadd.f32 %v2707, %v2770
        %v2798 = vadd.f32 %v2714, %v2774
        %v2799 = vadd.f32 %v2721, %v2778
        %v2800 = vadd.f32 %v2728, %v2770
        %v2801 = vadd.f32 %v2735, %v2774
        %v2802 = vadd.f32 %v2742, %v2778
        %v2803 = vadd.f32 %v2749, %v2770
        %v2804 = vadd.f32 %v2756, %v2774
        %v2805 = vadd.f32 %v2763, %v2778
        %v2809 = vrot.slane %v1426, 1
        %v2810 = vrot.slane %v1428, 1
        %v2811 = vrot.slane %v1467, 1
        %v2812 = vrot.slane %v1426, 2
        %v2813 = vrot.slane %v1428, 2
        %v2814 = vrot.slane %v1467, 2
        %v2815 = vrot.slane %v1426, 3
        %v2816 = vrot.slane %v1428, 3
        %v2817 = vrot.slane %v1467, 3
        %v2818 = vrot.slane %v1426, 4
        %v2819 = vrot.slane %v1428, 4
        %v2820 = vrot.slane %v1467, 4
        %v2821 = vrot.slane %v1426, 5
        %v2822 = vrot.slane %v1428, 5
        %v2823 = vrot.slane %v1467, 5
        %v2824 = vrot.slane %v1426, 6
        %v2825 = vrot.slane %v1428, 6
        %v2826 = vrot.slane %v1467, 6
        %v2827 = vrot.slane %v1426, 7
        %v2828 = vrot.slane %v1428, 7
        %v2829 = vrot.slane %v1467, 7
        %v2854 = vmul.f32 %v2782, %v1426
        %v2855 = vmul.f32 %v2783, %v1428
        %v2856 = vmul.f32 %v2784, %v1467
        %v2857 = vmul.f32 %v2785, %v2809
        %v2858 = vmul.f32 %v2786, %v2810
        %v2859 = vmul.f32 %v2787, %v2811
        %v2860 = vmul.f32 %v2788, %v2812
        %v2861 = vmul.f32 %v2789, %v2813
        %v2862 = vmul.f32 %v2790, %v2814
        %v2863 = vmul.f32 %v2791, %v2815
        %v2864 = vmul.f32 %v2792, %v2816
        %v2865 = vmul.f32 %v2793, %v2817
        %v2866 = vmul.f32 %v2794, %v2818
        %v2867 = vmul.f32 %v2795, %v2819
        %v2868 = vmul.f32 %v2796, %v2820
        %v2869 = vmul.f32 %v2797, %v2821
        %v2870 = vmul.f32 %v2798, %v2822
        %v2871 = vmul.f32 %v2799, %v2823
        %v2872 = vmul.f32 %v2800, %v2824
        %v2873 = vmul.f32 %v2801, %v2825
        %v2874 = vmul.f32 %v2802, %v2826
        %v2875 = vmul.f32 %v2803, %v2827
        %v2876 = vmul.f32 %v2804, %v2828
        %v2877 = vmul.f32 %v2805, %v2829
        %v2878 = vpack.c.bf16 %v2854, %v2854
        %v2879 = vpack.c.bf16 %v2855, %v2855
        %v2880 = vpack.c.bf16 %v2856, %v2856
        %v2881 = vpack.c.bf16 %v2857, %v2857
        %v2882 = vpack.c.bf16 %v2858, %v2858
        %v2883 = vpack.c.bf16 %v2859, %v2859
        %v2884 = vpack.c.bf16 %v2860, %v2860
        %v2885 = vpack.c.bf16 %v2861, %v2861
        %v2886 = vpack.c.bf16 %v2862, %v2862
        %v2887 = vpack.c.bf16 %v2863, %v2863
        %v2888 = vpack.c.bf16 %v2864, %v2864
        %v2889 = vpack.c.bf16 %v2865, %v2865
        %v2890 = vpack.c.bf16 %v2866, %v2866
        %v2891 = vpack.c.bf16 %v2867, %v2867
        %v2892 = vpack.c.bf16 %v2868, %v2868
        %v2893 = vpack.c.bf16 %v2869, %v2869
        %v2894 = vpack.c.bf16 %v2870, %v2870
        %v2895 = vpack.c.bf16 %v2871, %v2871
        %v2896 = vpack.c.bf16 %v2872, %v2872
        %v2897 = vpack.c.bf16 %v2873, %v2873
        %v2898 = vpack.c.bf16 %v2874, %v2874
        %v2899 = vpack.c.bf16 %v2875, %v2875
        %v2900 = vpack.c.bf16 %v2876, %v2876
        %v2901 = vpack.c.bf16 %v2877, %v2877
        %v2902 = vld [vmem:[%s8] sm:$0xf]
        %v2903 = vld [vmem:[%s8 + $0x4] sm:$0xf]
        %v2904 = vld [vmem:[%s8 + $0x8] sm:$0xf]
        %v2905 = vld [vmem:[%s8 + $0xc] sm:$0xf]
        %v2906 = vld [vmem:[%s8 + $0x10] sm:$0xf]
        %v2907 = vld [vmem:[%s8 + $0x14] sm:$0xf]
        %v2908 = vld [vmem:[%s8 + $0x18] sm:$0xf]
        %v2909 = vld [vmem:[%s8 + $0x1c] sm:$0xf]
        %v2910 = vld [vmem:[%s8 + $0x20] sm:$0xf]
        %v2911 = vld [vmem:[%s8 + $0x24] sm:$0xf]
        %v2912 = vld [vmem:[%s8 + $0x28] sm:$0xf]
        %v2913 = vld [vmem:[%s8 + $0x2c] sm:$0xf]
        %v2914 = vld [vmem:[%s8 + $0x30] sm:$0xf]
        %v2915 = vld [vmem:[%s8 + $0x34] sm:$0xf]
        %v2916 = vld [vmem:[%s8 + $0x38] sm:$0xf]
        %v2917 = vld [vmem:[%s8 + $0x3c] sm:$0xf]
        %v2918 = vld [vmem:[%s8 + $0x40] sm:$0xf]
        %v2919 = vld [vmem:[%s8 + $0x44] sm:$0xf]
        %v2920 = vld [vmem:[%s8 + $0x48] sm:$0xf]
        %v2921 = vld [vmem:[%s8 + $0x4c] sm:$0xf]
        %v2922 = vld [vmem:[%s8 + $0x50] sm:$0xf]
        %v2923 = vld [vmem:[%s8 + $0x54] sm:$0xf]
        %v2924 = vld [vmem:[%s8 + $0x58] sm:$0xf]
        %v2925 = vld [vmem:[%s8 + $0x5c] sm:$0xf]
        %v2926 = vld [vmem:[%s8 + $0x60] sm:$0xf]
        %v2927 = vld [vmem:[%s8 + $0x64] sm:$0xf]
        %v2928 = vld [vmem:[%s8 + $0x68] sm:$0xf]
        %v2929 = vld [vmem:[%s8 + $0x6c] sm:$0xf]
        %v2930 = vld [vmem:[%s8 + $0x70] sm:$0xf]
        %v2931 = vld [vmem:[%s8 + $0x74] sm:$0xf]
        %v2932 = vld [vmem:[%s8 + $0x78] sm:$0xf]
        %v2933 = vld [vmem:[%s8 + $0x7c] sm:$0xf]
        %v2934 = vld [vmem:[%s8 + $0x80] sm:$0xf]
        %v2935 = vld [vmem:[%s8 + $0x84] sm:$0xf]
        %v2936 = vld [vmem:[%s8 + $0x88] sm:$0xf]
        %v2937 = vld [vmem:[%s8 + $0x8c] sm:$0xf]
        %v2938 = vld [vmem:[%s8 + $0x90] sm:$0xf]
        %v2939 = vld [vmem:[%s8 + $0x94] sm:$0xf]
        %v2940 = vld [vmem:[%s8 + $0x98] sm:$0xf]
        %v2941 = vld [vmem:[%s8 + $0x9c] sm:$0xf]
        %v2942 = vld [vmem:[%s8 + $0xa0] sm:$0xf]
        %v2943 = vld [vmem:[%s8 + $0xa4] sm:$0xf]
        %v2944 = vld [vmem:[%s8 + $0xa8] sm:$0xf]
        %v2945 = vld [vmem:[%s8 + $0xac] sm:$0xf]
        %v2946 = vld [vmem:[%s8 + $0xb0] sm:$0xf]
        %v2947 = vld [vmem:[%s8 + $0xb4] sm:$0xf]
        %v2948 = vld [vmem:[%s8 + $0xb8] sm:$0xf]
        %v2949 = vld [vmem:[%s8 + $0xbc] sm:$0xf]
        %v2950 = vld [vmem:[%s6 + $0x30] sm:$0xff]
        %v2951 = vld [vmem:[%s6 + $0x38] sm:$0xf]
        %v2952 = vld [vmem:[%s6 + $0x3c] sm:$0xff]
        %v2953 = vld [vmem:[%s6 + $0x44] sm:$0xf]
        %v2954 = vld [vmem:[%s6 + $0x48] sm:$0xff]
        %v2955 = vld [vmem:[%s6 + $0x50] sm:$0xf]
        %v2956 = vld [vmem:[%s6 + $0x54] sm:$0xff]
        %v2957 = vld [vmem:[%s6 + $0x5c] sm:$0xf]
        %v2958 = vld [vmem:[%s6 + $0x60] sm:$0xff]
        %v2959 = vld [vmem:[%s6 + $0x68] sm:$0xf]
        %v2960 = vld [vmem:[%s6 + $0x6c] sm:$0xff]
        %v2961 = vld [vmem:[%s6 + $0x74] sm:$0xf]
        %v2962 = vld [vmem:[%s6 + $0x78] sm:$0xff]
        %v2963 = vld [vmem:[%s6 + $0x80] sm:$0xf]
        %v2964 = vld [vmem:[%s6 + $0x84] sm:$0xff]
        %v2965 = vld [vmem:[%s6 + $0x8c] sm:$0xf]
        %v2982 = vunpack.c.l.b16 %v2950
        %v2983 = vunpack.c.h.b16 %v2950
        %v2984 = vunpack.c.l.b16 %v2951
        %v2985 = vunpack.c.l.b16 %v2952
        %v2986 = vunpack.c.h.b16 %v2952
        %v2987 = vunpack.c.l.b16 %v2953
        %v2988 = vunpack.c.l.b16 %v2954
        %v2989 = vunpack.c.h.b16 %v2954
        %v2990 = vunpack.c.l.b16 %v2955
        %v2991 = vunpack.c.l.b16 %v2956
        %v2992 = vunpack.c.h.b16 %v2956
        %v2993 = vunpack.c.l.b16 %v2957
        %v2994 = vunpack.c.l.b16 %v2958
        %v2995 = vunpack.c.h.b16 %v2958
        %v2996 = vunpack.c.l.b16 %v2959
        %v2997 = vunpack.c.l.b16 %v2960
        %v2998 = vunpack.c.h.b16 %v2960
        %v2999 = vunpack.c.l.b16 %v2961
        %v3000 = vunpack.c.l.b16 %v2962
        %v3001 = vunpack.c.h.b16 %v2962
        %v3002 = vunpack.c.l.b16 %v2963
        %v3003 = vunpack.c.l.b16 %v2964
        %v3004 = vunpack.c.h.b16 %v2964
        %v3005 = vunpack.c.l.b16 %v2965
        %v3006 = vpack.c.b16 %v2985, %v2982
        %v3007 = vpack.c.b16 %v2986, %v2983
        %v3008 = vpack.c.b16 %v2987, %v2984
        %v3009 = vpack.c.b16 %v2991, %v2988
        %v3010 = vpack.c.b16 %v2992, %v2989
        %v3011 = vpack.c.b16 %v2993, %v2990
        %v3012 = vpack.c.b16 %v2997, %v2994
        %v3013 = vpack.c.b16 %v2998, %v2995
        %v3014 = vpack.c.b16 %v2999, %v2996
        %v3015 = vpack.c.b16 %v3003, %v3000
        %v3016 = vpack.c.b16 %v3004, %v3001
        %v3017 = vpack.c.b16 %v3005, %v3002
        %v3030 = vsel %vm2151, %v2170, 0
        %v3032 = vsel %vm2151, %v2173, 0
        %v3034 = vsel %vm2151, %v2176, 0
        %v3036 = vsel %vm2151, %v2179, 0
        %v3038 = vsel %vm2151, %v2182, 0
        %v3040 = vsel %vm2151, %v2185, 0
        %v3042 = vsel %vm2151, %v2188, 0
        %v3044 = vsel %vm2151, %v2191, 0
        %3046 = vmatprep.subr.bf16.mxu0 %v3007
        %3047 = vmatpush1.bf16.msra.mxu0 %v3006
        %3048 = vmatprep.subr.bf16.mxu0 %v3010
        %3049 = vmatpush1.bf16.msra.mxu0 %v3009
        %3050 = vmatprep.subr.bf16.mxu0 %v3013
        %3051 = vmatpush1.bf16.msra.mxu0 %v3012
        %3052 = vmatprep.subr.bf16.mxu0 %v3016
        %3053 = vmatpush1.bf16.msra.mxu0 %v3015
        %3054 = vmatprep.subr.bf16.mxu0 0
        %3055 = vmatpush1.bf16.msra.mxu0 0
        %3056 = vmatprep.subr.bf16.mxu0 0
        %3057 = vmatpush1.bf16.msra.mxu0 0
        %3058 = vmatprep.subr.bf16.mxu0 0
        %3059 = vmatpush1.bf16.msra.mxu0 0
        %3060 = vmatprep.subr.bf16.mxu0 0
        %3061 = vmatpush1.bf16.msra.mxu0 0
        %3062 = vmatprep.subr.bf16.mxu0 0
        %3063 = vmatpush1.bf16.msra.mxu0 0
        %3064 = vmatprep.subr.bf16.mxu0 0
        %3065 = vmatpush1.bf16.msra.mxu0 0
        %3066 = vmatprep.subr.bf16.mxu0 0
        %3067 = vmatpush1.bf16.msra.mxu0 0
        %3068 = vmatprep.subr.bf16.mxu0 0
        %3069 = vmatpush1.bf16.msra.mxu0 0
        %3070 = vmatprep.subr.bf16.mxu0 0
        %3071 = vmatpush1.bf16.msra.mxu0 0
        %3072 = vmatprep.subr.bf16.mxu0 0
        %3073 = vmatpush1.bf16.msra.mxu0 0
        %3074 = vmatprep.subr.bf16.mxu0 0
        %3075 = vmatpush1.bf16.msra.mxu0 0
        %3076 = vmatprep.subr.bf16.mxu0 0
        %3077 = vmatpush1.bf16.msra.mxu0 0
        %3078 = vmatprep.mubr.bf16.mxu0 0
        %3079 = vmatmul.mubr.bf16.gmra.mrb[0].mxu0 %v3030
        %v3080 = vpop.f32.mrb[0].mxu0
        %v3081 = vadd.f32 0.0, %v3080
        %v3082 = vpop.f32.mrb[0].mxu0
        %v3083 = vadd.f32 0.0, %v3082
        %v3084 = vpop.f32.mrb[0].mxu0
        %v3085 = vadd.f32 0.0, %v3084
        %v3086 = vpop.f32.mrb[0].mxu0
        %v3087 = vadd.f32 0.0, %v3086
        %3088 = vmatprep.mubr.bf16.mxu0 0
        %3089 = vmatmul.mubr.bf16.gmra.mrb[0].mxu0 %v3032
        %v3090 = vpop.f32.mrb[0].mxu0
        %v3091 = vadd.f32 0.0, %v3090
        %v3092 = vpop.f32.mrb[0].mxu0
        %v3093 = vadd.f32 0.0, %v3092
        %v3094 = vpop.f32.mrb[0].mxu0
        %v3095 = vadd.f32 0.0, %v3094
        %v3096 = vpop.f32.mrb[0].mxu0
        %v3097 = vadd.f32 0.0, %v3096
        %3098 = vmatprep.mubr.bf16.mxu0 0
        %3099 = vmatmul.mubr.bf16.gmra.mrb[0].mxu0 %v3034
        %v3100 = vpop.f32.mrb[0].mxu0
        %v3101 = vadd.f32 0.0, %v3100
        %v3102 = vpop.f32.mrb[0].mxu0
        %v3103 = vadd.f32 0.0, %v3102
        %v3104 = vpop.f32.mrb[0].mxu0
        %v3105 = vadd.f32 0.0, %v3104
        %v3106 = vpop.f32.mrb[0].mxu0
        %v3107 = vadd.f32 0.0, %v3106
        %3108 = vmatprep.mubr.bf16.mxu0 0
        %3109 = vmatmul.mubr.bf16.gmra.mrb[0].mxu0 %v3036
        %v3110 = vpop.f32.mrb[0].mxu0
        %v3111 = vadd.f32 0.0, %v3110
        %v3112 = vpop.f32.mrb[0].mxu0
        %v3113 = vadd.f32 0.0, %v3112
        %v3114 = vpop.f32.mrb[0].mxu0
        %v3115 = vadd.f32 0.0, %v3114
        %v3116 = vpop.f32.mrb[0].mxu0
        %v3117 = vadd.f32 0.0, %v3116
        %3118 = vmatprep.mubr.bf16.mxu0 0
        %3119 = vmatmul.mubr.bf16.gmra.mrb[0].mxu0 %v3038
        %v3120 = vpop.f32.mrb[0].mxu0
        %v3121 = vadd.f32 0.0, %v3120
        %v3122 = vpop.f32.mrb[0].mxu0
        %v3123 = vadd.f32 0.0, %v3122
        %v3124 = vpop.f32.mrb[0].mxu0
        %v3125 = vadd.f32 0.0, %v3124
        %v3126 = vpop.f32.mrb[0].mxu0
        %v3127 = vadd.f32 0.0, %v3126
        %3128 = vmatprep.mubr.bf16.mxu0 0
        %3129 = vmatmul.mubr.bf16.gmra.mrb[0].mxu0 %v3040
        %v3130 = vpop.f32.mrb[0].mxu0
        %v3131 = vadd.f32 0.0, %v3130
        %v3132 = vpop.f32.mrb[0].mxu0
        %v3133 = vadd.f32 0.0, %v3132
        %v3134 = vpop.f32.mrb[0].mxu0
        %v3135 = vadd.f32 0.0, %v3134
        %v3136 = vpop.f32.mrb[0].mxu0
        %v3137 = vadd.f32 0.0, %v3136
        %3138 = vmatprep.mubr.bf16.mxu0 0
        %3139 = vmatmul.mubr.bf16.gmra.mrb[0].mxu0 %v3042
        %v3140 = vpop.f32.mrb[0].mxu0
        %v3141 = vadd.f32 0.0, %v3140
        %v3142 = vpop.f32.mrb[0].mxu0
        %v3143 = vadd.f32 0.0, %v3142
        %v3144 = vpop.f32.mrb[0].mxu0
        %v3145 = vadd.f32 0.0, %v3144
        %v3146 = vpop.f32.mrb[0].mxu0
        %v3147 = vadd.f32 0.0, %v3146
        %3148 = vmatprep.mubr.bf16.mxu0 0
        %3149 = vmatmul.mubr.bf16.gmra.mrb[0].mxu0 %v3044
        %v3150 = vpop.f32.mrb[0].mxu0
        %v3151 = vadd.f32 0.0, %v3150
        %v3152 = vpop.f32.mrb[0].mxu0
        %v3153 = vadd.f32 0.0, %v3152
        %v3154 = vpop.f32.mrb[0].mxu0
        %v3155 = vadd.f32 0.0, %v3154
        %v3156 = vpop.f32.mrb[0].mxu0
        %v3157 = vadd.f32 0.0, %v3156
        %3158 = vdwg.mxu0
        %3159 = vmatprep.subr.bf16.mxu0 0
        %3160 = vmatpush1.bf16.msra.mxu0 %v3008
        %3161 = vmatprep.subr.bf16.mxu0 0
        %3162 = vmatpush1.bf16.msra.mxu0 %v3011
        %3163 = vmatprep.subr.bf16.mxu0 0
        %3164 = vmatpush1.bf16.msra.mxu0 %v3014
        %3165 = vmatprep.subr.bf16.mxu0 0
        %3166 = vmatpush1.bf16.msra.mxu0 %v3017
        %3167 = vmatprep.subr.bf16.mxu0 0
        %3168 = vmatpush1.bf16.msra.mxu0 0
        %3169 = vmatprep.subr.bf16.mxu0 0
        %3170 = vmatpush1.bf16.msra.mxu0 0
        %3171 = vmatprep.subr.bf16.mxu0 0
        %3172 = vmatpush1.bf16.msra.mxu0 0
        %3173 = vmatprep.subr.bf16.mxu0 0
        %3174 = vmatpush1.bf16.msra.mxu0 0
        %3175 = vmatprep.subr.bf16.mxu0 0
        %3176 = vmatpush1.bf16.msra.mxu0 0
        %3177 = vmatprep.subr.bf16.mxu0 0
        %3178 = vmatpush1.bf16.msra.mxu0 0
        %3179 = vmatprep.subr.bf16.mxu0 0
        %3180 = vmatpush1.bf16.msra.mxu0 0
        %3181 = vmatprep.subr.bf16.mxu0 0
        %3182 = vmatpush1.bf16.msra.mxu0 0
        %3183 = vmatprep.subr.bf16.mxu0 0
        %3184 = vmatpush1.bf16.msra.mxu0 0
        %3185 = vmatprep.subr.bf16.mxu0 0
        %3186 = vmatpush1.bf16.msra.mxu0 0
        %3187 = vmatprep.subr.bf16.mxu0 0
        %3188 = vmatpush1.bf16.msra.mxu0 0
        %3189 = vmatprep.subr.bf16.mxu0 0
        %3190 = vmatpush1.bf16.msra.mxu0 0
        %3191 = vmatprep.mubr.bf16.mxu0 0
        %3192 = vmatmul.mubr.bf16.gmra.mrb[0].mxu0 %v3030
        %v3193 = vpop.f32.mrb[0].mxu0
        %v3194 = vadd.f32 0.0, %v3193
        %v3195 = vpop.f32.mrb[0].mxu0
        %v3196 = vpop.f32.mrb[0].mxu0
        %v3197 = vadd.f32 0.0, %v3196
        %v3198 = vpop.f32.mrb[0].mxu0
        %3199 = vmatprep.mubr.bf16.mxu0 0
        %3200 = vmatmul.mubr.bf16.gmra.mrb[0].mxu0 %v3032
        %v3201 = vpop.f32.mrb[0].mxu0
        %v3202 = vadd.f32 0.0, %v3201
        %v3203 = vpop.f32.mrb[0].mxu0
        %v3204 = vpop.f32.mrb[0].mxu0
        %v3205 = vadd.f32 0.0, %v3204
        %v3206 = vpop.f32.mrb[0].mxu0
        %3207 = vmatprep.mubr.bf16.mxu0 0
        %3208 = vmatmul.mubr.bf16.gmra.mrb[0].mxu0 %v3034
        %v3209 = vpop.f32.mrb[0].mxu0
        %v3210 = vadd.f32 0.0, %v3209
        %v3211 = vpop.f32.mrb[0].mxu0
        %v3212 = vpop.f32.mrb[0].mxu0
        %v3213 = vadd.f32 0.0, %v3212
        %v3214 = vpop.f32.mrb[0].mxu0
        %3215 = vmatprep.mubr.bf16.mxu0 0
        %3216 = vmatmul.mubr.bf16.gmra.mrb[0].mxu0 %v3036
        %v3217 = vpop.f32.mrb[0].mxu0
        %v3218 = vadd.f32 0.0, %v3217
        %v3219 = vpop.f32.mrb[0].mxu0
        %v3220 = vpop.f32.mrb[0].mxu0
        %v3221 = vadd.f32 0.0, %v3220
        %v3222 = vpop.f32.mrb[0].mxu0
        %3223 = vmatprep.mubr.bf16.mxu0 0
        %3224 = vmatmul.mubr.bf16.gmra.mrb[0].mxu0 %v3038
        %v3225 = vpop.f32.mrb[0].mxu0
        %v3226 = vadd.f32 0.0, %v3225
        %v3227 = vpop.f32.mrb[0].mxu0
        %v3228 = vpop.f32.mrb[0].mxu0
        %v3229 = vadd.f32 0.0, %v3228
        %v3230 = vpop.f32.mrb[0].mxu0
        %3231 = vmatprep.mubr.bf16.mxu0 0
        %3232 = vmatmul.mubr.bf16.gmra.mrb[0].mxu0 %v3040
        %v3233 = vpop.f32.mrb[0].mxu0
        %v3234 = vadd.f32 0.0, %v3233
        %v3235 = vpop.f32.mrb[0].mxu0
        %v3236 = vpop.f32.mrb[0].mxu0
        %v3237 = vadd.f32 0.0, %v3236
        %v3238 = vpop.f32.mrb[0].mxu0
        %3239 = vmatprep.mubr.bf16.mxu0 0
        %3240 = vmatmul.mubr.bf16.gmra.mrb[0].mxu0 %v3042
        %v3241 = vpop.f32.mrb[0].mxu0
        %v3242 = vadd.f32 0.0, %v3241
        %v3243 = vpop.f32.mrb[0].mxu0
        %v3244 = vpop.f32.mrb[0].mxu0
        %v3245 = vadd.f32 0.0, %v3244
        %v3246 = vpop.f32.mrb[0].mxu0
        %3247 = vmatprep.mubr.bf16.mxu0 0
        %3248 = vmatmul.mubr.bf16.gmra.mrb[0].mxu0 %v3044
        %v3249 = vpop.f32.mrb[0].mxu0
        %v3250 = vadd.f32 0.0, %v3249
        %v3251 = vpop.f32.mrb[0].mxu0
        %v3252 = vpop.f32.mrb[0].mxu0
        %v3253 = vadd.f32 0.0, %v3252
        %v3254 = vpop.f32.mrb[0].mxu0
        %3255 = vdwg.mxu0
        %vm3256 = vcmp.lt.s32.totalorder %v2274, 15
        %vm3257 = vcmp.lt.s32.totalorder %v2275, 15
        %v3258 = vsel %vm3256, 1, 0
        %v3259 = vsel %vm3257, 1, 0
        %vm3260 = vcmp.eq.s32.totalorder %v3258, 1
        %vm3261 = vcmp.eq.s32.totalorder %v3259, 1
        %v3262 = vsel %vm3260, %v3081, -1e+30
        %v3263 = vsel %vm3260, %v3083, -1e+30
        %v3264 = vsel %vm3260, %v3194, -1e+30
        %v3265 = vsel %vm3261, %v3085, -1e+30
        %v3266 = vsel %vm3261, %v3087, -1e+30
        %v3267 = vsel %vm3261, %v3197, -1e+30
        %v3268 = vsel %vm3260, %v3091, -1e+30
        %v3269 = vsel %vm3260, %v3093, -1e+30
        %v3270 = vsel %vm3260, %v3202, -1e+30
        %v3271 = vsel %vm3261, %v3095, -1e+30
        %v3272 = vsel %vm3261, %v3097, -1e+30
        %v3273 = vsel %vm3261, %v3205, -1e+30
        %v3274 = vsel %vm3260, %v3101, -1e+30
        %v3275 = vsel %vm3260, %v3103, -1e+30
        %v3276 = vsel %vm3260, %v3210, -1e+30
        %v3277 = vsel %vm3261, %v3105, -1e+30
        %v3278 = vsel %vm3261, %v3107, -1e+30
        %v3279 = vsel %vm3261, %v3213, -1e+30
        %v3280 = vsel %vm3260, %v3111, -1e+30
        %v3281 = vsel %vm3260, %v3113, -1e+30
        %v3282 = vsel %vm3260, %v3218, -1e+30
        %v3283 = vsel %vm3261, %v3115, -1e+30
        %v3284 = vsel %vm3261, %v3117, -1e+30
        %v3285 = vsel %vm3261, %v3221, -1e+30
        %v3286 = vsel %vm3260, %v3121, -1e+30
        %v3287 = vsel %vm3260, %v3123, -1e+30
        %v3288 = vsel %vm3260, %v3226, -1e+30
        %v3289 = vsel %vm3261, %v3125, -1e+30
        %v3290 = vsel %vm3261, %v3127, -1e+30
        %v3291 = vsel %vm3261, %v3229, -1e+30
        %v3292 = vsel %vm3260, %v3131, -1e+30
        %v3293 = vsel %vm3260, %v3133, -1e+30
        %v3294 = vsel %vm3260, %v3234, -1e+30
        %v3295 = vsel %vm3261, %v3135, -1e+30
        %v3296 = vsel %vm3261, %v3137, -1e+30
        %v3297 = vsel %vm3261, %v3237, -1e+30
        %v3298 = vsel %vm3260, %v3141, -1e+30
        %v3299 = vsel %vm3260, %v3143, -1e+30
        %v3300 = vsel %vm3260, %v3242, -1e+30
        %v3301 = vsel %vm3261, %v3145, -1e+30
        %v3302 = vsel %vm3261, %v3147, -1e+30
        %v3303 = vsel %vm3261, %v3245, -1e+30
        %v3304 = vsel %vm3260, %v3151, -1e+30
        %v3305 = vsel %vm3260, %v3153, -1e+30
        %v3306 = vsel %vm3260, %v3250, -1e+30
        %v3307 = vsel %vm3261, %v3155, -1e+30
        %v3308 = vsel %vm3261, %v3157, -1e+30
        %v3309 = vsel %vm3261, %v3253, -1e+30
        %v3310 = vmax.f32 %v3262, %v3265
        %v3311 = vrot.slane %v3310, 4
        %v3312 = vmax.f32 %v3310, %v3311
        %v3313 = vrot.slane %v3312, 2
        %v3314 = vmax.f32 %v3312, %v3313
        %v3315 = vrot.slane %v3314, 1
        %v3316 = vmax.f32 %v3314, %v3315
        %v3317 = vmax.f32 %v3263, %v3266
        %v3318 = vrot.slane %v3317, 4
        %v3319 = vmax.f32 %v3317, %v3318
        %v3320 = vrot.slane %v3319, 2
        %v3321 = vmax.f32 %v3319, %v3320
        %v3322 = vrot.slane %v3321, 1
        %v3323 = vmax.f32 %v3321, %v3322
        %v3324 = vmax.f32 %v3264, %v3267
        %v3325 = vrot.slane %v3324, 4
        %v3326 = vmax.f32 %v3324, %v3325
        %v3327 = vrot.slane %v3326, 2
        %v3328 = vmax.f32 %v3326, %v3327
        %v3329 = vrot.slane %v3328, 1
        %v3330 = vmax.f32 %v3328, %v3329
        %v3331 = vmax.f32 %v3268, %v3271
        %v3332 = vrot.slane %v3331, 4
        %v3333 = vmax.f32 %v3331, %v3332
        %v3334 = vrot.slane %v3333, 2
        %v3335 = vmax.f32 %v3333, %v3334
        %v3336 = vrot.slane %v3335, 1
        %v3337 = vmax.f32 %v3335, %v3336
        %v3338 = vmax.f32 %v3269, %v3272
        %v3339 = vrot.slane %v3338, 4
        %v3340 = vmax.f32 %v3338, %v3339
        %v3341 = vrot.slane %v3340, 2
        %v3342 = vmax.f32 %v3340, %v3341
        %v3343 = vrot.slane %v3342, 1
        %v3344 = vmax.f32 %v3342, %v3343
        %v3345 = vmax.f32 %v3270, %v3273
        %v3346 = vrot.slane %v3345, 4
        %v3347 = vmax.f32 %v3345, %v3346
        %v3348 = vrot.slane %v3347, 2
        %v3349 = vmax.f32 %v3347, %v3348
        %v3350 = vrot.slane %v3349, 1
        %v3351 = vmax.f32 %v3349, %v3350
        %v3352 = vmax.f32 %v3274, %v3277
        %v3353 = vrot.slane %v3352, 4
        %v3354 = vmax.f32 %v3352, %v3353
        %v3355 = vrot.slane %v3354, 2
        %v3356 = vmax.f32 %v3354, %v3355
        %v3357 = vrot.slane %v3356, 1
        %v3358 = vmax.f32 %v3356, %v3357
        %v3359 = vmax.f32 %v3275, %v3278
        %v3360 = vrot.slane %v3359, 4
        %v3361 = vmax.f32 %v3359, %v3360
        %v3362 = vrot.slane %v3361, 2
        %v3363 = vmax.f32 %v3361, %v3362
        %v3364 = vrot.slane %v3363, 1
        %v3365 = vmax.f32 %v3363, %v3364
        %v3366 = vmax.f32 %v3276, %v3279
        %v3367 = vrot.slane %v3366, 4
        %v3368 = vmax.f32 %v3366, %v3367
        %v3369 = vrot.slane %v3368, 2
        %v3370 = vmax.f32 %v3368, %v3369
        %v3371 = vrot.slane %v3370, 1
        %v3372 = vmax.f32 %v3370, %v3371
        %v3373 = vmax.f32 %v3280, %v3283
        %v3374 = vrot.slane %v3373, 4
        %v3375 = vmax.f32 %v3373, %v3374
        %v3376 = vrot.slane %v3375, 2
        %v3377 = vmax.f32 %v3375, %v3376
        %v3378 = vrot.slane %v3377, 1
        %v3379 = vmax.f32 %v3377, %v3378
        %v3380 = vmax.f32 %v3281, %v3284
        %v3381 = vrot.slane %v3380, 4
        %v3382 = vmax.f32 %v3380, %v3381
        %v3383 = vrot.slane %v3382, 2
        %v3384 = vmax.f32 %v3382, %v3383
        %v3385 = vrot.slane %v3384, 1
        %v3386 = vmax.f32 %v3384, %v3385
        %v3387 = vmax.f32 %v3282, %v3285
        %v3388 = vrot.slane %v3387, 4
        %v3389 = vmax.f32 %v3387, %v3388
        %v3390 = vrot.slane %v3389, 2
        %v3391 = vmax.f32 %v3389, %v3390
        %v3392 = vrot.slane %v3391, 1
        %v3393 = vmax.f32 %v3391, %v3392
        %v3394 = vmax.f32 %v3286, %v3289
        %v3395 = vrot.slane %v3394, 4
        %v3396 = vmax.f32 %v3394, %v3395
        %v3397 = vrot.slane %v3396, 2
        %v3398 = vmax.f32 %v3396, %v3397
        %v3399 = vrot.slane %v3398, 1
        %v3400 = vmax.f32 %v3398, %v3399
        %v3401 = vmax.f32 %v3287, %v3290
        %v3402 = vrot.slane %v3401, 4
        %v3403 = vmax.f32 %v3401, %v3402
        %v3404 = vrot.slane %v3403, 2
        %v3405 = vmax.f32 %v3403, %v3404
        %v3406 = vrot.slane %v3405, 1
        %v3407 = vmax.f32 %v3405, %v3406
        %v3408 = vmax.f32 %v3288, %v3291
        %v3409 = vrot.slane %v3408, 4
        %v3410 = vmax.f32 %v3408, %v3409
        %v3411 = vrot.slane %v3410, 2
        %v3412 = vmax.f32 %v3410, %v3411
        %v3413 = vrot.slane %v3412, 1
        %v3414 = vmax.f32 %v3412, %v3413
        %v3415 = vmax.f32 %v3292, %v3295
        %v3416 = vrot.slane %v3415, 4
        %v3417 = vmax.f32 %v3415, %v3416
        %v3418 = vrot.slane %v3417, 2
        %v3419 = vmax.f32 %v3417, %v3418
        %v3420 = vrot.slane %v3419, 1
        %v3421 = vmax.f32 %v3419, %v3420
        %v3422 = vmax.f32 %v3293, %v3296
        %v3423 = vrot.slane %v3422, 4
        %v3424 = vmax.f32 %v3422, %v3423
        %v3425 = vrot.slane %v3424, 2
        %v3426 = vmax.f32 %v3424, %v3425
        %v3427 = vrot.slane %v3426, 1
        %v3428 = vmax.f32 %v3426, %v3427
        %v3429 = vmax.f32 %v3294, %v3297
        %v3430 = vrot.slane %v3429, 4
        %v3431 = vmax.f32 %v3429, %v3430
        %v3432 = vrot.slane %v3431, 2
        %v3433 = vmax.f32 %v3431, %v3432
        %v3434 = vrot.slane %v3433, 1
        %v3435 = vmax.f32 %v3433, %v3434
        %v3436 = vmax.f32 %v3298, %v3301
        %v3437 = vrot.slane %v3436, 4
        %v3438 = vmax.f32 %v3436, %v3437
        %v3439 = vrot.slane %v3438, 2
        %v3440 = vmax.f32 %v3438, %v3439
        %v3441 = vrot.slane %v3440, 1
        %v3442 = vmax.f32 %v3440, %v3441
        %v3443 = vmax.f32 %v3299, %v3302
        %v3444 = vrot.slane %v3443, 4
        %v3445 = vmax.f32 %v3443, %v3444
        %v3446 = vrot.slane %v3445, 2
        %v3447 = vmax.f32 %v3445, %v3446
        %v3448 = vrot.slane %v3447, 1
        %v3449 = vmax.f32 %v3447, %v3448
        %v3450 = vmax.f32 %v3300, %v3303
        %v3451 = vrot.slane %v3450, 4
        %v3452 = vmax.f32 %v3450, %v3451
        %v3453 = vrot.slane %v3452, 2
        %v3454 = vmax.f32 %v3452, %v3453
        %v3455 = vrot.slane %v3454, 1
        %v3456 = vmax.f32 %v3454, %v3455
        %v3457 = vmax.f32 %v3304, %v3307
        %v3458 = vrot.slane %v3457, 4
        %v3459 = vmax.f32 %v3457, %v3458
        %v3460 = vrot.slane %v3459, 2
        %v3461 = vmax.f32 %v3459, %v3460
        %v3462 = vrot.slane %v3461, 1
        %v3463 = vmax.f32 %v3461, %v3462
        %v3464 = vmax.f32 %v3305, %v3308
        %v3465 = vrot.slane %v3464, 4
        %v3466 = vmax.f32 %v3464, %v3465
        %v3467 = vrot.slane %v3466, 2
        %v3468 = vmax.f32 %v3466, %v3467
        %v3469 = vrot.slane %v3468, 1
        %v3470 = vmax.f32 %v3468, %v3469
        %v3471 = vmax.f32 %v3306, %v3309
        %v3472 = vrot.slane %v3471, 4
        %v3473 = vmax.f32 %v3471, %v3472
        %v3474 = vrot.slane %v3473, 2
        %v3475 = vmax.f32 %v3473, %v3474
        %v3476 = vrot.slane %v3475, 1
        %v3477 = vmax.f32 %v3475, %v3476
        %s3478 = scalar_lea.vmem [#allocation2], 25
        %v3479 = vld [vmem:[%s3478] ss:$8 sm:$0x7]
        %v3481 = vlaneseq
        %v3482 = vshrl.u32 %v3481, 7
        %v3483 = vsub.s32 0, %v3482
        %v3484 = vrot.slane %v3479, %v3483
        %v3485 = vlaneseq
        %v3486 = vshrl.u32 %v3485, 7
        %v3487 = vsub.s32 1, %v3486
        %v3488 = vrot.slane %v3479, %v3487
        %v3489 = vlaneseq
        %v3490 = vshrl.u32 %v3489, 7
        %v3491 = vsub.s32 2, %v3490
        %v3492 = vrot.slane %v3479, %v3491
        %v3496 = vadd.f32 %v3316, %v3484
        %v3497 = vadd.f32 %v3323, %v3488
        %v3498 = vadd.f32 %v3330, %v3492
        %v3499 = vadd.f32 %v3337, %v3484
        %v3500 = vadd.f32 %v3344, %v3488
        %v3501 = vadd.f32 %v3351, %v3492
        %v3502 = vadd.f32 %v3358, %v3484
        %v3503 = vadd.f32 %v3365, %v3488
        %v3504 = vadd.f32 %v3372, %v3492
        %v3505 = vadd.f32 %v3379, %v3484
        %v3506 = vadd.f32 %v3386, %v3488
        %v3507 = vadd.f32 %v3393, %v3492
        %v3508 = vadd.f32 %v3400, %v3484
        %v3509 = vadd.f32 %v3407, %v3488
        %v3510 = vadd.f32 %v3414, %v3492
        %v3511 = vadd.f32 %v3421, %v3484
        %v3512 = vadd.f32 %v3428, %v3488
        %v3513 = vadd.f32 %v3435, %v3492
        %v3514 = vadd.f32 %v3442, %v3484
        %v3515 = vadd.f32 %v3449, %v3488
        %v3516 = vadd.f32 %v3456, %v3492
        %v3517 = vadd.f32 %v3463, %v3484
        %v3518 = vadd.f32 %v3470, %v3488
        %v3519 = vadd.f32 %v3477, %v3492
        %v3520 = vmul.f32 %v3496, %v1426
        %v3521 = vmul.f32 %v3497, %v1428
        %v3522 = vmul.f32 %v3498, %v1467
        %v3523 = vmul.f32 %v3499, %v2809
        %v3524 = vmul.f32 %v3500, %v2810
        %v3525 = vmul.f32 %v3501, %v2811
        %v3526 = vmul.f32 %v3502, %v2812
        %v3527 = vmul.f32 %v3503, %v2813
        %v3528 = vmul.f32 %v3504, %v2814
        %v3529 = vmul.f32 %v3505, %v2815
        %v3530 = vmul.f32 %v3506, %v2816
        %v3531 = vmul.f32 %v3507, %v2817
        %v3532 = vmul.f32 %v3508, %v2818
        %v3533 = vmul.f32 %v3509, %v2819
        %v3534 = vmul.f32 %v3510, %v2820
        %v3535 = vmul.f32 %v3511, %v2821
        %v3536 = vmul.f32 %v3512, %v2822
        %v3537 = vmul.f32 %v3513, %v2823
        %v3538 = vmul.f32 %v3514, %v2824
        %v3539 = vmul.f32 %v3515, %v2825
        %v3540 = vmul.f32 %v3516, %v2826
        %v3541 = vmul.f32 %v3517, %v2827
        %v3542 = vmul.f32 %v3518, %v2828
        %v3543 = vmul.f32 %v3519, %v2829
        %v3544 = vpack.c.bf16 %v3520, %v3520
        %v3545 = vpack.c.bf16 %v3521, %v3521
        %v3546 = vpack.c.bf16 %v3522, %v3522
        %v3547 = vpack.c.bf16 %v3523, %v3523
        %v3548 = vpack.c.bf16 %v3524, %v3524
        %v3549 = vpack.c.bf16 %v3525, %v3525
        %v3550 = vpack.c.bf16 %v3526, %v3526
        %v3551 = vpack.c.bf16 %v3527, %v3527
        %v3552 = vpack.c.bf16 %v3528, %v3528
        %v3553 = vpack.c.bf16 %v3529, %v3529
        %v3554 = vpack.c.bf16 %v3530, %v3530
        %v3555 = vpack.c.bf16 %v3531, %v3531
        %v3556 = vpack.c.bf16 %v3532, %v3532
        %v3557 = vpack.c.bf16 %v3533, %v3533
        %v3558 = vpack.c.bf16 %v3534, %v3534
        %v3559 = vpack.c.bf16 %v3535, %v3535
        %v3560 = vpack.c.bf16 %v3536, %v3536
        %v3561 = vpack.c.bf16 %v3537, %v3537
        %v3562 = vpack.c.bf16 %v3538, %v3538
        %v3563 = vpack.c.bf16 %v3539, %v3539
        %v3564 = vpack.c.bf16 %v3540, %v3540
        %v3565 = vpack.c.bf16 %v3541, %v3541
        %v3566 = vpack.c.bf16 %v3542, %v3542
        %v3567 = vpack.c.bf16 %v3543, %v3543
        %v3568 = vld [vmem:[%s8 + $0xc0] sm:$0xf]
        %v3569 = vld [vmem:[%s8 + $0xc4] sm:$0xf]
        %v3570 = vld [vmem:[%s8 + $0xc8] sm:$0xf]
        %v3571 = vld [vmem:[%s8 + $0xcc] sm:$0xf]
        %v3572 = vld [vmem:[%s8 + $0xd0] sm:$0xf]
        %v3573 = vld [vmem:[%s8 + $0xd4] sm:$0xf]
        %v3574 = vld [vmem:[%s8 + $0xd8] sm:$0xf]
        %v3575 = vld [vmem:[%s8 + $0xdc] sm:$0xf]
        %v3576 = vld [vmem:[%s8 + $0xe0] sm:$0xf]
        %v3577 = vld [vmem:[%s8 + $0xe4] sm:$0xf]
        %v3578 = vld [vmem:[%s8 + $0xe8] sm:$0xf]
        %v3579 = vld [vmem:[%s8 + $0xec] sm:$0xf]
        %v3580 = vld [vmem:[%s8 + $0xf0] sm:$0xf]
        %v3581 = vld [vmem:[%s8 + $0xf4] sm:$0xf]
        %v3582 = vld [vmem:[%s8 + $0xf8] sm:$0xf]
        %v3583 = vld [vmem:[%s8 + $0xfc] sm:$0xf]
        %v3584 = vld [vmem:[%s8 + $0x100] sm:$0xf]
        %v3585 = vld [vmem:[%s8 + $0x104] sm:$0xf]
        %v3586 = vld [vmem:[%s8 + $0x108] sm:$0xf]
        %v3587 = vld [vmem:[%s8 + $0x10c] sm:$0xf]
        %v3588 = vld [vmem:[%s8 + $0x110] sm:$0xf]
        %v3589 = vld [vmem:[%s8 + $0x114] sm:$0xf]
        %v3590 = vld [vmem:[%s8 + $0x118] sm:$0xf]
        %v3591 = vld [vmem:[%s8 + $0x11c] sm:$0xf]
        %v3592 = vld [vmem:[%s8 + $0x120] sm:$0xf]
        %v3593 = vld [vmem:[%s8 + $0x124] sm:$0xf]
        %v3594 = vld [vmem:[%s8 + $0x128] sm:$0xf]
        %v3595 = vld [vmem:[%s8 + $0x12c] sm:$0xf]
        %v3596 = vld [vmem:[%s8 + $0x130] sm:$0xf]
        %v3597 = vld [vmem:[%s8 + $0x134] sm:$0xf]
        %v3598 = vld [vmem:[%s8 + $0x138] sm:$0xf]
        %v3599 = vld [vmem:[%s8 + $0x13c] sm:$0xf]
        %v3600 = vld [vmem:[%s8 + $0x140] sm:$0xf]
        %v3601 = vld [vmem:[%s8 + $0x144] sm:$0xf]
        %v3602 = vld [vmem:[%s8 + $0x148] sm:$0xf]
        %v3603 = vld [vmem:[%s8 + $0x14c] sm:$0xf]
        %v3604 = vld [vmem:[%s8 + $0x150] sm:$0xf]
        %v3605 = vld [vmem:[%s8 + $0x154] sm:$0xf]
        %v3606 = vld [vmem:[%s8 + $0x158] sm:$0xf]
        %v3607 = vld [vmem:[%s8 + $0x15c] sm:$0xf]
        %v3608 = vld [vmem:[%s8 + $0x160] sm:$0xf]
        %v3609 = vld [vmem:[%s8 + $0x164] sm:$0xf]
        %v3610 = vld [vmem:[%s8 + $0x168] sm:$0xf]
        %v3611 = vld [vmem:[%s8 + $0x16c] sm:$0xf]
        %v3612 = vld [vmem:[%s8 + $0x170] sm:$0xf]
        %v3613 = vld [vmem:[%s8 + $0x174] sm:$0xf]
        %v3614 = vld [vmem:[%s8 + $0x178] sm:$0xf]
        %v3615 = vld [vmem:[%s8 + $0x17c] sm:$0xf]
        %v3640 = vunpack.c.l.b16 %v3544
        %v3641 = vunpack.c.l.b16 %v3545
        %v3642 = vunpack.c.l.b16 %v3546
        %v3643 = vunpack.c.l.b16 %v3547
        %v3644 = vunpack.c.l.b16 %v3548
        %v3645 = vunpack.c.l.b16 %v3549
        %v3646 = vunpack.c.l.b16 %v3550
        %v3647 = vunpack.c.l.b16 %v3551
        %v3648 = vunpack.c.l.b16 %v3552
        %v3649 = vunpack.c.l.b16 %v3553
        %v3650 = vunpack.c.l.b16 %v3554
        %v3651 = vunpack.c.l.b16 %v3555
        %v3652 = vunpack.c.l.b16 %v3556
        %v3653 = vunpack.c.l.b16 %v3557
        %v3654 = vunpack.c.l.b16 %v3558
        %v3655 = vunpack.c.l.b16 %v3559
        %v3656 = vunpack.c.l.b16 %v3560
        %v3657 = vunpack.c.l.b16 %v3561
        %v3658 = vunpack.c.l.b16 %v3562
        %v3659 = vunpack.c.l.b16 %v3563
        %v3660 = vunpack.c.l.b16 %v3564
        %v3661 = vunpack.c.l.b16 %v3565
        %v3662 = vunpack.c.l.b16 %v3566
        %v3663 = vunpack.c.l.b16 %v3567
        %v3664 = vrot.slane %v3643, 7
        %v3665 = vsel %vm825, %v3664, %v3640
        %v3666 = vrot.slane %v3646, 6
        %v3667 = vsel %vm827, %v3666, %v3665
        %v3668 = vrot.slane %v3649, 5
        %v3669 = vsel %vm829, %v3668, %v3667
        %v3670 = vrot.slane %v3652, 4
        %v3671 = vsel %vm831, %v3670, %v3669
        %v3672 = vrot.slane %v3655, 3
        %v3673 = vsel %vm833, %v3672, %v3671
        %v3674 = vrot.slane %v3658, 2
        %v3675 = vsel %vm835, %v3674, %v3673
        %v3676 = vrot.slane %v3661, 1
        %v3677 = vsel %vm837, %v3676, %v3675
        %v3678 = vrot.slane %v3644, 7
        %v3679 = vsel %vm825, %v3678, %v3641
        %v3680 = vrot.slane %v3647, 6
        %v3681 = vsel %vm827, %v3680, %v3679
        %v3682 = vrot.slane %v3650, 5
        %v3683 = vsel %vm829, %v3682, %v3681
        %v3684 = vrot.slane %v3653, 4
        %v3685 = vsel %vm831, %v3684, %v3683
        %v3686 = vrot.slane %v3656, 3
        %v3687 = vsel %vm833, %v3686, %v3685
        %v3688 = vrot.slane %v3659, 2
        %v3689 = vsel %vm835, %v3688, %v3687
        %v3690 = vrot.slane %v3662, 1
        %v3691 = vsel %vm837, %v3690, %v3689
        %v3692 = vrot.slane %v3645, 7
        %v3693 = vsel %vm825, %v3692, %v3642
        %v3694 = vrot.slane %v3648, 6
        %v3695 = vsel %vm827, %v3694, %v3693
        %v3696 = vrot.slane %v3651, 5
        %v3697 = vsel %vm829, %v3696, %v3695
        %v3698 = vrot.slane %v3654, 4
        %v3699 = vsel %vm831, %v3698, %v3697
        %v3700 = vrot.slane %v3657, 3
        %v3701 = vsel %vm833, %v3700, %v3699
        %v3702 = vrot.slane %v3660, 2
        %v3703 = vsel %vm835, %v3702, %v3701
        %v3704 = vrot.slane %v3663, 1
        %v3705 = vsel %vm837, %v3704, %v3703
        %v3706 = vpack.c.b16 %v3677, %v3677
        %v3707 = vpack.c.b16 %v3691, %v3691
        %v3708 = vpack.c.b16 %v3705, %v3705
        %v3760 = vunpack.c.l.b16 %v3568
        %v3761 = vunpack.c.l.b16 %v3569
        %v3762 = vunpack.c.l.b16 %v3570
        %v3763 = vunpack.c.l.b16 %v3571
        %v3764 = vunpack.c.l.b16 %v3572
        %v3765 = vunpack.c.l.b16 %v3573
        %v3766 = vunpack.c.l.b16 %v3574
        %v3767 = vunpack.c.l.b16 %v3575
        %v3768 = vunpack.c.l.b16 %v3576
        %v3769 = vunpack.c.l.b16 %v3577
        %v3770 = vunpack.c.l.b16 %v3578
        %v3771 = vunpack.c.l.b16 %v3579
        %v3772 = vunpack.c.l.b16 %v3580
        %v3773 = vunpack.c.l.b16 %v3581
        %v3774 = vunpack.c.l.b16 %v3582
        %v3775 = vunpack.c.l.b16 %v3583
        %v3776 = vunpack.c.l.b16 %v3584
        %v3777 = vunpack.c.l.b16 %v3585
        %v3778 = vunpack.c.l.b16 %v3586
        %v3779 = vunpack.c.l.b16 %v3587
        %v3780 = vunpack.c.l.b16 %v3588
        %v3781 = vunpack.c.l.b16 %v3589
        %v3782 = vunpack.c.l.b16 %v3590
        %v3783 = vunpack.c.l.b16 %v3591
        %v3784 = vunpack.c.l.b16 %v3592
        %v3785 = vunpack.c.l.b16 %v3593
        %v3786 = vunpack.c.l.b16 %v3594
        %v3787 = vunpack.c.l.b16 %v3595
        %v3788 = vunpack.c.l.b16 %v3596
        %v3789 = vunpack.c.l.b16 %v3597
        %v3790 = vunpack.c.l.b16 %v3598
        %v3791 = vunpack.c.l.b16 %v3599
        %v3792 = vunpack.c.l.b16 %v3600
        %v3793 = vunpack.c.l.b16 %v3601
        %v3794 = vunpack.c.l.b16 %v3602
        %v3795 = vunpack.c.l.b16 %v3603
        %v3796 = vunpack.c.l.b16 %v3604
        %v3797 = vunpack.c.l.b16 %v3605
        %v3798 = vunpack.c.l.b16 %v3606
        %v3799 = vunpack.c.l.b16 %v3607
        %v3800 = vunpack.c.l.b16 %v3608
        %v3801 = vunpack.c.l.b16 %v3609
        %v3802 = vunpack.c.l.b16 %v3610
        %v3803 = vunpack.c.l.b16 %v3611
        %v3804 = vunpack.c.l.b16 %v3612
        %v3805 = vunpack.c.l.b16 %v3613
        %v3806 = vunpack.c.l.b16 %v3614
        %v3807 = vunpack.c.l.b16 %v3615
        %v3808 = vpack.c.b16 %v3761, %v3760
        %v3809 = vpack.c.b16 %v3763, %v3762
        %v3810 = vpack.c.b16 %v3765, %v3764
        %v3811 = vpack.c.b16 %v3767, %v3766
        %v3812 = vpack.c.b16 %v3769, %v3768
        %v3813 = vpack.c.b16 %v3771, %v3770
        %v3814 = vpack.c.b16 %v3773, %v3772
        %v3815 = vpack.c.b16 %v3775, %v3774
        %v3816 = vpack.c.b16 %v3777, %v3776
        %v3817 = vpack.c.b16 %v3779, %v3778
        %v3818 = vpack.c.b16 %v3781, %v3780
        %v3819 = vpack.c.b16 %v3783, %v3782
        %v3820 = vpack.c.b16 %v3785, %v3784
        %v3821 = vpack.c.b16 %v3787, %v3786
        %v3822 = vpack.c.b16 %v3789, %v3788
        %v3823 = vpack.c.b16 %v3791, %v3790
        %v3824 = vpack.c.b16 %v3793, %v3792
        %v3825 = vpack.c.b16 %v3795, %v3794
        %v3826 = vpack.c.b16 %v3797, %v3796
        %v3827 = vpack.c.b16 %v3799, %v3798
        %v3828 = vpack.c.b16 %v3801, %v3800
        %v3829 = vpack.c.b16 %v3803, %v3802
        %v3830 = vpack.c.b16 %v3805, %v3804
        %v3831 = vpack.c.b16 %v3807, %v3806
        %3856 = vmatprep.subr.bf16.mxu0 0
        %3857 = vmatpush1.bf16.msra.mxu0 %v3808
        %3858 = vmatprep.subr.bf16.mxu0 0
        %3859 = vmatpush1.bf16.msra.mxu0 %v3809
        %3860 = vmatprep.subr.bf16.mxu0 0
        %3861 = vmatpush1.bf16.msra.mxu0 %v3810
        %3862 = vmatprep.subr.bf16.mxu0 0
        %3863 = vmatpush1.bf16.msra.mxu0 %v3811
        %3864 = vmatprep.subr.bf16.mxu0 0
        %3865 = vmatpush1.bf16.msra.mxu0 %v3812
        %3866 = vmatprep.subr.bf16.mxu0 0
        %3867 = vmatpush1.bf16.msra.mxu0 %v3813
        %3868 = vmatprep.subr.bf16.mxu0 0
        %3869 = vmatpush1.bf16.msra.mxu0 %v3814
        %3870 = vmatprep.subr.bf16.mxu0 0
        %3871 = vmatpush1.bf16.msra.mxu0 %v3815
        %3872 = vmatprep.subr.bf16.mxu0 0
        %3873 = vmatpush1.bf16.msra.mxu0 %v3816
        %3874 = vmatprep.subr.bf16.mxu0 0
        %3875 = vmatpush1.bf16.msra.mxu0 %v3817
        %3876 = vmatprep.subr.bf16.mxu0 0
        %3877 = vmatpush1.bf16.msra.mxu0 %v3818
        %3878 = vmatprep.subr.bf16.mxu0 0
        %3879 = vmatpush1.bf16.msra.mxu0 %v3819
        %3880 = vmatprep.subr.bf16.mxu0 0
        %3881 = vmatpush1.bf16.msra.mxu0 %v3820
        %3882 = vmatprep.subr.bf16.mxu0 0
        %3883 = vmatpush1.bf16.msra.mxu0 %v3821
        %3884 = vmatprep.subr.bf16.mxu0 0
        %3885 = vmatpush1.bf16.msra.mxu0 %v3822
        %3886 = vmatprep.subr.bf16.mxu0 0
        %3887 = vmatpush1.bf16.msra.mxu0 %v3823
        %3888 = vmatprep.mubr.bf16.mxu0 %v3707
        %3889 = vmatmul.mubr.bf16.gmra.mrb[0].mxu0 %v3706
        %v3890 = vpop.f32.mrb[0].mxu0
        %v3891 = vadd.f32 0.0, %v3890
        %v3892 = vpop.f32.mrb[0].mxu0
        %v3893 = vpop.f32.mrb[0].mxu0
        %v3894 = vpop.f32.mrb[0].mxu0
        %3895 = vdwg.mxu0
        %3896 = vmatprep.subr.bf16.mxu0 0
        %3897 = vmatpush1.bf16.msra.mxu0 %v3824
        %3898 = vmatprep.subr.bf16.mxu0 0
        %3899 = vmatpush1.bf16.msra.mxu0 %v3825
        %3900 = vmatprep.subr.bf16.mxu0 0
        %3901 = vmatpush1.bf16.msra.mxu0 %v3826
        %3902 = vmatprep.subr.bf16.mxu0 0
        %3903 = vmatpush1.bf16.msra.mxu0 %v3827
        %3904 = vmatprep.subr.bf16.mxu0 0
        %3905 = vmatpush1.bf16.msra.mxu0 %v3828
        %3906 = vmatprep.subr.bf16.mxu0 0
        %3907 = vmatpush1.bf16.msra.mxu0 %v3829
        %3908 = vmatprep.subr.bf16.mxu0 0
        %3909 = vmatpush1.bf16.msra.mxu0 %v3830
        %3910 = vmatprep.subr.bf16.mxu0 0
        %3911 = vmatpush1.bf16.msra.mxu0 %v3831
        %3912 = vmatprep.subr.bf16.mxu0 0
        %3913 = vmatpush1.bf16.msra.mxu0 0
        %3914 = vmatprep.subr.bf16.mxu0 0
        %3915 = vmatpush1.bf16.msra.mxu0 0
        %3916 = vmatprep.subr.bf16.mxu0 0
        %3917 = vmatpush1.bf16.msra.mxu0 0
        %3918 = vmatprep.subr.bf16.mxu0 0
        %3919 = vmatpush1.bf16.msra.mxu0 0
        %3920 = vmatprep.subr.bf16.mxu0 0
        %3921 = vmatpush1.bf16.msra.mxu0 0
        %3922 = vmatprep.subr.bf16.mxu0 0
        %3923 = vmatpush1.bf16.msra.mxu0 0
        %3924 = vmatprep.subr.bf16.mxu0 0
        %3925 = vmatpush1.bf16.msra.mxu0 0
        %3926 = vmatprep.subr.bf16.mxu0 0
        %3927 = vmatpush1.bf16.msra.mxu0 0
        %3928 = vmatprep.mubr.bf16.mxu0 0
        %3929 = vmatmul.mubr.bf16.gmra.mrb[0].mxu0 %v3708
        %v3930 = vpop.f32.mrb[0].mxu0
        %v3931 = vadd.f32 %v3891, %v3930
        %v3932 = vpop.f32.mrb[0].mxu0
        %v3933 = vpop.f32.mrb[0].mxu0
        %v3934 = vpop.f32.mrb[0].mxu0
        %3935 = vdwg.mxu0
        %v3960 = vunpack.c.l.b16 %v2878
        %v3961 = vunpack.c.l.b16 %v2879
        %v3962 = vunpack.c.l.b16 %v2880
        %v3963 = vunpack.c.l.b16 %v2881
        %v3964 = vunpack.c.l.b16 %v2882
        %v3965 = vunpack.c.l.b16 %v2883
        %v3966 = vunpack.c.l.b16 %v2884
        %v3967 = vunpack.c.l.b16 %v2885
        %v3968 = vunpack.c.l.b16 %v2886
        %v3969 = vunpack.c.l.b16 %v2887
        %v3970 = vunpack.c.l.b16 %v2888
        %v3971 = vunpack.c.l.b16 %v2889
        %v3972 = vunpack.c.l.b16 %v2890
        %v3973 = vunpack.c.l.b16 %v2891
        %v3974 = vunpack.c.l.b16 %v2892
        %v3975 = vunpack.c.l.b16 %v2893
        %v3976 = vunpack.c.l.b16 %v2894
        %v3977 = vunpack.c.l.b16 %v2895
        %v3978 = vunpack.c.l.b16 %v2896
        %v3979 = vunpack.c.l.b16 %v2897
        %v3980 = vunpack.c.l.b16 %v2898
        %v3981 = vunpack.c.l.b16 %v2899
        %v3982 = vunpack.c.l.b16 %v2900
        %v3983 = vunpack.c.l.b16 %v2901
        %v3984 = vrot.slane %v3963, 7
        %v3985 = vsel %vm825, %v3984, %v3960
        %v3986 = vrot.slane %v3966, 6
        %v3987 = vsel %vm827, %v3986, %v3985
        %v3988 = vrot.slane %v3969, 5
        %v3989 = vsel %vm829, %v3988, %v3987
        %v3990 = vrot.slane %v3972, 4
        %v3991 = vsel %vm831, %v3990, %v3989
        %v3992 = vrot.slane %v3975, 3
        %v3993 = vsel %vm833, %v3992, %v3991
        %v3994 = vrot.slane %v3978, 2
        %v3995 = vsel %vm835, %v3994, %v3993
        %v3996 = vrot.slane %v3981, 1
        %v3997 = vsel %vm837, %v3996, %v3995
        %v3998 = vrot.slane %v3964, 7
        %v3999 = vsel %vm825, %v3998, %v3961
        %v4000 = vrot.slane %v3967, 6
        %v4001 = vsel %vm827, %v4000, %v3999
        %v4002 = vrot.slane %v3970, 5
        %v4003 = vsel %vm829, %v4002, %v4001
        %v4004 = vrot.slane %v3973, 4
        %v4005 = vsel %vm831, %v4004, %v4003
        %v4006 = vrot.slane %v3976, 3
        %v4007 = vsel %vm833, %v4006, %v4005
        %v4008 = vrot.slane %v3979, 2
        %v4009 = vsel %vm835, %v4008, %v4007
        %v4010 = vrot.slane %v3982, 1
        %v4011 = vsel %vm837, %v4010, %v4009
        %v4012 = vrot.slane %v3965, 7
        %v4013 = vsel %vm825, %v4012, %v3962
        %v4014 = vrot.slane %v3968, 6
        %v4015 = vsel %vm827, %v4014, %v4013
        %v4016 = vrot.slane %v3971, 5
        %v4017 = vsel %vm829, %v4016, %v4015
        %v4018 = vrot.slane %v3974, 4
        %v4019 = vsel %vm831, %v4018, %v4017
        %v4020 = vrot.slane %v3977, 3
        %v4021 = vsel %vm833, %v4020, %v4019
        %v4022 = vrot.slane %v3980, 2
        %v4023 = vsel %vm835, %v4022, %v4021
        %v4024 = vrot.slane %v3983, 1
        %v4025 = vsel %vm837, %v4024, %v4023
        %v4026 = vpack.c.b16 %v3997, %v3997
        %v4027 = vpack.c.b16 %v4011, %v4011
        %v4028 = vpack.c.b16 %v4025, %v4025
        %v4080 = vunpack.c.l.b16 %v2902
        %v4081 = vunpack.c.l.b16 %v2903
        %v4082 = vunpack.c.l.b16 %v2904
        %v4083 = vunpack.c.l.b16 %v2905
        %v4084 = vunpack.c.l.b16 %v2906
        %v4085 = vunpack.c.l.b16 %v2907
        %v4086 = vunpack.c.l.b16 %v2908
        %v4087 = vunpack.c.l.b16 %v2909
        %v4088 = vunpack.c.l.b16 %v2910
        %v4089 = vunpack.c.l.b16 %v2911
        %v4090 = vunpack.c.l.b16 %v2912
        %v4091 = vunpack.c.l.b16 %v2913
        %v4092 = vunpack.c.l.b16 %v2914
        %v4093 = vunpack.c.l.b16 %v2915
        %v4094 = vunpack.c.l.b16 %v2916
        %v4095 = vunpack.c.l.b16 %v2917
        %v4096 = vunpack.c.l.b16 %v2918
        %v4097 = vunpack.c.l.b16 %v2919
        %v4098 = vunpack.c.l.b16 %v2920
        %v4099 = vunpack.c.l.b16 %v2921
        %v4100 = vunpack.c.l.b16 %v2922
        %v4101 = vunpack.c.l.b16 %v2923
        %v4102 = vunpack.c.l.b16 %v2924
        %v4103 = vunpack.c.l.b16 %v2925
        %v4104 = vunpack.c.l.b16 %v2926
        %v4105 = vunpack.c.l.b16 %v2927
        %v4106 = vunpack.c.l.b16 %v2928
        %v4107 = vunpack.c.l.b16 %v2929
        %v4108 = vunpack.c.l.b16 %v2930
        %v4109 = vunpack.c.l.b16 %v2931
        %v4110 = vunpack.c.l.b16 %v2932
        %v4111 = vunpack.c.l.b16 %v2933
        %v4112 = vunpack.c.l.b16 %v2934
        %v4113 = vunpack.c.l.b16 %v2935
        %v4114 = vunpack.c.l.b16 %v2936
        %v4115 = vunpack.c.l.b16 %v2937
        %v4116 = vunpack.c.l.b16 %v2938
        %v4117 = vunpack.c.l.b16 %v2939
        %v4118 = vunpack.c.l.b16 %v2940
        %v4119 = vunpack.c.l.b16 %v2941
        %v4120 = vunpack.c.l.b16 %v2942
        %v4121 = vunpack.c.l.b16 %v2943
        %v4122 = vunpack.c.l.b16 %v2944
        %v4123 = vunpack.c.l.b16 %v2945
        %v4124 = vunpack.c.l.b16 %v2946
        %v4125 = vunpack.c.l.b16 %v2947
        %v4126 = vunpack.c.l.b16 %v2948
        %v4127 = vunpack.c.l.b16 %v2949
        %v4128 = vpack.c.b16 %v4081, %v4080
        %v4129 = vpack.c.b16 %v4083, %v4082
        %v4130 = vpack.c.b16 %v4085, %v4084
        %v4131 = vpack.c.b16 %v4087, %v4086
        %v4132 = vpack.c.b16 %v4089, %v4088
        %v4133 = vpack.c.b16 %v4091, %v4090
        %v4134 = vpack.c.b16 %v4093, %v4092
        %v4135 = vpack.c.b16 %v4095, %v4094
        %v4136 = vpack.c.b16 %v4097, %v4096
        %v4137 = vpack.c.b16 %v4099, %v4098
        %v4138 = vpack.c.b16 %v4101, %v4100
        %v4139 = vpack.c.b16 %v4103, %v4102
        %v4140 = vpack.c.b16 %v4105, %v4104
        %v4141 = vpack.c.b16 %v4107, %v4106
        %v4142 = vpack.c.b16 %v4109, %v4108
        %v4143 = vpack.c.b16 %v4111, %v4110
        %v4144 = vpack.c.b16 %v4113, %v4112
        %v4145 = vpack.c.b16 %v4115, %v4114
        %v4146 = vpack.c.b16 %v4117, %v4116
        %v4147 = vpack.c.b16 %v4119, %v4118
        %v4148 = vpack.c.b16 %v4121, %v4120
        %v4149 = vpack.c.b16 %v4123, %v4122
        %v4150 = vpack.c.b16 %v4125, %v4124
        %v4151 = vpack.c.b16 %v4127, %v4126
        %4176 = vmatprep.subr.bf16.mxu0 0
        %4177 = vmatpush1.bf16.msra.mxu0 %v4128
        %4178 = vmatprep.subr.bf16.mxu0 0
        %4179 = vmatpush1.bf16.msra.mxu0 %v4129
        %4180 = vmatprep.subr.bf16.mxu0 0
        %4181 = vmatpush1.bf16.msra.mxu0 %v4130
        %4182 = vmatprep.subr.bf16.mxu0 0
        %4183 = vmatpush1.bf16.msra.mxu0 %v4131
        %4184 = vmatprep.subr.bf16.mxu0 0
        %4185 = vmatpush1.bf16.msra.mxu0 %v4132
        %4186 = vmatprep.subr.bf16.mxu0 0
        %4187 = vmatpush1.bf16.msra.mxu0 %v4133
        %4188 = vmatprep.subr.bf16.mxu0 0
        %4189 = vmatpush1.bf16.msra.mxu0 %v4134
        %4190 = vmatprep.subr.bf16.mxu0 0
        %4191 = vmatpush1.bf16.msra.mxu0 %v4135
        %4192 = vmatprep.subr.bf16.mxu0 0
        %4193 = vmatpush1.bf16.msra.mxu0 %v4136
        %4194 = vmatprep.subr.bf16.mxu0 0
        %4195 = vmatpush1.bf16.msra.mxu0 %v4137
        %4196 = vmatprep.subr.bf16.mxu0 0
        %4197 = vmatpush1.bf16.msra.mxu0 %v4138
        %4198 = vmatprep.subr.bf16.mxu0 0
        %4199 = vmatpush1.bf16.msra.mxu0 %v4139
        %4200 = vmatprep.subr.bf16.mxu0 0
        %4201 = vmatpush1.bf16.msra.mxu0 %v4140
        %4202 = vmatprep.subr.bf16.mxu0 0
        %4203 = vmatpush1.bf16.msra.mxu0 %v4141
        %4204 = vmatprep.subr.bf16.mxu0 0
        %4205 = vmatpush1.bf16.msra.mxu0 %v4142
        %4206 = vmatprep.subr.bf16.mxu0 0
        %4207 = vmatpush1.bf16.msra.mxu0 %v4143
        %4208 = vmatprep.mubr.bf16.mxu0 %v4027
        %4209 = vmatmul.mubr.bf16.gmra.mrb[0].mxu0 %v4026
        %v4210 = vpop.f32.mrb[0].mxu0
        %v4211 = vadd.f32 %v3931, %v4210
        %v4212 = vpop.f32.mrb[0].mxu0
        %v4213 = vpop.f32.mrb[0].mxu0
        %v4214 = vpop.f32.mrb[0].mxu0
        %4215 = vdwg.mxu0
        %4216 = vmatprep.subr.bf16.mxu0 0
        %4217 = vmatpush1.bf16.msra.mxu0 %v4144
        %4218 = vmatprep.subr.bf16.mxu0 0
        %4219 = vmatpush1.bf16.msra.mxu0 %v4145
        %4220 = vmatprep.subr.bf16.mxu0 0
        %4221 = vmatpush1.bf16.msra.mxu0 %v4146
        %4222 = vmatprep.subr.bf16.mxu0 0
        %4223 = vmatpush1.bf16.msra.mxu0 %v4147
        %4224 = vmatprep.subr.bf16.mxu0 0
        %4225 = vmatpush1.bf16.msra.mxu0 %v4148
        %4226 = vmatprep.subr.bf16.mxu0 0
        %4227 = vmatpush1.bf16.msra.mxu0 %v4149
        %4228 = vmatprep.subr.bf16.mxu0 0
        %4229 = vmatpush1.bf16.msra.mxu0 %v4150
        %4230 = vmatprep.subr.bf16.mxu0 0
        %4231 = vmatpush1.bf16.msra.mxu0 %v4151
        %4232 = vmatprep.subr.bf16.mxu0 0
        %4233 = vmatpush1.bf16.msra.mxu0 0
        %4234 = vmatprep.subr.bf16.mxu0 0
        %4235 = vmatpush1.bf16.msra.mxu0 0
        %4236 = vmatprep.subr.bf16.mxu0 0
        %4237 = vmatpush1.bf16.msra.mxu0 0
        %4238 = vmatprep.subr.bf16.mxu0 0
        %4239 = vmatpush1.bf16.msra.mxu0 0
        %4240 = vmatprep.subr.bf16.mxu0 0
        %4241 = vmatpush1.bf16.msra.mxu0 0
        %4242 = vmatprep.subr.bf16.mxu0 0
        %4243 = vmatpush1.bf16.msra.mxu0 0
        %4244 = vmatprep.subr.bf16.mxu0 0
        %4245 = vmatpush1.bf16.msra.mxu0 0
        %4246 = vmatprep.subr.bf16.mxu0 0
        %4247 = vmatpush1.bf16.msra.mxu0 0
        %4248 = vmatprep.mubr.bf16.mxu0 0
        %4249 = vmatmul.mubr.bf16.gmra.mrb[0].mxu0 %v4028
        %v4250 = vpop.f32.mrb[0].mxu0
        %v4251 = vadd.f32 %v4211, %v4250
        %v4252 = vpop.f32.mrb[0].mxu0
        %v4253 = vpop.f32.mrb[0].mxu0
        %v4254 = vpop.f32.mrb[0].mxu0
        %4255 = vdwg.mxu0
        %v4256 = vld [vmem:[%s6 + $0x90] sm:$0xff]
        %v4257 = vld [vmem:[%s6 + $0x98] sm:$0xf]
        %v4258 = vld [vmem:[%s6 + $0x9c] sm:$0xff]
        %v4259 = vld [vmem:[%s6 + $0xa4] sm:$0xf]
        %v4260 = vld [vmem:[%s6 + $0xa8] sm:$0xff]
        %v4261 = vld [vmem:[%s6 + $0xb0] sm:$0xf]
        %v4262 = vld [vmem:[%s6 + $0xb4] sm:$0xff]
        %v4263 = vld [vmem:[%s6 + $0xbc] sm:$0xf]
        %v4264 = vld [vmem:[%s6 + $0xc0] sm:$0xff]
        %v4265 = vld [vmem:[%s6 + $0xc8] sm:$0xf]
        %v4266 = vld [vmem:[%s6 + $0xcc] sm:$0xff]
        %v4267 = vld [vmem:[%s6 + $0xd4] sm:$0xf]
        %v4268 = vld [vmem:[%s6 + $0xd8] sm:$0xff]
        %v4269 = vld [vmem:[%s6 + $0xe0] sm:$0xf]
        %v4270 = vld [vmem:[%s6 + $0xe4] sm:$0xff]
        %v4271 = vld [vmem:[%s6 + $0xec] sm:$0xf]
        %v4272 = vld [vmem:[%s6 + $0xf0] sm:$0xff]
        %v4273 = vld [vmem:[%s6 + $0xf8] sm:$0xf]
        %v4274 = vld [vmem:[%s6 + $0xfc] sm:$0xff]
        %v4275 = vld [vmem:[%s6 + $0x104] sm:$0xf]
        %v4276 = vld [vmem:[%s6 + $0x108] sm:$0xff]
        %v4277 = vld [vmem:[%s6 + $0x110] sm:$0xf]
        %v4278 = vld [vmem:[%s6 + $0x114] sm:$0xff]
        %v4279 = vld [vmem:[%s6 + $0x11c] sm:$0xf]
        %v4304 = vunpack.c.l.b16 %v4256
        %v4305 = vunpack.c.h.b16 %v4256
        %v4306 = vunpack.c.l.b16 %v4257
        %v4307 = vunpack.c.l.b16 %v4258
        %v4308 = vunpack.c.h.b16 %v4258
        %v4309 = vunpack.c.l.b16 %v4259
        %v4310 = vunpack.c.l.b16 %v4260
        %v4311 = vunpack.c.h.b16 %v4260
        %v4312 = vunpack.c.l.b16 %v4261
        %v4313 = vunpack.c.l.b16 %v4262
        %v4314 = vunpack.c.h.b16 %v4262
        %v4315 = vunpack.c.l.b16 %v4263
        %v4316 = vunpack.c.l.b16 %v4264
        %v4317 = vunpack.c.h.b16 %v4264
        %v4318 = vunpack.c.l.b16 %v4265
        %v4319 = vunpack.c.l.b16 %v4266
        %v4320 = vunpack.c.h.b16 %v4266
        %v4321 = vunpack.c.l.b16 %v4267
        %v4322 = vunpack.c.l.b16 %v4268
        %v4323 = vunpack.c.h.b16 %v4268
        %v4324 = vunpack.c.l.b16 %v4269
        %v4325 = vunpack.c.l.b16 %v4270
        %v4326 = vunpack.c.h.b16 %v4270
        %v4327 = vunpack.c.l.b16 %v4271
        %v4328 = vunpack.c.l.b16 %v4272
        %v4329 = vunpack.c.h.b16 %v4272
        %v4330 = vunpack.c.l.b16 %v4273
        %v4331 = vunpack.c.l.b16 %v4274
        %v4332 = vunpack.c.h.b16 %v4274
        %v4333 = vunpack.c.l.b16 %v4275
        %v4334 = vunpack.c.l.b16 %v4276
        %v4335 = vunpack.c.h.b16 %v4276
        %v4336 = vunpack.c.l.b16 %v4277
        %v4337 = vunpack.c.l.b16 %v4278
        %v4338 = vunpack.c.h.b16 %v4278
        %v4339 = vunpack.c.l.b16 %v4279
        %v4340 = vpack.c.b16 %v4307, %v4304
        %v4341 = vpack.c.b16 %v4308, %v4305
        %v4342 = vpack.c.b16 %v4309, %v4306
        %v4343 = vpack.c.b16 %v4313, %v4310
        %v4344 = vpack.c.b16 %v4314, %v4311
        %v4345 = vpack.c.b16 %v4315, %v4312
        %v4346 = vpack.c.b16 %v4319, %v4316
        %v4347 = vpack.c.b16 %v4320, %v4317
        %v4348 = vpack.c.b16 %v4321, %v4318
        %v4349 = vpack.c.b16 %v4325, %v4322
        %v4350 = vpack.c.b16 %v4326, %v4323
        %v4351 = vpack.c.b16 %v4327, %v4324
        %v4352 = vpack.c.b16 %v4331, %v4328
        %v4353 = vpack.c.b16 %v4332, %v4329
        %v4354 = vpack.c.b16 %v4333, %v4330
        %v4355 = vpack.c.b16 %v4337, %v4334
        %v4356 = vpack.c.b16 %v4338, %v4335
        %v4357 = vpack.c.b16 %v4339, %v4336
        %v4376 = vsel %vm2168, %v2170, 0
        %v4378 = vsel %vm2168, %v2173, 0
        %v4380 = vsel %vm2168, %v2176, 0
        %v4382 = vsel %vm2168, %v2179, 0
        %v4384 = vsel %vm2168, %v2182, 0
        %v4386 = vsel %vm2168, %v2185, 0
        %v4388 = vsel %vm2168, %v2188, 0
        %v4390 = vsel %vm2168, %v2191, 0
        %4392 = vmatprep.subr.bf16.mxu0 %v4341
        %4393 = vmatpush1.bf16.msra.mxu0 %v4340
        %4394 = vmatprep.subr.bf16.mxu0 %v4344
        %4395 = vmatpush1.bf16.msra.mxu0 %v4343
        %4396 = vmatprep.subr.bf16.mxu0 %v4347
        %4397 = vmatpush1.bf16.msra.mxu0 %v4346
        %4398 = vmatprep.subr.bf16.mxu0 %v4350
        %4399 = vmatpush1.bf16.msra.mxu0 %v4349
        %4400 = vmatprep.subr.bf16.mxu0 %v4353
        %4401 = vmatpush1.bf16.msra.mxu0 %v4352
        %4402 = vmatprep.subr.bf16.mxu0 %v4356
        %4403 = vmatpush1.bf16.msra.mxu0 %v4355
        %4404 = vmatprep.subr.bf16.mxu0 0
        %4405 = vmatpush1.bf16.msra.mxu0 0
        %4406 = vmatprep.subr.bf16.mxu0 0
        %4407 = vmatpush1.bf16.msra.mxu0 0
        %4408 = vmatprep.subr.bf16.mxu0 0
        %4409 = vmatpush1.bf16.msra.mxu0 0
        %4410 = vmatprep.subr.bf16.mxu0 0
        %4411 = vmatpush1.bf16.msra.mxu0 0
        %4412 = vmatprep.subr.bf16.mxu0 0
        %4413 = vmatpush1.bf16.msra.mxu0 0
        %4414 = vmatprep.subr.bf16.mxu0 0
        %4415 = vmatpush1.bf16.msra.mxu0 0
        %4416 = vmatprep.subr.bf16.mxu0 0
        %4417 = vmatpush1.bf16.msra.mxu0 0
        %4418 = vmatprep.subr.bf16.mxu0 0
        %4419 = vmatpush1.bf16.msra.mxu0 0
        %4420 = vmatprep.subr.bf16.mxu0 0
        %4421 = vmatpush1.bf16.msra.mxu0 0
        %4422 = vmatprep.subr.bf16.mxu0 0
        %4423 = vmatpush1.bf16.msra.mxu0 0
        %4424 = vmatprep.mubr.bf16.mxu0 0
        %4425 = vmatmul.mubr.bf16.gmra.mrb[0].mxu0 %v4376
        %v4426 = vpop.f32.mrb[0].mxu0
        %v4427 = vadd.f32 0.0, %v4426
        %v4428 = vpop.f32.mrb[0].mxu0
        %v4429 = vadd.f32 0.0, %v4428
        %v4430 = vpop.f32.mrb[0].mxu0
        %v4431 = vadd.f32 0.0, %v4430
        %v4432 = vpop.f32.mrb[0].mxu0
        %v4433 = vadd.f32 0.0, %v4432
        %4434 = vmatprep.mubr.bf16.mxu0 0
        %4435 = vmatmul.mubr.bf16.gmra.mrb[0].mxu0 %v4378
        %v4436 = vpop.f32.mrb[0].mxu0
        %v4437 = vadd.f32 0.0, %v4436
        %v4438 = vpop.f32.mrb[0].mxu0
        %v4439 = vadd.f32 0.0, %v4438
        %v4440 = vpop.f32.mrb[0].mxu0
        %v4441 = vadd.f32 0.0, %v4440
        %v4442 = vpop.f32.mrb[0].mxu0
        %v4443 = vadd.f32 0.0, %v4442
        %4444 = vmatprep.mubr.bf16.mxu0 0
        %4445 = vmatmul.mubr.bf16.gmra.mrb[0].mxu0 %v4380
        %v4446 = vpop.f32.mrb[0].mxu0
        %v4447 = vadd.f32 0.0, %v4446
        %v4448 = vpop.f32.mrb[0].mxu0
        %v4449 = vadd.f32 0.0, %v4448
        %v4450 = vpop.f32.mrb[0].mxu0
        %v4451 = vadd.f32 0.0, %v4450
        %v4452 = vpop.f32.mrb[0].mxu0
        %v4453 = vadd.f32 0.0, %v4452
        %4454 = vmatprep.mubr.bf16.mxu0 0
        %4455 = vmatmul.mubr.bf16.gmra.mrb[0].mxu0 %v4382
        %v4456 = vpop.f32.mrb[0].mxu0
        %v4457 = vadd.f32 0.0, %v4456
        %v4458 = vpop.f32.mrb[0].mxu0
        %v4459 = vadd.f32 0.0, %v4458
        %v4460 = vpop.f32.mrb[0].mxu0
        %v4461 = vadd.f32 0.0, %v4460
        %v4462 = vpop.f32.mrb[0].mxu0
        %v4463 = vadd.f32 0.0, %v4462
        %4464 = vmatprep.mubr.bf16.mxu0 0
        %4465 = vmatmul.mubr.bf16.gmra.mrb[0].mxu0 %v4384
        %v4466 = vpop.f32.mrb[0].mxu0
        %v4467 = vadd.f32 0.0, %v4466
        %v4468 = vpop.f32.mrb[0].mxu0
        %v4469 = vadd.f32 0.0, %v4468
        %v4470 = vpop.f32.mrb[0].mxu0
        %v4471 = vadd.f32 0.0, %v4470
        %v4472 = vpop.f32.mrb[0].mxu0
        %v4473 = vadd.f32 0.0, %v4472
        %4474 = vmatprep.mubr.bf16.mxu0 0
        %4475 = vmatmul.mubr.bf16.gmra.mrb[0].mxu0 %v4386
        %v4476 = vpop.f32.mrb[0].mxu0
        %v4477 = vadd.f32 0.0, %v4476
        %v4478 = vpop.f32.mrb[0].mxu0
        %v4479 = vadd.f32 0.0, %v4478
        %v4480 = vpop.f32.mrb[0].mxu0
        %v4481 = vadd.f32 0.0, %v4480
        %v4482 = vpop.f32.mrb[0].mxu0
        %v4483 = vadd.f32 0.0, %v4482
        %4484 = vmatprep.mubr.bf16.mxu0 0
        %4485 = vmatmul.mubr.bf16.gmra.mrb[0].mxu0 %v4388
        %v4486 = vpop.f32.mrb[0].mxu0
        %v4487 = vadd.f32 0.0, %v4486
        %v4488 = vpop.f32.mrb[0].mxu0
        %v4489 = vadd.f32 0.0, %v4488
        %v4490 = vpop.f32.mrb[0].mxu0
        %v4491 = vadd.f32 0.0, %v4490
        %v4492 = vpop.f32.mrb[0].mxu0
        %v4493 = vadd.f32 0.0, %v4492
        %4494 = vmatprep.mubr.bf16.mxu0 0
        %4495 = vmatmul.mubr.bf16.gmra.mrb[0].mxu0 %v4390
        %v4496 = vpop.f32.mrb[0].mxu0
        %v4497 = vadd.f32 0.0, %v4496
        %v4498 = vpop.f32.mrb[0].mxu0
        %v4499 = vadd.f32 0.0, %v4498
        %v4500 = vpop.f32.mrb[0].mxu0
        %v4501 = vadd.f32 0.0, %v4500
        %v4502 = vpop.f32.mrb[0].mxu0
        %v4503 = vadd.f32 0.0, %v4502
        %4504 = vdwg.mxu0
        %4505 = vmatprep.subr.bf16.mxu0 0
        %4506 = vmatpush1.bf16.msra.mxu0 %v4342
        %4507 = vmatprep.subr.bf16.mxu0 0
        %4508 = vmatpush1.bf16.msra.mxu0 %v4345
        %4509 = vmatprep.subr.bf16.mxu0 0
        %4510 = vmatpush1.bf16.msra.mxu0 %v4348
        %4511 = vmatprep.subr.bf16.mxu0 0
        %4512 = vmatpush1.bf16.msra.mxu0 %v4351
        %4513 = vmatprep.subr.bf16.mxu0 0
        %4514 = vmatpush1.bf16.msra.mxu0 %v4354
        %4515 = vmatprep.subr.bf16.mxu0 0
        %4516 = vmatpush1.bf16.msra.mxu0 %v4357
        %4517 = vmatprep.subr.bf16.mxu0 0
        %4518 = vmatpush1.bf16.msra.mxu0 0
        %4519 = vmatprep.subr.bf16.mxu0 0
        %4520 = vmatpush1.bf16.msra.mxu0 0
        %4521 = vmatprep.subr.bf16.mxu0 0
        %4522 = vmatpush1.bf16.msra.mxu0 0
        %4523 = vmatprep.subr.bf16.mxu0 0
        %4524 = vmatpush1.bf16.msra.mxu0 0
        %4525 = vmatprep.subr.bf16.mxu0 0
        %4526 = vmatpush1.bf16.msra.mxu0 0
        %4527 = vmatprep.subr.bf16.mxu0 0
        %4528 = vmatpush1.bf16.msra.mxu0 0
        %4529 = vmatprep.subr.bf16.mxu0 0
        %4530 = vmatpush1.bf16.msra.mxu0 0
        %4531 = vmatprep.subr.bf16.mxu0 0
        %4532 = vmatpush1.bf16.msra.mxu0 0
        %4533 = vmatprep.subr.bf16.mxu0 0
        %4534 = vmatpush1.bf16.msra.mxu0 0
        %4535 = vmatprep.subr.bf16.mxu0 0
        %4536 = vmatpush1.bf16.msra.mxu0 0
        %4537 = vmatprep.mubr.bf16.mxu0 0
        %4538 = vmatmul.mubr.bf16.gmra.mrb[0].mxu0 %v4376
        %v4539 = vpop.f32.mrb[0].mxu0
        %v4540 = vadd.f32 0.0, %v4539
        %v4541 = vpop.f32.mrb[0].mxu0
        %v4542 = vpop.f32.mrb[0].mxu0
        %v4543 = vadd.f32 0.0, %v4542
        %v4544 = vpop.f32.mrb[0].mxu0
        %4545 = vmatprep.mubr.bf16.mxu0 0
        %4546 = vmatmul.mubr.bf16.gmra.mrb[0].mxu0 %v4378
        %v4547 = vpop.f32.mrb[0].mxu0
        %v4548 = vadd.f32 0.0, %v4547
        %v4549 = vpop.f32.mrb[0].mxu0
        %v4550 = vpop.f32.mrb[0].mxu0
        %v4551 = vadd.f32 0.0, %v4550
        %v4552 = vpop.f32.mrb[0].mxu0
        %4553 = vmatprep.mubr.bf16.mxu0 0
        %4554 = vmatmul.mubr.bf16.gmra.mrb[0].mxu0 %v4380
        %v4555 = vpop.f32.mrb[0].mxu0
        %v4556 = vadd.f32 0.0, %v4555
        %v4557 = vpop.f32.mrb[0].mxu0
        %v4558 = vpop.f32.mrb[0].mxu0
        %v4559 = vadd.f32 0.0, %v4558
        %v4560 = vpop.f32.mrb[0].mxu0
        %4561 = vmatprep.mubr.bf16.mxu0 0
        %4562 = vmatmul.mubr.bf16.gmra.mrb[0].mxu0 %v4382
        %v4563 = vpop.f32.mrb[0].mxu0
        %v4564 = vadd.f32 0.0, %v4563
        %v4565 = vpop.f32.mrb[0].mxu0
        %v4566 = vpop.f32.mrb[0].mxu0
        %v4567 = vadd.f32 0.0, %v4566
        %v4568 = vpop.f32.mrb[0].mxu0
        %4569 = vmatprep.mubr.bf16.mxu0 0
        %4570 = vmatmul.mubr.bf16.gmra.mrb[0].mxu0 %v4384
        %v4571 = vpop.f32.mrb[0].mxu0
        %v4572 = vadd.f32 0.0, %v4571
        %v4573 = vpop.f32.mrb[0].mxu0
        %v4574 = vpop.f32.mrb[0].mxu0
        %v4575 = vadd.f32 0.0, %v4574
        %v4576 = vpop.f32.mrb[0].mxu0
        %4577 = vmatprep.mubr.bf16.mxu0 0
        %4578 = vmatmul.mubr.bf16.gmra.mrb[0].mxu0 %v4386
        %v4579 = vpop.f32.mrb[0].mxu0
        %v4580 = vadd.f32 0.0, %v4579
        %v4581 = vpop.f32.mrb[0].mxu0
        %v4582 = vpop.f32.mrb[0].mxu0
        %v4583 = vadd.f32 0.0, %v4582
        %v4584 = vpop.f32.mrb[0].mxu0
        %4585 = vmatprep.mubr.bf16.mxu0 0
        %4586 = vmatmul.mubr.bf16.gmra.mrb[0].mxu0 %v4388
        %v4587 = vpop.f32.mrb[0].mxu0
        %v4588 = vadd.f32 0.0, %v4587
        %v4589 = vpop.f32.mrb[0].mxu0
        %v4590 = vpop.f32.mrb[0].mxu0
        %v4591 = vadd.f32 0.0, %v4590
        %v4592 = vpop.f32.mrb[0].mxu0
        %4593 = vmatprep.mubr.bf16.mxu0 0
        %4594 = vmatmul.mubr.bf16.gmra.mrb[0].mxu0 %v4390
        %v4595 = vpop.f32.mrb[0].mxu0
        %v4596 = vadd.f32 0.0, %v4595
        %v4597 = vpop.f32.mrb[0].mxu0
        %v4598 = vpop.f32.mrb[0].mxu0
        %v4599 = vadd.f32 0.0, %v4598
        %v4600 = vpop.f32.mrb[0].mxu0
        %4601 = vdwg.mxu0
        %vm4602 = vcmp.lt.s32.totalorder %v2274, 14
        %vm4603 = vcmp.lt.s32.totalorder %v2275, 14
        %v4604 = vsel %vm4602, 1, 0
        %v4605 = vsel %vm4603, 1, 0
        %vm4606 = vcmp.eq.s32.totalorder %v4604, 1
        %vm4607 = vcmp.eq.s32.totalorder %v4605, 1
        %v4608 = vsel %vm4606, %v4427, -1e+30
        %v4609 = vsel %vm4606, %v4429, -1e+30
        %v4610 = vsel %vm4606, %v4540, -1e+30
        %v4611 = vsel %vm4607, %v4431, -1e+30
        %v4612 = vsel %vm4607, %v4433, -1e+30
        %v4613 = vsel %vm4607, %v4543, -1e+30
        %v4614 = vsel %vm4606, %v4437, -1e+30
        %v4615 = vsel %vm4606, %v4439, -1e+30
        %v4616 = vsel %vm4606, %v4548, -1e+30
        %v4617 = vsel %vm4607, %v4441, -1e+30
        %v4618 = vsel %vm4607, %v4443, -1e+30
        %v4619 = vsel %vm4607, %v4551, -1e+30
        %v4620 = vsel %vm4606, %v4447, -1e+30
        %v4621 = vsel %vm4606, %v4449, -1e+30
        %v4622 = vsel %vm4606, %v4556, -1e+30
        %v4623 = vsel %vm4607, %v4451, -1e+30
        %v4624 = vsel %vm4607, %v4453, -1e+30
        %v4625 = vsel %vm4607, %v4559, -1e+30
        %v4626 = vsel %vm4606, %v4457, -1e+30
        %v4627 = vsel %vm4606, %v4459, -1e+30
        %v4628 = vsel %vm4606, %v4564, -1e+30
        %v4629 = vsel %vm4607, %v4461, -1e+30
        %v4630 = vsel %vm4607, %v4463, -1e+30
        %v4631 = vsel %vm4607, %v4567, -1e+30
        %v4632 = vsel %vm4606, %v4467, -1e+30
        %v4633 = vsel %vm4606, %v4469, -1e+30
        %v4634 = vsel %vm4606, %v4572, -1e+30
        %v4635 = vsel %vm4607, %v4471, -1e+30
        %v4636 = vsel %vm4607, %v4473, -1e+30
        %v4637 = vsel %vm4607, %v4575, -1e+30
        %v4638 = vsel %vm4606, %v4477, -1e+30
        %v4639 = vsel %vm4606, %v4479, -1e+30
        %v4640 = vsel %vm4606, %v4580, -1e+30
        %v4641 = vsel %vm4607, %v4481, -1e+30
        %v4642 = vsel %vm4607, %v4483, -1e+30
        %v4643 = vsel %vm4607, %v4583, -1e+30
        %v4644 = vsel %vm4606, %v4487, -1e+30
        %v4645 = vsel %vm4606, %v4489, -1e+30
        %v4646 = vsel %vm4606, %v4588, -1e+30
        %v4647 = vsel %vm4607, %v4491, -1e+30
        %v4648 = vsel %vm4607, %v4493, -1e+30
        %v4649 = vsel %vm4607, %v4591, -1e+30
        %v4650 = vsel %vm4606, %v4497, -1e+30
        %v4651 = vsel %vm4606, %v4499, -1e+30
        %v4652 = vsel %vm4606, %v4596, -1e+30
        %v4653 = vsel %vm4607, %v4501, -1e+30
        %v4654 = vsel %vm4607, %v4503, -1e+30
        %v4655 = vsel %vm4607, %v4599, -1e+30
        %v4656 = vmax.f32 %v4608, %v4611
        %v4657 = vrot.slane %v4656, 4
        %v4658 = vmax.f32 %v4656, %v4657
        %v4659 = vrot.slane %v4658, 2
        %v4660 = vmax.f32 %v4658, %v4659
        %v4661 = vrot.slane %v4660, 1
        %v4662 = vmax.f32 %v4660, %v4661
        %v4663 = vmax.f32 %v4609, %v4612
        %v4664 = vrot.slane %v4663, 4
        %v4665 = vmax.f32 %v4663, %v4664
        %v4666 = vrot.slane %v4665, 2
        %v4667 = vmax.f32 %v4665, %v4666
        %v4668 = vrot.slane %v4667, 1
        %v4669 = vmax.f32 %v4667, %v4668
        %v4670 = vmax.f32 %v4610, %v4613
        %v4671 = vrot.slane %v4670, 4
        %v4672 = vmax.f32 %v4670, %v4671
        %v4673 = vrot.slane %v4672, 2
        %v4674 = vmax.f32 %v4672, %v4673
        %v4675 = vrot.slane %v4674, 1
        %v4676 = vmax.f32 %v4674, %v4675
        %v4677 = vmax.f32 %v4614, %v4617
        %v4678 = vrot.slane %v4677, 4
        %v4679 = vmax.f32 %v4677, %v4678
        %v4680 = vrot.slane %v4679, 2
        %v4681 = vmax.f32 %v4679, %v4680
        %v4682 = vrot.slane %v4681, 1
        %v4683 = vmax.f32 %v4681, %v4682
        %v4684 = vmax.f32 %v4615, %v4618
        %v4685 = vrot.slane %v4684, 4
        %v4686 = vmax.f32 %v4684, %v4685
        %v4687 = vrot.slane %v4686, 2
        %v4688 = vmax.f32 %v4686, %v4687
        %v4689 = vrot.slane %v4688, 1
        %v4690 = vmax.f32 %v4688, %v4689
        %v4691 = vmax.f32 %v4616, %v4619
        %v4692 = vrot.slane %v4691, 4
        %v4693 = vmax.f32 %v4691, %v4692
        %v4694 = vrot.slane %v4693, 2
        %v4695 = vmax.f32 %v4693, %v4694
        %v4696 = vrot.slane %v4695, 1
        %v4697 = vmax.f32 %v4695, %v4696
        %v4698 = vmax.f32 %v4620, %v4623
        %v4699 = vrot.slane %v4698, 4
        %v4700 = vmax.f32 %v4698, %v4699
        %v4701 = vrot.slane %v4700, 2
        %v4702 = vmax.f32 %v4700, %v4701
        %v4703 = vrot.slane %v4702, 1
        %v4704 = vmax.f32 %v4702, %v4703
        %v4705 = vmax.f32 %v4621, %v4624
        %v4706 = vrot.slane %v4705, 4
        %v4707 = vmax.f32 %v4705, %v4706
        %v4708 = vrot.slane %v4707, 2
        %v4709 = vmax.f32 %v4707, %v4708
        %v4710 = vrot.slane %v4709, 1
        %v4711 = vmax.f32 %v4709, %v4710
        %v4712 = vmax.f32 %v4622, %v4625
        %v4713 = vrot.slane %v4712, 4
        %v4714 = vmax.f32 %v4712, %v4713
        %v4715 = vrot.slane %v4714, 2
        %v4716 = vmax.f32 %v4714, %v4715
        %v4717 = vrot.slane %v4716, 1
        %v4718 = vmax.f32 %v4716, %v4717
        %v4719 = vmax.f32 %v4626, %v4629
        %v4720 = vrot.slane %v4719, 4
        %v4721 = vmax.f32 %v4719, %v4720
        %v4722 = vrot.slane %v4721, 2
        %v4723 = vmax.f32 %v4721, %v4722
        %v4724 = vrot.slane %v4723, 1
        %v4725 = vmax.f32 %v4723, %v4724
        %v4726 = vmax.f32 %v4627, %v4630
        %v4727 = vrot.slane %v4726, 4
        %v4728 = vmax.f32 %v4726, %v4727
        %v4729 = vrot.slane %v4728, 2
        %v4730 = vmax.f32 %v4728, %v4729
        %v4731 = vrot.slane %v4730, 1
        %v4732 = vmax.f32 %v4730, %v4731
        %v4733 = vmax.f32 %v4628, %v4631
        %v4734 = vrot.slane %v4733, 4
        %v4735 = vmax.f32 %v4733, %v4734
        %v4736 = vrot.slane %v4735, 2
        %v4737 = vmax.f32 %v4735, %v4736
        %v4738 = vrot.slane %v4737, 1
        %v4739 = vmax.f32 %v4737, %v4738
        %v4740 = vmax.f32 %v4632, %v4635
        %v4741 = vrot.slane %v4740, 4
        %v4742 = vmax.f32 %v4740, %v4741
        %v4743 = vrot.slane %v4742, 2
        %v4744 = vmax.f32 %v4742, %v4743
        %v4745 = vrot.slane %v4744, 1
        %v4746 = vmax.f32 %v4744, %v4745
        %v4747 = vmax.f32 %v4633, %v4636
        %v4748 = vrot.slane %v4747, 4
        %v4749 = vmax.f32 %v4747, %v4748
        %v4750 = vrot.slane %v4749, 2
        %v4751 = vmax.f32 %v4749, %v4750
        %v4752 = vrot.slane %v4751, 1
        %v4753 = vmax.f32 %v4751, %v4752
        %v4754 = vmax.f32 %v4634, %v4637
        %v4755 = vrot.slane %v4754, 4
        %v4756 = vmax.f32 %v4754, %v4755
        %v4757 = vrot.slane %v4756, 2
        %v4758 = vmax.f32 %v4756, %v4757
        %v4759 = vrot.slane %v4758, 1
        %v4760 = vmax.f32 %v4758, %v4759
        %v4761 = vmax.f32 %v4638, %v4641
        %v4762 = vrot.slane %v4761, 4
        %v4763 = vmax.f32 %v4761, %v4762
        %v4764 = vrot.slane %v4763, 2
        %v4765 = vmax.f32 %v4763, %v4764
        %v4766 = vrot.slane %v4765, 1
        %v4767 = vmax.f32 %v4765, %v4766
        %v4768 = vmax.f32 %v4639, %v4642
        %v4769 = vrot.slane %v4768, 4
        %v4770 = vmax.f32 %v4768, %v4769
        %v4771 = vrot.slane %v4770, 2
        %v4772 = vmax.f32 %v4770, %v4771
        %v4773 = vrot.slane %v4772, 1
        %v4774 = vmax.f32 %v4772, %v4773
        %v4775 = vmax.f32 %v4640, %v4643
        %v4776 = vrot.slane %v4775, 4
        %v4777 = vmax.f32 %v4775, %v4776
        %v4778 = vrot.slane %v4777, 2
        %v4779 = vmax.f32 %v4777, %v4778
        %v4780 = vrot.slane %v4779, 1
        %v4781 = vmax.f32 %v4779, %v4780
        %v4782 = vmax.f32 %v4644, %v4647
        %v4783 = vrot.slane %v4782, 4
        %v4784 = vmax.f32 %v4782, %v4783
        %v4785 = vrot.slane %v4784, 2
        %v4786 = vmax.f32 %v4784, %v4785
        %v4787 = vrot.slane %v4786, 1
        %v4788 = vmax.f32 %v4786, %v4787
        %v4789 = vmax.f32 %v4645, %v4648
        %v4790 = vrot.slane %v4789, 4
        %v4791 = vmax.f32 %v4789, %v4790
        %v4792 = vrot.slane %v4791, 2
        %v4793 = vmax.f32 %v4791, %v4792
        %v4794 = vrot.slane %v4793, 1
        %v4795 = vmax.f32 %v4793, %v4794
        %v4796 = vmax.f32 %v4646, %v4649
        %v4797 = vrot.slane %v4796, 4
        %v4798 = vmax.f32 %v4796, %v4797
        %v4799 = vrot.slane %v4798, 2
        %v4800 = vmax.f32 %v4798, %v4799
        %v4801 = vrot.slane %v4800, 1
        %v4802 = vmax.f32 %v4800, %v4801
        %v4803 = vmax.f32 %v4650, %v4653
        %v4804 = vrot.slane %v4803, 4
        %v4805 = vmax.f32 %v4803, %v4804
        %v4806 = vrot.slane %v4805, 2
        %v4807 = vmax.f32 %v4805, %v4806
        %v4808 = vrot.slane %v4807, 1
        %v4809 = vmax.f32 %v4807, %v4808
        %v4810 = vmax.f32 %v4651, %v4654
        %v4811 = vrot.slane %v4810, 4
        %v4812 = vmax.f32 %v4810, %v4811
        %v4813 = vrot.slane %v4812, 2
        %v4814 = vmax.f32 %v4812, %v4813
        %v4815 = vrot.slane %v4814, 1
        %v4816 = vmax.f32 %v4814, %v4815
        %v4817 = vmax.f32 %v4652, %v4655
        %v4818 = vrot.slane %v4817, 4
        %v4819 = vmax.f32 %v4817, %v4818
        %v4820 = vrot.slane %v4819, 2
        %v4821 = vmax.f32 %v4819, %v4820
        %v4822 = vrot.slane %v4821, 1
        %v4823 = vmax.f32 %v4821, %v4822
        %s4824 = scalar_lea.vmem [#allocation2], 26
        %v4825 = vld [vmem:[%s4824] ss:$8 sm:$0x7]
        %v4827 = vlaneseq
        %v4828 = vshrl.u32 %v4827, 7
        %v4829 = vsub.s32 0, %v4828
        %v4830 = vrot.slane %v4825, %v4829
        %v4831 = vlaneseq
        %v4832 = vshrl.u32 %v4831, 7
        %v4833 = vsub.s32 1, %v4832
        %v4834 = vrot.slane %v4825, %v4833
        %v4835 = vlaneseq
        %v4836 = vshrl.u32 %v4835, 7
        %v4837 = vsub.s32 2, %v4836
        %v4838 = vrot.slane %v4825, %v4837
        %v4842 = vadd.f32 %v4662, %v4830
        %v4843 = vadd.f32 %v4669, %v4834
        %v4844 = vadd.f32 %v4676, %v4838
        %v4845 = vadd.f32 %v4683, %v4830
        %v4846 = vadd.f32 %v4690, %v4834
        %v4847 = vadd.f32 %v4697, %v4838
        %v4848 = vadd.f32 %v4704, %v4830
        %v4849 = vadd.f32 %v4711, %v4834
        %v4850 = vadd.f32 %v4718, %v4838
        %v4851 = vadd.f32 %v4725, %v4830
        %v4852 = vadd.f32 %v4732, %v4834
        %v4853 = vadd.f32 %v4739, %v4838
        %v4854 = vadd.f32 %v4746, %v4830
        %v4855 = vadd.f32 %v4753, %v4834
        %v4856 = vadd.f32 %v4760, %v4838
        %v4857 = vadd.f32 %v4767, %v4830
        %v4858 = vadd.f32 %v4774, %v4834
        %v4859 = vadd.f32 %v4781, %v4838
        %v4860 = vadd.f32 %v4788, %v4830
        %v4861 = vadd.f32 %v4795, %v4834
        %v4862 = vadd.f32 %v4802, %v4838
        %v4863 = vadd.f32 %v4809, %v4830
        %v4864 = vadd.f32 %v4816, %v4834
        %v4865 = vadd.f32 %v4823, %v4838
        %v4866 = vmul.f32 %v4842, %v1426
        %v4867 = vmul.f32 %v4843, %v1428
        %v4868 = vmul.f32 %v4844, %v1467
        %v4869 = vmul.f32 %v4845, %v2809
        %v4870 = vmul.f32 %v4846, %v2810
        %v4871 = vmul.f32 %v4847, %v2811
        %v4872 = vmul.f32 %v4848, %v2812
        %v4873 = vmul.f32 %v4849, %v2813
        %v4874 = vmul.f32 %v4850, %v2814
        %v4875 = vmul.f32 %v4851, %v2815
        %v4876 = vmul.f32 %v4852, %v2816
        %v4877 = vmul.f32 %v4853, %v2817
        %v4878 = vmul.f32 %v4854, %v2818
        %v4879 = vmul.f32 %v4855, %v2819
        %v4880 = vmul.f32 %v4856, %v2820
        %v4881 = vmul.f32 %v4857, %v2821
        %v4882 = vmul.f32 %v4858, %v2822
        %v4883 = vmul.f32 %v4859, %v2823
        %v4884 = vmul.f32 %v4860, %v2824
        %v4885 = vmul.f32 %v4861, %v2825
        %v4886 = vmul.f32 %v4862, %v2826
        %v4887 = vmul.f32 %v4863, %v2827
        %v4888 = vmul.f32 %v4864, %v2828
        %v4889 = vmul.f32 %v4865, %v2829
        %v4890 = vpack.c.bf16 %v4866, %v4866
        %v4891 = vpack.c.bf16 %v4867, %v4867
        %v4892 = vpack.c.bf16 %v4868, %v4868
        %v4893 = vpack.c.bf16 %v4869, %v4869
        %v4894 = vpack.c.bf16 %v4870, %v4870
        %v4895 = vpack.c.bf16 %v4871, %v4871
        %v4896 = vpack.c.bf16 %v4872, %v4872
        %v4897 = vpack.c.bf16 %v4873, %v4873
        %v4898 = vpack.c.bf16 %v4874, %v4874
        %v4899 = vpack.c.bf16 %v4875, %v4875
        %v4900 = vpack.c.bf16 %v4876, %v4876
        %v4901 = vpack.c.bf16 %v4877, %v4877
        %v4902 = vpack.c.bf16 %v4878, %v4878
        %v4903 = vpack.c.bf16 %v4879, %v4879
        %v4904 = vpack.c.bf16 %v4880, %v4880
        %v4905 = vpack.c.bf16 %v4881, %v4881
        %v4906 = vpack.c.bf16 %v4882, %v4882
        %v4907 = vpack.c.bf16 %v4883, %v4883
        %v4908 = vpack.c.bf16 %v4884, %v4884
        %v4909 = vpack.c.bf16 %v4885, %v4885
        %v4910 = vpack.c.bf16 %v4886, %v4886
        %v4911 = vpack.c.bf16 %v4887, %v4887
        %v4912 = vpack.c.bf16 %v4888, %v4888
        %v4913 = vpack.c.bf16 %v4889, %v4889
        %v4914 = vld [vmem:[%s8 + $0x180] sm:$0xf]
        %v4915 = vld [vmem:[%s8 + $0x184] sm:$0xf]
        %v4916 = vld [vmem:[%s8 + $0x188] sm:$0xf]
        %v4917 = vld [vmem:[%s8 + $0x18c] sm:$0xf]
        %v4918 = vld [vmem:[%s8 + $0x190] sm:$0xf]
        %v4919 = vld [vmem:[%s8 + $0x194] sm:$0xf]
        %v4920 = vld [vmem:[%s8 + $0x198] sm:$0xf]
        %v4921 = vld [vmem:[%s8 + $0x19c] sm:$0xf]
        %v4922 = vld [vmem:[%s8 + $0x1a0] sm:$0xf]
        %v4923 = vld [vmem:[%s8 + $0x1a4] sm:$0xf]
        %v4924 = vld [vmem:[%s8 + $0x1a8] sm:$0xf]
        %v4925 = vld [vmem:[%s8 + $0x1ac] sm:$0xf]
        %v4926 = vld [vmem:[%s8 + $0x1b0] sm:$0xf]
        %v4927 = vld [vmem:[%s8 + $0x1b4] sm:$0xf]
        %v4928 = vld [vmem:[%s8 + $0x1b8] sm:$0xf]
        %v4929 = vld [vmem:[%s8 + $0x1bc] sm:$0xf]
        %v4930 = vld [vmem:[%s8 + $0x1c0] sm:$0xf]
        %v4931 = vld [vmem:[%s8 + $0x1c4] sm:$0xf]
        %v4932 = vld [vmem:[%s8 + $0x1c8] sm:$0xf]
        %v4933 = vld [vmem:[%s8 + $0x1cc] sm:$0xf]
        %v4934 = vld [vmem:[%s8 + $0x1d0] sm:$0xf]
        %v4935 = vld [vmem:[%s8 + $0x1d4] sm:$0xf]
        %v4936 = vld [vmem:[%s8 + $0x1d8] sm:$0xf]
        %v4937 = vld [vmem:[%s8 + $0x1dc] sm:$0xf]
        %v4938 = vld [vmem:[%s8 + $0x1e0] sm:$0xf]
        %v4939 = vld [vmem:[%s8 + $0x1e4] sm:$0xf]
        %v4940 = vld [vmem:[%s8 + $0x1e8] sm:$0xf]
        %v4941 = vld [vmem:[%s8 + $0x1ec] sm:$0xf]
        %v4942 = vld [vmem:[%s8 + $0x1f0] sm:$0xf]
        %v4943 = vld [vmem:[%s8 + $0x1f4] sm:$0xf]
        %v4944 = vld [vmem:[%s8 + $0x1f8] sm:$0xf]
        %v4945 = vld [vmem:[%s8 + $0x1fc] sm:$0xf]
        %v4946 = vld [vmem:[%s8 + $0x200] sm:$0xf]
        %v4947 = vld [vmem:[%s8 + $0x204] sm:$0xf]
        %v4948 = vld [vmem:[%s8 + $0x208] sm:$0xf]
        %v4949 = vld [vmem:[%s8 + $0x20c] sm:$0xf]
        %v4950 = vld [vmem:[%s8 + $0x210] sm:$0xf]
        %v4951 = vld [vmem:[%s8 + $0x214] sm:$0xf]
        %v4952 = vld [vmem:[%s8 + $0x218] sm:$0xf]
        %v4953 = vld [vmem:[%s8 + $0x21c] sm:$0xf]
        %v4954 = vld [vmem:[%s8 + $0x220] sm:$0xf]
        %v4955 = vld [vmem:[%s8 + $0x224] sm:$0xf]
        %v4956 = vld [vmem:[%s8 + $0x228] sm:$0xf]
        %v4957 = vld [vmem:[%s8 + $0x22c] sm:$0xf]
        %v4958 = vld [vmem:[%s8 + $0x230] sm:$0xf]
        %v4959 = vld [vmem:[%s8 + $0x234] sm:$0xf]
        %v4960 = vld [vmem:[%s8 + $0x238] sm:$0xf]
        %v4961 = vld [vmem:[%s8 + $0x23c] sm:$0xf]
        %v4986 = vunpack.c.l.b16 %v4890
        %v4987 = vunpack.c.l.b16 %v4891
        %v4988 = vunpack.c.l.b16 %v4892
        %v4989 = vunpack.c.l.b16 %v4893
        %v4990 = vunpack.c.l.b16 %v4894
        %v4991 = vunpack.c.l.b16 %v4895
        %v4992 = vunpack.c.l.b16 %v4896
        %v4993 = vunpack.c.l.b16 %v4897
        %v4994 = vunpack.c.l.b16 %v4898
        %v4995 = vunpack.c.l.b16 %v4899
        %v4996 = vunpack.c.l.b16 %v4900
        %v4997 = vunpack.c.l.b16 %v4901
        %v4998 = vunpack.c.l.b16 %v4902
        %v4999 = vunpack.c.l.b16 %v4903
        %v5000 = vunpack.c.l.b16 %v4904
        %v5001 = vunpack.c.l.b16 %v4905
        %v5002 = vunpack.c.l.b16 %v4906
        %v5003 = vunpack.c.l.b16 %v4907
        %v5004 = vunpack.c.l.b16 %v4908
        %v5005 = vunpack.c.l.b16 %v4909
        %v5006 = vunpack.c.l.b16 %v4910
        %v5007 = vunpack.c.l.b16 %v4911
        %v5008 = vunpack.c.l.b16 %v4912
        %v5009 = vunpack.c.l.b16 %v4913
        %v5010 = vrot.slane %v4989, 7
        %v5011 = vsel %vm825, %v5010, %v4986
        %v5012 = vrot.slane %v4992, 6
        %v5013 = vsel %vm827, %v5012, %v5011
        %v5014 = vrot.slane %v4995, 5
        %v5015 = vsel %vm829, %v5014, %v5013
        %v5016 = vrot.slane %v4998, 4
        %v5017 = vsel %vm831, %v5016, %v5015
        %v5018 = vrot.slane %v5001, 3
        %v5019 = vsel %vm833, %v5018, %v5017
        %v5020 = vrot.slane %v5004, 2
        %v5021 = vsel %vm835, %v5020, %v5019
        %v5022 = vrot.slane %v5007, 1
        %v5023 = vsel %vm837, %v5022, %v5021
        %v5024 = vrot.slane %v4990, 7
        %v5025 = vsel %vm825, %v5024, %v4987
        %v5026 = vrot.slane %v4993, 6
        %v5027 = vsel %vm827, %v5026, %v5025
        %v5028 = vrot.slane %v4996, 5
        %v5029 = vsel %vm829, %v5028, %v5027
        %v5030 = vrot.slane %v4999, 4
        %v5031 = vsel %vm831, %v5030, %v5029
        %v5032 = vrot.slane %v5002, 3
        %v5033 = vsel %vm833, %v5032, %v5031
        %v5034 = vrot.slane %v5005, 2
        %v5035 = vsel %vm835, %v5034, %v5033
        %v5036 = vrot.slane %v5008, 1
        %v5037 = vsel %vm837, %v5036, %v5035
        %v5038 = vrot.slane %v4991, 7
        %v5039 = vsel %vm825, %v5038, %v4988
        %v5040 = vrot.slane %v4994, 6
        %v5041 = vsel %vm827, %v5040, %v5039
        %v5042 = vrot.slane %v4997, 5
        %v5043 = vsel %vm829, %v5042, %v5041
        %v5044 = vrot.slane %v5000, 4
        %v5045 = vsel %vm831, %v5044, %v5043
        %v5046 = vrot.slane %v5003, 3
        %v5047 = vsel %vm833, %v5046, %v5045
        %v5048 = vrot.slane %v5006, 2
        %v5049 = vsel %vm835, %v5048, %v5047
        %v5050 = vrot.slane %v5009, 1
        %v5051 = vsel %vm837, %v5050, %v5049
        %v5052 = vpack.c.b16 %v5023, %v5023
        %v5053 = vpack.c.b16 %v5037, %v5037
        %v5054 = vpack.c.b16 %v5051, %v5051
        %v5106 = vunpack.c.l.b16 %v4914
        %v5107 = vunpack.c.l.b16 %v4915
        %v5108 = vunpack.c.l.b16 %v4916
        %v5109 = vunpack.c.l.b16 %v4917
        %v5110 = vunpack.c.l.b16 %v4918
        %v5111 = vunpack.c.l.b16 %v4919
        %v5112 = vunpack.c.l.b16 %v4920
        %v5113 = vunpack.c.l.b16 %v4921
        %v5114 = vunpack.c.l.b16 %v4922
        %v5115 = vunpack.c.l.b16 %v4923
        %v5116 = vunpack.c.l.b16 %v4924
        %v5117 = vunpack.c.l.b16 %v4925
        %v5118 = vunpack.c.l.b16 %v4926
        %v5119 = vunpack.c.l.b16 %v4927
        %v5120 = vunpack.c.l.b16 %v4928
        %v5121 = vunpack.c.l.b16 %v4929
        %v5122 = vunpack.c.l.b16 %v4930
        %v5123 = vunpack.c.l.b16 %v4931
        %v5124 = vunpack.c.l.b16 %v4932
        %v5125 = vunpack.c.l.b16 %v4933
        %v5126 = vunpack.c.l.b16 %v4934
        %v5127 = vunpack.c.l.b16 %v4935
        %v5128 = vunpack.c.l.b16 %v4936
        %v5129 = vunpack.c.l.b16 %v4937
        %v5130 = vunpack.c.l.b16 %v4938
        %v5131 = vunpack.c.l.b16 %v4939
        %v5132 = vunpack.c.l.b16 %v4940
        %v5133 = vunpack.c.l.b16 %v4941
        %v5134 = vunpack.c.l.b16 %v4942
        %v5135 = vunpack.c.l.b16 %v4943
        %v5136 = vunpack.c.l.b16 %v4944
        %v5137 = vunpack.c.l.b16 %v4945
        %v5138 = vunpack.c.l.b16 %v4946
        %v5139 = vunpack.c.l.b16 %v4947
        %v5140 = vunpack.c.l.b16 %v4948
        %v5141 = vunpack.c.l.b16 %v4949
        %v5142 = vunpack.c.l.b16 %v4950
        %v5143 = vunpack.c.l.b16 %v4951
        %v5144 = vunpack.c.l.b16 %v4952
        %v5145 = vunpack.c.l.b16 %v4953
        %v5146 = vunpack.c.l.b16 %v4954
        %v5147 = vunpack.c.l.b16 %v4955
        %v5148 = vunpack.c.l.b16 %v4956
        %v5149 = vunpack.c.l.b16 %v4957
        %v5150 = vunpack.c.l.b16 %v4958
        %v5151 = vunpack.c.l.b16 %v4959
        %v5152 = vunpack.c.l.b16 %v4960
        %v5153 = vunpack.c.l.b16 %v4961
        %v5154 = vpack.c.b16 %v5107, %v5106
        %v5155 = vpack.c.b16 %v5109, %v5108
        %v5156 = vpack.c.b16 %v5111, %v5110
        %v5157 = vpack.c.b16 %v5113, %v5112
        %v5158 = vpack.c.b16 %v5115, %v5114
        %v5159 = vpack.c.b16 %v5117, %v5116
        %v5160 = vpack.c.b16 %v5119, %v5118
        %v5161 = vpack.c.b16 %v5121, %v5120
        %v5162 = vpack.c.b16 %v5123, %v5122
        %v5163 = vpack.c.b16 %v5125, %v5124
        %v5164 = vpack.c.b16 %v5127, %v5126
        %v5165 = vpack.c.b16 %v5129, %v5128
        %v5166 = vpack.c.b16 %v5131, %v5130
        %v5167 = vpack.c.b16 %v5133, %v5132
        %v5168 = vpack.c.b16 %v5135, %v5134
        %v5169 = vpack.c.b16 %v5137, %v5136
        %v5170 = vpack.c.b16 %v5139, %v5138
        %v5171 = vpack.c.b16 %v5141, %v5140
        %v5172 = vpack.c.b16 %v5143, %v5142
        %v5173 = vpack.c.b16 %v5145, %v5144
        %v5174 = vpack.c.b16 %v5147, %v5146
        %v5175 = vpack.c.b16 %v5149, %v5148
        %v5176 = vpack.c.b16 %v5151, %v5150
        %v5177 = vpack.c.b16 %v5153, %v5152
        %5202 = vmatprep.subr.bf16.mxu0 0
        %5203 = vmatpush1.bf16.msra.mxu0 %v5154
        %5204 = vmatprep.subr.bf16.mxu0 0
        %5205 = vmatpush1.bf16.msra.mxu0 %v5155
        %5206 = vmatprep.subr.bf16.mxu0 0
        %5207 = vmatpush1.bf16.msra.mxu0 %v5156
        %5208 = vmatprep.subr.bf16.mxu0 0
        %5209 = vmatpush1.bf16.msra.mxu0 %v5157
        %5210 = vmatprep.subr.bf16.mxu0 0
        %5211 = vmatpush1.bf16.msra.mxu0 %v5158
        %5212 = vmatprep.subr.bf16.mxu0 0
        %5213 = vmatpush1.bf16.msra.mxu0 %v5159
        %5214 = vmatprep.subr.bf16.mxu0 0
        %5215 = vmatpush1.bf16.msra.mxu0 %v5160
        %5216 = vmatprep.subr.bf16.mxu0 0
        %5217 = vmatpush1.bf16.msra.mxu0 %v5161
        %5218 = vmatprep.subr.bf16.mxu0 0
        %5219 = vmatpush1.bf16.msra.mxu0 %v5162
        %5220 = vmatprep.subr.bf16.mxu0 0
        %5221 = vmatpush1.bf16.msra.mxu0 %v5163
        %5222 = vmatprep.subr.bf16.mxu0 0
        %5223 = vmatpush1.bf16.msra.mxu0 %v5164
        %5224 = vmatprep.subr.bf16.mxu0 0
        %5225 = vmatpush1.bf16.msra.mxu0 %v5165
        %5226 = vmatprep.subr.bf16.mxu0 0
        %5227 = vmatpush1.bf16.msra.mxu0 %v5166
        %5228 = vmatprep.subr.bf16.mxu0 0
        %5229 = vmatpush1.bf16.msra.mxu0 %v5167
        %5230 = vmatprep.subr.bf16.mxu0 0
        %5231 = vmatpush1.bf16.msra.mxu0 %v5168
        %5232 = vmatprep.subr.bf16.mxu0 0
        %5233 = vmatpush1.bf16.msra.mxu0 %v5169
        %5234 = vmatprep.mubr.bf16.mxu0 %v5053
        %5235 = vmatmul.mubr.bf16.gmra.mrb[0].mxu0 %v5052
        %v5236 = vpop.f32.mrb[0].mxu0
        %v5237 = vadd.f32 0.0, %v5236
        %v5238 = vpop.f32.mrb[0].mxu0
        %v5239 = vpop.f32.mrb[0].mxu0
        %v5240 = vpop.f32.mrb[0].mxu0
        %5241 = vdwg.mxu0
        %5242 = vmatprep.subr.bf16.mxu0 0
        %5243 = vmatpush1.bf16.msra.mxu0 %v5170
        %5244 = vmatprep.subr.bf16.mxu0 0
        %5245 = vmatpush1.bf16.msra.mxu0 %v5171
        %5246 = vmatprep.subr.bf16.mxu0 0
        %5247 = vmatpush1.bf16.msra.mxu0 %v5172
        %5248 = vmatprep.subr.bf16.mxu0 0
        %5249 = vmatpush1.bf16.msra.mxu0 %v5173
        %5250 = vmatprep.subr.bf16.mxu0 0
        %5251 = vmatpush1.bf16.msra.mxu0 %v5174
        %5252 = vmatprep.subr.bf16.mxu0 0
        %5253 = vmatpush1.bf16.msra.mxu0 %v5175
        %5254 = vmatprep.subr.bf16.mxu0 0
        %5255 = vmatpush1.bf16.msra.mxu0 %v5176
        %5256 = vmatprep.subr.bf16.mxu0 0
        %5257 = vmatpush1.bf16.msra.mxu0 %v5177
        %5258 = vmatprep.subr.bf16.mxu0 0
        %5259 = vmatpush1.bf16.msra.mxu0 0
        %5260 = vmatprep.subr.bf16.mxu0 0
        %5261 = vmatpush1.bf16.msra.mxu0 0
        %5262 = vmatprep.subr.bf16.mxu0 0
        %5263 = vmatpush1.bf16.msra.mxu0 0
        %5264 = vmatprep.subr.bf16.mxu0 0
        %5265 = vmatpush1.bf16.msra.mxu0 0
        %5266 = vmatprep.subr.bf16.mxu0 0
        %5267 = vmatpush1.bf16.msra.mxu0 0
        %5268 = vmatprep.subr.bf16.mxu0 0
        %5269 = vmatpush1.bf16.msra.mxu0 0
        %5270 = vmatprep.subr.bf16.mxu0 0
        %5271 = vmatpush1.bf16.msra.mxu0 0
        %5272 = vmatprep.subr.bf16.mxu0 0
        %5273 = vmatpush1.bf16.msra.mxu0 0
        %5274 = vmatprep.mubr.bf16.mxu0 0
        %5275 = vmatmul.mubr.bf16.gmra.mrb[0].mxu0 %v5054
        %v5276 = vpop.f32.mrb[0].mxu0
        %v5277 = vadd.f32 %v5237, %v5276
        %v5278 = vpop.f32.mrb[0].mxu0
        %v5279 = vpop.f32.mrb[0].mxu0
        %v5280 = vpop.f32.mrb[0].mxu0
        %5281 = vdwg.mxu0
        %v5282 = vadd.f32 %v4251, %v5277
        %v5283 = vld [vmem:[%s6 + $0x120] sm:$0xff]
        %v5284 = vld [vmem:[%s6 + $0x128] sm:$0xf]
        %v5285 = vld [vmem:[%s6 + $0x12c] sm:$0xff]
        %v5286 = vld [vmem:[%s6 + $0x134] sm:$0xf]
        %v5287 = vld [vmem:[%s6 + $0x138] sm:$0xff]
        %v5288 = vld [vmem:[%s6 + $0x140] sm:$0xf]
        %v5289 = vld [vmem:[%s6 + $0x144] sm:$0xff]
        %v5290 = vld [vmem:[%s6 + $0x14c] sm:$0xf]
        %v5291 = vld [vmem:[%s6 + $0x150] sm:$0xff]
        %v5292 = vld [vmem:[%s6 + $0x158] sm:$0xf]
        %v5293 = vld [vmem:[%s6 + $0x15c] sm:$0xff]
        %v5294 = vld [vmem:[%s6 + $0x164] sm:$0xf]
        %v5295 = vld [vmem:[%s6 + $0x168] sm:$0xff]
        %v5296 = vld [vmem:[%s6 + $0x170] sm:$0xf]
        %v5297 = vld [vmem:[%s6 + $0x174] sm:$0xff]
        %v5298 = vld [vmem:[%s6 + $0x17c] sm:$0xf]
        %v5299 = vld [vmem:[%s6 + $0x180] sm:$0xff]
        %v5300 = vld [vmem:[%s6 + $0x188] sm:$0xf]
        %v5301 = vld [vmem:[%s6 + $0x18c] sm:$0xff]
        %v5302 = vld [vmem:[%s6 + $0x194] sm:$0xf]
        %v5303 = vld [vmem:[%s6 + $0x198] sm:$0xff]
        %v5304 = vld [vmem:[%s6 + $0x1a0] sm:$0xf]
        %v5305 = vld [vmem:[%s6 + $0x1a4] sm:$0xff]
        %v5306 = vld [vmem:[%s6 + $0x1ac] sm:$0xf]
        %v5307 = vld [vmem:[%s6 + $0x1b0] sm:$0xff]
        %v5308 = vld [vmem:[%s6 + $0x1b8] sm:$0xf]
        %v5309 = vld [vmem:[%s6 + $0x1bc] sm:$0xff]
        %v5310 = vld [vmem:[%s6 + $0x1c4] sm:$0xf]
        %v5311 = vld [vmem:[%s6 + $0x1c8] sm:$0xff]
        %v5312 = vld [vmem:[%s6 + $0x1d0] sm:$0xf]
        %v5313 = vld [vmem:[%s6 + $0x1d4] sm:$0xff]
        %v5314 = vld [vmem:[%s6 + $0x1dc] sm:$0xf]
        %v5315 = vld [vmem:[%s6 + $0x1e0] sm:$0xff]
        %v5316 = vld [vmem:[%s6 + $0x1e8] sm:$0xf]
        %v5317 = vld [vmem:[%s6 + $0x1ec] sm:$0xff]
        %v5318 = vld [vmem:[%s6 + $0x1f4] sm:$0xf]
        %v5319 = vld [vmem:[%s6 + $0x1f8] sm:$0xff]
        %v5320 = vld [vmem:[%s6 + $0x200] sm:$0xf]
        %v5321 = vld [vmem:[%s6 + $0x204] sm:$0xff]
        %v5322 = vld [vmem:[%s6 + $0x20c] sm:$0xf]
        %v5363 = vunpack.c.l.b16 %v5283
        %v5364 = vunpack.c.h.b16 %v5283
        %v5365 = vunpack.c.l.b16 %v5284
        %v5366 = vunpack.c.l.b16 %v5285
        %v5367 = vunpack.c.h.b16 %v5285
        %v5368 = vunpack.c.l.b16 %v5286
        %v5369 = vunpack.c.l.b16 %v5287
        %v5370 = vunpack.c.h.b16 %v5287
        %v5371 = vunpack.c.l.b16 %v5288
        %v5372 = vunpack.c.l.b16 %v5289
        %v5373 = vunpack.c.h.b16 %v5289
        %v5374 = vunpack.c.l.b16 %v5290
        %v5375 = vunpack.c.l.b16 %v5291
        %v5376 = vunpack.c.h.b16 %v5291
        %v5377 = vunpack.c.l.b16 %v5292
        %v5378 = vunpack.c.l.b16 %v5293
        %v5379 = vunpack.c.h.b16 %v5293
        %v5380 = vunpack.c.l.b16 %v5294
        %v5381 = vunpack.c.l.b16 %v5295
        %v5382 = vunpack.c.h.b16 %v5295
        %v5383 = vunpack.c.l.b16 %v5296
        %v5384 = vunpack.c.l.b16 %v5297
        %v5385 = vunpack.c.h.b16 %v5297
        %v5386 = vunpack.c.l.b16 %v5298
        %v5387 = vunpack.c.l.b16 %v5299
        %v5388 = vunpack.c.h.b16 %v5299
        %v5389 = vunpack.c.l.b16 %v5300
        %v5390 = vunpack.c.l.b16 %v5301
        %v5391 = vunpack.c.h.b16 %v5301
        %v5392 = vunpack.c.l.b16 %v5302
        %v5393 = vunpack.c.l.b16 %v5303
        %v5394 = vunpack.c.h.b16 %v5303
        %v5395 = vunpack.c.l.b16 %v5304
        %v5396 = vunpack.c.l.b16 %v5305
        %v5397 = vunpack.c.h.b16 %v5305
        %v5398 = vunpack.c.l.b16 %v5306
        %v5399 = vunpack.c.l.b16 %v5307
        %v5400 = vunpack.c.h.b16 %v5307
        %v5401 = vunpack.c.l.b16 %v5308
        %v5402 = vunpack.c.l.b16 %v5309
        %v5403 = vunpack.c.h.b16 %v5309
        %v5404 = vunpack.c.l.b16 %v5310
        %v5405 = vunpack.c.l.b16 %v5311
        %v5406 = vunpack.c.h.b16 %v5311
        %v5407 = vunpack.c.l.b16 %v5312
        %v5408 = vunpack.c.l.b16 %v5313
        %v5409 = vunpack.c.h.b16 %v5313
        %v5410 = vunpack.c.l.b16 %v5314
        %v5411 = vunpack.c.l.b16 %v5315
        %v5412 = vunpack.c.h.b16 %v5315
        %v5413 = vunpack.c.l.b16 %v5316
        %v5414 = vunpack.c.l.b16 %v5317
        %v5415 = vunpack.c.h.b16 %v5317
        %v5416 = vunpack.c.l.b16 %v5318
        %v5417 = vunpack.c.l.b16 %v5319
        %v5418 = vunpack.c.h.b16 %v5319
        %v5419 = vunpack.c.l.b16 %v5320
        %v5420 = vunpack.c.l.b16 %v5321
        %v5421 = vunpack.c.h.b16 %v5321
        %v5422 = vunpack.c.l.b16 %v5322
        %v5423 = vpack.c.b16 %v5366, %v5363
        %v5424 = vpack.c.b16 %v5367, %v5364
        %v5425 = vpack.c.b16 %v5368, %v5365
        %v5426 = vpack.c.b16 %v5372, %v5369
        %v5427 = vpack.c.b16 %v5373, %v5370
        %v5428 = vpack.c.b16 %v5374, %v5371
        %v5429 = vpack.c.b16 %v5378, %v5375
        %v5430 = vpack.c.b16 %v5379, %v5376
        %v5431 = vpack.c.b16 %v5380, %v5377
        %v5432 = vpack.c.b16 %v5384, %v5381
        %v5433 = vpack.c.b16 %v5385, %v5382
        %v5434 = vpack.c.b16 %v5386, %v5383
        %v5435 = vpack.c.b16 %v5390, %v5387
        %v5436 = vpack.c.b16 %v5391, %v5388
        %v5437 = vpack.c.b16 %v5392, %v5389
        %v5438 = vpack.c.b16 %v5396, %v5393
        %v5439 = vpack.c.b16 %v5397, %v5394
        %v5440 = vpack.c.b16 %v5398, %v5395
        %v5441 = vpack.c.b16 %v5402, %v5399
        %v5442 = vpack.c.b16 %v5403, %v5400
        %v5443 = vpack.c.b16 %v5404, %v5401
        %v5444 = vpack.c.b16 %v5408, %v5405
        %v5445 = vpack.c.b16 %v5409, %v5406
        %v5446 = vpack.c.b16 %v5410, %v5407
        %v5447 = vpack.c.b16 %v5414, %v5411
        %v5448 = vpack.c.b16 %v5415, %v5412
        %v5449 = vpack.c.b16 %v5416, %v5413
        %v5450 = vpack.c.b16 %v5420, %v5417
        %v5451 = vpack.c.b16 %v5421, %v5418
        %v5452 = vpack.c.b16 %v5422, %v5419
        %v5483 = vsel %vm498, %v2234, 0
        %v5485 = vsel %vm498, %v2237, 0
        %v5487 = vsel %vm498, %v2240, 0
        %v5489 = vsel %vm498, %v2243, 0
        %v5491 = vsel %vm498, %v2246, 0
        %v5493 = vsel %vm498, %v2249, 0
        %v5495 = vsel %vm498, %v2252, 0
        %v5497 = vsel %vm498, %v2255, 0
        %5499 = vmatprep.subr.bf16.mxu0 %v5424
        %5500 = vmatpush1.bf16.msra.mxu0 %v5423
        %5501 = vmatprep.subr.bf16.mxu0 %v5427
        %5502 = vmatpush1.bf16.msra.mxu0 %v5426
        %5503 = vmatprep.subr.bf16.mxu0 %v5430
        %5504 = vmatpush1.bf16.msra.mxu0 %v5429
        %5505 = vmatprep.subr.bf16.mxu0 %v5433
        %5506 = vmatpush1.bf16.msra.mxu0 %v5432
        %5507 = vmatprep.subr.bf16.mxu0 %v5436
        %5508 = vmatpush1.bf16.msra.mxu0 %v5435
        %5509 = vmatprep.subr.bf16.mxu0 %v5439
        %5510 = vmatpush1.bf16.msra.mxu0 %v5438
        %5511 = vmatprep.subr.bf16.mxu0 %v5442
        %5512 = vmatpush1.bf16.msra.mxu0 %v5441
        %5513 = vmatprep.subr.bf16.mxu0 %v5445
        %5514 = vmatpush1.bf16.msra.mxu0 %v5444
        %5515 = vmatprep.subr.bf16.mxu0 %v5448
        %5516 = vmatpush1.bf16.msra.mxu0 %v5447
        %5517 = vmatprep.subr.bf16.mxu0 %v5451
        %5518 = vmatpush1.bf16.msra.mxu0 %v5450
        %5519 = vmatprep.subr.bf16.mxu0 0
        %5520 = vmatpush1.bf16.msra.mxu0 0
        %5521 = vmatprep.subr.bf16.mxu0 0
        %5522 = vmatpush1.bf16.msra.mxu0 0
        %5523 = vmatprep.subr.bf16.mxu0 0
        %5524 = vmatpush1.bf16.msra.mxu0 0
        %5525 = vmatprep.subr.bf16.mxu0 0
        %5526 = vmatpush1.bf16.msra.mxu0 0
        %5527 = vmatprep.subr.bf16.mxu0 0
        %5528 = vmatpush1.bf16.msra.mxu0 0
        %5529 = vmatprep.subr.bf16.mxu0 0
        %5530 = vmatpush1.bf16.msra.mxu0 0
        %5531 = vmatprep.mubr.bf16.mxu0 %v5483
        %5532 = vmatmul.mubr.bf16.gmra.mrb[0].mxu0 %v2170
        %v5533 = vpop.f32.mrb[0].mxu0
        %v5534 = vadd.f32 0.0, %v5533
        %v5535 = vpop.f32.mrb[0].mxu0
        %v5536 = vadd.f32 0.0, %v5535
        %v5537 = vpop.f32.mrb[0].mxu0
        %v5538 = vadd.f32 0.0, %v5537
        %v5539 = vpop.f32.mrb[0].mxu0
        %v5540 = vadd.f32 0.0, %v5539
        %5541 = vmatprep.mubr.bf16.mxu0 %v5485
        %5542 = vmatmul.mubr.bf16.gmra.mrb[0].mxu0 %v2173
        %v5543 = vpop.f32.mrb[0].mxu0
        %v5544 = vadd.f32 0.0, %v5543
        %v5545 = vpop.f32.mrb[0].mxu0
        %v5546 = vadd.f32 0.0, %v5545
        %v5547 = vpop.f32.mrb[0].mxu0
        %v5548 = vadd.f32 0.0, %v5547
        %v5549 = vpop.f32.mrb[0].mxu0
        %v5550 = vadd.f32 0.0, %v5549
        %5551 = vmatprep.mubr.bf16.mxu0 %v5487
        %5552 = vmatmul.mubr.bf16.gmra.mrb[0].mxu0 %v2176
        %v5553 = vpop.f32.mrb[0].mxu0
        %v5554 = vadd.f32 0.0, %v5553
        %v5555 = vpop.f32.mrb[0].mxu0
        %v5556 = vadd.f32 0.0, %v5555
        %v5557 = vpop.f32.mrb[0].mxu0
        %v5558 = vadd.f32 0.0, %v5557
        %v5559 = vpop.f32.mrb[0].mxu0
        %v5560 = vadd.f32 0.0, %v5559
        %5561 = vmatprep.mubr.bf16.mxu0 %v5489
        %5562 = vmatmul.mubr.bf16.gmra.mrb[0].mxu0 %v2179
        %v5563 = vpop.f32.mrb[0].mxu0
        %v5564 = vadd.f32 0.0, %v5563
        %v5565 = vpop.f32.mrb[0].mxu0
        %v5566 = vadd.f32 0.0, %v5565
        %v5567 = vpop.f32.mrb[0].mxu0
        %v5568 = vadd.f32 0.0, %v5567
        %v5569 = vpop.f32.mrb[0].mxu0
        %v5570 = vadd.f32 0.0, %v5569
        %5571 = vmatprep.mubr.bf16.mxu0 %v5491
        %5572 = vmatmul.mubr.bf16.gmra.mrb[0].mxu0 %v2182
        %v5573 = vpop.f32.mrb[0].mxu0
        %v5574 = vadd.f32 0.0, %v5573
        %v5575 = vpop.f32.mrb[0].mxu0
        %v5576 = vadd.f32 0.0, %v5575
        %v5577 = vpop.f32.mrb[0].mxu0
        %v5578 = vadd.f32 0.0, %v5577
        %v5579 = vpop.f32.mrb[0].mxu0
        %v5580 = vadd.f32 0.0, %v5579
        %5581 = vmatprep.mubr.bf16.mxu0 %v5493
        %5582 = vmatmul.mubr.bf16.gmra.mrb[0].mxu0 %v2185
        %v5583 = vpop.f32.mrb[0].mxu0
        %v5584 = vadd.f32 0.0, %v5583
        %v5585 = vpop.f32.mrb[0].mxu0
        %v5586 = vadd.f32 0.0, %v5585
        %v5587 = vpop.f32.mrb[0].mxu0
        %v5588 = vadd.f32 0.0, %v5587
        %v5589 = vpop.f32.mrb[0].mxu0
        %v5590 = vadd.f32 0.0, %v5589
        %5591 = vmatprep.mubr.bf16.mxu0 %v5495
        %5592 = vmatmul.mubr.bf16.gmra.mrb[0].mxu0 %v2188
        %v5593 = vpop.f32.mrb[0].mxu0
        %v5594 = vadd.f32 0.0, %v5593
        %v5595 = vpop.f32.mrb[0].mxu0
        %v5596 = vadd.f32 0.0, %v5595
        %v5597 = vpop.f32.mrb[0].mxu0
        %v5598 = vadd.f32 0.0, %v5597
        %v5599 = vpop.f32.mrb[0].mxu0
        %v5600 = vadd.f32 0.0, %v5599
        %5601 = vmatprep.mubr.bf16.mxu0 %v5497
        %5602 = vmatmul.mubr.bf16.gmra.mrb[0].mxu0 %v2191
        %v5603 = vpop.f32.mrb[0].mxu0
        %v5604 = vadd.f32 0.0, %v5603
        %v5605 = vpop.f32.mrb[0].mxu0
        %v5606 = vadd.f32 0.0, %v5605
        %v5607 = vpop.f32.mrb[0].mxu0
        %v5608 = vadd.f32 0.0, %v5607
        %v5609 = vpop.f32.mrb[0].mxu0
        %v5610 = vadd.f32 0.0, %v5609
        %5611 = vdwg.mxu0
        %5612 = vmatprep.subr.bf16.mxu0 0
        %5613 = vmatpush1.bf16.msra.mxu0 %v5425
        %5614 = vmatprep.subr.bf16.mxu0 0
        %5615 = vmatpush1.bf16.msra.mxu0 %v5428
        %5616 = vmatprep.subr.bf16.mxu0 0
        %5617 = vmatpush1.bf16.msra.mxu0 %v5431
        %5618 = vmatprep.subr.bf16.mxu0 0
        %5619 = vmatpush1.bf16.msra.mxu0 %v5434
        %5620 = vmatprep.subr.bf16.mxu0 0
        %5621 = vmatpush1.bf16.msra.mxu0 %v5437
        %5622 = vmatprep.subr.bf16.mxu0 0
        %5623 = vmatpush1.bf16.msra.mxu0 %v5440
        %5624 = vmatprep.subr.bf16.mxu0 0
        %5625 = vmatpush1.bf16.msra.mxu0 %v5443
        %5626 = vmatprep.subr.bf16.mxu0 0
        %5627 = vmatpush1.bf16.msra.mxu0 %v5446
        %5628 = vmatprep.subr.bf16.mxu0 0
        %5629 = vmatpush1.bf16.msra.mxu0 %v5449
        %5630 = vmatprep.subr.bf16.mxu0 0
        %5631 = vmatpush1.bf16.msra.mxu0 %v5452
        %5632 = vmatprep.subr.bf16.mxu0 0
        %5633 = vmatpush1.bf16.msra.mxu0 0
        %5634 = vmatprep.subr.bf16.mxu0 0
        %5635 = vmatpush1.bf16.msra.mxu0 0
        %5636 = vmatprep.subr.bf16.mxu0 0
        %5637 = vmatpush1.bf16.msra.mxu0 0
        %5638 = vmatprep.subr.bf16.mxu0 0
        %5639 = vmatpush1.bf16.msra.mxu0 0
        %5640 = vmatprep.subr.bf16.mxu0 0
        %5641 = vmatpush1.bf16.msra.mxu0 0
        %5642 = vmatprep.subr.bf16.mxu0 0
        %5643 = vmatpush1.bf16.msra.mxu0 0
        %5644 = vmatprep.mubr.bf16.mxu0 %v5483
        %5645 = vmatmul.mubr.bf16.gmra.mrb[0].mxu0 %v2170
        %v5646 = vpop.f32.mrb[0].mxu0
        %v5647 = vadd.f32 0.0, %v5646
        %v5648 = vpop.f32.mrb[0].mxu0
        %v5649 = vpop.f32.mrb[0].mxu0
        %v5650 = vadd.f32 0.0, %v5649
        %v5651 = vpop.f32.mrb[0].mxu0
        %5652 = vmatprep.mubr.bf16.mxu0 %v5485
        %5653 = vmatmul.mubr.bf16.gmra.mrb[0].mxu0 %v2173
        %v5654 = vpop.f32.mrb[0].mxu0
        %v5655 = vadd.f32 0.0, %v5654
        %v5656 = vpop.f32.mrb[0].mxu0
        %v5657 = vpop.f32.mrb[0].mxu0
        %v5658 = vadd.f32 0.0, %v5657
        %v5659 = vpop.f32.mrb[0].mxu0
        %5660 = vmatprep.mubr.bf16.mxu0 %v5487
        %5661 = vmatmul.mubr.bf16.gmra.mrb[0].mxu0 %v2176
        %v5662 = vpop.f32.mrb[0].mxu0
        %v5663 = vadd.f32 0.0, %v5662
        %v5664 = vpop.f32.mrb[0].mxu0
        %v5665 = vpop.f32.mrb[0].mxu0
        %v5666 = vadd.f32 0.0, %v5665
        %v5667 = vpop.f32.mrb[0].mxu0
        %5668 = vmatprep.mubr.bf16.mxu0 %v5489
        %5669 = vmatmul.mubr.bf16.gmra.mrb[0].mxu0 %v2179
        %v5670 = vpop.f32.mrb[0].mxu0
        %v5671 = vadd.f32 0.0, %v5670
        %v5672 = vpop.f32.mrb[0].mxu0
        %v5673 = vpop.f32.mrb[0].mxu0
        %v5674 = vadd.f32 0.0, %v5673
        %v5675 = vpop.f32.mrb[0].mxu0
        %5676 = vmatprep.mubr.bf16.mxu0 %v5491
        %5677 = vmatmul.mubr.bf16.gmra.mrb[0].mxu0 %v2182
        %v5678 = vpop.f32.mrb[0].mxu0
        %v5679 = vadd.f32 0.0, %v5678
        %v5680 = vpop.f32.mrb[0].mxu0
        %v5681 = vpop.f32.mrb[0].mxu0
        %v5682 = vadd.f32 0.0, %v5681
        %v5683 = vpop.f32.mrb[0].mxu0
        %5684 = vmatprep.mubr.bf16.mxu0 %v5493
        %5685 = vmatmul.mubr.bf16.gmra.mrb[0].mxu0 %v2185
        %v5686 = vpop.f32.mrb[0].mxu0
        %v5687 = vadd.f32 0.0, %v5686
        %v5688 = vpop.f32.mrb[0].mxu0
        %v5689 = vpop.f32.mrb[0].mxu0
        %v5690 = vadd.f32 0.0, %v5689
        %v5691 = vpop.f32.mrb[0].mxu0
        %5692 = vmatprep.mubr.bf16.mxu0 %v5495
        %5693 = vmatmul.mubr.bf16.gmra.mrb[0].mxu0 %v2188
        %v5694 = vpop.f32.mrb[0].mxu0
        %v5695 = vadd.f32 0.0, %v5694
        %v5696 = vpop.f32.mrb[0].mxu0
        %v5697 = vpop.f32.mrb[0].mxu0
        %v5698 = vadd.f32 0.0, %v5697
        %v5699 = vpop.f32.mrb[0].mxu0
        %5700 = vmatprep.mubr.bf16.mxu0 %v5497
        %5701 = vmatmul.mubr.bf16.gmra.mrb[0].mxu0 %v2191
        %v5702 = vpop.f32.mrb[0].mxu0
        %v5703 = vadd.f32 0.0, %v5702
        %v5704 = vpop.f32.mrb[0].mxu0
        %v5705 = vpop.f32.mrb[0].mxu0
        %v5706 = vadd.f32 0.0, %v5705
        %v5707 = vpop.f32.mrb[0].mxu0
        %5708 = vdwg.mxu0
        %vm5709 = vcmp.lt.s32.totalorder %v2274, 12
        %vm5710 = vcmp.lt.s32.totalorder %v2275, 12
        %v5711 = vsel %vm5709, 1, 0
        %v5712 = vsel %vm5710, 1, 0
        %vm5713 = vcmp.eq.s32.totalorder %v5711, 1
        %vm5714 = vcmp.eq.s32.totalorder %v5712, 1
        %v5715 = vsel %vm5713, %v5534, -1e+30
        %v5716 = vsel %vm5713, %v5536, -1e+30
        %v5717 = vsel %vm5713, %v5647, -1e+30
        %v5718 = vsel %vm5714, %v5538, -1e+30
        %v5719 = vsel %vm5714, %v5540, -1e+30
        %v5720 = vsel %vm5714, %v5650, -1e+30
        %v5721 = vsel %vm5713, %v5544, -1e+30
        %v5722 = vsel %vm5713, %v5546, -1e+30
        %v5723 = vsel %vm5713, %v5655, -1e+30
        %v5724 = vsel %vm5714, %v5548, -1e+30
        %v5725 = vsel %vm5714, %v5550, -1e+30
        %v5726 = vsel %vm5714, %v5658, -1e+30
        %v5727 = vsel %vm5713, %v5554, -1e+30
        %v5728 = vsel %vm5713, %v5556, -1e+30
        %v5729 = vsel %vm5713, %v5663, -1e+30
        %v5730 = vsel %vm5714, %v5558, -1e+30
        %v5731 = vsel %vm5714, %v5560, -1e+30
        %v5732 = vsel %vm5714, %v5666, -1e+30
        %v5733 = vsel %vm5713, %v5564, -1e+30
        %v5734 = vsel %vm5713, %v5566, -1e+30
        %v5735 = vsel %vm5713, %v5671, -1e+30
        %v5736 = vsel %vm5714, %v5568, -1e+30
        %v5737 = vsel %vm5714, %v5570, -1e+30
        %v5738 = vsel %vm5714, %v5674, -1e+30
        %v5739 = vsel %vm5713, %v5574, -1e+30
        %v5740 = vsel %vm5713, %v5576, -1e+30
        %v5741 = vsel %vm5713, %v5679, -1e+30
        %v5742 = vsel %vm5714, %v5578, -1e+30
        %v5743 = vsel %vm5714, %v5580, -1e+30
        %v5744 = vsel %vm5714, %v5682, -1e+30
        %v5745 = vsel %vm5713, %v5584, -1e+30
        %v5746 = vsel %vm5713, %v5586, -1e+30
        %v5747 = vsel %vm5713, %v5687, -1e+30
        %v5748 = vsel %vm5714, %v5588, -1e+30
        %v5749 = vsel %vm5714, %v5590, -1e+30
        %v5750 = vsel %vm5714, %v5690, -1e+30
        %v5751 = vsel %vm5713, %v5594, -1e+30
        %v5752 = vsel %vm5713, %v5596, -1e+30
        %v5753 = vsel %vm5713, %v5695, -1e+30
        %v5754 = vsel %vm5714, %v5598, -1e+30
        %v5755 = vsel %vm5714, %v5600, -1e+30
        %v5756 = vsel %vm5714, %v5698, -1e+30
        %v5757 = vsel %vm5713, %v5604, -1e+30
        %v5758 = vsel %vm5713, %v5606, -1e+30
        %v5759 = vsel %vm5713, %v5703, -1e+30
        %v5760 = vsel %vm5714, %v5608, -1e+30
        %v5761 = vsel %vm5714, %v5610, -1e+30
        %v5762 = vsel %vm5714, %v5706, -1e+30
        %v5763 = vmax.f32 %v5715, %v5718
        %v5764 = vrot.slane %v5763, 4
        %v5765 = vmax.f32 %v5763, %v5764
        %v5766 = vrot.slane %v5765, 2
        %v5767 = vmax.f32 %v5765, %v5766
        %v5768 = vrot.slane %v5767, 1
        %v5769 = vmax.f32 %v5767, %v5768
        %v5770 = vmax.f32 %v5716, %v5719
        %v5771 = vrot.slane %v5770, 4
        %v5772 = vmax.f32 %v5770, %v5771
        %v5773 = vrot.slane %v5772, 2
        %v5774 = vmax.f32 %v5772, %v5773
        %v5775 = vrot.slane %v5774, 1
        %v5776 = vmax.f32 %v5774, %v5775
        %v5777 = vmax.f32 %v5717, %v5720
        %v5778 = vrot.slane %v5777, 4
        %v5779 = vmax.f32 %v5777, %v5778
        %v5780 = vrot.slane %v5779, 2
        %v5781 = vmax.f32 %v5779, %v5780
        %v5782 = vrot.slane %v5781, 1
        %v5783 = vmax.f32 %v5781, %v5782
        %v5784 = vmax.f32 %v5721, %v5724
        %v5785 = vrot.slane %v5784, 4
        %v5786 = vmax.f32 %v5784, %v5785
        %v5787 = vrot.slane %v5786, 2
        %v5788 = vmax.f32 %v5786, %v5787
        %v5789 = vrot.slane %v5788, 1
        %v5790 = vmax.f32 %v5788, %v5789
        %v5791 = vmax.f32 %v5722, %v5725
        %v5792 = vrot.slane %v5791, 4
        %v5793 = vmax.f32 %v5791, %v5792
        %v5794 = vrot.slane %v5793, 2
        %v5795 = vmax.f32 %v5793, %v5794
        %v5796 = vrot.slane %v5795, 1
        %v5797 = vmax.f32 %v5795, %v5796
        %v5798 = vmax.f32 %v5723, %v5726
        %v5799 = vrot.slane %v5798, 4
        %v5800 = vmax.f32 %v5798, %v5799
        %v5801 = vrot.slane %v5800, 2
        %v5802 = vmax.f32 %v5800, %v5801
        %v5803 = vrot.slane %v5802, 1
        %v5804 = vmax.f32 %v5802, %v5803
        %v5805 = vmax.f32 %v5727, %v5730
        %v5806 = vrot.slane %v5805, 4
        %v5807 = vmax.f32 %v5805, %v5806
        %v5808 = vrot.slane %v5807, 2
        %v5809 = vmax.f32 %v5807, %v5808
        %v5810 = vrot.slane %v5809, 1
        %v5811 = vmax.f32 %v5809, %v5810
        %v5812 = vmax.f32 %v5728, %v5731
        %v5813 = vrot.slane %v5812, 4
        %v5814 = vmax.f32 %v5812, %v5813
        %v5815 = vrot.slane %v5814, 2
        %v5816 = vmax.f32 %v5814, %v5815
        %v5817 = vrot.slane %v5816, 1
        %v5818 = vmax.f32 %v5816, %v5817
        %v5819 = vmax.f32 %v5729, %v5732
        %v5820 = vrot.slane %v5819, 4
        %v5821 = vmax.f32 %v5819, %v5820
        %v5822 = vrot.slane %v5821, 2
        %v5823 = vmax.f32 %v5821, %v5822
        %v5824 = vrot.slane %v5823, 1
        %v5825 = vmax.f32 %v5823, %v5824
        %v5826 = vmax.f32 %v5733, %v5736
        %v5827 = vrot.slane %v5826, 4
        %v5828 = vmax.f32 %v5826, %v5827
        %v5829 = vrot.slane %v5828, 2
        %v5830 = vmax.f32 %v5828, %v5829
        %v5831 = vrot.slane %v5830, 1
        %v5832 = vmax.f32 %v5830, %v5831
        %v5833 = vmax.f32 %v5734, %v5737
        %v5834 = vrot.slane %v5833, 4
        %v5835 = vmax.f32 %v5833, %v5834
        %v5836 = vrot.slane %v5835, 2
        %v5837 = vmax.f32 %v5835, %v5836
        %v5838 = vrot.slane %v5837, 1
        %v5839 = vmax.f32 %v5837, %v5838
        %v5840 = vmax.f32 %v5735, %v5738
        %v5841 = vrot.slane %v5840, 4
        %v5842 = vmax.f32 %v5840, %v5841
        %v5843 = vrot.slane %v5842, 2
        %v5844 = vmax.f32 %v5842, %v5843
        %v5845 = vrot.slane %v5844, 1
        %v5846 = vmax.f32 %v5844, %v5845
        %v5847 = vmax.f32 %v5739, %v5742
        %v5848 = vrot.slane %v5847, 4
        %v5849 = vmax.f32 %v5847, %v5848
        %v5850 = vrot.slane %v5849, 2
        %v5851 = vmax.f32 %v5849, %v5850
        %v5852 = vrot.slane %v5851, 1
        %v5853 = vmax.f32 %v5851, %v5852
        %v5854 = vmax.f32 %v5740, %v5743
        %v5855 = vrot.slane %v5854, 4
        %v5856 = vmax.f32 %v5854, %v5855
        %v5857 = vrot.slane %v5856, 2
        %v5858 = vmax.f32 %v5856, %v5857
        %v5859 = vrot.slane %v5858, 1
        %v5860 = vmax.f32 %v5858, %v5859
        %v5861 = vmax.f32 %v5741, %v5744
        %v5862 = vrot.slane %v5861, 4
        %v5863 = vmax.f32 %v5861, %v5862
        %v5864 = vrot.slane %v5863, 2
        %v5865 = vmax.f32 %v5863, %v5864
        %v5866 = vrot.slane %v5865, 1
        %v5867 = vmax.f32 %v5865, %v5866
        %v5868 = vmax.f32 %v5745, %v5748
        %v5869 = vrot.slane %v5868, 4
        %v5870 = vmax.f32 %v5868, %v5869
        %v5871 = vrot.slane %v5870, 2
        %v5872 = vmax.f32 %v5870, %v5871
        %v5873 = vrot.slane %v5872, 1
        %v5874 = vmax.f32 %v5872, %v5873
        %v5875 = vmax.f32 %v5746, %v5749
        %v5876 = vrot.slane %v5875, 4
        %v5877 = vmax.f32 %v5875, %v5876
        %v5878 = vrot.slane %v5877, 2
        %v5879 = vmax.f32 %v5877, %v5878
        %v5880 = vrot.slane %v5879, 1
        %v5881 = vmax.f32 %v5879, %v5880
        %v5882 = vmax.f32 %v5747, %v5750
        %v5883 = vrot.slane %v5882, 4
        %v5884 = vmax.f32 %v5882, %v5883
        %v5885 = vrot.slane %v5884, 2
        %v5886 = vmax.f32 %v5884, %v5885
        %v5887 = vrot.slane %v5886, 1
        %v5888 = vmax.f32 %v5886, %v5887
        %v5889 = vmax.f32 %v5751, %v5754
        %v5890 = vrot.slane %v5889, 4
        %v5891 = vmax.f32 %v5889, %v5890
        %v5892 = vrot.slane %v5891, 2
        %v5893 = vmax.f32 %v5891, %v5892
        %v5894 = vrot.slane %v5893, 1
        %v5895 = vmax.f32 %v5893, %v5894
        %v5896 = vmax.f32 %v5752, %v5755
        %v5897 = vrot.slane %v5896, 4
        %v5898 = vmax.f32 %v5896, %v5897
        %v5899 = vrot.slane %v5898, 2
        %v5900 = vmax.f32 %v5898, %v5899
        %v5901 = vrot.slane %v5900, 1
        %v5902 = vmax.f32 %v5900, %v5901
        %v5903 = vmax.f32 %v5753, %v5756
        %v5904 = vrot.slane %v5903, 4
        %v5905 = vmax.f32 %v5903, %v5904
        %v5906 = vrot.slane %v5905, 2
        %v5907 = vmax.f32 %v5905, %v5906
        %v5908 = vrot.slane %v5907, 1
        %v5909 = vmax.f32 %v5907, %v5908
        %v5910 = vmax.f32 %v5757, %v5760
        %v5911 = vrot.slane %v5910, 4
        %v5912 = vmax.f32 %v5910, %v5911
        %v5913 = vrot.slane %v5912, 2
        %v5914 = vmax.f32 %v5912, %v5913
        %v5915 = vrot.slane %v5914, 1
        %v5916 = vmax.f32 %v5914, %v5915
        %v5917 = vmax.f32 %v5758, %v5761
        %v5918 = vrot.slane %v5917, 4
        %v5919 = vmax.f32 %v5917, %v5918
        %v5920 = vrot.slane %v5919, 2
        %v5921 = vmax.f32 %v5919, %v5920
        %v5922 = vrot.slane %v5921, 1
        %v5923 = vmax.f32 %v5921, %v5922
        %v5924 = vmax.f32 %v5759, %v5762
        %v5925 = vrot.slane %v5924, 4
        %v5926 = vmax.f32 %v5924, %v5925
        %v5927 = vrot.slane %v5926, 2
        %v5928 = vmax.f32 %v5926, %v5927
        %v5929 = vrot.slane %v5928, 1
        %v5930 = vmax.f32 %v5928, %v5929
        %s5931 = scalar_lea.vmem [#allocation2], 27
        %v5932 = vld [vmem:[%s5931] ss:$8 sm:$0x7]
        %v5934 = vlaneseq
        %v5935 = vshrl.u32 %v5934, 7
        %v5936 = vsub.s32 0, %v5935
        %v5937 = vrot.slane %v5932, %v5936
        %v5938 = vlaneseq
        %v5939 = vshrl.u32 %v5938, 7
        %v5940 = vsub.s32 1, %v5939
        %v5941 = vrot.slane %v5932, %v5940
        %v5942 = vlaneseq
        %v5943 = vshrl.u32 %v5942, 7
        %v5944 = vsub.s32 2, %v5943
        %v5945 = vrot.slane %v5932, %v5944
        %v5949 = vadd.f32 %v5769, %v5937
        %v5950 = vadd.f32 %v5776, %v5941
        %v5951 = vadd.f32 %v5783, %v5945
        %v5952 = vadd.f32 %v5790, %v5937
        %v5953 = vadd.f32 %v5797, %v5941
        %v5954 = vadd.f32 %v5804, %v5945
        %v5955 = vadd.f32 %v5811, %v5937
        %v5956 = vadd.f32 %v5818, %v5941
        %v5957 = vadd.f32 %v5825, %v5945
        %v5958 = vadd.f32 %v5832, %v5937
        %v5959 = vadd.f32 %v5839, %v5941
        %v5960 = vadd.f32 %v5846, %v5945
        %v5961 = vadd.f32 %v5853, %v5937
        %v5962 = vadd.f32 %v5860, %v5941
        %v5963 = vadd.f32 %v5867, %v5945
        %v5964 = vadd.f32 %v5874, %v5937
        %v5965 = vadd.f32 %v5881, %v5941
        %v5966 = vadd.f32 %v5888, %v5945
        %v5967 = vadd.f32 %v5895, %v5937
        %v5968 = vadd.f32 %v5902, %v5941
        %v5969 = vadd.f32 %v5909, %v5945
        %v5970 = vadd.f32 %v5916, %v5937
        %v5971 = vadd.f32 %v5923, %v5941
        %v5972 = vadd.f32 %v5930, %v5945
        %v5973 = vmul.f32 %v5949, %v1426
        %v5974 = vmul.f32 %v5950, %v1428
        %v5975 = vmul.f32 %v5951, %v1467
        %v5976 = vmul.f32 %v5952, %v2809
        %v5977 = vmul.f32 %v5953, %v2810
        %v5978 = vmul.f32 %v5954, %v2811
        %v5979 = vmul.f32 %v5955, %v2812
        %v5980 = vmul.f32 %v5956, %v2813
        %v5981 = vmul.f32 %v5957, %v2814
        %v5982 = vmul.f32 %v5958, %v2815
        %v5983 = vmul.f32 %v5959, %v2816
        %v5984 = vmul.f32 %v5960, %v2817
        %v5985 = vmul.f32 %v5961, %v2818
        %v5986 = vmul.f32 %v5962, %v2819
        %v5987 = vmul.f32 %v5963, %v2820
        %v5988 = vmul.f32 %v5964, %v2821
        %v5989 = vmul.f32 %v5965, %v2822
        %v5990 = vmul.f32 %v5966, %v2823
        %v5991 = vmul.f32 %v5967, %v2824
        %v5992 = vmul.f32 %v5968, %v2825
        %v5993 = vmul.f32 %v5969, %v2826
        %v5994 = vmul.f32 %v5970, %v2827
        %v5995 = vmul.f32 %v5971, %v2828
        %v5996 = vmul.f32 %v5972, %v2829
        %v5997 = vpack.c.bf16 %v5973, %v5973
        %v5998 = vpack.c.bf16 %v5974, %v5974
        %v5999 = vpack.c.bf16 %v5975, %v5975
        %v6000 = vpack.c.bf16 %v5976, %v5976
        %v6001 = vpack.c.bf16 %v5977, %v5977
        %v6002 = vpack.c.bf16 %v5978, %v5978
        %v6003 = vpack.c.bf16 %v5979, %v5979
        %v6004 = vpack.c.bf16 %v5980, %v5980
        %v6005 = vpack.c.bf16 %v5981, %v5981
        %v6006 = vpack.c.bf16 %v5982, %v5982
        %v6007 = vpack.c.bf16 %v5983, %v5983
        %v6008 = vpack.c.bf16 %v5984, %v5984
        %v6009 = vpack.c.bf16 %v5985, %v5985
        %v6010 = vpack.c.bf16 %v5986, %v5986
        %v6011 = vpack.c.bf16 %v5987, %v5987
        %v6012 = vpack.c.bf16 %v5988, %v5988
        %v6013 = vpack.c.bf16 %v5989, %v5989
        %v6014 = vpack.c.bf16 %v5990, %v5990
        %v6015 = vpack.c.bf16 %v5991, %v5991
        %v6016 = vpack.c.bf16 %v5992, %v5992
        %v6017 = vpack.c.bf16 %v5993, %v5993
        %v6018 = vpack.c.bf16 %v5994, %v5994
        %v6019 = vpack.c.bf16 %v5995, %v5995
        %v6020 = vpack.c.bf16 %v5996, %v5996
        %v6021 = vld [vmem:[%s8 + $0x240] sm:$0xf]
        %v6022 = vld [vmem:[%s8 + $0x244] sm:$0xf]
        %v6023 = vld [vmem:[%s8 + $0x248] sm:$0xf]
        %v6024 = vld [vmem:[%s8 + $0x24c] sm:$0xf]
        %v6025 = vld [vmem:[%s8 + $0x250] sm:$0xf]
        %v6026 = vld [vmem:[%s8 + $0x254] sm:$0xf]
        %v6027 = vld [vmem:[%s8 + $0x258] sm:$0xf]
        %v6028 = vld [vmem:[%s8 + $0x25c] sm:$0xf]
        %v6029 = vld [vmem:[%s8 + $0x260] sm:$0xf]
        %v6030 = vld [vmem:[%s8 + $0x264] sm:$0xf]
        %v6031 = vld [vmem:[%s8 + $0x268] sm:$0xf]
        %v6032 = vld [vmem:[%s8 + $0x26c] sm:$0xf]
        %v6033 = vld [vmem:[%s8 + $0x270] sm:$0xf]
        %v6034 = vld [vmem:[%s8 + $0x274] sm:$0xf]
        %v6035 = vld [vmem:[%s8 + $0x278] sm:$0xf]
        %v6036 = vld [vmem:[%s8 + $0x27c] sm:$0xf]
        %v6037 = vld [vmem:[%s8 + $0x280] sm:$0xf]
        %v6038 = vld [vmem:[%s8 + $0x284] sm:$0xf]
        %v6039 = vld [vmem:[%s8 + $0x288] sm:$0xf]
        %v6040 = vld [vmem:[%s8 + $0x28c] sm:$0xf]
        %v6041 = vld [vmem:[%s8 + $0x290] sm:$0xf]
        %v6042 = vld [vmem:[%s8 + $0x294] sm:$0xf]
        %v6043 = vld [vmem:[%s8 + $0x298] sm:$0xf]
        %v6044 = vld [vmem:[%s8 + $0x29c] sm:$0xf]
        %v6045 = vld [vmem:[%s8 + $0x2a0] sm:$0xf]
        %v6046 = vld [vmem:[%s8 + $0x2a4] sm:$0xf]
        %v6047 = vld [vmem:[%s8 + $0x2a8] sm:$0xf]
        %v6048 = vld [vmem:[%s8 + $0x2ac] sm:$0xf]
        %v6049 = vld [vmem:[%s8 + $0x2b0] sm:$0xf]
        %v6050 = vld [vmem:[%s8 + $0x2b4] sm:$0xf]
        %v6051 = vld [vmem:[%s8 + $0x2b8] sm:$0xf]
        %v6052 = vld [vmem:[%s8 + $0x2bc] sm:$0xf]
        %v6053 = vld [vmem:[%s8 + $0x2c0] sm:$0xf]
        %v6054 = vld [vmem:[%s8 + $0x2c4] sm:$0xf]
        %v6055 = vld [vmem:[%s8 + $0x2c8] sm:$0xf]
        %v6056 = vld [vmem:[%s8 + $0x2cc] sm:$0xf]
        %v6057 = vld [vmem:[%s8 + $0x2d0] sm:$0xf]
        %v6058 = vld [vmem:[%s8 + $0x2d4] sm:$0xf]
        %v6059 = vld [vmem:[%s8 + $0x2d8] sm:$0xf]
        %v6060 = vld [vmem:[%s8 + $0x2dc] sm:$0xf]
        %v6061 = vld [vmem:[%s8 + $0x2e0] sm:$0xf]
        %v6062 = vld [vmem:[%s8 + $0x2e4] sm:$0xf]
        %v6063 = vld [vmem:[%s8 + $0x2e8] sm:$0xf]
        %v6064 = vld [vmem:[%s8 + $0x2ec] sm:$0xf]
        %v6065 = vld [vmem:[%s8 + $0x2f0] sm:$0xf]
        %v6066 = vld [vmem:[%s8 + $0x2f4] sm:$0xf]
        %v6067 = vld [vmem:[%s8 + $0x2f8] sm:$0xf]
        %v6068 = vld [vmem:[%s8 + $0x2fc] sm:$0xf]
        %v6093 = vunpack.c.l.b16 %v5997
        %v6094 = vunpack.c.l.b16 %v5998
        %v6095 = vunpack.c.l.b16 %v5999
        %v6096 = vunpack.c.l.b16 %v6000
        %v6097 = vunpack.c.l.b16 %v6001
        %v6098 = vunpack.c.l.b16 %v6002
        %v6099 = vunpack.c.l.b16 %v6003
        %v6100 = vunpack.c.l.b16 %v6004
        %v6101 = vunpack.c.l.b16 %v6005
        %v6102 = vunpack.c.l.b16 %v6006
        %v6103 = vunpack.c.l.b16 %v6007
        %v6104 = vunpack.c.l.b16 %v6008
        %v6105 = vunpack.c.l.b16 %v6009
        %v6106 = vunpack.c.l.b16 %v6010
        %v6107 = vunpack.c.l.b16 %v6011
        %v6108 = vunpack.c.l.b16 %v6012
        %v6109 = vunpack.c.l.b16 %v6013
        %v6110 = vunpack.c.l.b16 %v6014
        %v6111 = vunpack.c.l.b16 %v6015
        %v6112 = vunpack.c.l.b16 %v6016
        %v6113 = vunpack.c.l.b16 %v6017
        %v6114 = vunpack.c.l.b16 %v6018
        %v6115 = vunpack.c.l.b16 %v6019
        %v6116 = vunpack.c.l.b16 %v6020
        %v6117 = vrot.slane %v6096, 7
        %v6118 = vsel %vm825, %v6117, %v6093
        %v6119 = vrot.slane %v6099, 6
        %v6120 = vsel %vm827, %v6119, %v6118
        %v6121 = vrot.slane %v6102, 5
        %v6122 = vsel %vm829, %v6121, %v6120
        %v6123 = vrot.slane %v6105, 4
        %v6124 = vsel %vm831, %v6123, %v6122
        %v6125 = vrot.slane %v6108, 3
        %v6126 = vsel %vm833, %v6125, %v6124
        %v6127 = vrot.slane %v6111, 2
        %v6128 = vsel %vm835, %v6127, %v6126
        %v6129 = vrot.slane %v6114, 1
        %v6130 = vsel %vm837, %v6129, %v6128
        %v6131 = vrot.slane %v6097, 7
        %v6132 = vsel %vm825, %v6131, %v6094
        %v6133 = vrot.slane %v6100, 6
        %v6134 = vsel %vm827, %v6133, %v6132
        %v6135 = vrot.slane %v6103, 5
        %v6136 = vsel %vm829, %v6135, %v6134
        %v6137 = vrot.slane %v6106, 4
        %v6138 = vsel %vm831, %v6137, %v6136
        %v6139 = vrot.slane %v6109, 3
        %v6140 = vsel %vm833, %v6139, %v6138
        %v6141 = vrot.slane %v6112, 2
        %v6142 = vsel %vm835, %v6141, %v6140
        %v6143 = vrot.slane %v6115, 1
        %v6144 = vsel %vm837, %v6143, %v6142
        %v6145 = vrot.slane %v6098, 7
        %v6146 = vsel %vm825, %v6145, %v6095
        %v6147 = vrot.slane %v6101, 6
        %v6148 = vsel %vm827, %v6147, %v6146
        %v6149 = vrot.slane %v6104, 5
        %v6150 = vsel %vm829, %v6149, %v6148
        %v6151 = vrot.slane %v6107, 4
        %v6152 = vsel %vm831, %v6151, %v6150
        %v6153 = vrot.slane %v6110, 3
        %v6154 = vsel %vm833, %v6153, %v6152
        %v6155 = vrot.slane %v6113, 2
        %v6156 = vsel %vm835, %v6155, %v6154
        %v6157 = vrot.slane %v6116, 1
        %v6158 = vsel %vm837, %v6157, %v6156
        %v6159 = vpack.c.b16 %v6130, %v6130
        %v6160 = vpack.c.b16 %v6144, %v6144
        %v6161 = vpack.c.b16 %v6158, %v6158
        %v6213 = vunpack.c.l.b16 %v6021
        %v6214 = vunpack.c.l.b16 %v6022
        %v6215 = vunpack.c.l.b16 %v6023
        %v6216 = vunpack.c.l.b16 %v6024
        %v6217 = vunpack.c.l.b16 %v6025
        %v6218 = vunpack.c.l.b16 %v6026
        %v6219 = vunpack.c.l.b16 %v6027
        %v6220 = vunpack.c.l.b16 %v6028
        %v6221 = vunpack.c.l.b16 %v6029
        %v6222 = vunpack.c.l.b16 %v6030
        %v6223 = vunpack.c.l.b16 %v6031
        %v6224 = vunpack.c.l.b16 %v6032
        %v6225 = vunpack.c.l.b16 %v6033
        %v6226 = vunpack.c.l.b16 %v6034
        %v6227 = vunpack.c.l.b16 %v6035
        %v6228 = vunpack.c.l.b16 %v6036
        %v6229 = vunpack.c.l.b16 %v6037
        %v6230 = vunpack.c.l.b16 %v6038
        %v6231 = vunpack.c.l.b16 %v6039
        %v6232 = vunpack.c.l.b16 %v6040
        %v6233 = vunpack.c.l.b16 %v6041
        %v6234 = vunpack.c.l.b16 %v6042
        %v6235 = vunpack.c.l.b16 %v6043
        %v6236 = vunpack.c.l.b16 %v6044
        %v6237 = vunpack.c.l.b16 %v6045
        %v6238 = vunpack.c.l.b16 %v6046
        %v6239 = vunpack.c.l.b16 %v6047
        %v6240 = vunpack.c.l.b16 %v6048
        %v6241 = vunpack.c.l.b16 %v6049
        %v6242 = vunpack.c.l.b16 %v6050
        %v6243 = vunpack.c.l.b16 %v6051
        %v6244 = vunpack.c.l.b16 %v6052
        %v6245 = vunpack.c.l.b16 %v6053
        %v6246 = vunpack.c.l.b16 %v6054
        %v6247 = vunpack.c.l.b16 %v6055
        %v6248 = vunpack.c.l.b16 %v6056
        %v6249 = vunpack.c.l.b16 %v6057
        %v6250 = vunpack.c.l.b16 %v6058
        %v6251 = vunpack.c.l.b16 %v6059
        %v6252 = vunpack.c.l.b16 %v6060
        %v6253 = vunpack.c.l.b16 %v6061
        %v6254 = vunpack.c.l.b16 %v6062
        %v6255 = vunpack.c.l.b16 %v6063
        %v6256 = vunpack.c.l.b16 %v6064
        %v6257 = vunpack.c.l.b16 %v6065
        %v6258 = vunpack.c.l.b16 %v6066
        %v6259 = vunpack.c.l.b16 %v6067
        %v6260 = vunpack.c.l.b16 %v6068
        %v6261 = vpack.c.b16 %v6214, %v6213
        %v6262 = vpack.c.b16 %v6216, %v6215
        %v6263 = vpack.c.b16 %v6218, %v6217
        %v6264 = vpack.c.b16 %v6220, %v6219
        %v6265 = vpack.c.b16 %v6222, %v6221
        %v6266 = vpack.c.b16 %v6224, %v6223
        %v6267 = vpack.c.b16 %v6226, %v6225
        %v6268 = vpack.c.b16 %v6228, %v6227
        %v6269 = vpack.c.b16 %v6230, %v6229
        %v6270 = vpack.c.b16 %v6232, %v6231
        %v6271 = vpack.c.b16 %v6234, %v6233
        %v6272 = vpack.c.b16 %v6236, %v6235
        %v6273 = vpack.c.b16 %v6238, %v6237
        %v6274 = vpack.c.b16 %v6240, %v6239
        %v6275 = vpack.c.b16 %v6242, %v6241
        %v6276 = vpack.c.b16 %v6244, %v6243
        %v6277 = vpack.c.b16 %v6246, %v6245
        %v6278 = vpack.c.b16 %v6248, %v6247
        %v6279 = vpack.c.b16 %v6250, %v6249
        %v6280 = vpack.c.b16 %v6252, %v6251
        %v6281 = vpack.c.b16 %v6254, %v6253
        %v6282 = vpack.c.b16 %v6256, %v6255
        %v6283 = vpack.c.b16 %v6258, %v6257
        %v6284 = vpack.c.b16 %v6260, %v6259
        %6309 = vmatprep.subr.bf16.mxu0 0
        %6310 = vmatpush1.bf16.msra.mxu0 %v6261
        %6311 = vmatprep.subr.bf16.mxu0 0
        %6312 = vmatpush1.bf16.msra.mxu0 %v6262
        %6313 = vmatprep.subr.bf16.mxu0 0
        %6314 = vmatpush1.bf16.msra.mxu0 %v6263
        %6315 = vmatprep.subr.bf16.mxu0 0
        %6316 = vmatpush1.bf16.msra.mxu0 %v6264
        %6317 = vmatprep.subr.bf16.mxu0 0
        %6318 = vmatpush1.bf16.msra.mxu0 %v6265
        %6319 = vmatprep.subr.bf16.mxu0 0
        %6320 = vmatpush1.bf16.msra.mxu0 %v6266
        %6321 = vmatprep.subr.bf16.mxu0 0
        %6322 = vmatpush1.bf16.msra.mxu0 %v6267
        %6323 = vmatprep.subr.bf16.mxu0 0
        %6324 = vmatpush1.bf16.msra.mxu0 %v6268
        %6325 = vmatprep.subr.bf16.mxu0 0
        %6326 = vmatpush1.bf16.msra.mxu0 %v6269
        %6327 = vmatprep.subr.bf16.mxu0 0
        %6328 = vmatpush1.bf16.msra.mxu0 %v6270
        %6329 = vmatprep.subr.bf16.mxu0 0
        %6330 = vmatpush1.bf16.msra.mxu0 %v6271
        %6331 = vmatprep.subr.bf16.mxu0 0
        %6332 = vmatpush1.bf16.msra.mxu0 %v6272
        %6333 = vmatprep.subr.bf16.mxu0 0
        %6334 = vmatpush1.bf16.msra.mxu0 %v6273
        %6335 = vmatprep.subr.bf16.mxu0 0
        %6336 = vmatpush1.bf16.msra.mxu0 %v6274
        %6337 = vmatprep.subr.bf16.mxu0 0
        %6338 = vmatpush1.bf16.msra.mxu0 %v6275
        %6339 = vmatprep.subr.bf16.mxu0 0
        %6340 = vmatpush1.bf16.msra.mxu0 %v6276
        %6341 = vmatprep.mubr.bf16.mxu0 %v6160
        %6342 = vmatmul.mubr.bf16.gmra.mrb[0].mxu0 %v6159
        %v6343 = vpop.f32.mrb[0].mxu0
        %v6344 = vadd.f32 0.0, %v6343
        %v6345 = vpop.f32.mrb[0].mxu0
        %v6346 = vpop.f32.mrb[0].mxu0
        %v6347 = vpop.f32.mrb[0].mxu0
        %6348 = vdwg.mxu0
        %6349 = vmatprep.subr.bf16.mxu0 0
        %6350 = vmatpush1.bf16.msra.mxu0 %v6277
        %6351 = vmatprep.subr.bf16.mxu0 0
        %6352 = vmatpush1.bf16.msra.mxu0 %v6278
        %6353 = vmatprep.subr.bf16.mxu0 0
        %6354 = vmatpush1.bf16.msra.mxu0 %v6279
        %6355 = vmatprep.subr.bf16.mxu0 0
        %6356 = vmatpush1.bf16.msra.mxu0 %v6280
        %6357 = vmatprep.subr.bf16.mxu0 0
        %6358 = vmatpush1.bf16.msra.mxu0 %v6281
        %6359 = vmatprep.subr.bf16.mxu0 0
        %6360 = vmatpush1.bf16.msra.mxu0 %v6282
        %6361 = vmatprep.subr.bf16.mxu0 0
        %6362 = vmatpush1.bf16.msra.mxu0 %v6283
        %6363 = vmatprep.subr.bf16.mxu0 0
        %6364 = vmatpush1.bf16.msra.mxu0 %v6284
        %6365 = vmatprep.subr.bf16.mxu0 0
        %6366 = vmatpush1.bf16.msra.mxu0 0
        %6367 = vmatprep.subr.bf16.mxu0 0
        %6368 = vmatpush1.bf16.msra.mxu0 0
        %6369 = vmatprep.subr.bf16.mxu0 0
        %6370 = vmatpush1.bf16.msra.mxu0 0
        %6371 = vmatprep.subr.bf16.mxu0 0
        %6372 = vmatpush1.bf16.msra.mxu0 0
        %6373 = vmatprep.subr.bf16.mxu0 0
        %6374 = vmatpush1.bf16.msra.mxu0 0
        %6375 = vmatprep.subr.bf16.mxu0 0
        %6376 = vmatpush1.bf16.msra.mxu0 0
        %6377 = vmatprep.subr.bf16.mxu0 0
        %6378 = vmatpush1.bf16.msra.mxu0 0
        %6379 = vmatprep.subr.bf16.mxu0 0
        %6380 = vmatpush1.bf16.msra.mxu0 0
        %6381 = vmatprep.mubr.bf16.mxu0 0
        %6382 = vmatmul.mubr.bf16.gmra.mrb[0].mxu0 %v6161
        %v6383 = vpop.f32.mrb[0].mxu0
        %v6384 = vadd.f32 %v6344, %v6383
        %v6385 = vpop.f32.mrb[0].mxu0
        %v6386 = vpop.f32.mrb[0].mxu0
        %v6387 = vpop.f32.mrb[0].mxu0
        %6388 = vdwg.mxu0
        %v6389 = vadd.f32 %v5282, %v6384
        %v6390 = vld [vmem:[%s6 + $0x210] sm:$0xff]
        %v6391 = vld [vmem:[%s6 + $0x218] sm:$0xf]
        %v6392 = vld [vmem:[%s6 + $0x21c] sm:$0xff]
        %v6393 = vld [vmem:[%s6 + $0x224] sm:$0xf]
        %v6394 = vld [vmem:[%s6 + $0x228] sm:$0xff]
        %v6395 = vld [vmem:[%s6 + $0x230] sm:$0xf]
        %v6396 = vld [vmem:[%s6 + $0x234] sm:$0xff]
        %v6397 = vld [vmem:[%s6 + $0x23c] sm:$0xf]
        %v6398 = vld [vmem:[%s6 + $0x240] sm:$0xff]
        %v6399 = vld [vmem:[%s6 + $0x248] sm:$0xf]
        %v6400 = vld [vmem:[%s6 + $0x24c] sm:$0xff]
        %v6401 = vld [vmem:[%s6 + $0x254] sm:$0xf]
        %v6402 = vld [vmem:[%s6 + $0x258] sm:$0xff]
        %v6403 = vld [vmem:[%s6 + $0x260] sm:$0xf]
        %v6404 = vld [vmem:[%s6 + $0x264] sm:$0xff]
        %v6405 = vld [vmem:[%s6 + $0x26c] sm:$0xf]
        %v6406 = vld [vmem:[%s6 + $0x270] sm:$0xff]
        %v6407 = vld [vmem:[%s6 + $0x278] sm:$0xf]
        %v6408 = vld [vmem:[%s6 + $0x27c] sm:$0xff]
        %v6409 = vld [vmem:[%s6 + $0x284] sm:$0xf]
        %v6410 = vld [vmem:[%s6 + $0x288] sm:$0xff]
        %v6411 = vld [vmem:[%s6 + $0x290] sm:$0xf]
        %v6412 = vld [vmem:[%s6 + $0x294] sm:$0xff]
        %v6413 = vld [vmem:[%s6 + $0x29c] sm:$0xf]
        %v6414 = vld [vmem:[%s6 + $0x2a0] sm:$0xff]
        %v6415 = vld [vmem:[%s6 + $0x2a8] sm:$0xf]
        %v6416 = vld [vmem:[%s6 + $0x2ac] sm:$0xff]
        %v6417 = vld [vmem:[%s6 + $0x2b4] sm:$0xf]
        %v6418 = vld [vmem:[%s6 + $0x2b8] sm:$0xff]
        %v6419 = vld [vmem:[%s6 + $0x2c0] sm:$0xf]
        %v6420 = vld [vmem:[%s6 + $0x2c4] sm:$0xff]
        %v6421 = vld [vmem:[%s6 + $0x2cc] sm:$0xf]
        %v6422 = vld [vmem:[%s6 + $0x2d0] sm:$0xff]
        %v6423 = vld [vmem:[%s6 + $0x2d8] sm:$0xf]
        %v6424 = vld [vmem:[%s6 + $0x2dc] sm:$0xff]
        %v6425 = vld [vmem:[%s6 + $0x2e4] sm:$0xf]
        %v6426 = vld [vmem:[%s6 + $0x2e8] sm:$0xff]
        %v6427 = vld [vmem:[%s6 + $0x2f0] sm:$0xf]
        %v6428 = vld [vmem:[%s6 + $0x2f4] sm:$0xff]
        %v6429 = vld [vmem:[%s6 + $0x2fc] sm:$0xf]
        %v6430 = vld [vmem:[%s6 + $0x300] sm:$0xff]
        %v6431 = vld [vmem:[%s6 + $0x308] sm:$0xf]
        %v6432 = vld [vmem:[%s6 + $0x30c] sm:$0xff]
        %v6433 = vld [vmem:[%s6 + $0x314] sm:$0xf]
        %v6434 = vld [vmem:[%s6 + $0x318] sm:$0xff]
        %v6435 = vld [vmem:[%s6 + $0x320] sm:$0xf]
        %v6436 = vld [vmem:[%s6 + $0x324] sm:$0xff]
        %v6437 = vld [vmem:[%s6 + $0x32c] sm:$0xf]
        %v6438 = vld [vmem:[%s6 + $0x330] sm:$0xff]
        %v6439 = vld [vmem:[%s6 + $0x338] sm:$0xf]
        %v6440 = vld [vmem:[%s6 + $0x33c] sm:$0xff]
        %v6441 = vld [vmem:[%s6 + $0x344] sm:$0xf]
        %v6442 = vld [vmem:[%s6 + $0x348] sm:$0xff]
        %v6443 = vld [vmem:[%s6 + $0x350] sm:$0xf]
        %v6444 = vld [vmem:[%s6 + $0x354] sm:$0xff]
        %v6445 = vld [vmem:[%s6 + $0x35c] sm:$0xf]
        %v6446 = vld [vmem:[%s6 + $0x360] sm:$0xff]
        %v6447 = vld [vmem:[%s6 + $0x368] sm:$0xf]
        %v6448 = vld [vmem:[%s6 + $0x36c] sm:$0xff]
        %v6449 = vld [vmem:[%s6 + $0x374] sm:$0xf]
        %v6450 = vld [vmem:[%s6 + $0x378] sm:$0xff]
        %v6451 = vld [vmem:[%s6 + $0x380] sm:$0xf]
        %v6452 = vld [vmem:[%s6 + $0x384] sm:$0xff]
        %v6453 = vld [vmem:[%s6 + $0x38c] sm:$0xf]
        %v6454 = vld [vmem:[%s6 + $0x390] sm:$0xff]
        %v6455 = vld [vmem:[%s6 + $0x398] sm:$0xf]
        %v6456 = vld [vmem:[%s6 + $0x39c] sm:$0xff]
        %v6457 = vld [vmem:[%s6 + $0x3a4] sm:$0xf]
        %v6458 = vld [vmem:[%s6 + $0x3a8] sm:$0xff]
        %v6459 = vld [vmem:[%s6 + $0x3b0] sm:$0xf]
        %v6460 = vld [vmem:[%s6 + $0x3b4] sm:$0xff]
        %v6461 = vld [vmem:[%s6 + $0x3bc] sm:$0xf]
        %v6462 = vld [vmem:[%s6 + $0x3c0] sm:$0xff]
        %v6463 = vld [vmem:[%s6 + $0x3c8] sm:$0xf]
        %v6464 = vld [vmem:[%s6 + $0x3cc] sm:$0xff]
        %v6465 = vld [vmem:[%s6 + $0x3d4] sm:$0xf]
        %v6466 = vld [vmem:[%s6 + $0x3d8] sm:$0xff]
        %v6467 = vld [vmem:[%s6 + $0x3e0] sm:$0xf]
        %v6468 = vld [vmem:[%s6 + $0x3e4] sm:$0xff]
        %v6469 = vld [vmem:[%s6 + $0x3ec] sm:$0xf]
        %v6550 = vunpack.c.l.b16 %v6390
        %v6551 = vunpack.c.h.b16 %v6390
        %v6552 = vunpack.c.l.b16 %v6391
        %v6553 = vunpack.c.l.b16 %v6392
        %v6554 = vunpack.c.h.b16 %v6392
        %v6555 = vunpack.c.l.b16 %v6393
        %v6556 = vunpack.c.l.b16 %v6394
        %v6557 = vunpack.c.h.b16 %v6394
        %v6558 = vunpack.c.l.b16 %v6395
        %v6559 = vunpack.c.l.b16 %v6396
        %v6560 = vunpack.c.h.b16 %v6396
        %v6561 = vunpack.c.l.b16 %v6397
        %v6562 = vunpack.c.l.b16 %v6398
        %v6563 = vunpack.c.h.b16 %v6398
        %v6564 = vunpack.c.l.b16 %v6399
        %v6565 = vunpack.c.l.b16 %v6400
        %v6566 = vunpack.c.h.b16 %v6400
        %v6567 = vunpack.c.l.b16 %v6401
        %v6568 = vunpack.c.l.b16 %v6402
        %v6569 = vunpack.c.h.b16 %v6402
        %v6570 = vunpack.c.l.b16 %v6403
        %v6571 = vunpack.c.l.b16 %v6404
        %v6572 = vunpack.c.h.b16 %v6404
        %v6573 = vunpack.c.l.b16 %v6405
        %v6574 = vunpack.c.l.b16 %v6406
        %v6575 = vunpack.c.h.b16 %v6406
        %v6576 = vunpack.c.l.b16 %v6407
        %v6577 = vunpack.c.l.b16 %v6408
        %v6578 = vunpack.c.h.b16 %v6408
        %v6579 = vunpack.c.l.b16 %v6409
        %v6580 = vunpack.c.l.b16 %v6410
        %v6581 = vunpack.c.h.b16 %v6410
        %v6582 = vunpack.c.l.b16 %v6411
        %v6583 = vunpack.c.l.b16 %v6412
        %v6584 = vunpack.c.h.b16 %v6412
        %v6585 = vunpack.c.l.b16 %v6413
        %v6586 = vunpack.c.l.b16 %v6414
        %v6587 = vunpack.c.h.b16 %v6414
        %v6588 = vunpack.c.l.b16 %v6415
        %v6589 = vunpack.c.l.b16 %v6416
        %v6590 = vunpack.c.h.b16 %v6416
        %v6591 = vunpack.c.l.b16 %v6417
        %v6592 = vunpack.c.l.b16 %v6418
        %v6593 = vunpack.c.h.b16 %v6418
        %v6594 = vunpack.c.l.b16 %v6419
        %v6595 = vunpack.c.l.b16 %v6420
        %v6596 = vunpack.c.h.b16 %v6420
        %v6597 = vunpack.c.l.b16 %v6421
        %v6598 = vunpack.c.l.b16 %v6422
        %v6599 = vunpack.c.h.b16 %v6422
        %v6600 = vunpack.c.l.b16 %v6423
        %v6601 = vunpack.c.l.b16 %v6424
        %v6602 = vunpack.c.h.b16 %v6424
        %v6603 = vunpack.c.l.b16 %v6425
        %v6604 = vunpack.c.l.b16 %v6426
        %v6605 = vunpack.c.h.b16 %v6426
        %v6606 = vunpack.c.l.b16 %v6427
        %v6607 = vunpack.c.l.b16 %v6428
        %v6608 = vunpack.c.h.b16 %v6428
        %v6609 = vunpack.c.l.b16 %v6429
        %v6610 = vunpack.c.l.b16 %v6430
        %v6611 = vunpack.c.h.b16 %v6430
        %v6612 = vunpack.c.l.b16 %v6431
        %v6613 = vunpack.c.l.b16 %v6432
        %v6614 = vunpack.c.h.b16 %v6432
        %v6615 = vunpack.c.l.b16 %v6433
        %v6616 = vunpack.c.l.b16 %v6434
        %v6617 = vunpack.c.h.b16 %v6434
        %v6618 = vunpack.c.l.b16 %v6435
        %v6619 = vunpack.c.l.b16 %v6436
        %v6620 = vunpack.c.h.b16 %v6436
        %v6621 = vunpack.c.l.b16 %v6437
        %v6622 = vunpack.c.l.b16 %v6438
        %v6623 = vunpack.c.h.b16 %v6438
        %v6624 = vunpack.c.l.b16 %v6439
        %v6625 = vunpack.c.l.b16 %v6440
        %v6626 = vunpack.c.h.b16 %v6440
        %v6627 = vunpack.c.l.b16 %v6441
        %v6628 = vunpack.c.l.b16 %v6442
        %v6629 = vunpack.c.h.b16 %v6442
        %v6630 = vunpack.c.l.b16 %v6443
        %v6631 = vunpack.c.l.b16 %v6444
        %v6632 = vunpack.c.h.b16 %v6444
        %v6633 = vunpack.c.l.b16 %v6445
        %v6634 = vunpack.c.l.b16 %v6446
        %v6635 = vunpack.c.h.b16 %v6446
        %v6636 = vunpack.c.l.b16 %v6447
        %v6637 = vunpack.c.l.b16 %v6448
        %v6638 = vunpack.c.h.b16 %v6448
        %v6639 = vunpack.c.l.b16 %v6449
        %v6640 = vunpack.c.l.b16 %v6450
        %v6641 = vunpack.c.h.b16 %v6450
        %v6642 = vunpack.c.l.b16 %v6451
        %v6643 = vunpack.c.l.b16 %v6452
        %v6644 = vunpack.c.h.b16 %v6452
        %v6645 = vunpack.c.l.b16 %v6453
        %v6646 = vunpack.c.l.b16 %v6454
        %v6647 = vunpack.c.h.b16 %v6454
        %v6648 = vunpack.c.l.b16 %v6455
        %v6649 = vunpack.c.l.b16 %v6456
        %v6650 = vunpack.c.h.b16 %v6456
        %v6651 = vunpack.c.l.b16 %v6457
        %v6652 = vunpack.c.l.b16 %v6458
        %v6653 = vunpack.c.h.b16 %v6458
        %v6654 = vunpack.c.l.b16 %v6459
        %v6655 = vunpack.c.l.b16 %v6460
        %v6656 = vunpack.c.h.b16 %v6460
        %v6657 = vunpack.c.l.b16 %v6461
        %v6658 = vunpack.c.l.b16 %v6462
        %v6659 = vunpack.c.h.b16 %v6462
        %v6660 = vunpack.c.l.b16 %v6463
        %v6661 = vunpack.c.l.b16 %v6464
        %v6662 = vunpack.c.h.b16 %v6464
        %v6663 = vunpack.c.l.b16 %v6465
        %v6664 = vunpack.c.l.b16 %v6466
        %v6665 = vunpack.c.h.b16 %v6466
        %v6666 = vunpack.c.l.b16 %v6467
        %v6667 = vunpack.c.l.b16 %v6468
        %v6668 = vunpack.c.h.b16 %v6468
        %v6669 = vunpack.c.l.b16 %v6469
        %v6670 = vpack.c.b16 %v6553, %v6550
        %v6671 = vpack.c.b16 %v6554, %v6551
        %v6672 = vpack.c.b16 %v6555, %v6552
        %v6673 = vpack.c.b16 %v6559, %v6556
        %v6674 = vpack.c.b16 %v6560, %v6557
        %v6675 = vpack.c.b16 %v6561, %v6558
        %v6676 = vpack.c.b16 %v6565, %v6562
        %v6677 = vpack.c.b16 %v6566, %v6563
        %v6678 = vpack.c.b16 %v6567, %v6564
        %v6679 = vpack.c.b16 %v6571, %v6568
        %v6680 = vpack.c.b16 %v6572, %v6569
        %v6681 = vpack.c.b16 %v6573, %v6570
        %v6682 = vpack.c.b16 %v6577, %v6574
        %v6683 = vpack.c.b16 %v6578, %v6575
        %v6684 = vpack.c.b16 %v6579, %v6576
        %v6685 = vpack.c.b16 %v6583, %v6580
        %v6686 = vpack.c.b16 %v6584, %v6581
        %v6687 = vpack.c.b16 %v6585, %v6582
        %v6688 = vpack.c.b16 %v6589, %v6586
        %v6689 = vpack.c.b16 %v6590, %v6587
        %v6690 = vpack.c.b16 %v6591, %v6588
        %v6691 = vpack.c.b16 %v6595, %v6592
        %v6692 = vpack.c.b16 %v6596, %v6593
        %v6693 = vpack.c.b16 %v6597, %v6594
        %v6694 = vpack.c.b16 %v6601, %v6598
        %v6695 = vpack.c.b16 %v6602, %v6599
        %v6696 = vpack.c.b16 %v6603, %v6600
        %v6697 = vpack.c.b16 %v6607, %v6604
        %v6698 = vpack.c.b16 %v6608, %v6605
        %v6699 = vpack.c.b16 %v6609, %v6606
        %v6700 = vpack.c.b16 %v6613, %v6610
        %v6701 = vpack.c.b16 %v6614, %v6611
        %v6702 = vpack.c.b16 %v6615, %v6612
        %v6703 = vpack.c.b16 %v6619, %v6616
        %v6704 = vpack.c.b16 %v6620, %v6617
        %v6705 = vpack.c.b16 %v6621, %v6618
        %v6706 = vpack.c.b16 %v6625, %v6622
        %v6707 = vpack.c.b16 %v6626, %v6623
        %v6708 = vpack.c.b16 %v6627, %v6624
        %v6709 = vpack.c.b16 %v6631, %v6628
        %v6710 = vpack.c.b16 %v6632, %v6629
        %v6711 = vpack.c.b16 %v6633, %v6630
        %v6712 = vpack.c.b16 %v6637, %v6634
        %v6713 = vpack.c.b16 %v6638, %v6635
        %v6714 = vpack.c.b16 %v6639, %v6636
        %v6715 = vpack.c.b16 %v6643, %v6640
        %v6716 = vpack.c.b16 %v6644, %v6641
        %v6717 = vpack.c.b16 %v6645, %v6642
        %v6718 = vpack.c.b16 %v6649, %v6646
        %v6719 = vpack.c.b16 %v6650, %v6647
        %v6720 = vpack.c.b16 %v6651, %v6648
        %v6721 = vpack.c.b16 %v6655, %v6652
        %v6722 = vpack.c.b16 %v6656, %v6653
        %v6723 = vpack.c.b16 %v6657, %v6654
        %v6724 = vpack.c.b16 %v6661, %v6658
        %v6725 = vpack.c.b16 %v6662, %v6659
        %v6726 = vpack.c.b16 %v6663, %v6660
        %v6727 = vpack.c.b16 %v6667, %v6664
        %v6728 = vpack.c.b16 %v6668, %v6665
        %v6729 = vpack.c.b16 %v6669, %v6666
        %v6790 = vsel %vm2151, %v2258, 0
        %v6792 = vsel %vm2151, %v2260, 0
        %v6794 = vsel %vm2151, %v2262, 0
        %v6796 = vsel %vm2151, %v2264, 0
        %v6798 = vsel %vm2151, %v2266, 0
        %v6800 = vsel %vm2151, %v2268, 0
        %v6802 = vsel %vm2151, %v2270, 0
        %v6804 = vsel %vm2151, %v2272, 0
        %6806 = vmatprep.subr.bf16.mxu0 %v6671
        %6807 = vmatpush1.bf16.msra.mxu0 %v6670
        %6808 = vmatprep.subr.bf16.mxu0 %v6674
        %6809 = vmatpush1.bf16.msra.mxu0 %v6673
        %6810 = vmatprep.subr.bf16.mxu0 %v6677
        %6811 = vmatpush1.bf16.msra.mxu0 %v6676
        %6812 = vmatprep.subr.bf16.mxu0 %v6680
        %6813 = vmatpush1.bf16.msra.mxu0 %v6679
        %6814 = vmatprep.subr.bf16.mxu0 %v6683
        %6815 = vmatpush1.bf16.msra.mxu0 %v6682
        %6816 = vmatprep.subr.bf16.mxu0 %v6686
        %6817 = vmatpush1.bf16.msra.mxu0 %v6685
        %6818 = vmatprep.subr.bf16.mxu0 %v6689
        %6819 = vmatpush1.bf16.msra.mxu0 %v6688
        %6820 = vmatprep.subr.bf16.mxu0 %v6692
        %6821 = vmatpush1.bf16.msra.mxu0 %v6691
        %6822 = vmatprep.subr.bf16.mxu0 %v6695
        %6823 = vmatpush1.bf16.msra.mxu0 %v6694
        %6824 = vmatprep.subr.bf16.mxu0 %v6698
        %6825 = vmatpush1.bf16.msra.mxu0 %v6697
        %6826 = vmatprep.subr.bf16.mxu0 %v6701
        %6827 = vmatpush1.bf16.msra.mxu0 %v6700
        %6828 = vmatprep.subr.bf16.mxu0 %v6704
        %6829 = vmatpush1.bf16.msra.mxu0 %v6703
        %6830 = vmatprep.subr.bf16.mxu0 %v6707
        %6831 = vmatpush1.bf16.msra.mxu0 %v6706
        %6832 = vmatprep.subr.bf16.mxu0 %v6710
        %6833 = vmatpush1.bf16.msra.mxu0 %v6709
        %6834 = vmatprep.subr.bf16.mxu0 %v6713
        %6835 = vmatpush1.bf16.msra.mxu0 %v6712
        %6836 = vmatprep.subr.bf16.mxu0 %v6716
        %6837 = vmatpush1.bf16.msra.mxu0 %v6715
        %6838 = vmatprep.mubr.bf16.mxu0 %v2234
        %6839 = vmatmul.mubr.bf16.gmra.mrb[0].mxu0 %v2170
        %v6840 = vpop.f32.mrb[0].mxu0
        %v6841 = vadd.f32 0.0, %v6840
        %v6842 = vpop.f32.mrb[0].mxu0
        %v6843 = vadd.f32 0.0, %v6842
        %v6844 = vpop.f32.mrb[0].mxu0
        %v6845 = vadd.f32 0.0, %v6844
        %v6846 = vpop.f32.mrb[0].mxu0
        %v6847 = vadd.f32 0.0, %v6846
        %6848 = vmatprep.mubr.bf16.mxu0 %v2237
        %6849 = vmatmul.mubr.bf16.gmra.mrb[0].mxu0 %v2173
        %v6850 = vpop.f32.mrb[0].mxu0
        %v6851 = vadd.f32 0.0, %v6850
        %v6852 = vpop.f32.mrb[0].mxu0
        %v6853 = vadd.f32 0.0, %v6852
        %v6854 = vpop.f32.mrb[0].mxu0
        %v6855 = vadd.f32 0.0, %v6854
        %v6856 = vpop.f32.mrb[0].mxu0
        %v6857 = vadd.f32 0.0, %v6856
        %6858 = vmatprep.mubr.bf16.mxu0 %v2240
        %6859 = vmatmul.mubr.bf16.gmra.mrb[0].mxu0 %v2176
        %v6860 = vpop.f32.mrb[0].mxu0
        %v6861 = vadd.f32 0.0, %v6860
        %v6862 = vpop.f32.mrb[0].mxu0
        %v6863 = vadd.f32 0.0, %v6862
        %v6864 = vpop.f32.mrb[0].mxu0
        %v6865 = vadd.f32 0.0, %v6864
        %v6866 = vpop.f32.mrb[0].mxu0
        %v6867 = vadd.f32 0.0, %v6866
        %6868 = vmatprep.mubr.bf16.mxu0 %v2243
        %6869 = vmatmul.mubr.bf16.gmra.mrb[0].mxu0 %v2179
        %v6870 = vpop.f32.mrb[0].mxu0
        %v6871 = vadd.f32 0.0, %v6870
        %v6872 = vpop.f32.mrb[0].mxu0
        %v6873 = vadd.f32 0.0, %v6872
        %v6874 = vpop.f32.mrb[0].mxu0
        %v6875 = vadd.f32 0.0, %v6874
        %v6876 = vpop.f32.mrb[0].mxu0
        %v6877 = vadd.f32 0.0, %v6876
        %6878 = vmatprep.mubr.bf16.mxu0 %v2246
        %6879 = vmatmul.mubr.bf16.gmra.mrb[0].mxu0 %v2182
        %v6880 = vpop.f32.mrb[0].mxu0
        %v6881 = vadd.f32 0.0, %v6880
        %v6882 = vpop.f32.mrb[0].mxu0
        %v6883 = vadd.f32 0.0, %v6882
        %v6884 = vpop.f32.mrb[0].mxu0
        %v6885 = vadd.f32 0.0, %v6884
        %v6886 = vpop.f32.mrb[0].mxu0
        %v6887 = vadd.f32 0.0, %v6886
        %6888 = vmatprep.mubr.bf16.mxu0 %v2249
        %6889 = vmatmul.mubr.bf16.gmra.mrb[0].mxu0 %v2185
        %v6890 = vpop.f32.mrb[0].mxu0
        %v6891 = vadd.f32 0.0, %v6890
        %v6892 = vpop.f32.mrb[0].mxu0
        %v6893 = vadd.f32 0.0, %v6892
        %v6894 = vpop.f32.mrb[0].mxu0
        %v6895 = vadd.f32 0.0, %v6894
        %v6896 = vpop.f32.mrb[0].mxu0
        %v6897 = vadd.f32 0.0, %v6896
        %6898 = vmatprep.mubr.bf16.mxu0 %v2252
        %6899 = vmatmul.mubr.bf16.gmra.mrb[0].mxu0 %v2188
        %v6900 = vpop.f32.mrb[0].mxu0
        %v6901 = vadd.f32 0.0, %v6900
        %v6902 = vpop.f32.mrb[0].mxu0
        %v6903 = vadd.f32 0.0, %v6902
        %v6904 = vpop.f32.mrb[0].mxu0
        %v6905 = vadd.f32 0.0, %v6904
        %v6906 = vpop.f32.mrb[0].mxu0
        %v6907 = vadd.f32 0.0, %v6906
        %6908 = vmatprep.mubr.bf16.mxu0 %v2255
        %6909 = vmatmul.mubr.bf16.gmra.mrb[0].mxu0 %v2191
        %v6910 = vpop.f32.mrb[0].mxu0
        %v6911 = vadd.f32 0.0, %v6910
        %v6912 = vpop.f32.mrb[0].mxu0
        %v6913 = vadd.f32 0.0, %v6912
        %v6914 = vpop.f32.mrb[0].mxu0
        %v6915 = vadd.f32 0.0, %v6914
        %v6916 = vpop.f32.mrb[0].mxu0
        %v6917 = vadd.f32 0.0, %v6916
        %6918 = vdwg.mxu0
        %6919 = vmatprep.subr.bf16.mxu0 %v6719
        %6920 = vmatpush1.bf16.msra.mxu0 %v6718
        %6921 = vmatprep.subr.bf16.mxu0 %v6722
        %6922 = vmatpush1.bf16.msra.mxu0 %v6721
        %6923 = vmatprep.subr.bf16.mxu0 %v6725
        %6924 = vmatpush1.bf16.msra.mxu0 %v6724
        %6925 = vmatprep.subr.bf16.mxu0 %v6728
        %6926 = vmatpush1.bf16.msra.mxu0 %v6727
        %6927 = vmatprep.subr.bf16.mxu0 0
        %6928 = vmatpush1.bf16.msra.mxu0 0
        %6929 = vmatprep.subr.bf16.mxu0 0
        %6930 = vmatpush1.bf16.msra.mxu0 0
        %6931 = vmatprep.subr.bf16.mxu0 0
        %6932 = vmatpush1.bf16.msra.mxu0 0
        %6933 = vmatprep.subr.bf16.mxu0 0
        %6934 = vmatpush1.bf16.msra.mxu0 0
        %6935 = vmatprep.subr.bf16.mxu0 0
        %6936 = vmatpush1.bf16.msra.mxu0 0
        %6937 = vmatprep.subr.bf16.mxu0 0
        %6938 = vmatpush1.bf16.msra.mxu0 0
        %6939 = vmatprep.subr.bf16.mxu0 0
        %6940 = vmatpush1.bf16.msra.mxu0 0
        %6941 = vmatprep.subr.bf16.mxu0 0
        %6942 = vmatpush1.bf16.msra.mxu0 0
        %6943 = vmatprep.subr.bf16.mxu0 0
        %6944 = vmatpush1.bf16.msra.mxu0 0
        %6945 = vmatprep.subr.bf16.mxu0 0
        %6946 = vmatpush1.bf16.msra.mxu0 0
        %6947 = vmatprep.subr.bf16.mxu0 0
        %6948 = vmatpush1.bf16.msra.mxu0 0
        %6949 = vmatprep.subr.bf16.mxu0 0
        %6950 = vmatpush1.bf16.msra.mxu0 0
        %6951 = vmatprep.mubr.bf16.mxu0 0
        %6952 = vmatmul.mubr.bf16.gmra.mrb[0].mxu0 %v6790
        %v6953 = vpop.f32.mrb[0].mxu0
        %v6954 = vadd.f32 %v6841, %v6953
        %v6955 = vpop.f32.mrb[0].mxu0
        %v6956 = vadd.f32 %v6843, %v6955
        %v6957 = vpop.f32.mrb[0].mxu0
        %v6958 = vadd.f32 %v6845, %v6957
        %v6959 = vpop.f32.mrb[0].mxu0
        %v6960 = vadd.f32 %v6847, %v6959
        %6961 = vmatprep.mubr.bf16.mxu0 0
        %6962 = vmatmul.mubr.bf16.gmra.mrb[0].mxu0 %v6792
        %v6963 = vpop.f32.mrb[0].mxu0
        %v6964 = vadd.f32 %v6851, %v6963
        %v6965 = vpop.f32.mrb[0].mxu0
        %v6966 = vadd.f32 %v6853, %v6965
        %v6967 = vpop.f32.mrb[0].mxu0
        %v6968 = vadd.f32 %v6855, %v6967
        %v6969 = vpop.f32.mrb[0].mxu0
        %v6970 = vadd.f32 %v6857, %v6969
        %6971 = vmatprep.mubr.bf16.mxu0 0
        %6972 = vmatmul.mubr.bf16.gmra.mrb[0].mxu0 %v6794
        %v6973 = vpop.f32.mrb[0].mxu0
        %v6974 = vadd.f32 %v6861, %v6973
        %v6975 = vpop.f32.mrb[0].mxu0
        %v6976 = vadd.f32 %v6863, %v6975
        %v6977 = vpop.f32.mrb[0].mxu0
        %v6978 = vadd.f32 %v6865, %v6977
        %v6979 = vpop.f32.mrb[0].mxu0
        %v6980 = vadd.f32 %v6867, %v6979
        %6981 = vmatprep.mubr.bf16.mxu0 0
        %6982 = vmatmul.mubr.bf16.gmra.mrb[0].mxu0 %v6796
        %v6983 = vpop.f32.mrb[0].mxu0
        %v6984 = vadd.f32 %v6871, %v6983
        %v6985 = vpop.f32.mrb[0].mxu0
        %v6986 = vadd.f32 %v6873, %v6985
        %v6987 = vpop.f32.mrb[0].mxu0
        %v6988 = vadd.f32 %v6875, %v6987
        %v6989 = vpop.f32.mrb[0].mxu0
        %v6990 = vadd.f32 %v6877, %v6989
        %6991 = vmatprep.mubr.bf16.mxu0 0
        %6992 = vmatmul.mubr.bf16.gmra.mrb[0].mxu0 %v6798
        %v6993 = vpop.f32.mrb[0].mxu0
        %v6994 = vadd.f32 %v6881, %v6993
        %v6995 = vpop.f32.mrb[0].mxu0
        %v6996 = vadd.f32 %v6883, %v6995
        %v6997 = vpop.f32.mrb[0].mxu0
        %v6998 = vadd.f32 %v6885, %v6997
        %v6999 = vpop.f32.mrb[0].mxu0
        %v7000 = vadd.f32 %v6887, %v6999
        %7001 = vmatprep.mubr.bf16.mxu0 0
        %7002 = vmatmul.mubr.bf16.gmra.mrb[0].mxu0 %v6800
        %v7003 = vpop.f32.mrb[0].mxu0
        %v7004 = vadd.f32 %v6891, %v7003
        %v7005 = vpop.f32.mrb[0].mxu0
        %v7006 = vadd.f32 %v6893, %v7005
        %v7007 = vpop.f32.mrb[0].mxu0
        %v7008 = vadd.f32 %v6895, %v7007
        %v7009 = vpop.f32.mrb[0].mxu0
        %v7010 = vadd.f32 %v6897, %v7009
        %7011 = vmatprep.mubr.bf16.mxu0 0
        %7012 = vmatmul.mubr.bf16.gmra.mrb[0].mxu0 %v6802
        %v7013 = vpop.f32.mrb[0].mxu0
        %v7014 = vadd.f32 %v6901, %v7013
        %v7015 = vpop.f32.mrb[0].mxu0
        %v7016 = vadd.f32 %v6903, %v7015
        %v7017 = vpop.f32.mrb[0].mxu0
        %v7018 = vadd.f32 %v6905, %v7017
        %v7019 = vpop.f32.mrb[0].mxu0
        %v7020 = vadd.f32 %v6907, %v7019
        %7021 = vmatprep.mubr.bf16.mxu0 0
        %7022 = vmatmul.mubr.bf16.gmra.mrb[0].mxu0 %v6804
        %v7023 = vpop.f32.mrb[0].mxu0
        %v7024 = vadd.f32 %v6911, %v7023
        %v7025 = vpop.f32.mrb[0].mxu0
        %v7026 = vadd.f32 %v6913, %v7025
        %v7027 = vpop.f32.mrb[0].mxu0
        %v7028 = vadd.f32 %v6915, %v7027
        %v7029 = vpop.f32.mrb[0].mxu0
        %v7030 = vadd.f32 %v6917, %v7029
        %7031 = vdwg.mxu0
        %7032 = vmatprep.subr.bf16.mxu0 0
        %7033 = vmatpush1.bf16.msra.mxu0 %v6672
        %7034 = vmatprep.subr.bf16.mxu0 0
        %7035 = vmatpush1.bf16.msra.mxu0 %v6675
        %7036 = vmatprep.subr.bf16.mxu0 0
        %7037 = vmatpush1.bf16.msra.mxu0 %v6678
        %7038 = vmatprep.subr.bf16.mxu0 0
        %7039 = vmatpush1.bf16.msra.mxu0 %v6681
        %7040 = vmatprep.subr.bf16.mxu0 0
        %7041 = vmatpush1.bf16.msra.mxu0 %v6684
        %7042 = vmatprep.subr.bf16.mxu0 0
        %7043 = vmatpush1.bf16.msra.mxu0 %v6687
        %7044 = vmatprep.subr.bf16.mxu0 0
        %7045 = vmatpush1.bf16.msra.mxu0 %v6690
        %7046 = vmatprep.subr.bf16.mxu0 0
        %7047 = vmatpush1.bf16.msra.mxu0 %v6693
        %7048 = vmatprep.subr.bf16.mxu0 0
        %7049 = vmatpush1.bf16.msra.mxu0 %v6696
        %7050 = vmatprep.subr.bf16.mxu0 0
        %7051 = vmatpush1.bf16.msra.mxu0 %v6699
        %7052 = vmatprep.subr.bf16.mxu0 0
        %7053 = vmatpush1.bf16.msra.mxu0 %v6702
        %7054 = vmatprep.subr.bf16.mxu0 0
        %7055 = vmatpush1.bf16.msra.mxu0 %v6705
        %7056 = vmatprep.subr.bf16.mxu0 0
        %7057 = vmatpush1.bf16.msra.mxu0 %v6708
        %7058 = vmatprep.subr.bf16.mxu0 0
        %7059 = vmatpush1.bf16.msra.mxu0 %v6711
        %7060 = vmatprep.subr.bf16.mxu0 0
        %7061 = vmatpush1.bf16.msra.mxu0 %v6714
        %7062 = vmatprep.subr.bf16.mxu0 0
        %7063 = vmatpush1.bf16.msra.mxu0 %v6717
        %7064 = vmatprep.mubr.bf16.mxu0 %v2234
        %7065 = vmatmul.mubr.bf16.gmra.mrb[0].mxu0 %v2170
        %v7066 = vpop.f32.mrb[0].mxu0
        %v7067 = vadd.f32 0.0, %v7066
        %v7068 = vpop.f32.mrb[0].mxu0
        %v7069 = vpop.f32.mrb[0].mxu0
        %v7070 = vadd.f32 0.0, %v7069
        %v7071 = vpop.f32.mrb[0].mxu0
        %7072 = vmatprep.mubr.bf16.mxu0 %v2237
        %7073 = vmatmul.mubr.bf16.gmra.mrb[0].mxu0 %v2173
        %v7074 = vpop.f32.mrb[0].mxu0
        %v7075 = vadd.f32 0.0, %v7074
        %v7076 = vpop.f32.mrb[0].mxu0
        %v7077 = vpop.f32.mrb[0].mxu0
        %v7078 = vadd.f32 0.0, %v7077
        %v7079 = vpop.f32.mrb[0].mxu0
        %7080 = vmatprep.mubr.bf16.mxu0 %v2240
        %7081 = vmatmul.mubr.bf16.gmra.mrb[0].mxu0 %v2176
        %v7082 = vpop.f32.mrb[0].mxu0
        %v7083 = vadd.f32 0.0, %v7082
        %v7084 = vpop.f32.mrb[0].mxu0
        %v7085 = vpop.f32.mrb[0].mxu0
        %v7086 = vadd.f32 0.0, %v7085
        %v7087 = vpop.f32.mrb[0].mxu0
        %7088 = vmatprep.mubr.bf16.mxu0 %v2243
        %7089 = vmatmul.mubr.bf16.gmra.mrb[0].mxu0 %v2179
        %v7090 = vpop.f32.mrb[0].mxu0
        %v7091 = vadd.f32 0.0, %v7090
        %v7092 = vpop.f32.mrb[0].mxu0
        %v7093 = vpop.f32.mrb[0].mxu0
        %v7094 = vadd.f32 0.0, %v7093
        %v7095 = vpop.f32.mrb[0].mxu0
        %7096 = vmatprep.mubr.bf16.mxu0 %v2246
        %7097 = vmatmul.mubr.bf16.gmra.mrb[0].mxu0 %v2182
        %v7098 = vpop.f32.mrb[0].mxu0
        %v7099 = vadd.f32 0.0, %v7098
        %v7100 = vpop.f32.mrb[0].mxu0
        %v7101 = vpop.f32.mrb[0].mxu0
        %v7102 = vadd.f32 0.0, %v7101
        %v7103 = vpop.f32.mrb[0].mxu0
        %7104 = vmatprep.mubr.bf16.mxu0 %v2249
        %7105 = vmatmul.mubr.bf16.gmra.mrb[0].mxu0 %v2185
        %v7106 = vpop.f32.mrb[0].mxu0
        %v7107 = vadd.f32 0.0, %v7106
        %v7108 = vpop.f32.mrb[0].mxu0
        %v7109 = vpop.f32.mrb[0].mxu0
        %v7110 = vadd.f32 0.0, %v7109
        %v7111 = vpop.f32.mrb[0].mxu0
        %7112 = vmatprep.mubr.bf16.mxu0 %v2252
        %7113 = vmatmul.mubr.bf16.gmra.mrb[0].mxu0 %v2188
        %v7114 = vpop.f32.mrb[0].mxu0
        %v7115 = vadd.f32 0.0, %v7114
        %v7116 = vpop.f32.mrb[0].mxu0
        %v7117 = vpop.f32.mrb[0].mxu0
        %v7118 = vadd.f32 0.0, %v7117
        %v7119 = vpop.f32.mrb[0].mxu0
        %7120 = vmatprep.mubr.bf16.mxu0 %v2255
        %7121 = vmatmul.mubr.bf16.gmra.mrb[0].mxu0 %v2191
        %v7122 = vpop.f32.mrb[0].mxu0
        %v7123 = vadd.f32 0.0, %v7122
        %v7124 = vpop.f32.mrb[0].mxu0
        %v7125 = vpop.f32.mrb[0].mxu0
        %v7126 = vadd.f32 0.0, %v7125
        %v7127 = vpop.f32.mrb[0].mxu0
        %7128 = vdwg.mxu0
        %7129 = vmatprep.subr.bf16.mxu0 0
        %7130 = vmatpush1.bf16.msra.mxu0 %v6720
        %7131 = vmatprep.subr.bf16.mxu0 0
        %7132 = vmatpush1.bf16.msra.mxu0 %v6723
        %7133 = vmatprep.subr.bf16.mxu0 0
        %7134 = vmatpush1.bf16.msra.mxu0 %v6726
        %7135 = vmatprep.subr.bf16.mxu0 0
        %7136 = vmatpush1.bf16.msra.mxu0 %v6729
        %7137 = vmatprep.subr.bf16.mxu0 0
        %7138 = vmatpush1.bf16.msra.mxu0 0
        %7139 = vmatprep.subr.bf16.mxu0 0
        %7140 = vmatpush1.bf16.msra.mxu0 0
        %7141 = vmatprep.subr.bf16.mxu0 0
        %7142 = vmatpush1.bf16.msra.mxu0 0
        %7143 = vmatprep.subr.bf16.mxu0 0
        %7144 = vmatpush1.bf16.msra.mxu0 0
        %7145 = vmatprep.subr.bf16.mxu0 0
        %7146 = vmatpush1.bf16.msra.mxu0 0
        %7147 = vmatprep.subr.bf16.mxu0 0
        %7148 = vmatpush1.bf16.msra.mxu0 0
        %7149 = vmatprep.subr.bf16.mxu0 0
        %7150 = vmatpush1.bf16.msra.mxu0 0
        %7151 = vmatprep.subr.bf16.mxu0 0
        %7152 = vmatpush1.bf16.msra.mxu0 0
        %7153 = vmatprep.subr.bf16.mxu0 0
        %7154 = vmatpush1.bf16.msra.mxu0 0
        %7155 = vmatprep.subr.bf16.mxu0 0
        %7156 = vmatpush1.bf16.msra.mxu0 0
        %7157 = vmatprep.subr.bf16.mxu0 0
        %7158 = vmatpush1.bf16.msra.mxu0 0
        %7159 = vmatprep.subr.bf16.mxu0 0
        %7160 = vmatpush1.bf16.msra.mxu0 0
        %7161 = vmatprep.mubr.bf16.mxu0 0
        %7162 = vmatmul.mubr.bf16.gmra.mrb[0].mxu0 %v6790
        %v7163 = vpop.f32.mrb[0].mxu0
        %v7164 = vadd.f32 %v7067, %v7163
        %v7165 = vpop.f32.mrb[0].mxu0
        %v7166 = vpop.f32.mrb[0].mxu0
        %v7167 = vadd.f32 %v7070, %v7166
        %v7168 = vpop.f32.mrb[0].mxu0
        %7169 = vmatprep.mubr.bf16.mxu0 0
        %7170 = vmatmul.mubr.bf16.gmra.mrb[0].mxu0 %v6792
        %v7171 = vpop.f32.mrb[0].mxu0
        %v7172 = vadd.f32 %v7075, %v7171
        %v7173 = vpop.f32.mrb[0].mxu0
        %v7174 = vpop.f32.mrb[0].mxu0
        %v7175 = vadd.f32 %v7078, %v7174
        %v7176 = vpop.f32.mrb[0].mxu0
        %7177 = vmatprep.mubr.bf16.mxu0 0
        %7178 = vmatmul.mubr.bf16.gmra.mrb[0].mxu0 %v6794
        %v7179 = vpop.f32.mrb[0].mxu0
        %v7180 = vadd.f32 %v7083, %v7179
        %v7181 = vpop.f32.mrb[0].mxu0
        %v7182 = vpop.f32.mrb[0].mxu0
        %v7183 = vadd.f32 %v7086, %v7182
        %v7184 = vpop.f32.mrb[0].mxu0
        %7185 = vmatprep.mubr.bf16.mxu0 0
        %7186 = vmatmul.mubr.bf16.gmra.mrb[0].mxu0 %v6796
        %v7187 = vpop.f32.mrb[0].mxu0
        %v7188 = vadd.f32 %v7091, %v7187
        %v7189 = vpop.f32.mrb[0].mxu0
        %v7190 = vpop.f32.mrb[0].mxu0
        %v7191 = vadd.f32 %v7094, %v7190
        %v7192 = vpop.f32.mrb[0].mxu0
        %7193 = vmatprep.mubr.bf16.mxu0 0
        %7194 = vmatmul.mubr.bf16.gmra.mrb[0].mxu0 %v6798
        %v7195 = vpop.f32.mrb[0].mxu0
        %v7196 = vadd.f32 %v7099, %v7195
        %v7197 = vpop.f32.mrb[0].mxu0
        %v7198 = vpop.f32.mrb[0].mxu0
        %v7199 = vadd.f32 %v7102, %v7198
        %v7200 = vpop.f32.mrb[0].mxu0
        %7201 = vmatprep.mubr.bf16.mxu0 0
        %7202 = vmatmul.mubr.bf16.gmra.mrb[0].mxu0 %v6800
        %v7203 = vpop.f32.mrb[0].mxu0
        %v7204 = vadd.f32 %v7107, %v7203
        %v7205 = vpop.f32.mrb[0].mxu0
        %v7206 = vpop.f32.mrb[0].mxu0
        %v7207 = vadd.f32 %v7110, %v7206
        %v7208 = vpop.f32.mrb[0].mxu0
        %7209 = vmatprep.mubr.bf16.mxu0 0
        %7210 = vmatmul.mubr.bf16.gmra.mrb[0].mxu0 %v6802
        %v7211 = vpop.f32.mrb[0].mxu0
        %v7212 = vadd.f32 %v7115, %v7211
        %v7213 = vpop.f32.mrb[0].mxu0
        %v7214 = vpop.f32.mrb[0].mxu0
        %v7215 = vadd.f32 %v7118, %v7214
        %v7216 = vpop.f32.mrb[0].mxu0
        %7217 = vmatprep.mubr.bf16.mxu0 0
        %7218 = vmatmul.mubr.bf16.gmra.mrb[0].mxu0 %v6804
        %v7219 = vpop.f32.mrb[0].mxu0
        %v7220 = vadd.f32 %v7123, %v7219
        %v7221 = vpop.f32.mrb[0].mxu0
        %v7222 = vpop.f32.mrb[0].mxu0
        %v7223 = vadd.f32 %v7126, %v7222
        %v7224 = vpop.f32.mrb[0].mxu0
        %7225 = vdwg.mxu0
        %vm7226 = vcmp.lt.s32.totalorder %v2274, 7
        %vm7227 = vcmp.lt.s32.totalorder %v2275, 7
        %v7228 = vsel %vm7226, 1, 0
        %v7229 = vsel %vm7227, 1, 0
        %vm7230 = vcmp.eq.s32.totalorder %v7228, 1
        %vm7231 = vcmp.eq.s32.totalorder %v7229, 1
        %v7232 = vsel %vm7230, %v6954, -1e+30
        %v7233 = vsel %vm7230, %v6956, -1e+30
        %v7234 = vsel %vm7230, %v7164, -1e+30
        %v7235 = vsel %vm7231, %v6958, -1e+30
        %v7236 = vsel %vm7231, %v6960, -1e+30
        %v7237 = vsel %vm7231, %v7167, -1e+30
        %v7238 = vsel %vm7230, %v6964, -1e+30
        %v7239 = vsel %vm7230, %v6966, -1e+30
        %v7240 = vsel %vm7230, %v7172, -1e+30
        %v7241 = vsel %vm7231, %v6968, -1e+30
        %v7242 = vsel %vm7231, %v6970, -1e+30
        %v7243 = vsel %vm7231, %v7175, -1e+30
        %v7244 = vsel %vm7230, %v6974, -1e+30
        %v7245 = vsel %vm7230, %v6976, -1e+30
        %v7246 = vsel %vm7230, %v7180, -1e+30
        %v7247 = vsel %vm7231, %v6978, -1e+30
        %v7248 = vsel %vm7231, %v6980, -1e+30
        %v7249 = vsel %vm7231, %v7183, -1e+30
        %v7250 = vsel %vm7230, %v6984, -1e+30
        %v7251 = vsel %vm7230, %v6986, -1e+30
        %v7252 = vsel %vm7230, %v7188, -1e+30
        %v7253 = vsel %vm7231, %v6988, -1e+30
        %v7254 = vsel %vm7231, %v6990, -1e+30
        %v7255 = vsel %vm7231, %v7191, -1e+30
        %v7256 = vsel %vm7230, %v6994, -1e+30
        %v7257 = vsel %vm7230, %v6996, -1e+30
        %v7258 = vsel %vm7230, %v7196, -1e+30
        %v7259 = vsel %vm7231, %v6998, -1e+30
        %v7260 = vsel %vm7231, %v7000, -1e+30
        %v7261 = vsel %vm7231, %v7199, -1e+30
        %v7262 = vsel %vm7230, %v7004, -1e+30
        %v7263 = vsel %vm7230, %v7006, -1e+30
        %v7264 = vsel %vm7230, %v7204, -1e+30
        %v7265 = vsel %vm7231, %v7008, -1e+30
        %v7266 = vsel %vm7231, %v7010, -1e+30
        %v7267 = vsel %vm7231, %v7207, -1e+30
        %v7268 = vsel %vm7230, %v7014, -1e+30
        %v7269 = vsel %vm7230, %v7016, -1e+30
        %v7270 = vsel %vm7230, %v7212, -1e+30
        %v7271 = vsel %vm7231, %v7018, -1e+30
        %v7272 = vsel %vm7231, %v7020, -1e+30
        %v7273 = vsel %vm7231, %v7215, -1e+30
        %v7274 = vsel %vm7230, %v7024, -1e+30
        %v7275 = vsel %vm7230, %v7026, -1e+30
        %v7276 = vsel %vm7230, %v7220, -1e+30
        %v7277 = vsel %vm7231, %v7028, -1e+30
        %v7278 = vsel %vm7231, %v7030, -1e+30
        %v7279 = vsel %vm7231, %v7223, -1e+30
        %v7280 = vmax.f32 %v7232, %v7235
        %v7281 = vrot.slane %v7280, 4
        %v7282 = vmax.f32 %v7280, %v7281
        %v7283 = vrot.slane %v7282, 2
        %v7284 = vmax.f32 %v7282, %v7283
        %v7285 = vrot.slane %v7284, 1
        %v7286 = vmax.f32 %v7284, %v7285
        %v7287 = vmax.f32 %v7233, %v7236
        %v7288 = vrot.slane %v7287, 4
        %v7289 = vmax.f32 %v7287, %v7288
        %v7290 = vrot.slane %v7289, 2
        %v7291 = vmax.f32 %v7289, %v7290
        %v7292 = vrot.slane %v7291, 1
        %v7293 = vmax.f32 %v7291, %v7292
        %v7294 = vmax.f32 %v7234, %v7237
        %v7295 = vrot.slane %v7294, 4
        %v7296 = vmax.f32 %v7294, %v7295
        %v7297 = vrot.slane %v7296, 2
        %v7298 = vmax.f32 %v7296, %v7297
        %v7299 = vrot.slane %v7298, 1
        %v7300 = vmax.f32 %v7298, %v7299
        %v7301 = vmax.f32 %v7238, %v7241
        %v7302 = vrot.slane %v7301, 4
        %v7303 = vmax.f32 %v7301, %v7302
        %v7304 = vrot.slane %v7303, 2
        %v7305 = vmax.f32 %v7303, %v7304
        %v7306 = vrot.slane %v7305, 1
        %v7307 = vmax.f32 %v7305, %v7306
        %v7308 = vmax.f32 %v7239, %v7242
        %v7309 = vrot.slane %v7308, 4
        %v7310 = vmax.f32 %v7308, %v7309
        %v7311 = vrot.slane %v7310, 2
        %v7312 = vmax.f32 %v7310, %v7311
        %v7313 = vrot.slane %v7312, 1
        %v7314 = vmax.f32 %v7312, %v7313
        %v7315 = vmax.f32 %v7240, %v7243
        %v7316 = vrot.slane %v7315, 4
        %v7317 = vmax.f32 %v7315, %v7316
        %v7318 = vrot.slane %v7317, 2
        %v7319 = vmax.f32 %v7317, %v7318
        %v7320 = vrot.slane %v7319, 1
        %v7321 = vmax.f32 %v7319, %v7320
        %v7322 = vmax.f32 %v7244, %v7247
        %v7323 = vrot.slane %v7322, 4
        %v7324 = vmax.f32 %v7322, %v7323
        %v7325 = vrot.slane %v7324, 2
        %v7326 = vmax.f32 %v7324, %v7325
        %v7327 = vrot.slane %v7326, 1
        %v7328 = vmax.f32 %v7326, %v7327
        %v7329 = vmax.f32 %v7245, %v7248
        %v7330 = vrot.slane %v7329, 4
        %v7331 = vmax.f32 %v7329, %v7330
        %v7332 = vrot.slane %v7331, 2
        %v7333 = vmax.f32 %v7331, %v7332
        %v7334 = vrot.slane %v7333, 1
        %v7335 = vmax.f32 %v7333, %v7334
        %v7336 = vmax.f32 %v7246, %v7249
        %v7337 = vrot.slane %v7336, 4
        %v7338 = vmax.f32 %v7336, %v7337
        %v7339 = vrot.slane %v7338, 2
        %v7340 = vmax.f32 %v7338, %v7339
        %v7341 = vrot.slane %v7340, 1
        %v7342 = vmax.f32 %v7340, %v7341
        %v7343 = vmax.f32 %v7250, %v7253
        %v7344 = vrot.slane %v7343, 4
        %v7345 = vmax.f32 %v7343, %v7344
        %v7346 = vrot.slane %v7345, 2
        %v7347 = vmax.f32 %v7345, %v7346
        %v7348 = vrot.slane %v7347, 1
        %v7349 = vmax.f32 %v7347, %v7348
        %v7350 = vmax.f32 %v7251, %v7254
        %v7351 = vrot.slane %v7350, 4
        %v7352 = vmax.f32 %v7350, %v7351
        %v7353 = vrot.slane %v7352, 2
        %v7354 = vmax.f32 %v7352, %v7353
        %v7355 = vrot.slane %v7354, 1
        %v7356 = vmax.f32 %v7354, %v7355
        %v7357 = vmax.f32 %v7252, %v7255
        %v7358 = vrot.slane %v7357, 4
        %v7359 = vmax.f32 %v7357, %v7358
        %v7360 = vrot.slane %v7359, 2
        %v7361 = vmax.f32 %v7359, %v7360
        %v7362 = vrot.slane %v7361, 1
        %v7363 = vmax.f32 %v7361, %v7362
        %v7364 = vmax.f32 %v7256, %v7259
        %v7365 = vrot.slane %v7364, 4
        %v7366 = vmax.f32 %v7364, %v7365
        %v7367 = vrot.slane %v7366, 2
        %v7368 = vmax.f32 %v7366, %v7367
        %v7369 = vrot.slane %v7368, 1
        %v7370 = vmax.f32 %v7368, %v7369
        %v7371 = vmax.f32 %v7257, %v7260
        %v7372 = vrot.slane %v7371, 4
        %v7373 = vmax.f32 %v7371, %v7372
        %v7374 = vrot.slane %v7373, 2
        %v7375 = vmax.f32 %v7373, %v7374
        %v7376 = vrot.slane %v7375, 1
        %v7377 = vmax.f32 %v7375, %v7376
        %v7378 = vmax.f32 %v7258, %v7261
        %v7379 = vrot.slane %v7378, 4
        %v7380 = vmax.f32 %v7378, %v7379
        %v7381 = vrot.slane %v7380, 2
        %v7382 = vmax.f32 %v7380, %v7381
        %v7383 = vrot.slane %v7382, 1
        %v7384 = vmax.f32 %v7382, %v7383
        %v7385 = vmax.f32 %v7262, %v7265
        %v7386 = vrot.slane %v7385, 4
        %v7387 = vmax.f32 %v7385, %v7386
        %v7388 = vrot.slane %v7387, 2
        %v7389 = vmax.f32 %v7387, %v7388
        %v7390 = vrot.slane %v7389, 1
        %v7391 = vmax.f32 %v7389, %v7390
        %v7392 = vmax.f32 %v7263, %v7266
        %v7393 = vrot.slane %v7392, 4
        %v7394 = vmax.f32 %v7392, %v7393
        %v7395 = vrot.slane %v7394, 2
        %v7396 = vmax.f32 %v7394, %v7395
        %v7397 = vrot.slane %v7396, 1
        %v7398 = vmax.f32 %v7396, %v7397
        %v7399 = vmax.f32 %v7264, %v7267
        %v7400 = vrot.slane %v7399, 4
        %v7401 = vmax.f32 %v7399, %v7400
        %v7402 = vrot.slane %v7401, 2
        %v7403 = vmax.f32 %v7401, %v7402
        %v7404 = vrot.slane %v7403, 1
        %v7405 = vmax.f32 %v7403, %v7404
        %v7406 = vmax.f32 %v7268, %v7271
        %v7407 = vrot.slane %v7406, 4
        %v7408 = vmax.f32 %v7406, %v7407
        %v7409 = vrot.slane %v7408, 2
        %v7410 = vmax.f32 %v7408, %v7409
        %v7411 = vrot.slane %v7410, 1
        %v7412 = vmax.f32 %v7410, %v7411
        %v7413 = vmax.f32 %v7269, %v7272
        %v7414 = vrot.slane %v7413, 4
        %v7415 = vmax.f32 %v7413, %v7414
        %v7416 = vrot.slane %v7415, 2
        %v7417 = vmax.f32 %v7415, %v7416
        %v7418 = vrot.slane %v7417, 1
        %v7419 = vmax.f32 %v7417, %v7418
        %v7420 = vmax.f32 %v7270, %v7273
        %v7421 = vrot.slane %v7420, 4
        %v7422 = vmax.f32 %v7420, %v7421
        %v7423 = vrot.slane %v7422, 2
        %v7424 = vmax.f32 %v7422, %v7423
        %v7425 = vrot.slane %v7424, 1
        %v7426 = vmax.f32 %v7424, %v7425
        %v7427 = vmax.f32 %v7274, %v7277
        %v7428 = vrot.slane %v7427, 4
        %v7429 = vmax.f32 %v7427, %v7428
        %v7430 = vrot.slane %v7429, 2
        %v7431 = vmax.f32 %v7429, %v7430
        %v7432 = vrot.slane %v7431, 1
        %v7433 = vmax.f32 %v7431, %v7432
        %v7434 = vmax.f32 %v7275, %v7278
        %v7435 = vrot.slane %v7434, 4
        %v7436 = vmax.f32 %v7434, %v7435
        %v7437 = vrot.slane %v7436, 2
        %v7438 = vmax.f32 %v7436, %v7437
        %v7439 = vrot.slane %v7438, 1
        %v7440 = vmax.f32 %v7438, %v7439
        %v7441 = vmax.f32 %v7276, %v7279
        %v7442 = vrot.slane %v7441, 4
        %v7443 = vmax.f32 %v7441, %v7442
        %v7444 = vrot.slane %v7443, 2
        %v7445 = vmax.f32 %v7443, %v7444
        %v7446 = vrot.slane %v7445, 1
        %v7447 = vmax.f32 %v7445, %v7446
        %s7448 = scalar_lea.vmem [#allocation2], 28
        %v7449 = vld [vmem:[%s7448] ss:$8 sm:$0x7]
        %v7451 = vlaneseq
        %v7452 = vshrl.u32 %v7451, 7
        %v7453 = vsub.s32 0, %v7452
        %v7454 = vrot.slane %v7449, %v7453
        %v7455 = vlaneseq
        %v7456 = vshrl.u32 %v7455, 7
        %v7457 = vsub.s32 1, %v7456
        %v7458 = vrot.slane %v7449, %v7457
        %v7459 = vlaneseq
        %v7460 = vshrl.u32 %v7459, 7
        %v7461 = vsub.s32 2, %v7460
        %v7462 = vrot.slane %v7449, %v7461
        %v7466 = vadd.f32 %v7286, %v7454
        %v7467 = vadd.f32 %v7293, %v7458
        %v7468 = vadd.f32 %v7300, %v7462
        %v7469 = vadd.f32 %v7307, %v7454
        %v7470 = vadd.f32 %v7314, %v7458
        %v7471 = vadd.f32 %v7321, %v7462
        %v7472 = vadd.f32 %v7328, %v7454
        %v7473 = vadd.f32 %v7335, %v7458
        %v7474 = vadd.f32 %v7342, %v7462
        %v7475 = vadd.f32 %v7349, %v7454
        %v7476 = vadd.f32 %v7356, %v7458
        %v7477 = vadd.f32 %v7363, %v7462
        %v7478 = vadd.f32 %v7370, %v7454
        %v7479 = vadd.f32 %v7377, %v7458
        %v7480 = vadd.f32 %v7384, %v7462
        %v7481 = vadd.f32 %v7391, %v7454
        %v7482 = vadd.f32 %v7398, %v7458
        %v7483 = vadd.f32 %v7405, %v7462
        %v7484 = vadd.f32 %v7412, %v7454
        %v7485 = vadd.f32 %v7419, %v7458
        %v7486 = vadd.f32 %v7426, %v7462
        %v7487 = vadd.f32 %v7433, %v7454
        %v7488 = vadd.f32 %v7440, %v7458
        %v7489 = vadd.f32 %v7447, %v7462
        %v7490 = vmul.f32 %v7466, %v1426
        %v7491 = vmul.f32 %v7467, %v1428
        %v7492 = vmul.f32 %v7468, %v1467
        %v7493 = vmul.f32 %v7469, %v2809
        %v7494 = vmul.f32 %v7470, %v2810
        %v7495 = vmul.f32 %v7471, %v2811
        %v7496 = vmul.f32 %v7472, %v2812
        %v7497 = vmul.f32 %v7473, %v2813
        %v7498 = vmul.f32 %v7474, %v2814
        %v7499 = vmul.f32 %v7475, %v2815
        %v7500 = vmul.f32 %v7476, %v2816
        %v7501 = vmul.f32 %v7477, %v2817
        %v7502 = vmul.f32 %v7478, %v2818
        %v7503 = vmul.f32 %v7479, %v2819
        %v7504 = vmul.f32 %v7480, %v2820
        %v7505 = vmul.f32 %v7481, %v2821
        %v7506 = vmul.f32 %v7482, %v2822
        %v7507 = vmul.f32 %v7483, %v2823
        %v7508 = vmul.f32 %v7484, %v2824
        %v7509 = vmul.f32 %v7485, %v2825
        %v7510 = vmul.f32 %v7486, %v2826
        %v7511 = vmul.f32 %v7487, %v2827
        %v7512 = vmul.f32 %v7488, %v2828
        %v7513 = vmul.f32 %v7489, %v2829
        %v7514 = vpack.c.bf16 %v7490, %v7490
        %v7515 = vpack.c.bf16 %v7491, %v7491
        %v7516 = vpack.c.bf16 %v7492, %v7492
        %v7517 = vpack.c.bf16 %v7493, %v7493
        %v7518 = vpack.c.bf16 %v7494, %v7494
        %v7519 = vpack.c.bf16 %v7495, %v7495
        %v7520 = vpack.c.bf16 %v7496, %v7496
        %v7521 = vpack.c.bf16 %v7497, %v7497
        %v7522 = vpack.c.bf16 %v7498, %v7498
        %v7523 = vpack.c.bf16 %v7499, %v7499
        %v7524 = vpack.c.bf16 %v7500, %v7500
        %v7525 = vpack.c.bf16 %v7501, %v7501
        %v7526 = vpack.c.bf16 %v7502, %v7502
        %v7527 = vpack.c.bf16 %v7503, %v7503
        %v7528 = vpack.c.bf16 %v7504, %v7504
        %v7529 = vpack.c.bf16 %v7505, %v7505
        %v7530 = vpack.c.bf16 %v7506, %v7506
        %v7531 = vpack.c.bf16 %v7507, %v7507
        %v7532 = vpack.c.bf16 %v7508, %v7508
        %v7533 = vpack.c.bf16 %v7509, %v7509
        %v7534 = vpack.c.bf16 %v7510, %v7510
        %v7535 = vpack.c.bf16 %v7511, %v7511
        %v7536 = vpack.c.bf16 %v7512, %v7512
        %v7537 = vpack.c.bf16 %v7513, %v7513
        %v7538 = vld [vmem:[%s8 + $0x300] sm:$0xf]
        %v7539 = vld [vmem:[%s8 + $0x304] sm:$0xf]
        %v7540 = vld [vmem:[%s8 + $0x308] sm:$0xf]
        %v7541 = vld [vmem:[%s8 + $0x30c] sm:$0xf]
        %v7542 = vld [vmem:[%s8 + $0x310] sm:$0xf]
        %v7543 = vld [vmem:[%s8 + $0x314] sm:$0xf]
        %v7544 = vld [vmem:[%s8 + $0x318] sm:$0xf]
        %v7545 = vld [vmem:[%s8 + $0x31c] sm:$0xf]
        %v7546 = vld [vmem:[%s8 + $0x320] sm:$0xf]
        %v7547 = vld [vmem:[%s8 + $0x324] sm:$0xf]
        %v7548 = vld [vmem:[%s8 + $0x328] sm:$0xf]
        %v7549 = vld [vmem:[%s8 + $0x32c] sm:$0xf]
        %v7550 = vld [vmem:[%s8 + $0x330] sm:$0xf]
        %v7551 = vld [vmem:[%s8 + $0x334] sm:$0xf]
        %v7552 = vld [vmem:[%s8 + $0x338] sm:$0xf]
        %v7553 = vld [vmem:[%s8 + $0x33c] sm:$0xf]
        %v7554 = vld [vmem:[%s8 + $0x340] sm:$0xf]
        %v7555 = vld [vmem:[%s8 + $0x344] sm:$0xf]
        %v7556 = vld [vmem:[%s8 + $0x348] sm:$0xf]
        %v7557 = vld [vmem:[%s8 + $0x34c] sm:$0xf]
        %v7558 = vld [vmem:[%s8 + $0x350] sm:$0xf]
        %v7559 = vld [vmem:[%s8 + $0x354] sm:$0xf]
        %v7560 = vld [vmem:[%s8 + $0x358] sm:$0xf]
        %v7561 = vld [vmem:[%s8 + $0x35c] sm:$0xf]
        %v7562 = vld [vmem:[%s8 + $0x360] sm:$0xf]
        %v7563 = vld [vmem:[%s8 + $0x364] sm:$0xf]
        %v7564 = vld [vmem:[%s8 + $0x368] sm:$0xf]
        %v7565 = vld [vmem:[%s8 + $0x36c] sm:$0xf]
        %v7566 = vld [vmem:[%s8 + $0x370] sm:$0xf]
        %v7567 = vld [vmem:[%s8 + $0x374] sm:$0xf]
        %v7568 = vld [vmem:[%s8 + $0x378] sm:$0xf]
        %v7569 = vld [vmem:[%s8 + $0x37c] sm:$0xf]
        %v7570 = vld [vmem:[%s8 + $0x380] sm:$0xf]
        %v7571 = vld [vmem:[%s8 + $0x384] sm:$0xf]
        %v7572 = vld [vmem:[%s8 + $0x388] sm:$0xf]
        %v7573 = vld [vmem:[%s8 + $0x38c] sm:$0xf]
        %v7574 = vld [vmem:[%s8 + $0x390] sm:$0xf]
        %v7575 = vld [vmem:[%s8 + $0x394] sm:$0xf]
        %v7576 = vld [vmem:[%s8 + $0x398] sm:$0xf]
        %v7577 = vld [vmem:[%s8 + $0x39c] sm:$0xf]
        %v7578 = vld [vmem:[%s8 + $0x3a0] sm:$0xf]
        %v7579 = vld [vmem:[%s8 + $0x3a4] sm:$0xf]
        %v7580 = vld [vmem:[%s8 + $0x3a8] sm:$0xf]
        %v7581 = vld [vmem:[%s8 + $0x3ac] sm:$0xf]
        %v7582 = vld [vmem:[%s8 + $0x3b0] sm:$0xf]
        %v7583 = vld [vmem:[%s8 + $0x3b4] sm:$0xf]
        %v7584 = vld [vmem:[%s8 + $0x3b8] sm:$0xf]
        %v7585 = vld [vmem:[%s8 + $0x3bc] sm:$0xf]
        %v7610 = vunpack.c.l.b16 %v7514
        %v7611 = vunpack.c.l.b16 %v7515
        %v7612 = vunpack.c.l.b16 %v7516
        %v7613 = vunpack.c.l.b16 %v7517
        %v7614 = vunpack.c.l.b16 %v7518
        %v7615 = vunpack.c.l.b16 %v7519
        %v7616 = vunpack.c.l.b16 %v7520
        %v7617 = vunpack.c.l.b16 %v7521
        %v7618 = vunpack.c.l.b16 %v7522
        %v7619 = vunpack.c.l.b16 %v7523
        %v7620 = vunpack.c.l.b16 %v7524
        %v7621 = vunpack.c.l.b16 %v7525
        %v7622 = vunpack.c.l.b16 %v7526
        %v7623 = vunpack.c.l.b16 %v7527
        %v7624 = vunpack.c.l.b16 %v7528
        %v7625 = vunpack.c.l.b16 %v7529
        %v7626 = vunpack.c.l.b16 %v7530
        %v7627 = vunpack.c.l.b16 %v7531
        %v7628 = vunpack.c.l.b16 %v7532
        %v7629 = vunpack.c.l.b16 %v7533
        %v7630 = vunpack.c.l.b16 %v7534
        %v7631 = vunpack.c.l.b16 %v7535
        %v7632 = vunpack.c.l.b16 %v7536
        %v7633 = vunpack.c.l.b16 %v7537
        %v7634 = vrot.slane %v7613, 7
        %v7635 = vsel %vm825, %v7634, %v7610
        %v7636 = vrot.slane %v7616, 6
        %v7637 = vsel %vm827, %v7636, %v7635
        %v7638 = vrot.slane %v7619, 5
        %v7639 = vsel %vm829, %v7638, %v7637
        %v7640 = vrot.slane %v7622, 4
        %v7641 = vsel %vm831, %v7640, %v7639
        %v7642 = vrot.slane %v7625, 3
        %v7643 = vsel %vm833, %v7642, %v7641
        %v7644 = vrot.slane %v7628, 2
        %v7645 = vsel %vm835, %v7644, %v7643
        %v7646 = vrot.slane %v7631, 1
        %v7647 = vsel %vm837, %v7646, %v7645
        %v7648 = vrot.slane %v7614, 7
        %v7649 = vsel %vm825, %v7648, %v7611
        %v7650 = vrot.slane %v7617, 6
        %v7651 = vsel %vm827, %v7650, %v7649
        %v7652 = vrot.slane %v7620, 5
        %v7653 = vsel %vm829, %v7652, %v7651
        %v7654 = vrot.slane %v7623, 4
        %v7655 = vsel %vm831, %v7654, %v7653
        %v7656 = vrot.slane %v7626, 3
        %v7657 = vsel %vm833, %v7656, %v7655
        %v7658 = vrot.slane %v7629, 2
        %v7659 = vsel %vm835, %v7658, %v7657
        %v7660 = vrot.slane %v7632, 1
        %v7661 = vsel %vm837, %v7660, %v7659
        %v7662 = vrot.slane %v7615, 7
        %v7663 = vsel %vm825, %v7662, %v7612
        %v7664 = vrot.slane %v7618, 6
        %v7665 = vsel %vm827, %v7664, %v7663
        %v7666 = vrot.slane %v7621, 5
        %v7667 = vsel %vm829, %v7666, %v7665
        %v7668 = vrot.slane %v7624, 4
        %v7669 = vsel %vm831, %v7668, %v7667
        %v7670 = vrot.slane %v7627, 3
        %v7671 = vsel %vm833, %v7670, %v7669
        %v7672 = vrot.slane %v7630, 2
        %v7673 = vsel %vm835, %v7672, %v7671
        %v7674 = vrot.slane %v7633, 1
        %v7675 = vsel %vm837, %v7674, %v7673
        %v7676 = vpack.c.b16 %v7647, %v7647
        %v7677 = vpack.c.b16 %v7661, %v7661
        %v7678 = vpack.c.b16 %v7675, %v7675
        %v7730 = vunpack.c.l.b16 %v7538
        %v7731 = vunpack.c.l.b16 %v7539
        %v7732 = vunpack.c.l.b16 %v7540
        %v7733 = vunpack.c.l.b16 %v7541
        %v7734 = vunpack.c.l.b16 %v7542
        %v7735 = vunpack.c.l.b16 %v7543
        %v7736 = vunpack.c.l.b16 %v7544
        %v7737 = vunpack.c.l.b16 %v7545
        %v7738 = vunpack.c.l.b16 %v7546
        %v7739 = vunpack.c.l.b16 %v7547
        %v7740 = vunpack.c.l.b16 %v7548
        %v7741 = vunpack.c.l.b16 %v7549
        %v7742 = vunpack.c.l.b16 %v7550
        %v7743 = vunpack.c.l.b16 %v7551
        %v7744 = vunpack.c.l.b16 %v7552
        %v7745 = vunpack.c.l.b16 %v7553
        %v7746 = vunpack.c.l.b16 %v7554
        %v7747 = vunpack.c.l.b16 %v7555
        %v7748 = vunpack.c.l.b16 %v7556
        %v7749 = vunpack.c.l.b16 %v7557
        %v7750 = vunpack.c.l.b16 %v7558
        %v7751 = vunpack.c.l.b16 %v7559
        %v7752 = vunpack.c.l.b16 %v7560
        %v7753 = vunpack.c.l.b16 %v7561
        %v7754 = vunpack.c.l.b16 %v7562
        %v7755 = vunpack.c.l.b16 %v7563
        %v7756 = vunpack.c.l.b16 %v7564
        %v7757 = vunpack.c.l.b16 %v7565
        %v7758 = vunpack.c.l.b16 %v7566
        %v7759 = vunpack.c.l.b16 %v7567
        %v7760 = vunpack.c.l.b16 %v7568
        %v7761 = vunpack.c.l.b16 %v7569
        %v7762 = vunpack.c.l.b16 %v7570
        %v7763 = vunpack.c.l.b16 %v7571
        %v7764 = vunpack.c.l.b16 %v7572
        %v7765 = vunpack.c.l.b16 %v7573
        %v7766 = vunpack.c.l.b16 %v7574
        %v7767 = vunpack.c.l.b16 %v7575
        %v7768 = vunpack.c.l.b16 %v7576
        %v7769 = vunpack.c.l.b16 %v7577
        %v7770 = vunpack.c.l.b16 %v7578
        %v7771 = vunpack.c.l.b16 %v7579
        %v7772 = vunpack.c.l.b16 %v7580
        %v7773 = vunpack.c.l.b16 %v7581
        %v7774 = vunpack.c.l.b16 %v7582
        %v7775 = vunpack.c.l.b16 %v7583
        %v7776 = vunpack.c.l.b16 %v7584
        %v7777 = vunpack.c.l.b16 %v7585
        %v7778 = vpack.c.b16 %v7731, %v7730
        %v7779 = vpack.c.b16 %v7733, %v7732
        %v7780 = vpack.c.b16 %v7735, %v7734
        %v7781 = vpack.c.b16 %v7737, %v7736
        %v7782 = vpack.c.b16 %v7739, %v7738
        %v7783 = vpack.c.b16 %v7741, %v7740
        %v7784 = vpack.c.b16 %v7743, %v7742
        %v7785 = vpack.c.b16 %v7745, %v7744
        %v7786 = vpack.c.b16 %v7747, %v7746
        %v7787 = vpack.c.b16 %v7749, %v7748
        %v7788 = vpack.c.b16 %v7751, %v7750
        %v7789 = vpack.c.b16 %v7753, %v7752
        %v7790 = vpack.c.b16 %v7755, %v7754
        %v7791 = vpack.c.b16 %v7757, %v7756
        %v7792 = vpack.c.b16 %v7759, %v7758
        %v7793 = vpack.c.b16 %v7761, %v7760
        %v7794 = vpack.c.b16 %v7763, %v7762
        %v7795 = vpack.c.b16 %v7765, %v7764
        %v7796 = vpack.c.b16 %v7767, %v7766
        %v7797 = vpack.c.b16 %v7769, %v7768
        %v7798 = vpack.c.b16 %v7771, %v7770
        %v7799 = vpack.c.b16 %v7773, %v7772
        %v7800 = vpack.c.b16 %v7775, %v7774
        %v7801 = vpack.c.b16 %v7777, %v7776
        %7826 = vmatprep.subr.bf16.mxu0 0
        %7827 = vmatpush1.bf16.msra.mxu0 %v7778
        %7828 = vmatprep.subr.bf16.mxu0 0
        %7829 = vmatpush1.bf16.msra.mxu0 %v7779
        %7830 = vmatprep.subr.bf16.mxu0 0
        %7831 = vmatpush1.bf16.msra.mxu0 %v7780
        %7832 = vmatprep.subr.bf16.mxu0 0
        %7833 = vmatpush1.bf16.msra.mxu0 %v7781
        %7834 = vmatprep.subr.bf16.mxu0 0
        %7835 = vmatpush1.bf16.msra.mxu0 %v7782
        %7836 = vmatprep.subr.bf16.mxu0 0
        %7837 = vmatpush1.bf16.msra.mxu0 %v7783
        %7838 = vmatprep.subr.bf16.mxu0 0
        %7839 = vmatpush1.bf16.msra.mxu0 %v7784
        %7840 = vmatprep.subr.bf16.mxu0 0
        %7841 = vmatpush1.bf16.msra.mxu0 %v7785
        %7842 = vmatprep.subr.bf16.mxu0 0
        %7843 = vmatpush1.bf16.msra.mxu0 %v7786
        %7844 = vmatprep.subr.bf16.mxu0 0
        %7845 = vmatpush1.bf16.msra.mxu0 %v7787
        %7846 = vmatprep.subr.bf16.mxu0 0
        %7847 = vmatpush1.bf16.msra.mxu0 %v7788
        %7848 = vmatprep.subr.bf16.mxu0 0
        %7849 = vmatpush1.bf16.msra.mxu0 %v7789
        %7850 = vmatprep.subr.bf16.mxu0 0
        %7851 = vmatpush1.bf16.msra.mxu0 %v7790
        %7852 = vmatprep.subr.bf16.mxu0 0
        %7853 = vmatpush1.bf16.msra.mxu0 %v7791
        %7854 = vmatprep.subr.bf16.mxu0 0
        %7855 = vmatpush1.bf16.msra.mxu0 %v7792
        %7856 = vmatprep.subr.bf16.mxu0 0
        %7857 = vmatpush1.bf16.msra.mxu0 %v7793
        %7858 = vmatprep.mubr.bf16.mxu0 %v7677
        %7859 = vmatmul.mubr.bf16.gmra.mrb[0].mxu0 %v7676
        %v7860 = vpop.f32.mrb[0].mxu0
        %v7861 = vadd.f32 0.0, %v7860
        %v7862 = vpop.f32.mrb[0].mxu0
        %v7863 = vpop.f32.mrb[0].mxu0
        %v7864 = vpop.f32.mrb[0].mxu0
        %7865 = vdwg.mxu0
        %7866 = vmatprep.subr.bf16.mxu0 0
        %7867 = vmatpush1.bf16.msra.mxu0 %v7794
        %7868 = vmatprep.subr.bf16.mxu0 0
        %7869 = vmatpush1.bf16.msra.mxu0 %v7795
        %7870 = vmatprep.subr.bf16.mxu0 0
        %7871 = vmatpush1.bf16.msra.mxu0 %v7796
        %7872 = vmatprep.subr.bf16.mxu0 0
        %7873 = vmatpush1.bf16.msra.mxu0 %v7797
        %7874 = vmatprep.subr.bf16.mxu0 0
        %7875 = vmatpush1.bf16.msra.mxu0 %v7798
        %7876 = vmatprep.subr.bf16.mxu0 0
        %7877 = vmatpush1.bf16.msra.mxu0 %v7799
        %7878 = vmatprep.subr.bf16.mxu0 0
        %7879 = vmatpush1.bf16.msra.mxu0 %v7800
        %7880 = vmatprep.subr.bf16.mxu0 0
        %7881 = vmatpush1.bf16.msra.mxu0 %v7801
        %7882 = vmatprep.subr.bf16.mxu0 0
        %7883 = vmatpush1.bf16.msra.mxu0 0
        %7884 = vmatprep.subr.bf16.mxu0 0
        %7885 = vmatpush1.bf16.msra.mxu0 0
        %7886 = vmatprep.subr.bf16.mxu0 0
        %7887 = vmatpush1.bf16.msra.mxu0 0
        %7888 = vmatprep.subr.bf16.mxu0 0
        %7889 = vmatpush1.bf16.msra.mxu0 0
        %7890 = vmatprep.subr.bf16.mxu0 0
        %7891 = vmatpush1.bf16.msra.mxu0 0
        %7892 = vmatprep.subr.bf16.mxu0 0
        %7893 = vmatpush1.bf16.msra.mxu0 0
        %7894 = vmatprep.subr.bf16.mxu0 0
        %7895 = vmatpush1.bf16.msra.mxu0 0
        %7896 = vmatprep.subr.bf16.mxu0 0
        %7897 = vmatpush1.bf16.msra.mxu0 0
        %7898 = vmatprep.mubr.bf16.mxu0 0
        %7899 = vmatmul.mubr.bf16.gmra.mrb[0].mxu0 %v7678
        %v7900 = vpop.f32.mrb[0].mxu0
        %v7901 = vadd.f32 %v7861, %v7900
        %v7902 = vpop.f32.mrb[0].mxu0
        %v7903 = vpop.f32.mrb[0].mxu0
        %v7904 = vpop.f32.mrb[0].mxu0
        %7905 = vdwg.mxu0
        %v7906 = vadd.f32 %v6389, %v7901
        %v7907 = vld [vmem:[#allocation2 + $0x3] ss:$0 sm:$0xff]
        %v7908 = vadd.f32 %v7906, %v7907
        %v7909 = vld [vmem:[#allocation2 + $0x4] ss:$0 sm:$0xff]
        %v7910 = vmul.f32 %v7908, %v7909
        %v7911 = vld [vmem:[#allocation2 + $0x5] ss:$0 sm:$0xff]
        %v7912 = vadd.f32 %v7910, %v7911
        %v7913 = vmax.f32 %v7912, 0.0
        %v7914 = vld [vmem:[#allocation2 + $0x6] ss:$0 sm:$0xff]
        %v7915 = vmul.f32 %v7913, %v7914
        %v7916 = vsel %vm498, %v7915, 0.0
        %7917 = vadd.xlane.f32.xlu0 %v7916
        %v7918 = vpop.xlane.xlu0 %7917
        %v7919 = vadd.f32 %v7918, %v465
        %v7920 = vsub.f32 0.0, %v7919
        %v7921 = vmul.f32 %v7920, 1.442695
        %v7922 = vpow.pop %v7921
        %v7923 = vadd.f32 %v7922, 1.0
        %v7924 = vrcp.pop %v7923
        %v7925 = vmin.f32 %v7924, 1.0
        %7927 = vrot.lane.b32.xlu0 %v7925, 127
        %v7928 = vpop.permute.xlu0 %7927
        %vm7930 = vcmask 7168
        %7931 = vst.msk [vmem:[%s397] sm:$0xff] %vm7930, %v7928
        %p7932 = scmp.lt.s32.totalorder %s22, 1
        %s7933 = scalar_select %p7932, %s22, 1
        %s7934 = smul.addr %s7933, 8
        %s7935 = scalar_lea.vmem %s9, %s7934
        // Predicated region
        $region65: #{tpu_custom_call.1} parent=55 // pred_check
          %p7936 = pneg %p244
        $region66: #{tpu_custom_call.1} parent=55 // pred_check_branch
          %7938 = sbr.rel (%p7936) target = $region68
        $region67: #{tpu_custom_call.1} parent=55 // pred_region
          _
        $region68: #{tpu_custom_call.1} parent=55 // pred_fallthru
          _
      $region56: #{tpu_custom_call.1} parent=5 // pred_fallthru
        _
      %p7939 = scmp.le.s32.totalorder 2, %s17
      // Predicated region
      $region69: #{tpu_custom_call.1} parent=5 // pred_check
        %p7940 = pneg %p7939
      $region70: #{tpu_custom_call.1} parent=5 // pred_check_branch
        %7942 = sbr.rel (%p7940) target = $region72
      $region71: #{tpu_custom_call.1} parent=5 // pred_region
        %s7943 = ssub.s32 %s17, 2
        // Predicated region
        $region73: #{tpu_custom_call.1} parent=71 // pred_check
          %p7944 = pneg %p250
        $region74: #{tpu_custom_call.1} parent=71 // pred_check_branch
          %7946 = sbr.rel (%p7944) target = $region76
        $region75: #{tpu_custom_call.1} parent=71 // pred_region
          %p7947 = scmp.lt.s32.totalorder %s23, 1
          %s7948 = scalar_select %p7947, %s23, 1
          %s7949 = smul.addr %s7948, 8
          %s7950 = scalar_lea.vmem %s9, %s7949
        $region76: #{tpu_custom_call.1} parent=71 // pred_fallthru
          _
      $region72: #{tpu_custom_call.1} parent=5 // pred_fallthru
        _
    $region6: #{tpu_custom_call.1} parent=1 // loop_footer
      %s21 = sadd.s32 1, %s17
    $region7: #{tpu_custom_call.1} parent=1 // loop_footer_branch
      %16 = sbr.rel target = $region3
    $region8: #{tpu_custom_call.1} parent=1 // loop_exit
      _
    %7951 = vsyncpa [#allocation3], 1
    %s7952 = scalar_lea.sflag [#allocation3], 1
    %7953 = vsyncpa %s7952, 1
    %7954 = vsyncpa [#allocation5], 1

</llo_original>
